<compile_context>
chip_gen: v6e
topology: v6e:2x2x1
jax: 0.10.0
libtpu: 0.0.40
codegen_flags: <defaults>
</compile_context>

<pallas_src>
import functools

import numpy as np
import jax
import jax.numpy as jnp
from jax import lax
from jax.experimental import pallas as pl
from jax.experimental.pallas import tpu as pltpu

# ----------------------------------------------------------------------------
# hyper / model config (small, deterministic, synthetic)
# ----------------------------------------------------------------------------
ADAPTIVE = True
ATTENTION = True
HIDDEN = [16, 32]
TCN_KERNEL = 5          # hyperparam_cfg['kernel_size']
ATT_KERNEL = 9          # conv_sa / conv_ta 1-D attention kernel (standard AAGCN)
VPAD = 128              # graph nodes padded to one full vreg of lanes
CFG = {
    "cls_task_names": {"obj_cat": True, "act_rec": True},
    "reg_task_names": {"obj_pose": True, "body_loc": True},
}


# ----------------------------------------------------------------------------
# the fused per-layer AAGCN kernel (everything for one sample stays in VMEM)
# ----------------------------------------------------------------------------
def _aagcn_layer_kernel(scal_ref, x_ref, w_ab_ref, b_ab_ref, pa_ref,
                        w_md_ref, sh_md_ref, mpool_ref, w_sa_ref, mta_ref,
                        w_fc1_ref, b_fc1_ref, w_fc2_ref, b_fc2_ref,
                        w_last_ref, sh_last_ref, o_ref, *, v_valid, attention):
    f32 = jnp.float32
    x = x_ref[0]                                    # (C*T, Vp) bf16, node layout
    ct, vp = x.shape
    it = w_ab_ref.shape[0] // 6                     # inter * T

    alpha = scal_ref[0]
    b_sa = scal_ref[1]
    b_ta = scal_ref[2]

    # --- adaptive embeddings (conv_a / conv_b, 3 subsets) : one matmul -------
    emb = jnp.dot(w_ab_ref[...], x, preferred_element_type=f32) + b_ab_ref[...]

    # --- data-dependent adjacency: 3 Grams, f32 accumulate, /(inter*T) here --
    grams = []
    for k in range(3):
        a_k = emb[k * it:(k + 1) * it, :]
        b_k = emb[(3 + k) * it:(4 + k) * it, :]
        grams.append(lax.dot_general(a_k, b_k, (((0,), (0,)), ((), ())),
                                     preferred_element_type=f32))
    gram = jnp.concatenate(grams, axis=1)           # (Vp, 3*Vp)
    a_eff = pa_ref[...] + alpha * jnp.tanh(gram * (1.0 / it))

    # --- graph conv: single (C*T, Vp) x (Vp, 3*Vp) matmul --------------------
    xg = jnp.dot(x, a_eff.astype(jnp.bfloat16), preferred_element_type=f32)
    xg = xg.astype(jnp.bfloat16)
    xg_stack = jnp.concatenate(
        [xg[:, k * vp:(k + 1) * vp] for k in range(3)], axis=0)   # (3*C*T, Vp)

    # --- channel mix (conv_d) + down 1x1 + BN (folded) + ReLU: one matmul ----
    op = jnp.concatenate([xg_stack, x], axis=0)     # (4*C*T, Vp) bf16
    y = jnp.dot(w_md_ref[...], op, preferred_element_type=f32) + sh_md_ref[...]
    y = jax.nn.relu(y)                              # (O*T, Vp) f32

    lane = lax.broadcasted_iota(jnp.int32, (1, vp), 1)
    lane_mask = (lane < v_valid).astype(f32)
    y = y * lane_mask                               # zero the padded node lanes

    if attention:
        att_k = w_sa_ref.shape[0]
        pad = (att_k - 1) // 2
        # spatial: mean over T, conv1d over nodes (out_channels=1), sigmoid
        se_v = jnp.dot(mpool_ref[...], y, preferred_element_type=f32)   # (O, Vp)
        u = jnp.dot(w_sa_ref[...], se_v, preferred_element_type=f32)    # (K, Vp)
        s_pre = jnp.zeros((1, vp), f32)
        for j in range(att_k):
            # circular roll == zero-padded shift (>=4 zero lanes on both sides)
            s_pre = s_pre + pltpu.roll(u[j:j + 1, :], shift=(pad - j) % vp, axis=1)
        y = y * (1.0 + jax.nn.sigmoid(s_pre + b_sa))

        # temporal: mean over nodes, conv1d over frames (banded matrix), sigmoid
        colv = jnp.sum(y, axis=1, keepdims=True)                        # (O*T, 1)
        s_t = jax.nn.sigmoid(
            jnp.dot(mta_ref[...], colv, preferred_element_type=f32) + b_ta)
        y = y * (1.0 + s_t)

        # channel SE: mean over (T, V), fc1 -> relu -> fc2 (pre-expanded), sigmoid
        colv = jnp.sum(y, axis=1, keepdims=True)
        se_c = jnp.dot(mpool_ref[...], colv,
                       preferred_element_type=f32) * (1.0 / v_valid)    # (O, 1)
        h = jax.nn.relu(jnp.dot(w_fc1_ref[...], se_c,
                                preferred_element_type=f32) + b_fc1_ref[...])
        s_c = jax.nn.sigmoid(jnp.dot(w_fc2_ref[...], h,
                                     preferred_element_type=f32) + b_fc2_ref[...])
        y = y * (1.0 + s_c)

    # --- temporal conv (banded kron matrix) + 1x1 residual + BN + ReLU -------
    op2 = jnp.concatenate([y.astype(jnp.bfloat16), x], axis=0)   # (O*T + C*T, Vp)
    out = jnp.dot(w_last_ref[...], op2, preferred_element_type=f32) + sh_last_ref[...]
    out = jax.nn.relu(out) * lane_mask
    o_ref[0] = out.astype(o_ref.dtype)


# ----------------------------------------------------------------------------
# weight preparation (tiny, traced once per call; BN folding + kron lifting)
# ----------------------------------------------------------------------------
def _bn_scale_shift(bn, eps=1e-5):
    sc = bn["gamma"] * lax.rsqrt(bn["var"] + eps)
    sh = bn["beta"] - bn["mean"] * sc
    return sc, sh


def _prepare_layer(p, T, V, Vp):
    g = p["gcn"]
    out_c = g["conv_d_w"].shape[1]
    eyeT = jnp.eye(T, dtype=jnp.float32)

    # conv_a / conv_b 1x1 convs lifted to row-space via kron(W, I_T)
    w_ab = jnp.concatenate(
        [jnp.kron(g["conv_a_w"][k], eyeT) for k in range(3)] +
        [jnp.kron(g["conv_b_w"][k], eyeT) for k in range(3)], axis=0)
    b_ab = jnp.concatenate(
        [jnp.repeat(g["conv_a_b"][k], T) for k in range(3)] +
        [jnp.repeat(g["conv_b_b"][k], T) for k in range(3)], axis=0).reshape(-1, 1)

    # learnable adjacency, padded and lane-concatenated over the 3 subsets
    pa = jnp.pad(g["PA"], ((0, 0), (0, Vp - V), (0, Vp - V)))
    pa_cat = jnp.concatenate([pa[0], pa[1], pa[2]], axis=1)

    # conv_d (3 subsets) + down 1x1, BN scales folded into the bf16 weights
    msc, msh = _bn_scale_shift(g["bn"])
    dsc, dsh = _bn_scale_shift(g["down_bn"])
    wd = jnp.concatenate(
        [jnp.kron(g["conv_d_w"][k] * msc[:, None], eyeT) for k in range(3)], axis=1)
    wdn = jnp.kron(g["down_w"] * dsc[:, None], eyeT)
    w_md = jnp.concatenate([wd, wdn], axis=1)
    sh_md = jnp.repeat(msc * jnp.sum(g["conv_d_b"], axis=0) + msh
                       + dsc * g["down_b"] + dsh, T).reshape(-1, 1)

    # attention helpers
    mpool = jnp.kron(jnp.eye(out_c, dtype=jnp.float32),
                     jnp.full((1, T), 1.0 / T, jnp.float32))        # (O, O*T)
    w_sa = jnp.transpose(g["conv_sa_w"][0], (1, 0)).astype(jnp.float32)  # (K, O)
    K = g["conv_ta_w"].shape[2]
    pad = (K - 1) // 2
    mta = jnp.zeros((T, out_c * T), jnp.float32)
    for j in range(K):
        mta = mta + jnp.kron(g["conv_ta_w"][0, :, j][None, :],
                             jnp.eye(T, k=j - pad, dtype=jnp.float32))
    mta = jnp.tile(mta, (out_c, 1)) * (1.0 / V)                     # (O*T, O*T)
    w_fc1 = g["fc1_w"]
    b_fc1 = g["fc1_b"].reshape(-1, 1)
    w_fc2e = jnp.repeat(g["fc2_w"], T, axis=0)                      # (O*T, H)
    b_fc2e = jnp.repeat(g["fc2_b"], T).reshape(-1, 1)

    # temporal conv as a banded (O*T, O*T) matrix + 1x1 residual, BN folded
    tsc, tsh = _bn_scale_shift(p["tcn"]["bn"])
    rsc, rsh = _bn_scale_shift(p["res_bn"])
    kt = p["tcn"]["w"].shape[0]
    tpad = (kt - 1) // 2
    wt = jnp.zeros((out_c * T, out_c * T), jnp.float32)
    for j in range(kt):
        wt = wt + jnp.kron(p["tcn"]["w"][j] * tsc[:, None],
                           jnp.eye(T, k=j - tpad, dtype=jnp.float32))
    wr = jnp.kron(p["res_w"] * rsc[:, None], eyeT)
    w_last = jnp.concatenate([wt, wr], axis=1)
    sh_last = jnp.repeat(tsc * p["tcn"]["b"] + tsh
                         + rsc * p["res_b"] + rsh, T).reshape(-1, 1)

    scal = jnp.concatenate([g["alpha"].reshape(1), g["conv_sa_b"].reshape(1),
                            g["conv_ta_b"].reshape(1)]).astype(jnp.float32)

    return dict(scal=scal,
                w_ab=w_ab.astype(jnp.bfloat16), b_ab=b_ab, pa_cat=pa_cat,
                w_md=w_md.astype(jnp.bfloat16), sh_md=sh_md,
                mpool=mpool, w_sa=w_sa, mta=mta,
                w_fc1=w_fc1, b_fc1=b_fc1, w_fc2e=w_fc2e, b_fc2e=b_fc2e,
                w_last=w_last.astype(jnp.bfloat16), sh_last=sh_last,
                out_rows=out_c * T)


# ----------------------------------------------------------------------------
# Pallas wrapper: one call per AAGCN layer
# ----------------------------------------------------------------------------
def aagcn_layer_pallas(x_n, prep, out_dtype, v_valid):
    N, CT, Vp = x_n.shape
    OT = prep["out_rows"]

    operands = [prep["scal"], x_n, prep["w_ab"], prep["b_ab"], prep["pa_cat"],
                prep["w_md"], prep["sh_md"], prep["mpool"], prep["w_sa"],
                prep["mta"], prep["w_fc1"], prep["b_fc1"], prep["w_fc2e"],
                prep["b_fc2e"], prep["w_last"], prep["sh_last"]]

    def _fixed(arr):
        return pl.BlockSpec(arr.shape, lambda b: (0, 0))

    in_specs = [pl.BlockSpec(memory_space=pltpu.MemorySpace.SMEM),
                pl.BlockSpec((1, CT, Vp), lambda b: (b, 0, 0))]
    in_specs += [_fixed(a) for a in operands[2:]]

    it = prep["w_ab"].shape[0] // 6
    flops = 2 * N * Vp * (prep["w_ab"].shape[0] * CT     # embedding conv
                          + 3 * it * Vp                  # Gram matrices
                          + CT * 3 * Vp                  # graph conv
                          + OT * 4 * CT                  # mix + down
                          + OT * (OT + CT))              # tcn + residual
    weight_bytes = sum(int(np.prod(a.shape)) * a.dtype.itemsize for a in operands[2:])
    bytes_accessed = (int(x_n.size) * 2
                      + N * OT * Vp * np.dtype(out_dtype).itemsize
                      + N * weight_bytes)

    kernel = functools.partial(_aagcn_layer_kernel, v_valid=v_valid,
                               attention=ATTENTION)
    return pl.pallas_call(
        kernel,
        out_shape=jax.ShapeDtypeStruct((N, OT, Vp), out_dtype),
        grid=(N,),
        in_specs=in_specs,
        out_specs=pl.BlockSpec((1, OT, Vp), lambda b: (b, 0, 0)),
        compiler_params=pltpu.CompilerParams(dimension_semantics=("parallel",)),
        cost_estimate=pl.CostEstimate(flops=int(flops),
                                      transcendentals=int(N * 4 * Vp * Vp),
                                      bytes_accessed=int(bytes_accessed)),
    )(*operands)


# ----------------------------------------------------------------------------
# model forward
# ----------------------------------------------------------------------------
def mmgcn_branch_fwd(params, x):
    """x: (N, C, T, V) -> (x_class (N, O2), x_reg (N, T, V))."""
    N, C, T, V = x.shape
    x_n = jnp.pad(x, ((0, 0), (0, 0), (0, 0), (0, VPAD - V)))
    x_n = x_n.reshape(N, C * T, VPAD).astype(jnp.bfloat16)

    prep1 = _prepare_layer(params["agcn1"], T, V, VPAD)
    prep2 = _prepare_layer(params["agcn2"], T, V, VPAD)

    y1 = aagcn_layer_pallas(x_n, prep1, jnp.bfloat16, V)   # inter-layer kept bf16
    # nn.Dropout(0.5): identity in eval mode
    y2 = aagcn_layer_pallas(y1, prep2, jnp.float32, V)

    O2 = prep2["out_rows"] // T
    y = y2.reshape(N, O2, T, VPAD)[..., :V]
    x_class = y.mean(axis=(2, 3))      # == mean(3).mean(2)
    x_reg = y.mean(axis=1)
    return x_class, x_reg


def multimodal_gcn_fwd(params, input_vector, cfg):
    cls_results, reg_results = [], []
    joint_number = None
    for input_type, vector in input_vector.items():
        # vector['x'] is (N, T, V, C) -> permute(0,3,1,2) -> (N, C, T, V)
        x = jnp.transpose(vector["x"], (0, 3, 1, 2))
        if input_type == "fullpose":
            x_class, x_reg = mmgcn_branch_fwd(params["fullpose"], x)
            joint_number = x.shape[-1]
        else:
            # TODO(synk): contact / joints_15 / joints_21 branches not instantiated.
            continue
        cls_results.append(x_class)
        reg_results.append(x_reg)
    x_class = jnp.concatenate(cls_results, axis=1)
    x_reg = jnp.concatenate(reg_results, axis=2)

    # tiny heads: plain jnp (launch overhead of a custom call would dominate)
    preds = {}
    if cfg["cls_task_names"]["obj_cat"]:
        w, b = params["lin_obj_class"]["w"], params["lin_obj_class"]["b"]
        preds["obj_cat"] = x_class @ w.T + b
    if cfg["cls_task_names"]["act_rec"]:
        w, b = params["lin_act_rec"]["w"], params["lin_act_rec"]["b"]
        preds["act_rec"] = x_class @ w.T + b
    if cfg["reg_task_names"]["obj_pose"]:
        w, b = params["lin_obj_orient"]["w"], params["lin_obj_orient"]["b"]
        preds["obj_pose"] = x_reg @ w.T + b
    if cfg["reg_task_names"]["body_loc"]:
        w, b = params["lin_body_loc"]["w"], params["lin_body_loc"]["b"]
        yb = x_reg @ w.T + b
        preds["body_loc"] = yb.reshape(yb.shape[:-1] + (joint_number, 3)).astype(jnp.float32)
    return preds


# ----------------------------------------------------------------------------
# deterministic parameter construction
# ----------------------------------------------------------------------------
def _nrm(key, shape, scale):
    return (jax.random.normal(key, shape) * scale).astype(jnp.float32)


def bn_params(c):
    return dict(gamma=jnp.ones((c,), jnp.float32),
                beta=jnp.zeros((c,), jnp.float32),
                mean=jnp.zeros((c,), jnp.float32),
                var=jnp.ones((c,), jnp.float32))


def build_adjacency(edges, V):
    adj = np.zeros((V, V), np.float32)
    for i, j in edges:
        adj[i, j] = 1.0

    def norm(a):
        d = a.sum(0)
        d = np.where(d > 0, 1.0 / d, 0.0)
        return a * d[None, :]

    A = np.stack([np.eye(V, dtype=np.float32), norm(adj), norm(adj.T)], 0)
    return jnp.asarray(A)


def init_aagcn(key, in_c, out_c, A, kt):
    inter = max(out_c // 4, 1)
    ks = jax.random.split(key, 20)
    gcn = dict(
        PA=jnp.array(A), alpha=jnp.full((1, 1), 0.1, jnp.float32),
        conv_a_w=_nrm(ks[0], (3, inter, in_c), 0.2),
        conv_a_b=_nrm(ks[1], (3, inter), 0.05),
        conv_b_w=_nrm(ks[2], (3, inter, in_c), 0.2),
        conv_b_b=_nrm(ks[3], (3, inter), 0.05),
        conv_d_w=_nrm(ks[4], (3, out_c, in_c), 0.2),
        conv_d_b=_nrm(ks[5], (3, out_c), 0.05),
        bn=bn_params(out_c),
        down_w=_nrm(ks[6], (out_c, in_c), 0.2),
        down_b=_nrm(ks[7], (out_c,), 0.05),
        down_bn=bn_params(out_c),
        conv_sa_w=_nrm(ks[8], (1, out_c, ATT_KERNEL), 0.2),
        conv_sa_b=_nrm(ks[9], (1,), 0.05),
        conv_ta_w=_nrm(ks[10], (1, out_c, ATT_KERNEL), 0.2),
        conv_ta_b=_nrm(ks[11], (1,), 0.05),
        fc1_w=_nrm(ks[12], (out_c // 2, out_c), 0.2),
        fc1_b=_nrm(ks[13], (out_c // 2,), 0.05),
        fc2_w=_nrm(ks[14], (out_c, out_c // 2), 0.2),
        fc2_b=_nrm(ks[15], (out_c,), 0.05),
    )
    tcn = dict(w=_nrm(ks[16], (kt, out_c, out_c), 0.1),
               b=_nrm(ks[17], (out_c,), 0.05),
               bn=bn_params(out_c))
    return dict(gcn=gcn, tcn=tcn,
                res_w=_nrm(ks[18], (out_c, in_c), 0.2),
                res_b=_nrm(ks[19], (out_c,), 0.05),
                res_bn=bn_params(out_c))


def init_linear(key, out_f, in_f):
    kw, kb = jax.random.split(key)
    return dict(w=_nrm(kw, (out_f, in_f), 0.1), b=_nrm(kb, (out_f,), 0.05))


def init_multimodal_params(key, A, in_c, hidden, kt, num_nodes, multimodalities=1):
    k1, k2, k3, k4, k5, k6 = jax.random.split(key, 6)
    return dict(
        fullpose=dict(agcn1=init_aagcn(k1, in_c, hidden[0], A, kt),
                      agcn2=init_aagcn(k2, hidden[0], hidden[1], A, kt)),
        lin_obj_class=init_linear(k3, 51, hidden[1] * multimodalities),
        lin_act_rec=init_linear(k4, 4, hidden[1] * multimodalities),
        lin_obj_orient=init_linear(k5, 6, num_nodes),
        lin_body_loc=init_linear(k6, 117, num_nodes),
    )


# ----------------------------------------------------------------------------
if __name__ == "__main__":
    key = jax.random.PRNGKey(0)
    N, T, V, C_in = 2, 8, 39, 4    # fullpose: 20 graph joints -> 2*20-1 = 39 data nodes
    edges = [(i, i + 1) for i in range(V - 1)]
    A = build_adjacency(edges, V)

    k_params, k_data = jax.random.split(key)
    params = init_multimodal_params(k_params, A, C_in, HIDDEN, TCN_KERNEL, V)
    x = jax.random.normal(k_data, (N, T, V, C_in), jnp.float32)

    run = jax.jit(lambda p, xx: multimodal_gcn_fwd(p, {"fullpose": {"x": xx}}, CFG))
    preds = run(params, x)
    preds = jax.tree_util.tree_map(jax.block_until_ready, preds)

    assert preds["obj_cat"].shape == (N, 51)
    assert preds["act_rec"].shape == (N, 4)
    assert preds["obj_pose"].shape == (N, T, 6)
    assert preds["body_loc"].shape == (N, T, V, 3)
    assert all(bool(jnp.all(jnp.isfinite(v))) for v in preds.values())
    print("KERNEL_OK")
</pallas_src>

<mosaic_0001>
module attributes {stable_mosaic.version = 11 : i64} {
  func.func @_aagcn_layer_kernel(%arg0: i32, %arg1: memref<3xf32, #tpu.memory_space<smem>>, %arg2: memref<1x32x128xbf16, #tpu.memory_space<vmem>>, %arg3: memref<192x32xbf16, #tpu.memory_space<vmem>>, %arg4: memref<192x1xf32, #tpu.memory_space<vmem>>, %arg5: memref<128x384xf32, #tpu.memory_space<vmem>>, %arg6: memref<128x128xbf16, #tpu.memory_space<vmem>>, %arg7: memref<128x1xf32, #tpu.memory_space<vmem>>, %arg8: memref<16x128xf32, #tpu.memory_space<vmem>>, %arg9: memref<9x16xf32, #tpu.memory_space<vmem>>, %arg10: memref<128x128xf32, #tpu.memory_space<vmem>>, %arg11: memref<8x16xf32, #tpu.memory_space<vmem>>, %arg12: memref<8x1xf32, #tpu.memory_space<vmem>>, %arg13: memref<128x8xf32, #tpu.memory_space<vmem>>, %arg14: memref<128x1xf32, #tpu.memory_space<vmem>>, %arg15: memref<128x160xbf16, #tpu.memory_space<vmem>>, %arg16: memref<128x1xf32, #tpu.memory_space<vmem>>, %arg17: memref<1x128x128xbf16, #tpu.memory_space<vmem>>) attributes {dimension_semantics = [#tpu.dimension_semantics<parallel>], iteration_bounds = array<i64: 2>, scalar_prefetch = 0 : i64, scratch_operands = 0 : i64, tpu.core_type = #tpu.core_type<tc>, window_params = [{transform_indices = @transform_0, window_bounds = array<i64: 3>}, {transform_indices = @transform_1, window_bounds = array<i64: 1, 32, 128>}, {pipeline_mode = #tpu.pipeline_mode<synchronous>, transform_indices = @transform_2, window_bounds = array<i64: 192, 32>}, {pipeline_mode = #tpu.pipeline_mode<synchronous>, transform_indices = @transform_3, window_bounds = array<i64: 192, 1>}, {pipeline_mode = #tpu.pipeline_mode<synchronous>, transform_indices = @transform_4, window_bounds = array<i64: 128, 384>}, {pipeline_mode = #tpu.pipeline_mode<synchronous>, transform_indices = @transform_5, window_bounds = array<i64: 128, 128>}, {pipeline_mode = #tpu.pipeline_mode<synchronous>, transform_indices = @transform_6, window_bounds = array<i64: 128, 1>}, {pipeline_mode = #tpu.pipeline_mode<synchronous>, transform_indices = @transform_7, window_bounds = array<i64: 16, 128>}, {pipeline_mode = #tpu.pipeline_mode<synchronous>, transform_indices = @transform_8, window_bounds = array<i64: 9, 16>}, {pipeline_mode = #tpu.pipeline_mode<synchronous>, transform_indices = @transform_9, window_bounds = array<i64: 128, 128>}, {pipeline_mode = #tpu.pipeline_mode<synchronous>, transform_indices = @transform_10, window_bounds = array<i64: 8, 16>}, {pipeline_mode = #tpu.pipeline_mode<synchronous>, transform_indices = @transform_11, window_bounds = array<i64: 8, 1>}, {pipeline_mode = #tpu.pipeline_mode<synchronous>, transform_indices = @transform_12, window_bounds = array<i64: 128, 8>}, {pipeline_mode = #tpu.pipeline_mode<synchronous>, transform_indices = @transform_13, window_bounds = array<i64: 128, 1>}, {pipeline_mode = #tpu.pipeline_mode<synchronous>, transform_indices = @transform_14, window_bounds = array<i64: 128, 160>}, {pipeline_mode = #tpu.pipeline_mode<synchronous>, transform_indices = @transform_15, window_bounds = array<i64: 128, 1>}, {transform_indices = @transform_16, window_bounds = array<i64: 1, 128, 128>}]} {
    %c0 = arith.constant 0 : index
    %c0_0 = arith.constant 0 : index
    %c0_1 = arith.constant 0 : index
    %0 = vector.load %arg2[%c0, %c0_0, %c0_1] : memref<1x32x128xbf16, #tpu.memory_space<vmem>>, vector<1x32x128xbf16>
    %1 = vector.shape_cast %0 : vector<1x32x128xbf16> to vector<32x128xbf16>
    %c0_2 = arith.constant 0 : index
    %2 = memref.load %arg1[%c0_2] : memref<3xf32, #tpu.memory_space<smem>>
    %c1 = arith.constant 1 : index
    %3 = memref.load %arg1[%c1] : memref<3xf32, #tpu.memory_space<smem>>
    %c2 = arith.constant 2 : index
    %4 = memref.load %arg1[%c2] : memref<3xf32, #tpu.memory_space<smem>>
    %c0_3 = arith.constant 0 : index
    %c0_4 = arith.constant 0 : index
    %5 = vector.load %arg3[%c0_3, %c0_4] : memref<192x32xbf16, #tpu.memory_space<vmem>>, vector<192x32xbf16>
    %cst = arith.constant dense<0.000000e+00> : vector<192x128xf32>
    %6 = tpu.matmul %5, %1, %cst {dimension_numbers = #tpu.dot_dimension_numbers<[1], [0], [0], [1], [0, 0, 1, 1], [], []>} : vector<192x32xbf16>, vector<32x128xbf16>, vector<192x128xf32> -> vector<192x128xf32>
    %c0_5 = arith.constant 0 : index
    %c0_6 = arith.constant 0 : index
    %7 = vector.load %arg4[%c0_5, %c0_6] : memref<192x1xf32, #tpu.memory_space<vmem>>, vector<192x1xf32>
    %8 = vector.broadcast %7 : vector<192x1xf32> to vector<192x128xf32>
    %9 = arith.addf %6, %8 : vector<192x128xf32>
    %10 = vector.extract_strided_slice %9 {offsets = [0, 0], sizes = [32, 128], strides = [1, 1]} : vector<192x128xf32> to vector<32x128xf32>
    %11 = vector.extract_strided_slice %9 {offsets = [96, 0], sizes = [32, 128], strides = [1, 1]} : vector<192x128xf32> to vector<32x128xf32>
    %cst_7 = arith.constant dense<0.000000e+00> : vector<128x128xf32>
    %12 = tpu.matmul %10, %11, %cst_7 {dimension_numbers = #tpu.dot_dimension_numbers<[0], [0], [1], [1], [0, 1, 1, 1], [], []>} : vector<32x128xf32>, vector<32x128xf32>, vector<128x128xf32> -> vector<128x128xf32>
    %13 = vector.extract_strided_slice %9 {offsets = [32, 0], sizes = [32, 128], strides = [1, 1]} : vector<192x128xf32> to vector<32x128xf32>
    %14 = vector.extract_strided_slice %9 {offsets = [128, 0], sizes = [32, 128], strides = [1, 1]} : vector<192x128xf32> to vector<32x128xf32>
    %cst_8 = arith.constant dense<0.000000e+00> : vector<128x128xf32>
    %15 = tpu.matmul %13, %14, %cst_8 {dimension_numbers = #tpu.dot_dimension_numbers<[0], [0], [1], [1], [0, 1, 1, 1], [], []>} : vector<32x128xf32>, vector<32x128xf32>, vector<128x128xf32> -> vector<128x128xf32>
    %16 = vector.extract_strided_slice %9 {offsets = [64, 0], sizes = [32, 128], strides = [1, 1]} : vector<192x128xf32> to vector<32x128xf32>
    %17 = vector.extract_strided_slice %9 {offsets = [160, 0], sizes = [32, 128], strides = [1, 1]} : vector<192x128xf32> to vector<32x128xf32>
    %cst_9 = arith.constant dense<0.000000e+00> : vector<128x128xf32>
    %18 = tpu.matmul %16, %17, %cst_9 {dimension_numbers = #tpu.dot_dimension_numbers<[0], [0], [1], [1], [0, 1, 1, 1], [], []>} : vector<32x128xf32>, vector<32x128xf32>, vector<128x128xf32> -> vector<128x128xf32>
    %19 = tpu.concatenate %12, %15, %18 in 1 : vector<128x128xf32>, vector<128x128xf32>, vector<128x128xf32> -> vector<128x384xf32>
    %c0_10 = arith.constant 0 : index
    %c0_11 = arith.constant 0 : index
    %20 = vector.load %arg5[%c0_10, %c0_11] : memref<128x384xf32, #tpu.memory_space<vmem>>, vector<128x384xf32>
    %cst_12 = arith.constant 3.125000e-02 : f32
    %21 = vector.broadcast %cst_12 : f32 to vector<128x384xf32>
    %22 = arith.mulf %19, %21 : vector<128x384xf32>
    %23 = math.tanh %22 : vector<128x384xf32>
    %24 = vector.broadcast %2 : f32 to vector<128x384xf32>
    %25 = arith.mulf %24, %23 : vector<128x384xf32>
    %26 = arith.addf %20, %25 : vector<128x384xf32>
    %27 = arith.truncf %26 : vector<128x384xf32> to vector<128x384xbf16>
    %cst_13 = arith.constant dense<0.000000e+00> : vector<32x384xf32>
    %28 = tpu.matmul %1, %27, %cst_13 {dimension_numbers = #tpu.dot_dimension_numbers<[1], [0], [0], [1], [0, 0, 1, 1], [], []>} : vector<32x128xbf16>, vector<128x384xbf16>, vector<32x384xf32> -> vector<32x384xf32>
    %29 = arith.truncf %28 : vector<32x384xf32> to vector<32x384xbf16>
    %30 = vector.extract_strided_slice %29 {offsets = [0, 0], sizes = [32, 128], strides = [1, 1]} : vector<32x384xbf16> to vector<32x128xbf16>
    %31 = vector.extract_strided_slice %29 {offsets = [0, 128], sizes = [32, 128], strides = [1, 1]} : vector<32x384xbf16> to vector<32x128xbf16>
    %32 = vector.extract_strided_slice %29 {offsets = [0, 256], sizes = [32, 128], strides = [1, 1]} : vector<32x384xbf16> to vector<32x128xbf16>
    %33 = tpu.concatenate %30, %31, %32 in 0 : vector<32x128xbf16>, vector<32x128xbf16>, vector<32x128xbf16> -> vector<96x128xbf16>
    %34 = tpu.concatenate %33, %1 in 0 : vector<96x128xbf16>, vector<32x128xbf16> -> vector<128x128xbf16>
    %c0_14 = arith.constant 0 : index
    %c0_15 = arith.constant 0 : index
    %35 = vector.load %arg6[%c0_14, %c0_15] : memref<128x128xbf16, #tpu.memory_space<vmem>>, vector<128x128xbf16>
    %cst_16 = arith.constant dense<0.000000e+00> : vector<128x128xf32>
    %36 = tpu.matmul %35, %34, %cst_16 {dimension_numbers = #tpu.dot_dimension_numbers<[1], [0], [0], [1], [0, 0, 1, 1], [], []>} : vector<128x128xbf16>, vector<128x128xbf16>, vector<128x128xf32> -> vector<128x128xf32>
    %c0_17 = arith.constant 0 : index
    %c0_18 = arith.constant 0 : index
    %37 = vector.load %arg7[%c0_17, %c0_18] : memref<128x1xf32, #tpu.memory_space<vmem>>, vector<128x1xf32>
    %38 = vector.broadcast %37 : vector<128x1xf32> to vector<128x128xf32>
    %39 = arith.addf %36, %38 : vector<128x128xf32>
    %cst_19 = arith.constant 0.000000e+00 : f32
    %40 = vector.broadcast %cst_19 : f32 to vector<128x128xf32>
    %41 = arith.maximumf %39, %40 : vector<128x128xf32>
    %42 = tpu.iota {dimensions = array<i32: 1>} : vector<1x128xi32>
    %c39_i32 = arith.constant 39 : i32
    %43 = vector.broadcast %c39_i32 : i32 to vector<1x128xi32>
    %44 = arith.cmpi slt, %42, %43 : vector<1x128xi32>
    %45 = arith.extui %44 : vector<1x128xi1> to vector<1x128xi32>
    %46 = arith.sitofp %45 : vector<1x128xi32> to vector<1x128xf32>
    %47 = vector.broadcast %46 : vector<1x128xf32> to vector<128x128xf32>
    %48 = arith.mulf %41, %47 : vector<128x128xf32>
    %c0_20 = arith.constant 0 : index
    %c0_21 = arith.constant 0 : index
    %49 = vector.load %arg8[%c0_20, %c0_21] : memref<16x128xf32, #tpu.memory_space<vmem>>, vector<16x128xf32>
    %cst_22 = arith.constant dense<0.000000e+00> : vector<16x128xf32>
    %50 = tpu.matmul %49, %48, %cst_22 {dimension_numbers = #tpu.dot_dimension_numbers<[1], [0], [0], [1], [0, 0, 1, 1], [], []>} : vector<16x128xf32>, vector<128x128xf32>, vector<16x128xf32> -> vector<16x128xf32>
    %c0_23 = arith.constant 0 : index
    %c0_24 = arith.constant 0 : index
    %51 = vector.load %arg9[%c0_23, %c0_24] : memref<9x16xf32, #tpu.memory_space<vmem>>, vector<9x16xf32>
    %cst_25 = arith.constant dense<0.000000e+00> : vector<9x128xf32>
    %52 = tpu.matmul %51, %50, %cst_25 {dimension_numbers = #tpu.dot_dimension_numbers<[1], [0], [0], [1], [0, 0, 1, 1], [], []>} : vector<9x16xf32>, vector<16x128xf32>, vector<9x128xf32> -> vector<9x128xf32>
    %cst_26 = arith.constant 0.000000e+00 : f32
    %53 = vector.broadcast %cst_26 : f32 to vector<1x128xf32>
    %54 = vector.extract_strided_slice %52 {offsets = [0, 0], sizes = [1, 128], strides = [1, 1]} : vector<9x128xf32> to vector<1x128xf32>
    %c4_i32 = arith.constant 4 : i32
    %55 = tpu.dynamic_rotate %54 by %c4_i32 dim 1 : vector<1x128xf32>, i32 -> vector<1x128xf32>
    %56 = arith.addf %53, %55 : vector<1x128xf32>
    %57 = vector.extract_strided_slice %52 {offsets = [1, 0], sizes = [1, 128], strides = [1, 1]} : vector<9x128xf32> to vector<1x128xf32>
    %c3_i32 = arith.constant 3 : i32
    %58 = tpu.dynamic_rotate %57 by %c3_i32 dim 1 : vector<1x128xf32>, i32 -> vector<1x128xf32>
    %59 = arith.addf %56, %58 : vector<1x128xf32>
    %60 = vector.extract_strided_slice %52 {offsets = [2, 0], sizes = [1, 128], strides = [1, 1]} : vector<9x128xf32> to vector<1x128xf32>
    %c2_i32 = arith.constant 2 : i32
    %61 = tpu.dynamic_rotate %60 by %c2_i32 dim 1 : vector<1x128xf32>, i32 -> vector<1x128xf32>
    %62 = arith.addf %59, %61 : vector<1x128xf32>
    %63 = vector.extract_strided_slice %52 {offsets = [3, 0], sizes = [1, 128], strides = [1, 1]} : vector<9x128xf32> to vector<1x128xf32>
    %c1_i32 = arith.constant 1 : i32
    %64 = tpu.dynamic_rotate %63 by %c1_i32 dim 1 : vector<1x128xf32>, i32 -> vector<1x128xf32>
    %65 = arith.addf %62, %64 : vector<1x128xf32>
    %66 = vector.extract_strided_slice %52 {offsets = [4, 0], sizes = [1, 128], strides = [1, 1]} : vector<9x128xf32> to vector<1x128xf32>
    %c0_i32 = arith.constant 0 : i32
    %67 = tpu.dynamic_rotate %66 by %c0_i32 dim 1 : vector<1x128xf32>, i32 -> vector<1x128xf32>
    %68 = arith.addf %65, %67 : vector<1x128xf32>
    %69 = vector.extract_strided_slice %52 {offsets = [5, 0], sizes = [1, 128], strides = [1, 1]} : vector<9x128xf32> to vector<1x128xf32>
    %c127_i32 = arith.constant 127 : i32
    %70 = tpu.dynamic_rotate %69 by %c127_i32 dim 1 : vector<1x128xf32>, i32 -> vector<1x128xf32>
    %71 = arith.addf %68, %70 : vector<1x128xf32>
    %72 = vector.extract_strided_slice %52 {offsets = [6, 0], sizes = [1, 128], strides = [1, 1]} : vector<9x128xf32> to vector<1x128xf32>
    %c126_i32 = arith.constant 126 : i32
    %73 = tpu.dynamic_rotate %72 by %c126_i32 dim 1 : vector<1x128xf32>, i32 -> vector<1x128xf32>
    %74 = arith.addf %71, %73 : vector<1x128xf32>
    %75 = vector.extract_strided_slice %52 {offsets = [7, 0], sizes = [1, 128], strides = [1, 1]} : vector<9x128xf32> to vector<1x128xf32>
    %c125_i32 = arith.constant 125 : i32
    %76 = tpu.dynamic_rotate %75 by %c125_i32 dim 1 : vector<1x128xf32>, i32 -> vector<1x128xf32>
    %77 = arith.addf %74, %76 : vector<1x128xf32>
    %78 = vector.extract_strided_slice %52 {offsets = [8, 0], sizes = [1, 128], strides = [1, 1]} : vector<9x128xf32> to vector<1x128xf32>
    %c124_i32 = arith.constant 124 : i32
    %79 = tpu.dynamic_rotate %78 by %c124_i32 dim 1 : vector<1x128xf32>, i32 -> vector<1x128xf32>
    %80 = arith.addf %77, %79 : vector<1x128xf32>
    %81 = vector.broadcast %3 : f32 to vector<1x128xf32>
    %82 = arith.addf %80, %81 : vector<1x128xf32>
    %83 = arith.negf %82 : vector<1x128xf32>
    %84 = math.exp %83 : vector<1x128xf32>
    %cst_27 = arith.constant 1.000000e+00 : f32
    %85 = vector.broadcast %cst_27 : f32 to vector<1x128xf32>
    %86 = arith.addf %85, %84 : vector<1x128xf32>
    %87 = arith.divf %85, %86 : vector<1x128xf32>
    %cst_28 = arith.constant 1.000000e+00 : f32
    %88 = vector.broadcast %cst_28 : f32 to vector<1x128xf32>
    %89 = arith.addf %88, %87 : vector<1x128xf32>
    %90 = vector.broadcast %89 : vector<1x128xf32> to vector<128x128xf32>
    %91 = arith.mulf %48, %90 : vector<128x128xf32>
    %cst_29 = arith.constant dense<0.000000e+00> : vector<128xf32>
    %92 = vector.multi_reduction <add>, %91, %cst_29 [1] : vector<128x128xf32> to vector<128xf32>
    %93 = vector.shape_cast %92 : vector<128xf32> to vector<128x1xf32>
    %c0_30 = arith.constant 0 : index
    %c0_31 = arith.constant 0 : index
    %94 = vector.load %arg10[%c0_30, %c0_31] : memref<128x128xf32, #tpu.memory_space<vmem>>, vector<128x128xf32>
    %cst_32 = arith.constant dense<0.000000e+00> : vector<128x1xf32>
    %95 = tpu.matmul %94, %93, %cst_32 {dimension_numbers = #tpu.dot_dimension_numbers<[1], [0], [0], [1], [0, 0, 1, 1], [], []>} : vector<128x128xf32>, vector<128x1xf32>, vector<128x1xf32> -> vector<128x1xf32>
    %96 = vector.broadcast %4 : f32 to vector<128x1xf32>
    %97 = arith.addf %95, %96 : vector<128x1xf32>
    %98 = arith.negf %97 : vector<128x1xf32>
    %99 = math.exp %98 : vector<128x1xf32>
    %cst_33 = arith.constant 1.000000e+00 : f32
    %100 = vector.broadcast %cst_33 : f32 to vector<128x1xf32>
    %101 = arith.addf %100, %99 : vector<128x1xf32>
    %102 = arith.divf %100, %101 : vector<128x1xf32>
    %cst_34 = arith.constant 1.000000e+00 : f32
    %103 = vector.broadcast %cst_34 : f32 to vector<128x1xf32>
    %104 = arith.addf %103, %102 : vector<128x1xf32>
    %105 = vector.broadcast %104 : vector<128x1xf32> to vector<128x128xf32>
    %106 = arith.mulf %91, %105 : vector<128x128xf32>
    %cst_35 = arith.constant dense<0.000000e+00> : vector<128xf32>
    %107 = vector.multi_reduction <add>, %106, %cst_35 [1] : vector<128x128xf32> to vector<128xf32>
    %108 = vector.shape_cast %107 : vector<128xf32> to vector<128x1xf32>
    %c0_36 = arith.constant 0 : index
    %c0_37 = arith.constant 0 : index
    %109 = vector.load %arg8[%c0_36, %c0_37] : memref<16x128xf32, #tpu.memory_space<vmem>>, vector<16x128xf32>
    %cst_38 = arith.constant dense<0.000000e+00> : vector<16x1xf32>
    %110 = tpu.matmul %109, %108, %cst_38 {dimension_numbers = #tpu.dot_dimension_numbers<[1], [0], [0], [1], [0, 0, 1, 1], [], []>} : vector<16x128xf32>, vector<128x1xf32>, vector<16x1xf32> -> vector<16x1xf32>
    %cst_39 = arith.constant 0.025641026 : f32
    %111 = vector.broadcast %cst_39 : f32 to vector<16x1xf32>
    %112 = arith.mulf %110, %111 : vector<16x1xf32>
    %c0_40 = arith.constant 0 : index
    %c0_41 = arith.constant 0 : index
    %113 = vector.load %arg11[%c0_40, %c0_41] : memref<8x16xf32, #tpu.memory_space<vmem>>, vector<8x16xf32>
    %cst_42 = arith.constant dense<0.000000e+00> : vector<8x1xf32>
    %114 = tpu.matmul %113, %112, %cst_42 {dimension_numbers = #tpu.dot_dimension_numbers<[1], [0], [0], [1], [0, 0, 1, 1], [], []>} : vector<8x16xf32>, vector<16x1xf32>, vector<8x1xf32> -> vector<8x1xf32>
    %c0_43 = arith.constant 0 : index
    %c0_44 = arith.constant 0 : index
    %115 = vector.load %arg12[%c0_43, %c0_44] : memref<8x1xf32, #tpu.memory_space<vmem>>, vector<8x1xf32>
    %116 = arith.addf %114, %115 : vector<8x1xf32>
    %cst_45 = arith.constant 0.000000e+00 : f32
    %117 = vector.broadcast %cst_45 : f32 to vector<8x1xf32>
    %118 = arith.maximumf %116, %117 : vector<8x1xf32>
    %c0_46 = arith.constant 0 : index
    %c0_47 = arith.constant 0 : index
    %119 = vector.load %arg13[%c0_46, %c0_47] : memref<128x8xf32, #tpu.memory_space<vmem>>, vector<128x8xf32>
    %cst_48 = arith.constant dense<0.000000e+00> : vector<128x1xf32>
    %120 = tpu.matmul %119, %118, %cst_48 {dimension_numbers = #tpu.dot_dimension_numbers<[1], [0], [0], [1], [0, 0, 1, 1], [], []>} : vector<128x8xf32>, vector<8x1xf32>, vector<128x1xf32> -> vector<128x1xf32>
    %c0_49 = arith.constant 0 : index
    %c0_50 = arith.constant 0 : index
    %121 = vector.load %arg14[%c0_49, %c0_50] : memref<128x1xf32, #tpu.memory_space<vmem>>, vector<128x1xf32>
    %122 = arith.addf %120, %121 : vector<128x1xf32>
    %123 = arith.negf %122 : vector<128x1xf32>
    %124 = math.exp %123 : vector<128x1xf32>
    %cst_51 = arith.constant 1.000000e+00 : f32
    %125 = vector.broadcast %cst_51 : f32 to vector<128x1xf32>
    %126 = arith.addf %125, %124 : vector<128x1xf32>
    %127 = arith.divf %125, %126 : vector<128x1xf32>
    %cst_52 = arith.constant 1.000000e+00 : f32
    %128 = vector.broadcast %cst_52 : f32 to vector<128x1xf32>
    %129 = arith.addf %128, %127 : vector<128x1xf32>
    %130 = vector.broadcast %129 : vector<128x1xf32> to vector<128x128xf32>
    %131 = arith.mulf %106, %130 : vector<128x128xf32>
    %132 = arith.truncf %131 : vector<128x128xf32> to vector<128x128xbf16>
    %133 = tpu.concatenate %132, %1 in 0 : vector<128x128xbf16>, vector<32x128xbf16> -> vector<160x128xbf16>
    %c0_53 = arith.constant 0 : index
    %c0_54 = arith.constant 0 : index
    %134 = vector.load %arg15[%c0_53, %c0_54] : memref<128x160xbf16, #tpu.memory_space<vmem>>, vector<128x160xbf16>
    %cst_55 = arith.constant dense<0.000000e+00> : vector<128x128xf32>
    %135 = tpu.matmul %134, %133, %cst_55 {dimension_numbers = #tpu.dot_dimension_numbers<[1], [0], [0], [1], [0, 0, 1, 1], [], []>} : vector<128x160xbf16>, vector<160x128xbf16>, vector<128x128xf32> -> vector<128x128xf32>
    %c0_56 = arith.constant 0 : index
    %c0_57 = arith.constant 0 : index
    %136 = vector.load %arg16[%c0_56, %c0_57] : memref<128x1xf32, #tpu.memory_space<vmem>>, vector<128x1xf32>
    %137 = vector.broadcast %136 : vector<128x1xf32> to vector<128x128xf32>
    %138 = arith.addf %135, %137 : vector<128x128xf32>
    %cst_58 = arith.constant 0.000000e+00 : f32
    %139 = vector.broadcast %cst_58 : f32 to vector<128x128xf32>
    %140 = arith.maximumf %138, %139 : vector<128x128xf32>
    %141 = vector.broadcast %46 : vector<1x128xf32> to vector<128x128xf32>
    %142 = arith.mulf %140, %141 : vector<128x128xf32>
    %143 = arith.truncf %142 : vector<128x128xf32> to vector<128x128xbf16>
    %c0_59 = arith.constant 0 : index
    %c0_60 = arith.constant 0 : index
    %c0_61 = arith.constant 0 : index
    %144 = vector.load %arg17[%c0_59, %c0_60, %c0_61] : memref<1x128x128xbf16, #tpu.memory_space<vmem>>, vector<1x128x128xbf16>
    %145 = vector.shape_cast %144 : vector<1x128x128xbf16> to vector<128x128xbf16>
    %146 = vector.shape_cast %143 : vector<128x128xbf16> to vector<1x128x128xbf16>
    tpu.vector_store %arg17[%c0_59, %c0_60, %c0_61], %146 {strides = array<i32>} : memref<1x128x128xbf16, #tpu.memory_space<vmem>>, vector<1x128x128xbf16>,
    return
  }
  func.func @transform_0(%arg0: i32) -> i32 {
    %c0_i32 = arith.constant 0 : i32
    %c0_i32_0 = arith.constant 0 : i32
    return %c0_i32 : i32
  }
  func.func @transform_1(%arg0: i32) -> (i32, i32, i32) {
    %c0_i32 = arith.constant 0 : i32
    %c0_i32_0 = arith.constant 0 : i32
    %c0_i32_1 = arith.constant 0 : i32
    return %arg0, %c0_i32, %c0_i32_0 : i32, i32, i32
  }
  func.func @transform_2(%arg0: i32) -> (i32, i32) {
    %c0_i32 = arith.constant 0 : i32
    %c0_i32_0 = arith.constant 0 : i32
    %c0_i32_1 = arith.constant 0 : i32
    return %c0_i32, %c0_i32_0 : i32, i32
  }
  func.func @transform_3(%arg0: i32) -> (i32, i32) {
    %c0_i32 = arith.constant 0 : i32
    %c0_i32_0 = arith.constant 0 : i32
    %c0_i32_1 = arith.constant 0 : i32
    return %c0_i32, %c0_i32_0 : i32, i32
  }
  func.func @transform_4(%arg0: i32) -> (i32, i32) {
    %c0_i32 = arith.constant 0 : i32
    %c0_i32_0 = arith.constant 0 : i32
    %c0_i32_1 = arith.constant 0 : i32
    return %c0_i32, %c0_i32_0 : i32, i32
  }
  func.func @transform_5(%arg0: i32) -> (i32, i32) {
    %c0_i32 = arith.constant 0 : i32
    %c0_i32_0 = arith.constant 0 : i32
    %c0_i32_1 = arith.constant 0 : i32
    return %c0_i32, %c0_i32_0 : i32, i32
  }
  func.func @transform_6(%arg0: i32) -> (i32, i32) {
    %c0_i32 = arith.constant 0 : i32
    %c0_i32_0 = arith.constant 0 : i32
    %c0_i32_1 = arith.constant 0 : i32
    return %c0_i32, %c0_i32_0 : i32, i32
  }
  func.func @transform_7(%arg0: i32) -> (i32, i32) {
    %c0_i32 = arith.constant 0 : i32
    %c0_i32_0 = arith.constant 0 : i32
    %c0_i32_1 = arith.constant 0 : i32
    return %c0_i32, %c0_i32_0 : i32, i32
  }
  func.func @transform_8(%arg0: i32) -> (i32, i32) {
    %c0_i32 = arith.constant 0 : i32
    %c0_i32_0 = arith.constant 0 : i32
    %c0_i32_1 = arith.constant 0 : i32
    return %c0_i32, %c0_i32_0 : i32, i32
  }
  func.func @transform_9(%arg0: i32) -> (i32, i32) {
    %c0_i32 = arith.constant 0 : i32
    %c0_i32_0 = arith.constant 0 : i32
    %c0_i32_1 = arith.constant 0 : i32
    return %c0_i32, %c0_i32_0 : i32, i32
  }
  func.func @transform_10(%arg0: i32) -> (i32, i32) {
    %c0_i32 = arith.constant 0 : i32
    %c0_i32_0 = arith.constant 0 : i32
    %c0_i32_1 = arith.constant 0 : i32
    return %c0_i32, %c0_i32_0 : i32, i32
  }
  func.func @transform_11(%arg0: i32) -> (i32, i32) {
    %c0_i32 = arith.constant 0 : i32
    %c0_i32_0 = arith.constant 0 : i32
    %c0_i32_1 = arith.constant 0 : i32
    return %c0_i32, %c0_i32_0 : i32, i32
  }
  func.func @transform_12(%arg0: i32) -> (i32, i32) {
    %c0_i32 = arith.constant 0 : i32
    %c0_i32_0 = arith.constant 0 : i32
    %c0_i32_1 = arith.constant 0 : i32
    return %c0_i32, %c0_i32_0 : i32, i32
  }
  func.func @transform_13(%arg0: i32) -> (i32, i32) {
    %c0_i32 = arith.constant 0 : i32
    %c0_i32_0 = arith.constant 0 : i32
    %c0_i32_1 = arith.constant 0 : i32
    return %c0_i32, %c0_i32_0 : i32, i32
  }
  func.func @transform_14(%arg0: i32) -> (i32, i32) {
    %c0_i32 = arith.constant 0 : i32
    %c0_i32_0 = arith.constant 0 : i32
    %c0_i32_1 = arith.constant 0 : i32
    return %c0_i32, %c0_i32_0 : i32, i32
  }
  func.func @transform_15(%arg0: i32) -> (i32, i32) {
    %c0_i32 = arith.constant 0 : i32
    %c0_i32_0 = arith.constant 0 : i32
    %c0_i32_1 = arith.constant 0 : i32
    return %c0_i32, %c0_i32_0 : i32, i32
  }
  func.func @transform_16(%arg0: i32) -> (i32, i32, i32) {
    %c0_i32 = arith.constant 0 : i32
    %c0_i32_0 = arith.constant 0 : i32
    %c0_i32_1 = arith.constant 0 : i32
    return %arg0, %c0_i32, %c0_i32_0 : i32, i32, i32
  }
}

module attributes {stable_mosaic.version = 11 : i64} {
  func.func @_aagcn_layer_kernel(%arg0: i32, %arg1: memref<3xf32, #tpu.memory_space<smem>>, %arg2: memref<1x128x128xbf16, #tpu.memory_space<vmem>>, %arg3: memref<384x128xbf16, #tpu.memory_space<vmem>>, %arg4: memref<384x1xf32, #tpu.memory_space<vmem>>, %arg5: memref<128x384xf32, #tpu.memory_space<vmem>>, %arg6: memref<256x512xbf16, #tpu.memory_space<vmem>>, %arg7: memref<256x1xf32, #tpu.memory_space<vmem>>, %arg8: memref<32x256xf32, #tpu.memory_space<vmem>>, %arg9: memref<9x32xf32, #tpu.memory_space<vmem>>, %arg10: memref<256x256xf32, #tpu.memory_space<vmem>>, %arg11: memref<16x32xf32, #tpu.memory_space<vmem>>, %arg12: memref<16x1xf32, #tpu.memory_space<vmem>>, %arg13: memref<256x16xf32, #tpu.memory_space<vmem>>, %arg14: memref<256x1xf32, #tpu.memory_space<vmem>>, %arg15: memref<256x384xbf16, #tpu.memory_space<vmem>>, %arg16: memref<256x1xf32, #tpu.memory_space<vmem>>, %arg17: memref<1x256x128xf32, #tpu.memory_space<vmem>>) attributes {dimension_semantics = [#tpu.dimension_semantics<parallel>], iteration_bounds = array<i64: 2>, scalar_prefetch = 0 : i64, scratch_operands = 0 : i64, tpu.core_type = #tpu.core_type<tc>, window_params = [{transform_indices = @transform_0, window_bounds = array<i64: 3>}, {transform_indices = @transform_1, window_bounds = array<i64: 1, 128, 128>}, {pipeline_mode = #tpu.pipeline_mode<synchronous>, transform_indices = @transform_2, window_bounds = array<i64: 384, 128>}, {pipeline_mode = #tpu.pipeline_mode<synchronous>, transform_indices = @transform_3, window_bounds = array<i64: 384, 1>}, {pipeline_mode = #tpu.pipeline_mode<synchronous>, transform_indices = @transform_4, window_bounds = array<i64: 128, 384>}, {pipeline_mode = #tpu.pipeline_mode<synchronous>, transform_indices = @transform_5, window_bounds = array<i64: 256, 512>}, {pipeline_mode = #tpu.pipeline_mode<synchronous>, transform_indices = @transform_6, window_bounds = array<i64: 256, 1>}, {pipeline_mode = #tpu.pipeline_mode<synchronous>, transform_indices = @transform_7, window_bounds = array<i64: 32, 256>}, {pipeline_mode = #tpu.pipeline_mode<synchronous>, transform_indices = @transform_8, window_bounds = array<i64: 9, 32>}, {pipeline_mode = #tpu.pipeline_mode<synchronous>, transform_indices = @transform_9, window_bounds = array<i64: 256, 256>}, {pipeline_mode = #tpu.pipeline_mode<synchronous>, transform_indices = @transform_10, window_bounds = array<i64: 16, 32>}, {pipeline_mode = #tpu.pipeline_mode<synchronous>, transform_indices = @transform_11, window_bounds = array<i64: 16, 1>}, {pipeline_mode = #tpu.pipeline_mode<synchronous>, transform_indices = @transform_12, window_bounds = array<i64: 256, 16>}, {pipeline_mode = #tpu.pipeline_mode<synchronous>, transform_indices = @transform_13, window_bounds = array<i64: 256, 1>}, {pipeline_mode = #tpu.pipeline_mode<synchronous>, transform_indices = @transform_14, window_bounds = array<i64: 256, 384>}, {pipeline_mode = #tpu.pipeline_mode<synchronous>, transform_indices = @transform_15, window_bounds = array<i64: 256, 1>}, {transform_indices = @transform_16, window_bounds = array<i64: 1, 256, 128>}]} {
    %c0 = arith.constant 0 : index
    %c0_0 = arith.constant 0 : index
    %c0_1 = arith.constant 0 : index
    %0 = vector.load %arg2[%c0, %c0_0, %c0_1] : memref<1x128x128xbf16, #tpu.memory_space<vmem>>, vector<1x128x128xbf16>
    %1 = vector.shape_cast %0 : vector<1x128x128xbf16> to vector<128x128xbf16>
    %c0_2 = arith.constant 0 : index
    %2 = memref.load %arg1[%c0_2] : memref<3xf32, #tpu.memory_space<smem>>
    %c1 = arith.constant 1 : index
    %3 = memref.load %arg1[%c1] : memref<3xf32, #tpu.memory_space<smem>>
    %c2 = arith.constant 2 : index
    %4 = memref.load %arg1[%c2] : memref<3xf32, #tpu.memory_space<smem>>
    %c0_3 = arith.constant 0 : index
    %c0_4 = arith.constant 0 : index
    %5 = vector.load %arg3[%c0_3, %c0_4] : memref<384x128xbf16, #tpu.memory_space<vmem>>, vector<384x128xbf16>
    %cst = arith.constant dense<0.000000e+00> : vector<384x128xf32>
    %6 = tpu.matmul %5, %1, %cst {dimension_numbers = #tpu.dot_dimension_numbers<[1], [0], [0], [1], [0, 0, 1, 1], [], []>} : vector<384x128xbf16>, vector<128x128xbf16>, vector<384x128xf32> -> vector<384x128xf32>
    %c0_5 = arith.constant 0 : index
    %c0_6 = arith.constant 0 : index
    %7 = vector.load %arg4[%c0_5, %c0_6] : memref<384x1xf32, #tpu.memory_space<vmem>>, vector<384x1xf32>
    %8 = vector.broadcast %7 : vector<384x1xf32> to vector<384x128xf32>
    %9 = arith.addf %6, %8 : vector<384x128xf32>
    %10 = vector.extract_strided_slice %9 {offsets = [0, 0], sizes = [64, 128], strides = [1, 1]} : vector<384x128xf32> to vector<64x128xf32>
    %11 = vector.extract_strided_slice %9 {offsets = [192, 0], sizes = [64, 128], strides = [1, 1]} : vector<384x128xf32> to vector<64x128xf32>
    %cst_7 = arith.constant dense<0.000000e+00> : vector<128x128xf32>
    %12 = tpu.matmul %10, %11, %cst_7 {dimension_numbers = #tpu.dot_dimension_numbers<[0], [0], [1], [1], [0, 1, 1, 1], [], []>} : vector<64x128xf32>, vector<64x128xf32>, vector<128x128xf32> -> vector<128x128xf32>
    %13 = vector.extract_strided_slice %9 {offsets = [64, 0], sizes = [64, 128], strides = [1, 1]} : vector<384x128xf32> to vector<64x128xf32>
    %14 = vector.extract_strided_slice %9 {offsets = [256, 0], sizes = [64, 128], strides = [1, 1]} : vector<384x128xf32> to vector<64x128xf32>
    %cst_8 = arith.constant dense<0.000000e+00> : vector<128x128xf32>
    %15 = tpu.matmul %13, %14, %cst_8 {dimension_numbers = #tpu.dot_dimension_numbers<[0], [0], [1], [1], [0, 1, 1, 1], [], []>} : vector<64x128xf32>, vector<64x128xf32>, vector<128x128xf32> -> vector<128x128xf32>
    %16 = vector.extract_strided_slice %9 {offsets = [128, 0], sizes = [64, 128], strides = [1, 1]} : vector<384x128xf32> to vector<64x128xf32>
    %17 = vector.extract_strided_slice %9 {offsets = [320, 0], sizes = [64, 128], strides = [1, 1]} : vector<384x128xf32> to vector<64x128xf32>
    %cst_9 = arith.constant dense<0.000000e+00> : vector<128x128xf32>
    %18 = tpu.matmul %16, %17, %cst_9 {dimension_numbers = #tpu.dot_dimension_numbers<[0], [0], [1], [1], [0, 1, 1, 1], [], []>} : vector<64x128xf32>, vector<64x128xf32>, vector<128x128xf32> -> vector<128x128xf32>
    %19 = tpu.concatenate %12, %15, %18 in 1 : vector<128x128xf32>, vector<128x128xf32>, vector<128x128xf32> -> vector<128x384xf32>
    %c0_10 = arith.constant 0 : index
    %c0_11 = arith.constant 0 : index
    %20 = vector.load %arg5[%c0_10, %c0_11] : memref<128x384xf32, #tpu.memory_space<vmem>>, vector<128x384xf32>
    %cst_12 = arith.constant 1.562500e-02 : f32
    %21 = vector.broadcast %cst_12 : f32 to vector<128x384xf32>
    %22 = arith.mulf %19, %21 : vector<128x384xf32>
    %23 = math.tanh %22 : vector<128x384xf32>
    %24 = vector.broadcast %2 : f32 to vector<128x384xf32>
    %25 = arith.mulf %24, %23 : vector<128x384xf32>
    %26 = arith.addf %20, %25 : vector<128x384xf32>
    %27 = arith.truncf %26 : vector<128x384xf32> to vector<128x384xbf16>
    %cst_13 = arith.constant dense<0.000000e+00> : vector<128x384xf32>
    %28 = tpu.matmul %1, %27, %cst_13 {dimension_numbers = #tpu.dot_dimension_numbers<[1], [0], [0], [1], [0, 0, 1, 1], [], []>} : vector<128x128xbf16>, vector<128x384xbf16>, vector<128x384xf32> -> vector<128x384xf32>
    %29 = arith.truncf %28 : vector<128x384xf32> to vector<128x384xbf16>
    %30 = vector.extract_strided_slice %29 {offsets = [0, 0], sizes = [128, 128], strides = [1, 1]} : vector<128x384xbf16> to vector<128x128xbf16>
    %31 = vector.extract_strided_slice %29 {offsets = [0, 128], sizes = [128, 128], strides = [1, 1]} : vector<128x384xbf16> to vector<128x128xbf16>
    %32 = vector.extract_strided_slice %29 {offsets = [0, 256], sizes = [128, 128], strides = [1, 1]} : vector<128x384xbf16> to vector<128x128xbf16>
    %33 = tpu.concatenate %30, %31, %32 in 0 : vector<128x128xbf16>, vector<128x128xbf16>, vector<128x128xbf16> -> vector<384x128xbf16>
    %34 = tpu.concatenate %33, %1 in 0 : vector<384x128xbf16>, vector<128x128xbf16> -> vector<512x128xbf16>
    %c0_14 = arith.constant 0 : index
    %c0_15 = arith.constant 0 : index
    %35 = vector.load %arg6[%c0_14, %c0_15] : memref<256x512xbf16, #tpu.memory_space<vmem>>, vector<256x512xbf16>
    %cst_16 = arith.constant dense<0.000000e+00> : vector<256x128xf32>
    %36 = tpu.matmul %35, %34, %cst_16 {dimension_numbers = #tpu.dot_dimension_numbers<[1], [0], [0], [1], [0, 0, 1, 1], [], []>} : vector<256x512xbf16>, vector<512x128xbf16>, vector<256x128xf32> -> vector<256x128xf32>
    %c0_17 = arith.constant 0 : index
    %c0_18 = arith.constant 0 : index
    %37 = vector.load %arg7[%c0_17, %c0_18] : memref<256x1xf32, #tpu.memory_space<vmem>>, vector<256x1xf32>
    %38 = vector.broadcast %37 : vector<256x1xf32> to vector<256x128xf32>
    %39 = arith.addf %36, %38 : vector<256x128xf32>
    %cst_19 = arith.constant 0.000000e+00 : f32
    %40 = vector.broadcast %cst_19 : f32 to vector<256x128xf32>
    %41 = arith.maximumf %39, %40 : vector<256x128xf32>
    %42 = tpu.iota {dimensions = array<i32: 1>} : vector<1x128xi32>
    %c39_i32 = arith.constant 39 : i32
    %43 = vector.broadcast %c39_i32 : i32 to vector<1x128xi32>
    %44 = arith.cmpi slt, %42, %43 : vector<1x128xi32>
    %45 = arith.extui %44 : vector<1x128xi1> to vector<1x128xi32>
    %46 = arith.sitofp %45 : vector<1x128xi32> to vector<1x128xf32>
    %47 = vector.broadcast %46 : vector<1x128xf32> to vector<256x128xf32>
    %48 = arith.mulf %41, %47 : vector<256x128xf32>
    %c0_20 = arith.constant 0 : index
    %c0_21 = arith.constant 0 : index
    %49 = vector.load %arg8[%c0_20, %c0_21] : memref<32x256xf32, #tpu.memory_space<vmem>>, vector<32x256xf32>
    %cst_22 = arith.constant dense<0.000000e+00> : vector<32x128xf32>
    %50 = tpu.matmul %49, %48, %cst_22 {dimension_numbers = #tpu.dot_dimension_numbers<[1], [0], [0], [1], [0, 0, 1, 1], [], []>} : vector<32x256xf32>, vector<256x128xf32>, vector<32x128xf32> -> vector<32x128xf32>
    %c0_23 = arith.constant 0 : index
    %c0_24 = arith.constant 0 : index
    %51 = vector.load %arg9[%c0_23, %c0_24] : memref<9x32xf32, #tpu.memory_space<vmem>>, vector<9x32xf32>
    %cst_25 = arith.constant dense<0.000000e+00> : vector<9x128xf32>
    %52 = tpu.matmul %51, %50, %cst_25 {dimension_numbers = #tpu.dot_dimension_numbers<[1], [0], [0], [1], [0, 0, 1, 1], [], []>} : vector<9x32xf32>, vector<32x128xf32>, vector<9x128xf32> -> vector<9x128xf32>
    %cst_26 = arith.constant 0.000000e+00 : f32
    %53 = vector.broadcast %cst_26 : f32 to vector<1x128xf32>
    %54 = vector.extract_strided_slice %52 {offsets = [0, 0], sizes = [1, 128], strides = [1, 1]} : vector<9x128xf32> to vector<1x128xf32>
    %c4_i32 = arith.constant 4 : i32
    %55 = tpu.dynamic_rotate %54 by %c4_i32 dim 1 : vector<1x128xf32>, i32 -> vector<1x128xf32>
    %56 = arith.addf %53, %55 : vector<1x128xf32>
    %57 = vector.extract_strided_slice %52 {offsets = [1, 0], sizes = [1, 128], strides = [1, 1]} : vector<9x128xf32> to vector<1x128xf32>
    %c3_i32 = arith.constant 3 : i32
    %58 = tpu.dynamic_rotate %57 by %c3_i32 dim 1 : vector<1x128xf32>, i32 -> vector<1x128xf32>
    %59 = arith.addf %56, %58 : vector<1x128xf32>
    %60 = vector.extract_strided_slice %52 {offsets = [2, 0], sizes = [1, 128], strides = [1, 1]} : vector<9x128xf32> to vector<1x128xf32>
    %c2_i32 = arith.constant 2 : i32
    %61 = tpu.dynamic_rotate %60 by %c2_i32 dim 1 : vector<1x128xf32>, i32 -> vector<1x128xf32>
    %62 = arith.addf %59, %61 : vector<1x128xf32>
    %63 = vector.extract_strided_slice %52 {offsets = [3, 0], sizes = [1, 128], strides = [1, 1]} : vector<9x128xf32> to vector<1x128xf32>
    %c1_i32 = arith.constant 1 : i32
    %64 = tpu.dynamic_rotate %63 by %c1_i32 dim 1 : vector<1x128xf32>, i32 -> vector<1x128xf32>
    %65 = arith.addf %62, %64 : vector<1x128xf32>
    %66 = vector.extract_strided_slice %52 {offsets = [4, 0], sizes = [1, 128], strides = [1, 1]} : vector<9x128xf32> to vector<1x128xf32>
    %c0_i32 = arith.constant 0 : i32
    %67 = tpu.dynamic_rotate %66 by %c0_i32 dim 1 : vector<1x128xf32>, i32 -> vector<1x128xf32>
    %68 = arith.addf %65, %67 : vector<1x128xf32>
    %69 = vector.extract_strided_slice %52 {offsets = [5, 0], sizes = [1, 128], strides = [1, 1]} : vector<9x128xf32> to vector<1x128xf32>
    %c127_i32 = arith.constant 127 : i32
    %70 = tpu.dynamic_rotate %69 by %c127_i32 dim 1 : vector<1x128xf32>, i32 -> vector<1x128xf32>
    %71 = arith.addf %68, %70 : vector<1x128xf32>
    %72 = vector.extract_strided_slice %52 {offsets = [6, 0], sizes = [1, 128], strides = [1, 1]} : vector<9x128xf32> to vector<1x128xf32>
    %c126_i32 = arith.constant 126 : i32
    %73 = tpu.dynamic_rotate %72 by %c126_i32 dim 1 : vector<1x128xf32>, i32 -> vector<1x128xf32>
    %74 = arith.addf %71, %73 : vector<1x128xf32>
    %75 = vector.extract_strided_slice %52 {offsets = [7, 0], sizes = [1, 128], strides = [1, 1]} : vector<9x128xf32> to vector<1x128xf32>
    %c125_i32 = arith.constant 125 : i32
    %76 = tpu.dynamic_rotate %75 by %c125_i32 dim 1 : vector<1x128xf32>, i32 -> vector<1x128xf32>
    %77 = arith.addf %74, %76 : vector<1x128xf32>
    %78 = vector.extract_strided_slice %52 {offsets = [8, 0], sizes = [1, 128], strides = [1, 1]} : vector<9x128xf32> to vector<1x128xf32>
    %c124_i32 = arith.constant 124 : i32
    %79 = tpu.dynamic_rotate %78 by %c124_i32 dim 1 : vector<1x128xf32>, i32 -> vector<1x128xf32>
    %80 = arith.addf %77, %79 : vector<1x128xf32>
    %81 = vector.broadcast %3 : f32 to vector<1x128xf32>
    %82 = arith.addf %80, %81 : vector<1x128xf32>
    %83 = arith.negf %82 : vector<1x128xf32>
    %84 = math.exp %83 : vector<1x128xf32>
    %cst_27 = arith.constant 1.000000e+00 : f32
    %85 = vector.broadcast %cst_27 : f32 to vector<1x128xf32>
    %86 = arith.addf %85, %84 : vector<1x128xf32>
    %87 = arith.divf %85, %86 : vector<1x128xf32>
    %cst_28 = arith.constant 1.000000e+00 : f32
    %88 = vector.broadcast %cst_28 : f32 to vector<1x128xf32>
    %89 = arith.addf %88, %87 : vector<1x128xf32>
    %90 = vector.broadcast %89 : vector<1x128xf32> to vector<256x128xf32>
    %91 = arith.mulf %48, %90 : vector<256x128xf32>
    %cst_29 = arith.constant dense<0.000000e+00> : vector<256xf32>
    %92 = vector.multi_reduction <add>, %91, %cst_29 [1] : vector<256x128xf32> to vector<256xf32>
    %93 = vector.shape_cast %92 : vector<256xf32> to vector<256x1xf32>
    %c0_30 = arith.constant 0 : index
    %c0_31 = arith.constant 0 : index
    %94 = vector.load %arg10[%c0_30, %c0_31] : memref<256x256xf32, #tpu.memory_space<vmem>>, vector<256x256xf32>
    %cst_32 = arith.constant dense<0.000000e+00> : vector<256x1xf32>
    %95 = tpu.matmul %94, %93, %cst_32 {dimension_numbers = #tpu.dot_dimension_numbers<[1], [0], [0], [1], [0, 0, 1, 1], [], []>} : vector<256x256xf32>, vector<256x1xf32>, vector<256x1xf32> -> vector<256x1xf32>
    %96 = vector.broadcast %4 : f32 to vector<256x1xf32>
    %97 = arith.addf %95, %96 : vector<256x1xf32>
    %98 = arith.negf %97 : vector<256x1xf32>
    %99 = math.exp %98 : vector<256x1xf32>
    %cst_33 = arith.constant 1.000000e+00 : f32
    %100 = vector.broadcast %cst_33 : f32 to vector<256x1xf32>
    %101 = arith.addf %100, %99 : vector<256x1xf32>
    %102 = arith.divf %100, %101 : vector<256x1xf32>
    %cst_34 = arith.constant 1.000000e+00 : f32
    %103 = vector.broadcast %cst_34 : f32 to vector<256x1xf32>
    %104 = arith.addf %103, %102 : vector<256x1xf32>
    %105 = vector.broadcast %104 : vector<256x1xf32> to vector<256x128xf32>
    %106 = arith.mulf %91, %105 : vector<256x128xf32>
    %cst_35 = arith.constant dense<0.000000e+00> : vector<256xf32>
    %107 = vector.multi_reduction <add>, %106, %cst_35 [1] : vector<256x128xf32> to vector<256xf32>
    %108 = vector.shape_cast %107 : vector<256xf32> to vector<256x1xf32>
    %c0_36 = arith.constant 0 : index
    %c0_37 = arith.constant 0 : index
    %109 = vector.load %arg8[%c0_36, %c0_37] : memref<32x256xf32, #tpu.memory_space<vmem>>, vector<32x256xf32>
    %cst_38 = arith.constant dense<0.000000e+00> : vector<32x1xf32>
    %110 = tpu.matmul %109, %108, %cst_38 {dimension_numbers = #tpu.dot_dimension_numbers<[1], [0], [0], [1], [0, 0, 1, 1], [], []>} : vector<32x256xf32>, vector<256x1xf32>, vector<32x1xf32> -> vector<32x1xf32>
    %cst_39 = arith.constant 0.025641026 : f32
    %111 = vector.broadcast %cst_39 : f32 to vector<32x1xf32>
    %112 = arith.mulf %110, %111 : vector<32x1xf32>
    %c0_40 = arith.constant 0 : index
    %c0_41 = arith.constant 0 : index
    %113 = vector.load %arg11[%c0_40, %c0_41] : memref<16x32xf32, #tpu.memory_space<vmem>>, vector<16x32xf32>
    %cst_42 = arith.constant dense<0.000000e+00> : vector<16x1xf32>
    %114 = tpu.matmul %113, %112, %cst_42 {dimension_numbers = #tpu.dot_dimension_numbers<[1], [0], [0], [1], [0, 0, 1, 1], [], []>} : vector<16x32xf32>, vector<32x1xf32>, vector<16x1xf32> -> vector<16x1xf32>
    %c0_43 = arith.constant 0 : index
    %c0_44 = arith.constant 0 : index
    %115 = vector.load %arg12[%c0_43, %c0_44] : memref<16x1xf32, #tpu.memory_space<vmem>>, vector<16x1xf32>
    %116 = arith.addf %114, %115 : vector<16x1xf32>
    %cst_45 = arith.constant 0.000000e+00 : f32
    %117 = vector.broadcast %cst_45 : f32 to vector<16x1xf32>
    %118 = arith.maximumf %116, %117 : vector<16x1xf32>
    %c0_46 = arith.constant 0 : index
    %c0_47 = arith.constant 0 : index
    %119 = vector.load %arg13[%c0_46, %c0_47] : memref<256x16xf32, #tpu.memory_space<vmem>>, vector<256x16xf32>
    %cst_48 = arith.constant dense<0.000000e+00> : vector<256x1xf32>
    %120 = tpu.matmul %119, %118, %cst_48 {dimension_numbers = #tpu.dot_dimension_numbers<[1], [0], [0], [1], [0, 0, 1, 1], [], []>} : vector<256x16xf32>, vector<16x1xf32>, vector<256x1xf32> -> vector<256x1xf32>
    %c0_49 = arith.constant 0 : index
    %c0_50 = arith.constant 0 : index
    %121 = vector.load %arg14[%c0_49, %c0_50] : memref<256x1xf32, #tpu.memory_space<vmem>>, vector<256x1xf32>
    %122 = arith.addf %120, %121 : vector<256x1xf32>
    %123 = arith.negf %122 : vector<256x1xf32>
    %124 = math.exp %123 : vector<256x1xf32>
    %cst_51 = arith.constant 1.000000e+00 : f32
    %125 = vector.broadcast %cst_51 : f32 to vector<256x1xf32>
    %126 = arith.addf %125, %124 : vector<256x1xf32>
    %127 = arith.divf %125, %126 : vector<256x1xf32>
    %cst_52 = arith.constant 1.000000e+00 : f32
    %128 = vector.broadcast %cst_52 : f32 to vector<256x1xf32>
    %129 = arith.addf %128, %127 : vector<256x1xf32>
    %130 = vector.broadcast %129 : vector<256x1xf32> to vector<256x128xf32>
    %131 = arith.mulf %106, %130 : vector<256x128xf32>
    %132 = arith.truncf %131 : vector<256x128xf32> to vector<256x128xbf16>
    %133 = tpu.concatenate %132, %1 in 0 : vector<256x128xbf16>, vector<128x128xbf16> -> vector<384x128xbf16>
    %c0_53 = arith.constant 0 : index
    %c0_54 = arith.constant 0 : index
    %134 = vector.load %arg15[%c0_53, %c0_54] : memref<256x384xbf16, #tpu.memory_space<vmem>>, vector<256x384xbf16>
    %cst_55 = arith.constant dense<0.000000e+00> : vector<256x128xf32>
    %135 = tpu.matmul %134, %133, %cst_55 {dimension_numbers = #tpu.dot_dimension_numbers<[1], [0], [0], [1], [0, 0, 1, 1], [], []>} : vector<256x384xbf16>, vector<384x128xbf16>, vector<256x128xf32> -> vector<256x128xf32>
    %c0_56 = arith.constant 0 : index
    %c0_57 = arith.constant 0 : index
    %136 = vector.load %arg16[%c0_56, %c0_57] : memref<256x1xf32, #tpu.memory_space<vmem>>, vector<256x1xf32>
    %137 = vector.broadcast %136 : vector<256x1xf32> to vector<256x128xf32>
    %138 = arith.addf %135, %137 : vector<256x128xf32>
    %cst_58 = arith.constant 0.000000e+00 : f32
    %139 = vector.broadcast %cst_58 : f32 to vector<256x128xf32>
    %140 = arith.maximumf %138, %139 : vector<256x128xf32>
    %141 = vector.broadcast %46 : vector<1x128xf32> to vector<256x128xf32>
    %142 = arith.mulf %140, %141 : vector<256x128xf32>
    %c0_59 = arith.constant 0 : index
    %c0_60 = arith.constant 0 : index
    %c0_61 = arith.constant 0 : index
    %143 = vector.load %arg17[%c0_59, %c0_60, %c0_61] : memref<1x256x128xf32, #tpu.memory_space<vmem>>, vector<1x256x128xf32>
    %144 = vector.shape_cast %143 : vector<1x256x128xf32> to vector<256x128xf32>
    %145 = vector.shape_cast %142 : vector<256x128xf32> to vector<1x256x128xf32>
    tpu.vector_store %arg17[%c0_59, %c0_60, %c0_61], %145 {strides = array<i32>} : memref<1x256x128xf32, #tpu.memory_space<vmem>>, vector<1x256x128xf32>,
    return
  }
  func.func @transform_0(%arg0: i32) -> i32 {
    %c0_i32 = arith.constant 0 : i32
    %c0_i32_0 = arith.constant 0 : i32
    return %c0_i32 : i32
  }
  func.func @transform_1(%arg0: i32) -> (i32, i32, i32) {
    %c0_i32 = arith.constant 0 : i32
    %c0_i32_0 = arith.constant 0 : i32
    %c0_i32_1 = arith.constant 0 : i32
    return %arg0, %c0_i32, %c0_i32_0 : i32, i32, i32
  }
  func.func @transform_2(%arg0: i32) -> (i32, i32) {
    %c0_i32 = arith.constant 0 : i32
    %c0_i32_0 = arith.constant 0 : i32
    %c0_i32_1 = arith.constant 0 : i32
    return %c0_i32, %c0_i32_0 : i32, i32
  }
  func.func @transform_3(%arg0: i32) -> (i32, i32) {
    %c0_i32 = arith.constant 0 : i32
    %c0_i32_0 = arith.constant 0 : i32
    %c0_i32_1 = arith.constant 0 : i32
    return %c0_i32, %c0_i32_0 : i32, i32
  }
  func.func @transform_4(%arg0: i32) -> (i32, i32) {
    %c0_i32 = arith.constant 0 : i32
    %c0_i32_0 = arith.constant 0 : i32
    %c0_i32_1 = arith.constant 0 : i32
    return %c0_i32, %c0_i32_0 : i32, i32
  }
  func.func @transform_5(%arg0: i32) -> (i32, i32) {
    %c0_i32 = arith.constant 0 : i32
    %c0_i32_0 = arith.constant 0 : i32
    %c0_i32_1 = arith.constant 0 : i32
    return %c0_i32, %c0_i32_0 : i32, i32
  }
  func.func @transform_6(%arg0: i32) -> (i32, i32) {
    %c0_i32 = arith.constant 0 : i32
    %c0_i32_0 = arith.constant 0 : i32
    %c0_i32_1 = arith.constant 0 : i32
    return %c0_i32, %c0_i32_0 : i32, i32
  }
  func.func @transform_7(%arg0: i32) -> (i32, i32) {
    %c0_i32 = arith.constant 0 : i32
    %c0_i32_0 = arith.constant 0 : i32
    %c0_i32_1 = arith.constant 0 : i32
    return %c0_i32, %c0_i32_0 : i32, i32
  }
  func.func @transform_8(%arg0: i32) -> (i32, i32) {
    %c0_i32 = arith.constant 0 : i32
    %c0_i32_0 = arith.constant 0 : i32
    %c0_i32_1 = arith.constant 0 : i32
    return %c0_i32, %c0_i32_0 : i32, i32
  }
  func.func @transform_9(%arg0: i32) -> (i32, i32) {
    %c0_i32 = arith.constant 0 : i32
    %c0_i32_0 = arith.constant 0 : i32
    %c0_i32_1 = arith.constant 0 : i32
    return %c0_i32, %c0_i32_0 : i32, i32
  }
  func.func @transform_10(%arg0: i32) -> (i32, i32) {
    %c0_i32 = arith.constant 0 : i32
    %c0_i32_0 = arith.constant 0 : i32
    %c0_i32_1 = arith.constant 0 : i32
    return %c0_i32, %c0_i32_0 : i32, i32
  }
  func.func @transform_11(%arg0: i32) -> (i32, i32) {
    %c0_i32 = arith.constant 0 : i32
    %c0_i32_0 = arith.constant 0 : i32
    %c0_i32_1 = arith.constant 0 : i32
    return %c0_i32, %c0_i32_0 : i32, i32
  }
  func.func @transform_12(%arg0: i32) -> (i32, i32) {
    %c0_i32 = arith.constant 0 : i32
    %c0_i32_0 = arith.constant 0 : i32
    %c0_i32_1 = arith.constant 0 : i32
    return %c0_i32, %c0_i32_0 : i32, i32
  }
  func.func @transform_13(%arg0: i32) -> (i32, i32) {
    %c0_i32 = arith.constant 0 : i32
    %c0_i32_0 = arith.constant 0 : i32
    %c0_i32_1 = arith.constant 0 : i32
    return %c0_i32, %c0_i32_0 : i32, i32
  }
  func.func @transform_14(%arg0: i32) -> (i32, i32) {
    %c0_i32 = arith.constant 0 : i32
    %c0_i32_0 = arith.constant 0 : i32
    %c0_i32_1 = arith.constant 0 : i32
    return %c0_i32, %c0_i32_0 : i32, i32
  }
  func.func @transform_15(%arg0: i32) -> (i32, i32) {
    %c0_i32 = arith.constant 0 : i32
    %c0_i32_0 = arith.constant 0 : i32
    %c0_i32_1 = arith.constant 0 : i32
    return %c0_i32, %c0_i32_0 : i32, i32
  }
  func.func @transform_16(%arg0: i32) -> (i32, i32, i32) {
    %c0_i32 = arith.constant 0 : i32
    %c0_i32_0 = arith.constant 0 : i32
    %c0_i32_1 = arith.constant 0 : i32
    return %arg0, %c0_i32, %c0_i32_0 : i32, i32, i32
  }
}

</mosaic_0001>

<llo_original>
// kernel: _lambda_.2
$region0: #{_lambda_.2}
  #allocation0 [shape = 'u32[]', space=smem, size = 0x4, offset = 0x4, fixed_abs, tag = 'smem constant byte address 0x4 - core index']
  #allocation1 [shape = 'u32[144,128]{1,0:T(1,128)}', space=vmem, size = 0x12000, scoped, tag = 'internal scratch']
  %s0 = inlined_call_operand.vmem [shape: f32[3], index: 0, kind: input, shape index: {}]
  %s1 = inlined_call_operand.vmem [shape: bf16[2,32,128], index: 1, kind: input, shape index: {}]
  %s2 = inlined_call_operand.vmem [shape: bf16[192,32], index: 2, kind: input, shape index: {}]
  %s3 = inlined_call_operand.vmem [shape: f32[192,1], index: 3, kind: input, shape index: {}]
  %s4 = inlined_call_operand.vmem [shape: f32[128,384], index: 4, kind: input, shape index: {}]
  %s5 = inlined_call_operand.vmem [shape: bf16[128,128], index: 5, kind: input, shape index: {}]
  %s6 = inlined_call_operand.vmem [shape: f32[128,1], index: 6, kind: input, shape index: {}]
  %s7 = inlined_call_operand.vmem [shape: f32[16,128], index: 7, kind: input, shape index: {}]
  %s8 = inlined_call_operand.vmem [shape: f32[9,16], index: 8, kind: input, shape index: {}]
  %s9 = inlined_call_operand.vmem [shape: f32[128,128], index: 9, kind: input, shape index: {}]
  %s10 = inlined_call_operand.vmem [shape: f32[8,16], index: 10, kind: input, shape index: {}]
  %s11 = inlined_call_operand.vmem [shape: f32[8,1], index: 11, kind: input, shape index: {}]
  %s12 = inlined_call_operand.vmem [shape: f32[128,8], index: 12, kind: input, shape index: {}]
  %s13 = inlined_call_operand.vmem [shape: f32[128,1], index: 13, kind: input, shape index: {}]
  %s14 = inlined_call_operand.vmem [shape: bf16[128,160], index: 14, kind: input, shape index: {}]
  %s15 = inlined_call_operand.vmem [shape: f32[128,1], index: 15, kind: input, shape index: {}]
  %s16 = inlined_call_operand.vmem [shape: bf16[2,128,128], index: 16, kind: output, shape index: {}]
  %s17 = sld [smem:[#allocation0]]
  $region101: #{_lambda_.2} parent=0
    _
  %s19 = ssub.s32 1, %s17
  %s20 = scalar_select 0, %s19, %s17
  $region1: #{_lambda_.2} parent=0
    #allocation2 [shape = 'u8[512]{0}', space=smem, size = 0x200, scoped, tag = 'input window, operand 0, single buffered']
    #allocation3 [shape = 's32[2]{0}', space=sflag, size = 0x8, scoped, tag = 'scoped memory for _lambda_.2']
    %21 = vsyncpa [#allocation3], 0
    loop: start=0, step=1, limit=4
    $region2: #{_lambda_.2} parent=1 // loop_pre_header
      _
    $region3: #{_lambda_.2} parent=1 // loop_header
      %s23 = sphi 0, %s27
      %p24 = scmp.ge.s32.totalorder %s23, 4
      %s31 = sphi 0, %s31
      %s33 = sphi 0, %s31
      %s34 = sphi 0, %s33
      %s48 = sphi 0, %s34
      %s54 = sphi 0, %s56
      %s57 = sphi 0, %s54
      %s58 = sphi 0, %s57
      %s74 = sphi 0, %s58
      %s78 = sphi 0, %s78
      %s80 = sphi 0, %s78
      %s81 = sphi 0, %s80
      %s95 = sphi 0, %s81
      %s99 = sphi 0, %s99
      %s101 = sphi 0, %s99
      %s102 = sphi 0, %s101
      %s116 = sphi 0, %s102
      %s120 = sphi 0, %s120
      %s122 = sphi 0, %s120
      %s123 = sphi 0, %s122
      %s137 = sphi 0, %s123
      %s141 = sphi 0, %s141
      %s143 = sphi 0, %s141
      %s144 = sphi 0, %s143
      %s158 = sphi 0, %s144
      %s162 = sphi 0, %s162
      %s164 = sphi 0, %s162
      %s165 = sphi 0, %s164
      %s179 = sphi 0, %s165
      %s183 = sphi 0, %s183
      %s185 = sphi 0, %s183
      %s186 = sphi 0, %s185
      %s200 = sphi 0, %s186
      %s204 = sphi 0, %s204
      %s206 = sphi 0, %s204
      %s207 = sphi 0, %s206
      %s221 = sphi 0, %s207
      %s225 = sphi 0, %s225
      %s227 = sphi 0, %s225
      %s228 = sphi 0, %s227
      %s242 = sphi 0, %s228
      %s246 = sphi 0, %s246
      %s248 = sphi 0, %s246
      %s249 = sphi 0, %s248
      %s263 = sphi 0, %s249
      %s267 = sphi 0, %s267
      %s269 = sphi 0, %s267
      %s270 = sphi 0, %s269
      %s284 = sphi 0, %s270
      %s288 = sphi 0, %s288
      %s290 = sphi 0, %s288
      %s291 = sphi 0, %s290
      %s305 = sphi 0, %s291
      %s309 = sphi 0, %s309
      %s311 = sphi 0, %s309
      %s312 = sphi 0, %s311
      %s326 = sphi 0, %s312
      %s330 = sphi 0, %s330
      %s332 = sphi 0, %s330
      %s333 = sphi 0, %s332
      %s347 = sphi 0, %s333
      %s351 = sphi 0, %s351
      %s353 = sphi 0, %s351
      %s354 = sphi 0, %s353
      %s368 = sphi 0, %s354
      %s374 = sphi 0, %s376
      %s377 = sphi 0, %s374
      %s378 = sphi 0, %s377
      %s394 = sphi 0, %s378
    $region4: #{_lambda_.2} parent=1 // loop_header_branch
      %26 = sbr.rel (%p24) target = $region8
    $region5: #{_lambda_.2} parent=1 // loop_body
      %s28 = ssub.s32 %s23, 1
      %s29 = ssub.s32 %s23, 2
      %s30 = sadd.s32 %s23, 1
      %s32 = sadd.s32 %s31, 1
      %p35 = scmp.eq.s32.totalorder %s23, 1
      %p36 = scmp.ne.s32.totalorder %s31, %s33
      %p37 = scmp.eq.s32.totalorder %s23, 0
      %p38 = por %p36, %p37
      %p39 = scmp.ne.s32.totalorder %s31, %s33
      %p40 = scmp.eq.s32.totalorder %s28, 1
      %p41 = por %p39, %p40
      %p42 = scmp.ne.s32.totalorder %s33, %s34
      %p43 = scmp.eq.s32.totalorder %s28, 0
      %p44 = por %p42, %p43
      %p45 = scmp.ne.s32.totalorder %s33, %s34
      %p46 = scmp.eq.s32.totalorder %s29, 1
      %p47 = por %p45, %p46
      %p49 = scmp.ne.s32.totalorder %s34, %s48
      %p50 = scmp.eq.s32.totalorder %s29, 0
      %p51 = por %p49, %p50
      %s52 = ssub.s32 %s23, %s30
      %p53 = scmp.eq.s32.totalorder %s52, 0
      %s55 = sadd.s32 %s54, 1
      %s56 = scalar_select %p53, %s54, %s55
      %p59 = pneg %p53
      %p60 = scmp.eq.s32.totalorder %s23, 1
      %p61 = por %p59, %p60
      %p62 = scmp.ne.s32.totalorder %s54, %s57
      %p63 = scmp.eq.s32.totalorder %s23, 0
      %p64 = por %p62, %p63
      %p65 = scmp.ne.s32.totalorder %s54, %s57
      %p66 = scmp.eq.s32.totalorder %s28, 1
      %p67 = por %p65, %p66
      %p68 = scmp.ne.s32.totalorder %s57, %s58
      %p69 = scmp.eq.s32.totalorder %s28, 0
      %p70 = por %p68, %p69
      %p71 = scmp.ne.s32.totalorder %s57, %s58
      %p72 = scmp.eq.s32.totalorder %s29, 1
      %p73 = por %p71, %p72
      %p75 = scmp.ne.s32.totalorder %s58, %s74
      %p76 = scmp.eq.s32.totalorder %s29, 0
      %p77 = por %p75, %p76
      %s79 = sadd.s32 %s78, 1
      %p82 = scmp.eq.s32.totalorder %s23, 1
      %p83 = scmp.ne.s32.totalorder %s78, %s80
      %p84 = scmp.eq.s32.totalorder %s23, 0
      %p85 = por %p83, %p84
      %p86 = scmp.ne.s32.totalorder %s78, %s80
      %p87 = scmp.eq.s32.totalorder %s28, 1
      %p88 = por %p86, %p87
      %p89 = scmp.ne.s32.totalorder %s80, %s81
      %p90 = scmp.eq.s32.totalorder %s28, 0
      %p91 = por %p89, %p90
      %p92 = scmp.ne.s32.totalorder %s80, %s81
      %p93 = scmp.eq.s32.totalorder %s29, 1
      %p94 = por %p92, %p93
      %p96 = scmp.ne.s32.totalorder %s81, %s95
      %p97 = scmp.eq.s32.totalorder %s29, 0
      %p98 = por %p96, %p97
      %s100 = sadd.s32 %s99, 1
      %p103 = scmp.eq.s32.totalorder %s23, 1
      %p104 = scmp.ne.s32.totalorder %s99, %s101
      %p105 = scmp.eq.s32.totalorder %s23, 0
      %p106 = por %p104, %p105
      %p107 = scmp.ne.s32.totalorder %s99, %s101
      %p108 = scmp.eq.s32.totalorder %s28, 1
      %p109 = por %p107, %p108
      %p110 = scmp.ne.s32.totalorder %s101, %s102
      %p111 = scmp.eq.s32.totalorder %s28, 0
      %p112 = por %p110, %p111
      %p113 = scmp.ne.s32.totalorder %s101, %s102
      %p114 = scmp.eq.s32.totalorder %s29, 1
      %p115 = por %p113, %p114
      %p117 = scmp.ne.s32.totalorder %s102, %s116
      %p118 = scmp.eq.s32.totalorder %s29, 0
      %p119 = por %p117, %p118
      %s121 = sadd.s32 %s120, 1
      %p124 = scmp.eq.s32.totalorder %s23, 1
      %p125 = scmp.ne.s32.totalorder %s120, %s122
      %p126 = scmp.eq.s32.totalorder %s23, 0
      %p127 = por %p125, %p126
      %p128 = scmp.ne.s32.totalorder %s120, %s122
      %p129 = scmp.eq.s32.totalorder %s28, 1
      %p130 = por %p128, %p129
      %p131 = scmp.ne.s32.totalorder %s122, %s123
      %p132 = scmp.eq.s32.totalorder %s28, 0
      %p133 = por %p131, %p132
      %p134 = scmp.ne.s32.totalorder %s122, %s123
      %p135 = scmp.eq.s32.totalorder %s29, 1
      %p136 = por %p134, %p135
      %p138 = scmp.ne.s32.totalorder %s123, %s137
      %p139 = scmp.eq.s32.totalorder %s29, 0
      %p140 = por %p138, %p139
      %s142 = sadd.s32 %s141, 1
      %p145 = scmp.eq.s32.totalorder %s23, 1
      %p146 = scmp.ne.s32.totalorder %s141, %s143
      %p147 = scmp.eq.s32.totalorder %s23, 0
      %p148 = por %p146, %p147
      %p149 = scmp.ne.s32.totalorder %s141, %s143
      %p150 = scmp.eq.s32.totalorder %s28, 1
      %p151 = por %p149, %p150
      %p152 = scmp.ne.s32.totalorder %s143, %s144
      %p153 = scmp.eq.s32.totalorder %s28, 0
      %p154 = por %p152, %p153
      %p155 = scmp.ne.s32.totalorder %s143, %s144
      %p156 = scmp.eq.s32.totalorder %s29, 1
      %p157 = por %p155, %p156
      %p159 = scmp.ne.s32.totalorder %s144, %s158
      %p160 = scmp.eq.s32.totalorder %s29, 0
      %p161 = por %p159, %p160
      %s163 = sadd.s32 %s162, 1
      %p166 = scmp.eq.s32.totalorder %s23, 1
      %p167 = scmp.ne.s32.totalorder %s162, %s164
      %p168 = scmp.eq.s32.totalorder %s23, 0
      %p169 = por %p167, %p168
      %p170 = scmp.ne.s32.totalorder %s162, %s164
      %p171 = scmp.eq.s32.totalorder %s28, 1
      %p172 = por %p170, %p171
      %p173 = scmp.ne.s32.totalorder %s164, %s165
      %p174 = scmp.eq.s32.totalorder %s28, 0
      %p175 = por %p173, %p174
      %p176 = scmp.ne.s32.totalorder %s164, %s165
      %p177 = scmp.eq.s32.totalorder %s29, 1
      %p178 = por %p176, %p177
      %p180 = scmp.ne.s32.totalorder %s165, %s179
      %p181 = scmp.eq.s32.totalorder %s29, 0
      %p182 = por %p180, %p181
      %s184 = sadd.s32 %s183, 1
      %p187 = scmp.eq.s32.totalorder %s23, 1
      %p188 = scmp.ne.s32.totalorder %s183, %s185
      %p189 = scmp.eq.s32.totalorder %s23, 0
      %p190 = por %p188, %p189
      %p191 = scmp.ne.s32.totalorder %s183, %s185
      %p192 = scmp.eq.s32.totalorder %s28, 1
      %p193 = por %p191, %p192
      %p194 = scmp.ne.s32.totalorder %s185, %s186
      %p195 = scmp.eq.s32.totalorder %s28, 0
      %p196 = por %p194, %p195
      %p197 = scmp.ne.s32.totalorder %s185, %s186
      %p198 = scmp.eq.s32.totalorder %s29, 1
      %p199 = por %p197, %p198
      %p201 = scmp.ne.s32.totalorder %s186, %s200
      %p202 = scmp.eq.s32.totalorder %s29, 0
      %p203 = por %p201, %p202
      %s205 = sadd.s32 %s204, 1
      %p208 = scmp.eq.s32.totalorder %s23, 1
      %p209 = scmp.ne.s32.totalorder %s204, %s206
      %p210 = scmp.eq.s32.totalorder %s23, 0
      %p211 = por %p209, %p210
      %p212 = scmp.ne.s32.totalorder %s204, %s206
      %p213 = scmp.eq.s32.totalorder %s28, 1
      %p214 = por %p212, %p213
      %p215 = scmp.ne.s32.totalorder %s206, %s207
      %p216 = scmp.eq.s32.totalorder %s28, 0
      %p217 = por %p215, %p216
      %p218 = scmp.ne.s32.totalorder %s206, %s207
      %p219 = scmp.eq.s32.totalorder %s29, 1
      %p220 = por %p218, %p219
      %p222 = scmp.ne.s32.totalorder %s207, %s221
      %p223 = scmp.eq.s32.totalorder %s29, 0
      %p224 = por %p222, %p223
      %s226 = sadd.s32 %s225, 1
      %p229 = scmp.eq.s32.totalorder %s23, 1
      %p230 = scmp.ne.s32.totalorder %s225, %s227
      %p231 = scmp.eq.s32.totalorder %s23, 0
      %p232 = por %p230, %p231
      %p233 = scmp.ne.s32.totalorder %s225, %s227
      %p234 = scmp.eq.s32.totalorder %s28, 1
      %p235 = por %p233, %p234
      %p236 = scmp.ne.s32.totalorder %s227, %s228
      %p237 = scmp.eq.s32.totalorder %s28, 0
      %p238 = por %p236, %p237
      %p239 = scmp.ne.s32.totalorder %s227, %s228
      %p240 = scmp.eq.s32.totalorder %s29, 1
      %p241 = por %p239, %p240
      %p243 = scmp.ne.s32.totalorder %s228, %s242
      %p244 = scmp.eq.s32.totalorder %s29, 0
      %p245 = por %p243, %p244
      %s247 = sadd.s32 %s246, 1
      %p250 = scmp.eq.s32.totalorder %s23, 1
      %p251 = scmp.ne.s32.totalorder %s246, %s248
      %p252 = scmp.eq.s32.totalorder %s23, 0
      %p253 = por %p251, %p252
      %p254 = scmp.ne.s32.totalorder %s246, %s248
      %p255 = scmp.eq.s32.totalorder %s28, 1
      %p256 = por %p254, %p255
      %p257 = scmp.ne.s32.totalorder %s248, %s249
      %p258 = scmp.eq.s32.totalorder %s28, 0
      %p259 = por %p257, %p258
      %p260 = scmp.ne.s32.totalorder %s248, %s249
      %p261 = scmp.eq.s32.totalorder %s29, 1
      %p262 = por %p260, %p261
      %p264 = scmp.ne.s32.totalorder %s249, %s263
      %p265 = scmp.eq.s32.totalorder %s29, 0
      %p266 = por %p264, %p265
      %s268 = sadd.s32 %s267, 1
      %p271 = scmp.eq.s32.totalorder %s23, 1
      %p272 = scmp.ne.s32.totalorder %s267, %s269
      %p273 = scmp.eq.s32.totalorder %s23, 0
      %p274 = por %p272, %p273
      %p275 = scmp.ne.s32.totalorder %s267, %s269
      %p276 = scmp.eq.s32.totalorder %s28, 1
      %p277 = por %p275, %p276
      %p278 = scmp.ne.s32.totalorder %s269, %s270
      %p279 = scmp.eq.s32.totalorder %s28, 0
      %p280 = por %p278, %p279
      %p281 = scmp.ne.s32.totalorder %s269, %s270
      %p282 = scmp.eq.s32.totalorder %s29, 1
      %p283 = por %p281, %p282
      %p285 = scmp.ne.s32.totalorder %s270, %s284
      %p286 = scmp.eq.s32.totalorder %s29, 0
      %p287 = por %p285, %p286
      %s289 = sadd.s32 %s288, 1
      %p292 = scmp.eq.s32.totalorder %s23, 1
      %p293 = scmp.ne.s32.totalorder %s288, %s290
      %p294 = scmp.eq.s32.totalorder %s23, 0
      %p295 = por %p293, %p294
      %p296 = scmp.ne.s32.totalorder %s288, %s290
      %p297 = scmp.eq.s32.totalorder %s28, 1
      %p298 = por %p296, %p297
      %p299 = scmp.ne.s32.totalorder %s290, %s291
      %p300 = scmp.eq.s32.totalorder %s28, 0
      %p301 = por %p299, %p300
      %p302 = scmp.ne.s32.totalorder %s290, %s291
      %p303 = scmp.eq.s32.totalorder %s29, 1
      %p304 = por %p302, %p303
      %p306 = scmp.ne.s32.totalorder %s291, %s305
      %p307 = scmp.eq.s32.totalorder %s29, 0
      %p308 = por %p306, %p307
      %s310 = sadd.s32 %s309, 1
      %p313 = scmp.eq.s32.totalorder %s23, 1
      %p314 = scmp.ne.s32.totalorder %s309, %s311
      %p315 = scmp.eq.s32.totalorder %s23, 0
      %p316 = por %p314, %p315
      %p317 = scmp.ne.s32.totalorder %s309, %s311
      %p318 = scmp.eq.s32.totalorder %s28, 1
      %p319 = por %p317, %p318
      %p320 = scmp.ne.s32.totalorder %s311, %s312
      %p321 = scmp.eq.s32.totalorder %s28, 0
      %p322 = por %p320, %p321
      %p323 = scmp.ne.s32.totalorder %s311, %s312
      %p324 = scmp.eq.s32.totalorder %s29, 1
      %p325 = por %p323, %p324
      %p327 = scmp.ne.s32.totalorder %s312, %s326
      %p328 = scmp.eq.s32.totalorder %s29, 0
      %p329 = por %p327, %p328
      %s331 = sadd.s32 %s330, 1
      %p334 = scmp.eq.s32.totalorder %s23, 1
      %p335 = scmp.ne.s32.totalorder %s330, %s332
      %p336 = scmp.eq.s32.totalorder %s23, 0
      %p337 = por %p335, %p336
      %p338 = scmp.ne.s32.totalorder %s330, %s332
      %p339 = scmp.eq.s32.totalorder %s28, 1
      %p340 = por %p338, %p339
      %p341 = scmp.ne.s32.totalorder %s332, %s333
      %p342 = scmp.eq.s32.totalorder %s28, 0
      %p343 = por %p341, %p342
      %p344 = scmp.ne.s32.totalorder %s332, %s333
      %p345 = scmp.eq.s32.totalorder %s29, 1
      %p346 = por %p344, %p345
      %p348 = scmp.ne.s32.totalorder %s333, %s347
      %p349 = scmp.eq.s32.totalorder %s29, 0
      %p350 = por %p348, %p349
      %s352 = sadd.s32 %s351, 1
      %p355 = scmp.eq.s32.totalorder %s23, 1
      %p356 = scmp.ne.s32.totalorder %s351, %s353
      %p357 = scmp.eq.s32.totalorder %s23, 0
      %p358 = por %p356, %p357
      %p359 = scmp.ne.s32.totalorder %s351, %s353
      %p360 = scmp.eq.s32.totalorder %s28, 1
      %p361 = por %p359, %p360
      %p362 = scmp.ne.s32.totalorder %s353, %s354
      %p363 = scmp.eq.s32.totalorder %s28, 0
      %p364 = por %p362, %p363
      %p365 = scmp.ne.s32.totalorder %s353, %s354
      %p366 = scmp.eq.s32.totalorder %s29, 1
      %p367 = por %p365, %p366
      %p369 = scmp.ne.s32.totalorder %s354, %s368
      %p370 = scmp.eq.s32.totalorder %s29, 0
      %p371 = por %p369, %p370
      %s372 = ssub.s32 %s23, %s30
      %p373 = scmp.eq.s32.totalorder %s372, 0
      %s375 = sadd.s32 %s374, 1
      %s376 = scalar_select %p373, %s374, %s375
      %p379 = pneg %p373
      %p380 = scmp.eq.s32.totalorder %s23, 1
      %p381 = por %p379, %p380
      %p382 = scmp.ne.s32.totalorder %s374, %s377
      %p383 = scmp.eq.s32.totalorder %s23, 0
      %p384 = por %p382, %p383
      %p385 = scmp.ne.s32.totalorder %s374, %s377
      %p386 = scmp.eq.s32.totalorder %s28, 1
      %p387 = por %p385, %p386
      %p388 = scmp.ne.s32.totalorder %s377, %s378
      %p389 = scmp.eq.s32.totalorder %s28, 0
      %p390 = por %p388, %p389
      %p391 = scmp.ne.s32.totalorder %s377, %s378
      %p392 = scmp.eq.s32.totalorder %s29, 1
      %p393 = por %p391, %p392
      %p395 = scmp.ne.s32.totalorder %s378, %s394
      %p396 = scmp.eq.s32.totalorder %s29, 0
      %p397 = por %p395, %p396
      %p398 = scmp.le.s32.totalorder 1, %s23
      %p399 = scmp.lt.s32.totalorder %s23, 3
      %p400 = pnand %p398, %p399
      %p401 = pneg %p400
      // Predicated region
      $region9: #{_lambda_.2} parent=5 // pred_check
        _
      $region10: #{_lambda_.2} parent=5 // pred_check_branch
        %403 = sbr.rel (%p400) target = $region12
      $region11: #{_lambda_.2} parent=5 // pred_region
        %s404 = ssub.s32 %s23, 1
        // Predicated region
        $region13: #{_lambda_.2} parent=11 // pred_check
          %p405 = pneg %p44
        $region14: #{_lambda_.2} parent=11 // pred_check_branch
          %407 = sbr.rel (%p405) target = $region16
        $region15: #{_lambda_.2} parent=11 // pred_region
          %s409 = ssub.s32 16, 16
          %410 = vsyncadd [#allocation3], %s409
          %s412 = sshll.u32 %s0, 4
          %s413 = int_to_ptr.vmem [resolvable:$true] %s412
          %415 = dma.vmem_to_smem %s413, 16, [#allocation2], [#allocation3]
        $region16: #{_lambda_.2} parent=11 // pred_fallthru
          _
        // Predicated region
        $region17: #{_lambda_.2} parent=11 // pred_check
          %p416 = pneg %p91
        $region18: #{_lambda_.2} parent=11 // pred_check_branch
          %418 = sbr.rel (%p416) target = $region20
        $region19: #{_lambda_.2} parent=11 // pred_region
          _
        $region20: #{_lambda_.2} parent=11 // pred_fallthru
          _
        // Predicated region
        $region21: #{_lambda_.2} parent=11 // pred_check
          %p419 = pneg %p112
        $region22: #{_lambda_.2} parent=11 // pred_check_branch
          %421 = sbr.rel (%p419) target = $region24
        $region23: #{_lambda_.2} parent=11 // pred_region
          _
        $region24: #{_lambda_.2} parent=11 // pred_fallthru
          _
        // Predicated region
        $region25: #{_lambda_.2} parent=11 // pred_check
          %p422 = pneg %p133
        $region26: #{_lambda_.2} parent=11 // pred_check_branch
          %424 = sbr.rel (%p422) target = $region28
        $region27: #{_lambda_.2} parent=11 // pred_region
          _
        $region28: #{_lambda_.2} parent=11 // pred_fallthru
          _
        // Predicated region
        $region29: #{_lambda_.2} parent=11 // pred_check
          %p425 = pneg %p154
        $region30: #{_lambda_.2} parent=11 // pred_check_branch
          %427 = sbr.rel (%p425) target = $region32
        $region31: #{_lambda_.2} parent=11 // pred_region
          _
        $region32: #{_lambda_.2} parent=11 // pred_fallthru
          _
        // Predicated region
        $region33: #{_lambda_.2} parent=11 // pred_check
          %p428 = pneg %p175
        $region34: #{_lambda_.2} parent=11 // pred_check_branch
          %430 = sbr.rel (%p428) target = $region36
        $region35: #{_lambda_.2} parent=11 // pred_region
          _
        $region36: #{_lambda_.2} parent=11 // pred_fallthru
          _
        // Predicated region
        $region37: #{_lambda_.2} parent=11 // pred_check
          %p431 = pneg %p196
        $region38: #{_lambda_.2} parent=11 // pred_check_branch
          %433 = sbr.rel (%p431) target = $region40
        $region39: #{_lambda_.2} parent=11 // pred_region
          _
        $region40: #{_lambda_.2} parent=11 // pred_fallthru
          _
        // Predicated region
        $region41: #{_lambda_.2} parent=11 // pred_check
          %p434 = pneg %p217
        $region42: #{_lambda_.2} parent=11 // pred_check_branch
          %436 = sbr.rel (%p434) target = $region44
        $region43: #{_lambda_.2} parent=11 // pred_region
          _
        $region44: #{_lambda_.2} parent=11 // pred_fallthru
          _
        // Predicated region
        $region45: #{_lambda_.2} parent=11 // pred_check
          %p437 = pneg %p238
        $region46: #{_lambda_.2} parent=11 // pred_check_branch
          %439 = sbr.rel (%p437) target = $region48
        $region47: #{_lambda_.2} parent=11 // pred_region
          _
        $region48: #{_lambda_.2} parent=11 // pred_fallthru
          _
        // Predicated region
        $region49: #{_lambda_.2} parent=11 // pred_check
          %p440 = pneg %p259
        $region50: #{_lambda_.2} parent=11 // pred_check_branch
          %442 = sbr.rel (%p440) target = $region52
        $region51: #{_lambda_.2} parent=11 // pred_region
          _
        $region52: #{_lambda_.2} parent=11 // pred_fallthru
          _
        // Predicated region
        $region53: #{_lambda_.2} parent=11 // pred_check
          %p443 = pneg %p280
        $region54: #{_lambda_.2} parent=11 // pred_check_branch
          %445 = sbr.rel (%p443) target = $region56
        $region55: #{_lambda_.2} parent=11 // pred_region
          _
        $region56: #{_lambda_.2} parent=11 // pred_fallthru
          _
        // Predicated region
        $region57: #{_lambda_.2} parent=11 // pred_check
          %p446 = pneg %p301
        $region58: #{_lambda_.2} parent=11 // pred_check_branch
          %448 = sbr.rel (%p446) target = $region60
        $region59: #{_lambda_.2} parent=11 // pred_region
          _
        $region60: #{_lambda_.2} parent=11 // pred_fallthru
          _
        // Predicated region
        $region61: #{_lambda_.2} parent=11 // pred_check
          %p449 = pneg %p322
        $region62: #{_lambda_.2} parent=11 // pred_check_branch
          %451 = sbr.rel (%p449) target = $region64
        $region63: #{_lambda_.2} parent=11 // pred_region
          _
        $region64: #{_lambda_.2} parent=11 // pred_fallthru
          _
        // Predicated region
        $region65: #{_lambda_.2} parent=11 // pred_check
          %p452 = pneg %p343
        $region66: #{_lambda_.2} parent=11 // pred_check_branch
          %454 = sbr.rel (%p452) target = $region68
        $region67: #{_lambda_.2} parent=11 // pred_region
          _
        $region68: #{_lambda_.2} parent=11 // pred_fallthru
          _
        // Predicated region
        $region69: #{_lambda_.2} parent=11 // pred_check
          %p455 = pneg %p364
        $region70: #{_lambda_.2} parent=11 // pred_check_branch
          %457 = sbr.rel (%p455) target = $region72
        $region71: #{_lambda_.2} parent=11 // pred_region
          _
        $region72: #{_lambda_.2} parent=11 // pred_fallthru
          _
      $region12: #{_lambda_.2} parent=5 // pred_fallthru
        _
      %p458 = scmp.lt.s32.totalorder %s23, 2
      // Predicated region
      $region73: #{_lambda_.2} parent=5 // pred_check
        %p459 = pneg %p458
      $region74: #{_lambda_.2} parent=5 // pred_check_branch
        %461 = sbr.rel (%p459) target = $region76
      $region75: #{_lambda_.2} parent=5 // pred_region
        // Predicated region
        $region77: #{_lambda_.2} parent=75 // pred_check
          %p462 = pneg %p64
        $region78: #{_lambda_.2} parent=75 // pred_check_branch
          %464 = sbr.rel (%p462) target = $region80
        $region79: #{_lambda_.2} parent=75 // pred_region
          %p465 = scmp.lt.s32.totalorder %s23, 1
          %s466 = scalar_select %p465, %s23, 1
          %s467 = smul.addr %s466, 4
          %s468 = smul.addr %s467, 4
          %s469 = scalar_lea.vmem %s1, %s468
        $region80: #{_lambda_.2} parent=75 // pred_fallthru
          _
      $region76: #{_lambda_.2} parent=5 // pred_fallthru
        _
      %p470 = scmp.le.s32.totalorder 1, %s23
      %p471 = scmp.lt.s32.totalorder %s23, 3
      %p472 = pnand %p470, %p471
      %p473 = pneg %p472
      // Predicated region
      $region81: #{_lambda_.2} parent=5 // pred_check
        _
      $region82: #{_lambda_.2} parent=5 // pred_check_branch
        %475 = sbr.rel (%p472) target = $region84
      $region83: #{_lambda_.2} parent=5 // pred_region
        %s476 = ssub.s32 %s23, 1
        // Predicated region
        $region85: #{_lambda_.2} parent=83 // pred_check
          %p477 = pneg %p44
        $region86: #{_lambda_.2} parent=83 // pred_check_branch
          %479 = sbr.rel (%p477) target = $region88
        $region87: #{_lambda_.2} parent=83 // pred_region
          %480 = dma.done [#allocation3], 16
        $region88: #{_lambda_.2} parent=83 // pred_fallthru
          _
        %481 = sfence
        %p482 = pneg %p44
        %p483 = pneg %p41
        %p484 = scmp.lt.s32.totalorder %s28, 1
        %s485 = scalar_select %p484, %s28, 1
        %s486 = smul.addr %s485, 4
        %s487 = smul.addr %s486, 4
        %s488 = scalar_lea.vmem %s1, %s487
        %p489 = pneg %p70
        %p490 = pneg %p67
        %p491 = pneg %p91
        %p492 = pneg %p88
        %p493 = pneg %p112
        %p494 = pneg %p109
        %p495 = pneg %p133
        %p496 = pneg %p130
        %p497 = pneg %p154
        %p498 = pneg %p151
        %p499 = pneg %p175
        %p500 = pneg %p172
        %p501 = pneg %p196
        %p502 = pneg %p193
        %p503 = pneg %p217
        %p504 = pneg %p214
        %p505 = pneg %p238
        %p506 = pneg %p235
        %p507 = pneg %p259
        %p508 = pneg %p256
        %p509 = pneg %p280
        %p510 = pneg %p277
        %p511 = pneg %p301
        %p512 = pneg %p298
        %p513 = pneg %p322
        %p514 = pneg %p319
        %p515 = pneg %p343
        %p516 = pneg %p340
        %p517 = pneg %p364
        %p518 = pneg %p361
        %p519 = pneg %p390
        %p520 = pneg %p387
        %p521 = scmp.lt.s32.totalorder %s28, 1
        %s522 = scalar_select %p521, %s28, 1
        %s523 = smul.addr %s522, 16
        %s524 = smul.addr %s523, 4
        %s525 = scalar_lea.vmem %s16, %s524
        %p526 = scmp.lt.s32.totalorder %s28, 1
        %s527 = scalar_select %p526, %s28, 1
        %s528 = smul.addr %s527, 4
        %s529 = smul.addr %s528, 4
        %s530 = scalar_lea.vmem %s1, %s529
        %p531 = scmp.lt.s32.totalorder %s28, 1
        %s532 = scalar_select %p531, %s28, 1
        %s533 = smul.addr %s532, 16
        %s534 = smul.addr %s533, 4
        %s535 = scalar_lea.vmem %s16, %s534
        %v537 = vld [vmem:[%s530] sm:$0xf]
        %v538 = vld [vmem:[%s530 + $0x4] sm:$0xf]
        %v539 = vld [vmem:[%s530 + $0x8] sm:$0xf]
        %v540 = vld [vmem:[%s530 + $0xc] sm:$0xf]
        %s541 = sld [smem:[#allocation2]]
        %s542 = sld [smem:[#allocation2 + $0x1]]
        %s543 = sld [smem:[#allocation2 + $0x2]]
        %v544 = vld [vmem:[%s2] sm:$0xf]
        %v545 = vld [vmem:[%s2 + $0x4] sm:$0xf]
        %v546 = vld [vmem:[%s2 + $0x8] sm:$0xf]
        %v547 = vld [vmem:[%s2 + $0xc] sm:$0xf]
        %v548 = vld [vmem:[%s2 + $0x10] sm:$0xf]
        %v549 = vld [vmem:[%s2 + $0x14] sm:$0xf]
        %v550 = vld [vmem:[%s2 + $0x18] sm:$0xf]
        %v551 = vld [vmem:[%s2 + $0x1c] sm:$0xf]
        %v552 = vld [vmem:[%s2 + $0x20] sm:$0xf]
        %v553 = vld [vmem:[%s2 + $0x24] sm:$0xf]
        %v554 = vld [vmem:[%s2 + $0x28] sm:$0xf]
        %v555 = vld [vmem:[%s2 + $0x2c] sm:$0xf]
        %v556 = vld [vmem:[%s2 + $0x30] sm:$0xf]
        %v557 = vld [vmem:[%s2 + $0x34] sm:$0xf]
        %v558 = vld [vmem:[%s2 + $0x38] sm:$0xf]
        %v559 = vld [vmem:[%s2 + $0x3c] sm:$0xf]
        %v560 = vld [vmem:[%s2 + $0x40] sm:$0xf]
        %v561 = vld [vmem:[%s2 + $0x44] sm:$0xf]
        %v562 = vld [vmem:[%s2 + $0x48] sm:$0xf]
        %v563 = vld [vmem:[%s2 + $0x4c] sm:$0xf]
        %v564 = vld [vmem:[%s2 + $0x50] sm:$0xf]
        %v565 = vld [vmem:[%s2 + $0x54] sm:$0xf]
        %v566 = vld [vmem:[%s2 + $0x58] sm:$0xf]
        %v567 = vld [vmem:[%s2 + $0x5c] sm:$0xf]
        %v568 = vld [vmem:[%s3] sm:$0xff]
        %v569 = vld [vmem:[%s3 + $0x8] sm:$0xff]
        %v570 = vld [vmem:[%s3 + $0x10] sm:$0xff]
        %v571 = vld [vmem:[%s3 + $0x18] sm:$0xff]
        %v572 = vld [vmem:[%s3 + $0x20] sm:$0xff]
        %v573 = vld [vmem:[%s3 + $0x28] sm:$0xff]
        %v574 = vld [vmem:[%s3 + $0x30] sm:$0xff]
        %v575 = vld [vmem:[%s3 + $0x38] sm:$0xff]
        %v576 = vld [vmem:[%s3 + $0x40] sm:$0xff]
        %v577 = vld [vmem:[%s3 + $0x48] sm:$0xff]
        %v578 = vld [vmem:[%s3 + $0x50] sm:$0xff]
        %v579 = vld [vmem:[%s3 + $0x58] sm:$0xff]
        %v580 = vld [vmem:[%s3 + $0x60] sm:$0xff]
        %v581 = vld [vmem:[%s3 + $0x68] sm:$0xff]
        %v582 = vld [vmem:[%s3 + $0x70] sm:$0xff]
        %v583 = vld [vmem:[%s3 + $0x78] sm:$0xff]
        %v584 = vld [vmem:[%s3 + $0x80] sm:$0xff]
        %v585 = vld [vmem:[%s3 + $0x88] sm:$0xff]
        %v586 = vld [vmem:[%s3 + $0x90] sm:$0xff]
        %v587 = vld [vmem:[%s3 + $0x98] sm:$0xff]
        %v588 = vld [vmem:[%s3 + $0xa0] sm:$0xff]
        %v589 = vld [vmem:[%s3 + $0xa8] sm:$0xff]
        %v590 = vld [vmem:[%s3 + $0xb0] sm:$0xff]
        %v591 = vld [vmem:[%s3 + $0xb8] sm:$0xff]
        %593 = vset.pattern.permute.xlu0 0
        %594 = vperm.xlu0 %593, %v568
        %v595 = vpop.permute.xlu0 %594
        %598 = vset.pattern.permute.xlu0 0
        %599 = vperm.xlu0 %598, %v569
        %v600 = vpop.permute.xlu0 %599
        %603 = vset.pattern.permute.xlu0 0
        %604 = vperm.xlu0 %603, %v570
        %v605 = vpop.permute.xlu0 %604
        %608 = vset.pattern.permute.xlu0 0
        %609 = vperm.xlu0 %608, %v571
        %v610 = vpop.permute.xlu0 %609
        %613 = vset.pattern.permute.xlu0 0
        %614 = vperm.xlu0 %613, %v572
        %v615 = vpop.permute.xlu0 %614
        %618 = vset.pattern.permute.xlu0 0
        %619 = vperm.xlu0 %618, %v573
        %v620 = vpop.permute.xlu0 %619
        %623 = vset.pattern.permute.xlu0 0
        %624 = vperm.xlu0 %623, %v574
        %v625 = vpop.permute.xlu0 %624
        %628 = vset.pattern.permute.xlu0 0
        %629 = vperm.xlu0 %628, %v575
        %v630 = vpop.permute.xlu0 %629
        %633 = vset.pattern.permute.xlu0 0
        %634 = vperm.xlu0 %633, %v576
        %v635 = vpop.permute.xlu0 %634
        %638 = vset.pattern.permute.xlu0 0
        %639 = vperm.xlu0 %638, %v577
        %v640 = vpop.permute.xlu0 %639
        %643 = vset.pattern.permute.xlu0 0
        %644 = vperm.xlu0 %643, %v578
        %v645 = vpop.permute.xlu0 %644
        %648 = vset.pattern.permute.xlu0 0
        %649 = vperm.xlu0 %648, %v579
        %v650 = vpop.permute.xlu0 %649
        %653 = vset.pattern.permute.xlu0 0
        %654 = vperm.xlu0 %653, %v580
        %v655 = vpop.permute.xlu0 %654
        %658 = vset.pattern.permute.xlu0 0
        %659 = vperm.xlu0 %658, %v581
        %v660 = vpop.permute.xlu0 %659
        %663 = vset.pattern.permute.xlu0 0
        %664 = vperm.xlu0 %663, %v582
        %v665 = vpop.permute.xlu0 %664
        %668 = vset.pattern.permute.xlu0 0
        %669 = vperm.xlu0 %668, %v583
        %v670 = vpop.permute.xlu0 %669
        %673 = vset.pattern.permute.xlu0 0
        %674 = vperm.xlu0 %673, %v584
        %v675 = vpop.permute.xlu0 %674
        %678 = vset.pattern.permute.xlu0 0
        %679 = vperm.xlu0 %678, %v585
        %v680 = vpop.permute.xlu0 %679
        %683 = vset.pattern.permute.xlu0 0
        %684 = vperm.xlu0 %683, %v586
        %v685 = vpop.permute.xlu0 %684
        %688 = vset.pattern.permute.xlu0 0
        %689 = vperm.xlu0 %688, %v587
        %v690 = vpop.permute.xlu0 %689
        %693 = vset.pattern.permute.xlu0 0
        %694 = vperm.xlu0 %693, %v588
        %v695 = vpop.permute.xlu0 %694
        %698 = vset.pattern.permute.xlu0 0
        %699 = vperm.xlu0 %698, %v589
        %v700 = vpop.permute.xlu0 %699
        %703 = vset.pattern.permute.xlu0 0
        %704 = vperm.xlu0 %703, %v590
        %v705 = vpop.permute.xlu0 %704
        %708 = vset.pattern.permute.xlu0 0
        %709 = vperm.xlu0 %708, %v591
        %v710 = vpop.permute.xlu0 %709
        %v736 = vunpack.c.l.b16 %v544
        %v737 = vunpack.c.l.b16 %v545
        %v738 = vunpack.c.l.b16 %v546
        %v739 = vunpack.c.l.b16 %v547
        %v740 = vunpack.c.l.b16 %v548
        %v741 = vunpack.c.l.b16 %v549
        %v742 = vunpack.c.l.b16 %v550
        %v743 = vunpack.c.l.b16 %v551
        %v744 = vunpack.c.l.b16 %v552
        %v745 = vunpack.c.l.b16 %v553
        %v746 = vunpack.c.l.b16 %v554
        %v747 = vunpack.c.l.b16 %v555
        %v748 = vunpack.c.l.b16 %v556
        %v749 = vunpack.c.l.b16 %v557
        %v750 = vunpack.c.l.b16 %v558
        %v751 = vunpack.c.l.b16 %v559
        %v752 = vunpack.c.l.b16 %v560
        %v753 = vunpack.c.l.b16 %v561
        %v754 = vunpack.c.l.b16 %v562
        %v755 = vunpack.c.l.b16 %v563
        %v756 = vunpack.c.l.b16 %v564
        %v757 = vunpack.c.l.b16 %v565
        %v758 = vunpack.c.l.b16 %v566
        %v759 = vunpack.c.l.b16 %v567
        %v760 = vpack.c.b16 %v737, %v736
        %v761 = vpack.c.b16 %v739, %v738
        %v762 = vpack.c.b16 %v741, %v740
        %v763 = vpack.c.b16 %v743, %v742
        %v764 = vpack.c.b16 %v745, %v744
        %v765 = vpack.c.b16 %v747, %v746
        %v766 = vpack.c.b16 %v749, %v748
        %v767 = vpack.c.b16 %v751, %v750
        %v768 = vpack.c.b16 %v753, %v752
        %v769 = vpack.c.b16 %v755, %v754
        %v770 = vpack.c.b16 %v757, %v756
        %v771 = vpack.c.b16 %v759, %v758
        %v776 = vunpack.c.l.b16 %v537
        %v777 = vunpack.c.l.b16 %v538
        %v778 = vunpack.c.l.b16 %v539
        %v779 = vunpack.c.l.b16 %v540
        %v780 = vpack.c.b16 %v777, %v776
        %v781 = vpack.c.b16 %v779, %v778
        %vm784 = vcmask 261120
        %v786 = vsel %vm784, %v760, 0
        %v789 = vsel %vm784, %v761, 0
        %v792 = vsel %vm784, %v762, 0
        %v795 = vsel %vm784, %v763, 0
        %v798 = vsel %vm784, %v764, 0
        %v801 = vsel %vm784, %v765, 0
        %v804 = vsel %vm784, %v766, 0
        %v807 = vsel %vm784, %v767, 0
        %v810 = vsel %vm784, %v768, 0
        %v813 = vsel %vm784, %v769, 0
        %v816 = vsel %vm784, %v770, 0
        %v819 = vsel %vm784, %v771, 0
        %821 = vmatprep.subr.bf16.mxu0 0
        %822 = vmatpush1.bf16.msra.mxu0 0
        %823 = vmatprep.subr.bf16.mxu0 0
        %824 = vmatpush1.bf16.msra.mxu0 0
        %825 = vmatprep.subr.bf16.mxu0 0
        %826 = vmatpush1.bf16.msra.mxu0 0
        %827 = vmatprep.subr.bf16.mxu0 0
        %828 = vmatpush1.bf16.msra.mxu0 0
        %829 = vmatprep.subr.bf16.mxu0 0
        %830 = vmatpush1.bf16.msra.mxu0 0
        %831 = vmatprep.subr.bf16.mxu0 0
        %832 = vmatpush1.bf16.msra.mxu0 0
        %833 = vmatprep.subr.bf16.mxu0 0
        %834 = vmatpush1.bf16.msra.mxu0 %v781
        %835 = vmatprep.subr.bf16.mxu0 0
        %836 = vmatpush1.bf16.msra.mxu0 %v780
        %837 = vmatprep.subr.bf16.mxu0 0
        %838 = vmatpush2.bf16.msra.mxu0 0
        %839 = vmatprep.subr.bf16.mxu0 0
        %840 = vmatpush2.bf16.msra.mxu0 0
        %841 = vmatprep.subr.bf16.mxu0 0
        %842 = vmatpush2.bf16.msra.mxu0 0
        %843 = vmatprep.subr.bf16.mxu0 0
        %844 = vmatpush2.bf16.msra.mxu0 0
        %845 = vmatprep.subr.bf16.mxu0 0
        %846 = vmatpush2.bf16.msra.mxu0 0
        %847 = vmatprep.subr.bf16.mxu0 0
        %848 = vmatpush2.bf16.msra.mxu0 0
        %849 = vmatprep.subr.bf16.mxu0 0
        %850 = vmatpush2.bf16.msra.mxu0 0
        %851 = vmatprep.subr.bf16.mxu0 0
        %852 = vmatpush2.bf16.msra.mxu0 0
        %853 = vmatprep.mubr.bf16.mxu0 0
        %854 = vmatmul.mubr.bf16.gmra.mxu0 %v786
        %v855 = vpop.f32.mrf.mxu0
        %v856 = vadd.f32 %v595, %v855
        %v857 = vpop.f32.mrf.mxu0
        %v858 = vpop.f32.mrf.mxu0
        %v859 = vadd.f32 %v600, %v858
        %v860 = vpop.f32.mrf.mxu0
        %861 = vmatprep.mubr.bf16.mxu0 0
        %862 = vmatmul.mubr.bf16.gmra.mxu0 %v789
        %v863 = vpop.f32.mrf.mxu0
        %v864 = vadd.f32 %v605, %v863
        %v865 = vpop.f32.mrf.mxu0
        %v866 = vpop.f32.mrf.mxu0
        %v867 = vadd.f32 %v610, %v866
        %v868 = vpop.f32.mrf.mxu0
        %869 = vmatprep.mubr.bf16.mxu0 0
        %870 = vmatmul.mubr.bf16.gmra.mxu0 %v792
        %v871 = vpop.f32.mrf.mxu0
        %v872 = vadd.f32 %v615, %v871
        %v873 = vpop.f32.mrf.mxu0
        %v874 = vpop.f32.mrf.mxu0
        %v875 = vadd.f32 %v620, %v874
        %v876 = vpop.f32.mrf.mxu0
        %877 = vmatprep.mubr.bf16.mxu0 0
        %878 = vmatmul.mubr.bf16.gmra.mxu0 %v795
        %v879 = vpop.f32.mrf.mxu0
        %v880 = vadd.f32 %v625, %v879
        %v881 = vpop.f32.mrf.mxu0
        %v882 = vpop.f32.mrf.mxu0
        %v883 = vadd.f32 %v630, %v882
        %v884 = vpop.f32.mrf.mxu0
        %885 = vmatprep.mubr.bf16.mxu0 0
        %886 = vmatmul.mubr.bf16.gmra.mxu0 %v798
        %v887 = vpop.f32.mrf.mxu0
        %v888 = vadd.f32 %v635, %v887
        %v889 = vpop.f32.mrf.mxu0
        %v890 = vpop.f32.mrf.mxu0
        %v891 = vadd.f32 %v640, %v890
        %v892 = vpop.f32.mrf.mxu0
        %893 = vmatprep.mubr.bf16.mxu0 0
        %894 = vmatmul.mubr.bf16.gmra.mxu0 %v801
        %v895 = vpop.f32.mrf.mxu0
        %v896 = vadd.f32 %v645, %v895
        %v897 = vpop.f32.mrf.mxu0
        %v898 = vpop.f32.mrf.mxu0
        %v899 = vadd.f32 %v650, %v898
        %v900 = vpop.f32.mrf.mxu0
        %901 = vmatprep.mubr.bf16.mxu0 0
        %902 = vmatmul.mubr.bf16.gmra.mxu0 %v804
        %v903 = vpop.f32.mrf.mxu0
        %v904 = vadd.f32 %v655, %v903
        %v905 = vpop.f32.mrf.mxu0
        %v906 = vpop.f32.mrf.mxu0
        %v907 = vadd.f32 %v660, %v906
        %v908 = vpop.f32.mrf.mxu0
        %909 = vmatprep.mubr.bf16.mxu0 0
        %910 = vmatmul.mubr.bf16.gmra.mxu0 %v807
        %v911 = vpop.f32.mrf.mxu0
        %v912 = vadd.f32 %v665, %v911
        %v913 = vpop.f32.mrf.mxu0
        %v914 = vpop.f32.mrf.mxu0
        %v915 = vadd.f32 %v670, %v914
        %v916 = vpop.f32.mrf.mxu0
        %917 = vmatprep.mubr.bf16.mxu0 0
        %918 = vmatmul.mubr.bf16.gmra.mxu0 %v810
        %v919 = vpop.f32.mrf.mxu0
        %v920 = vadd.f32 %v675, %v919
        %v921 = vpop.f32.mrf.mxu0
        %v922 = vpop.f32.mrf.mxu0
        %v923 = vadd.f32 %v680, %v922
        %v924 = vpop.f32.mrf.mxu0
        %925 = vmatprep.mubr.bf16.mxu0 0
        %926 = vmatmul.mubr.bf16.gmra.mxu0 %v813
        %v927 = vpop.f32.mrf.mxu0
        %v928 = vadd.f32 %v685, %v927
        %v929 = vpop.f32.mrf.mxu0
        %v930 = vpop.f32.mrf.mxu0
        %v931 = vadd.f32 %v690, %v930
        %v932 = vpop.f32.mrf.mxu0
        %933 = vmatprep.mubr.bf16.mxu0 0
        %934 = vmatmul.mubr.bf16.gmra.mxu0 %v816
        %v935 = vpop.f32.mrf.mxu0
        %v936 = vadd.f32 %v695, %v935
        %v937 = vpop.f32.mrf.mxu0
        %v938 = vpop.f32.mrf.mxu0
        %v939 = vadd.f32 %v700, %v938
        %v940 = vpop.f32.mrf.mxu0
        %941 = vmatprep.mubr.bf16.mxu0 0
        %942 = vmatmul.mubr.bf16.gmra.mxu0 %v819
        %v943 = vpop.f32.mrf.mxu0
        %v944 = vadd.f32 %v705, %v943
        %v945 = vpop.f32.mrf.mxu0
        %v946 = vpop.f32.mrf.mxu0
        %v947 = vadd.f32 %v710, %v946
        %v948 = vpop.f32.mrf.mxu0
        %949 = vdwg.mxu0
        %950 = vxpose.xlu0.b32.start [1/16] %v856, 128
        %951 = vxpose.xlu0.b32.cont [2/16] %v859, 128
        %952 = vxpose.xlu0.b32.cont [3/16] %v864, 128
        %953 = vxpose.xlu0.b32.cont [4/16] %v867, 128
        %954 = vxpose.xlu0.b32.cont [5/16] 0.0, 128
        %955 = vxpose.xlu0.b32.cont [6/16] 0.0, 128
        %956 = vxpose.xlu0.b32.cont [7/16] 0.0, 128
        %957 = vxpose.xlu0.b32.cont [8/16] 0.0, 128
        %958 = vxpose.xlu0.b32.cont [9/16] 0.0, 128
        %959 = vxpose.xlu0.b32.cont [10/16] 0.0, 128
        %960 = vxpose.xlu0.b32.cont [11/16] 0.0, 128
        %961 = vxpose.xlu0.b32.cont [12/16] 0.0, 128
        %962 = vxpose.xlu0.b32.cont [13/16] 0.0, 128
        %963 = vxpose.xlu0.b32.cont [14/16] 0.0, 128
        %964 = vxpose.xlu0.b32.cont [15/16] 0.0, 128
        %965 = vxpose.xlu0.b32.end [16/16] 0.0, 128
        %v966 = vpop.trf.xlu0
        %v967 = vpop.trf.xlu0
        %v968 = vpop.trf.xlu0
        %v969 = vpop.trf.xlu0
        %v970 = vpop.trf.xlu0
        %v971 = vpop.trf.xlu0
        %v972 = vpop.trf.xlu0
        %v973 = vpop.trf.xlu0
        %v974 = vpop.trf.xlu0
        %v975 = vpop.trf.xlu0
        %v976 = vpop.trf.xlu0
        %v977 = vpop.trf.xlu0
        %v978 = vpop.trf.xlu0
        %v979 = vpop.trf.xlu0
        %v980 = vpop.trf.xlu0
        %v981 = vpop.trf.xlu0
        %v983 = vsel %vm784, %v966, 0
        %v986 = vsel %vm784, %v967, 0
        %v989 = vsel %vm784, %v968, 0
        %v992 = vsel %vm784, %v969, 0
        %v995 = vsel %vm784, %v970, 0
        %v998 = vsel %vm784, %v971, 0
        %v1001 = vsel %vm784, %v972, 0
        %v1004 = vsel %vm784, %v973, 0
        %v1007 = vsel %vm784, %v974, 0
        %v1010 = vsel %vm784, %v975, 0
        %v1013 = vsel %vm784, %v976, 0
        %v1016 = vsel %vm784, %v977, 0
        %v1019 = vsel %vm784, %v978, 0
        %v1022 = vsel %vm784, %v979, 0
        %v1025 = vsel %vm784, %v980, 0
        %v1028 = vsel %vm784, %v981, 0
        %1030 = vmatprep.subr.mxu0 0.0
        %1031 = vmatpush1.msra.mxu0 0.0
        %1032 = vmatprep.subr.mxu0 0.0
        %1033 = vmatpush1.msra.mxu0 0.0
        %1034 = vmatprep.subr.mxu0 0.0
        %1035 = vmatpush1.msra.mxu0 0.0
        %1036 = vmatprep.subr.mxu0 0.0
        %1037 = vmatpush1.msra.mxu0 0.0
        %1038 = vmatprep.subr.mxu0 0.0
        %1039 = vmatpush1.msra.mxu0 0.0
        %1040 = vmatprep.subr.mxu0 0.0
        %1041 = vmatpush1.msra.mxu0 0.0
        %1042 = vmatprep.subr.mxu0 0.0
        %1043 = vmatpush1.msra.mxu0 0.0
        %1044 = vmatprep.subr.mxu0 0.0
        %1045 = vmatpush1.msra.mxu0 0.0
        %1046 = vmatprep.subr.mxu0 0.0
        %1047 = vmatpush1.msra.mxu0 0.0
        %1048 = vmatprep.subr.mxu0 0.0
        %1049 = vmatpush1.msra.mxu0 0.0
        %1050 = vmatprep.subr.mxu0 0.0
        %1051 = vmatpush1.msra.mxu0 0.0
        %1052 = vmatprep.subr.mxu0 0.0
        %1053 = vmatpush1.msra.mxu0 0.0
        %1054 = vmatprep.subr.mxu0 0.0
        %1055 = vmatpush1.msra.mxu0 %v915
        %1056 = vmatprep.subr.mxu0 0.0
        %1057 = vmatpush1.msra.mxu0 %v912
        %1058 = vmatprep.subr.mxu0 0.0
        %1059 = vmatpush1.msra.mxu0 %v907
        %1060 = vmatprep.subr.mxu0 0.0
        %1061 = vmatpush1.msra.mxu0 %v904
        %1062 = vmatprep.subr.mxu0 0.0
        %1063 = vmatpush2.msra.mxu0 0.0
        %1064 = vmatprep.subr.mxu0 0.0
        %1065 = vmatpush2.msra.mxu0 0.0
        %1066 = vmatprep.subr.mxu0 0.0
        %1067 = vmatpush2.msra.mxu0 0.0
        %1068 = vmatprep.subr.mxu0 0.0
        %1069 = vmatpush2.msra.mxu0 0.0
        %1070 = vmatprep.subr.mxu0 0.0
        %1071 = vmatpush2.msra.mxu0 0.0
        %1072 = vmatprep.subr.mxu0 0.0
        %1073 = vmatpush2.msra.mxu0 0.0
        %1074 = vmatprep.subr.mxu0 0.0
        %1075 = vmatpush2.msra.mxu0 0.0
        %1076 = vmatprep.subr.mxu0 0.0
        %1077 = vmatpush2.msra.mxu0 0.0
        %1078 = vmatprep.subr.mxu0 0.0
        %1079 = vmatpush2.msra.mxu0 0.0
        %1080 = vmatprep.subr.mxu0 0.0
        %1081 = vmatpush2.msra.mxu0 0.0
        %1082 = vmatprep.subr.mxu0 0.0
        %1083 = vmatpush2.msra.mxu0 0.0
        %1084 = vmatprep.subr.mxu0 0.0
        %1085 = vmatpush2.msra.mxu0 0.0
        %1086 = vmatprep.subr.mxu0 0.0
        %1087 = vmatpush2.msra.mxu0 0.0
        %1088 = vmatprep.subr.mxu0 0.0
        %1089 = vmatpush2.msra.mxu0 0.0
        %1090 = vmatprep.subr.mxu0 0.0
        %1091 = vmatpush2.msra.mxu0 0.0
        %1092 = vmatprep.subr.mxu0 0.0
        %1093 = vmatpush2.msra.mxu0 0.0
        %1094 = vmatprep.mubr.f32.mxu0 0.0
        %1095 = vmatmul.mubr.f32.gmra.mxu0 %v983
        %v1096 = vpop.f32.mrf.mxu0
        %v1097 = vadd.f32 0.0, %v1096
        %v1098 = vpop.f32.mrf.mxu0
        %1099 = vmatprep.mubr.f32.mxu0 0.0
        %1100 = vmatmul.mubr.f32.gmra.mxu0 %v986
        %v1101 = vpop.f32.mrf.mxu0
        %v1102 = vadd.f32 0.0, %v1101
        %v1103 = vpop.f32.mrf.mxu0
        %1104 = vmatprep.mubr.f32.mxu0 0.0
        %1105 = vmatmul.mubr.f32.gmra.mxu0 %v989
        %v1106 = vpop.f32.mrf.mxu0
        %v1107 = vadd.f32 0.0, %v1106
        %v1108 = vpop.f32.mrf.mxu0
        %1109 = vmatprep.mubr.f32.mxu0 0.0
        %1110 = vmatmul.mubr.f32.gmra.mxu0 %v992
        %v1111 = vpop.f32.mrf.mxu0
        %v1112 = vadd.f32 0.0, %v1111
        %v1113 = vpop.f32.mrf.mxu0
        %1114 = vmatprep.mubr.f32.mxu0 0.0
        %1115 = vmatmul.mubr.f32.gmra.mxu0 %v995
        %v1116 = vpop.f32.mrf.mxu0
        %v1117 = vadd.f32 0.0, %v1116
        %v1118 = vpop.f32.mrf.mxu0
        %1119 = vmatprep.mubr.f32.mxu0 0.0
        %1120 = vmatmul.mubr.f32.gmra.mxu0 %v998
        %v1121 = vpop.f32.mrf.mxu0
        %v1122 = vadd.f32 0.0, %v1121
        %v1123 = vpop.f32.mrf.mxu0
        %1124 = vmatprep.mubr.f32.mxu0 0.0
        %1125 = vmatmul.mubr.f32.gmra.mxu0 %v1001
        %v1126 = vpop.f32.mrf.mxu0
        %v1127 = vadd.f32 0.0, %v1126
        %v1128 = vpop.f32.mrf.mxu0
        %1129 = vmatprep.mubr.f32.mxu0 0.0
        %1130 = vmatmul.mubr.f32.gmra.mxu0 %v1004
        %v1131 = vpop.f32.mrf.mxu0
        %v1132 = vadd.f32 0.0, %v1131
        %v1133 = vpop.f32.mrf.mxu0
        %1134 = vmatprep.mubr.f32.mxu0 0.0
        %1135 = vmatmul.mubr.f32.gmra.mxu0 %v1007
        %v1136 = vpop.f32.mrf.mxu0
        %v1137 = vadd.f32 0.0, %v1136
        %v1138 = vpop.f32.mrf.mxu0
        %1139 = vmatprep.mubr.f32.mxu0 0.0
        %1140 = vmatmul.mubr.f32.gmra.mxu0 %v1010
        %v1141 = vpop.f32.mrf.mxu0
        %v1142 = vadd.f32 0.0, %v1141
        %v1143 = vpop.f32.mrf.mxu0
        %1144 = vmatprep.mubr.f32.mxu0 0.0
        %1145 = vmatmul.mubr.f32.gmra.mxu0 %v1013
        %v1146 = vpop.f32.mrf.mxu0
        %v1147 = vadd.f32 0.0, %v1146
        %v1148 = vpop.f32.mrf.mxu0
        %1149 = vmatprep.mubr.f32.mxu0 0.0
        %1150 = vmatmul.mubr.f32.gmra.mxu0 %v1016
        %v1151 = vpop.f32.mrf.mxu0
        %v1152 = vadd.f32 0.0, %v1151
        %v1153 = vpop.f32.mrf.mxu0
        %1154 = vmatprep.mubr.f32.mxu0 0.0
        %1155 = vmatmul.mubr.f32.gmra.mxu0 %v1019
        %v1156 = vpop.f32.mrf.mxu0
        %v1157 = vadd.f32 0.0, %v1156
        %v1158 = vpop.f32.mrf.mxu0
        %1159 = vmatprep.mubr.f32.mxu0 0.0
        %1160 = vmatmul.mubr.f32.gmra.mxu0 %v1022
        %v1161 = vpop.f32.mrf.mxu0
        %v1162 = vadd.f32 0.0, %v1161
        %v1163 = vpop.f32.mrf.mxu0
        %1164 = vmatprep.mubr.f32.mxu0 0.0
        %1165 = vmatmul.mubr.f32.gmra.mxu0 %v1025
        %v1166 = vpop.f32.mrf.mxu0
        %v1167 = vadd.f32 0.0, %v1166
        %v1168 = vpop.f32.mrf.mxu0
        %1169 = vmatprep.mubr.f32.mxu0 0.0
        %1170 = vmatmul.mubr.f32.gmra.mxu0 %v1028
        %v1171 = vpop.f32.mrf.mxu0
        %v1172 = vadd.f32 0.0, %v1171
        %v1173 = vpop.f32.mrf.mxu0
        %1174 = vdwg.mxu0
        %1175 = vxpose.xlu0.b32.start [1/16] %v872, 128
        %1176 = vxpose.xlu0.b32.cont [2/16] %v875, 128
        %1177 = vxpose.xlu0.b32.cont [3/16] %v880, 128
        %1178 = vxpose.xlu0.b32.cont [4/16] %v883, 128
        %1179 = vxpose.xlu0.b32.cont [5/16] 0.0, 128
        %1180 = vxpose.xlu0.b32.cont [6/16] 0.0, 128
        %1181 = vxpose.xlu0.b32.cont [7/16] 0.0, 128
        %1182 = vxpose.xlu0.b32.cont [8/16] 0.0, 128
        %1183 = vxpose.xlu0.b32.cont [9/16] 0.0, 128
        %1184 = vxpose.xlu0.b32.cont [10/16] 0.0, 128
        %1185 = vxpose.xlu0.b32.cont [11/16] 0.0, 128
        %1186 = vxpose.xlu0.b32.cont [12/16] 0.0, 128
        %1187 = vxpose.xlu0.b32.cont [13/16] 0.0, 128
        %1188 = vxpose.xlu0.b32.cont [14/16] 0.0, 128
        %1189 = vxpose.xlu0.b32.cont [15/16] 0.0, 128
        %1190 = vxpose.xlu0.b32.end [16/16] 0.0, 128
        %v1191 = vpop.trf.xlu0
        %v1192 = vpop.trf.xlu0
        %v1193 = vpop.trf.xlu0
        %v1194 = vpop.trf.xlu0
        %v1195 = vpop.trf.xlu0
        %v1196 = vpop.trf.xlu0
        %v1197 = vpop.trf.xlu0
        %v1198 = vpop.trf.xlu0
        %v1199 = vpop.trf.xlu0
        %v1200 = vpop.trf.xlu0
        %v1201 = vpop.trf.xlu0
        %v1202 = vpop.trf.xlu0
        %v1203 = vpop.trf.xlu0
        %v1204 = vpop.trf.xlu0
        %v1205 = vpop.trf.xlu0
        %v1206 = vpop.trf.xlu0
        %v1208 = vsel %vm784, %v1191, 0
        %v1211 = vsel %vm784, %v1192, 0
        %v1214 = vsel %vm784, %v1193, 0
        %v1217 = vsel %vm784, %v1194, 0
        %v1220 = vsel %vm784, %v1195, 0
        %v1223 = vsel %vm784, %v1196, 0
        %v1226 = vsel %vm784, %v1197, 0
        %v1229 = vsel %vm784, %v1198, 0
        %v1232 = vsel %vm784, %v1199, 0
        %v1235 = vsel %vm784, %v1200, 0
        %v1238 = vsel %vm784, %v1201, 0
        %v1241 = vsel %vm784, %v1202, 0
        %v1244 = vsel %vm784, %v1203, 0
        %v1247 = vsel %vm784, %v1204, 0
        %v1250 = vsel %vm784, %v1205, 0
        %v1253 = vsel %vm784, %v1206, 0
        %1255 = vmatprep.subr.mxu0 0.0
        %1256 = vmatpush1.msra.mxu0 0.0
        %1257 = vmatprep.subr.mxu0 0.0
        %1258 = vmatpush1.msra.mxu0 0.0
        %1259 = vmatprep.subr.mxu0 0.0
        %1260 = vmatpush1.msra.mxu0 0.0
        %1261 = vmatprep.subr.mxu0 0.0
        %1262 = vmatpush1.msra.mxu0 0.0
        %1263 = vmatprep.subr.mxu0 0.0
        %1264 = vmatpush1.msra.mxu0 0.0
        %1265 = vmatprep.subr.mxu0 0.0
        %1266 = vmatpush1.msra.mxu0 0.0
        %1267 = vmatprep.subr.mxu0 0.0
        %1268 = vmatpush1.msra.mxu0 0.0
        %1269 = vmatprep.subr.mxu0 0.0
        %1270 = vmatpush1.msra.mxu0 0.0
        %1271 = vmatprep.subr.mxu0 0.0
        %1272 = vmatpush1.msra.mxu0 0.0
        %1273 = vmatprep.subr.mxu0 0.0
        %1274 = vmatpush1.msra.mxu0 0.0
        %1275 = vmatprep.subr.mxu0 0.0
        %1276 = vmatpush1.msra.mxu0 0.0
        %1277 = vmatprep.subr.mxu0 0.0
        %1278 = vmatpush1.msra.mxu0 0.0
        %1279 = vmatprep.subr.mxu0 0.0
        %1280 = vmatpush1.msra.mxu0 %v931
        %1281 = vmatprep.subr.mxu0 0.0
        %1282 = vmatpush1.msra.mxu0 %v928
        %1283 = vmatprep.subr.mxu0 0.0
        %1284 = vmatpush1.msra.mxu0 %v923
        %1285 = vmatprep.subr.mxu0 0.0
        %1286 = vmatpush1.msra.mxu0 %v920
        %1287 = vmatprep.subr.mxu0 0.0
        %1288 = vmatpush2.msra.mxu0 0.0
        %1289 = vmatprep.subr.mxu0 0.0
        %1290 = vmatpush2.msra.mxu0 0.0
        %1291 = vmatprep.subr.mxu0 0.0
        %1292 = vmatpush2.msra.mxu0 0.0
        %1293 = vmatprep.subr.mxu0 0.0
        %1294 = vmatpush2.msra.mxu0 0.0
        %1295 = vmatprep.subr.mxu0 0.0
        %1296 = vmatpush2.msra.mxu0 0.0
        %1297 = vmatprep.subr.mxu0 0.0
        %1298 = vmatpush2.msra.mxu0 0.0
        %1299 = vmatprep.subr.mxu0 0.0
        %1300 = vmatpush2.msra.mxu0 0.0
        %1301 = vmatprep.subr.mxu0 0.0
        %1302 = vmatpush2.msra.mxu0 0.0
        %1303 = vmatprep.subr.mxu0 0.0
        %1304 = vmatpush2.msra.mxu0 0.0
        %1305 = vmatprep.subr.mxu0 0.0
        %1306 = vmatpush2.msra.mxu0 0.0
        %1307 = vmatprep.subr.mxu0 0.0
        %1308 = vmatpush2.msra.mxu0 0.0
        %1309 = vmatprep.subr.mxu0 0.0
        %1310 = vmatpush2.msra.mxu0 0.0
        %1311 = vmatprep.subr.mxu0 0.0
        %1312 = vmatpush2.msra.mxu0 0.0
        %1313 = vmatprep.subr.mxu0 0.0
        %1314 = vmatpush2.msra.mxu0 0.0
        %1315 = vmatprep.subr.mxu0 0.0
        %1316 = vmatpush2.msra.mxu0 0.0
        %1317 = vmatprep.subr.mxu0 0.0
        %1318 = vmatpush2.msra.mxu0 0.0
        %1319 = vmatprep.mubr.f32.mxu0 0.0
        %1320 = vmatmul.mubr.f32.gmra.mxu0 %v1208
        %v1321 = vpop.f32.mrf.mxu0
        %v1322 = vadd.f32 0.0, %v1321
        %v1323 = vpop.f32.mrf.mxu0
        %1324 = vmatprep.mubr.f32.mxu0 0.0
        %1325 = vmatmul.mubr.f32.gmra.mxu0 %v1211
        %v1326 = vpop.f32.mrf.mxu0
        %v1327 = vadd.f32 0.0, %v1326
        %v1328 = vpop.f32.mrf.mxu0
        %1329 = vmatprep.mubr.f32.mxu0 0.0
        %1330 = vmatmul.mubr.f32.gmra.mxu0 %v1214
        %v1331 = vpop.f32.mrf.mxu0
        %v1332 = vadd.f32 0.0, %v1331
        %v1333 = vpop.f32.mrf.mxu0
        %1334 = vmatprep.mubr.f32.mxu0 0.0
        %1335 = vmatmul.mubr.f32.gmra.mxu0 %v1217
        %v1336 = vpop.f32.mrf.mxu0
        %v1337 = vadd.f32 0.0, %v1336
        %v1338 = vpop.f32.mrf.mxu0
        %1339 = vmatprep.mubr.f32.mxu0 0.0
        %1340 = vmatmul.mubr.f32.gmra.mxu0 %v1220
        %v1341 = vpop.f32.mrf.mxu0
        %v1342 = vadd.f32 0.0, %v1341
        %v1343 = vpop.f32.mrf.mxu0
        %1344 = vmatprep.mubr.f32.mxu0 0.0
        %1345 = vmatmul.mubr.f32.gmra.mxu0 %v1223
        %v1346 = vpop.f32.mrf.mxu0
        %v1347 = vadd.f32 0.0, %v1346
        %v1348 = vpop.f32.mrf.mxu0
        %1349 = vmatprep.mubr.f32.mxu0 0.0
        %1350 = vmatmul.mubr.f32.gmra.mxu0 %v1226
        %v1351 = vpop.f32.mrf.mxu0
        %v1352 = vadd.f32 0.0, %v1351
        %v1353 = vpop.f32.mrf.mxu0
        %1354 = vmatprep.mubr.f32.mxu0 0.0
        %1355 = vmatmul.mubr.f32.gmra.mxu0 %v1229
        %v1356 = vpop.f32.mrf.mxu0
        %v1357 = vadd.f32 0.0, %v1356
        %v1358 = vpop.f32.mrf.mxu0
        %1359 = vmatprep.mubr.f32.mxu0 0.0
        %1360 = vmatmul.mubr.f32.gmra.mxu0 %v1232
        %v1361 = vpop.f32.mrf.mxu0
        %v1362 = vadd.f32 0.0, %v1361
        %v1363 = vpop.f32.mrf.mxu0
        %1364 = vmatprep.mubr.f32.mxu0 0.0
        %1365 = vmatmul.mubr.f32.gmra.mxu0 %v1235
        %v1366 = vpop.f32.mrf.mxu0
        %v1367 = vadd.f32 0.0, %v1366
        %v1368 = vpop.f32.mrf.mxu0
        %1369 = vmatprep.mubr.f32.mxu0 0.0
        %1370 = vmatmul.mubr.f32.gmra.mxu0 %v1238
        %v1371 = vpop.f32.mrf.mxu0
        %v1372 = vadd.f32 0.0, %v1371
        %v1373 = vpop.f32.mrf.mxu0
        %1374 = vmatprep.mubr.f32.mxu0 0.0
        %1375 = vmatmul.mubr.f32.gmra.mxu0 %v1241
        %v1376 = vpop.f32.mrf.mxu0
        %v1377 = vadd.f32 0.0, %v1376
        %v1378 = vpop.f32.mrf.mxu0
        %1379 = vmatprep.mubr.f32.mxu0 0.0
        %1380 = vmatmul.mubr.f32.gmra.mxu0 %v1244
        %v1381 = vpop.f32.mrf.mxu0
        %v1382 = vadd.f32 0.0, %v1381
        %v1383 = vpop.f32.mrf.mxu0
        %1384 = vmatprep.mubr.f32.mxu0 0.0
        %1385 = vmatmul.mubr.f32.gmra.mxu0 %v1247
        %v1386 = vpop.f32.mrf.mxu0
        %v1387 = vadd.f32 0.0, %v1386
        %v1388 = vpop.f32.mrf.mxu0
        %1389 = vmatprep.mubr.f32.mxu0 0.0
        %1390 = vmatmul.mubr.f32.gmra.mxu0 %v1250
        %v1391 = vpop.f32.mrf.mxu0
        %v1392 = vadd.f32 0.0, %v1391
        %v1393 = vpop.f32.mrf.mxu0
        %1394 = vmatprep.mubr.f32.mxu0 0.0
        %1395 = vmatmul.mubr.f32.gmra.mxu0 %v1253
        %v1396 = vpop.f32.mrf.mxu0
        %v1397 = vadd.f32 0.0, %v1396
        %v1398 = vpop.f32.mrf.mxu0
        %1399 = vdwg.mxu0
        %1400 = vxpose.xlu0.b32.start [1/16] %v888, 128
        %1401 = vxpose.xlu0.b32.cont [2/16] %v891, 128
        %1402 = vxpose.xlu0.b32.cont [3/16] %v896, 128
        %1403 = vxpose.xlu0.b32.cont [4/16] %v899, 128
        %1404 = vxpose.xlu0.b32.cont [5/16] 0.0, 128
        %1405 = vxpose.xlu0.b32.cont [6/16] 0.0, 128
        %1406 = vxpose.xlu0.b32.cont [7/16] 0.0, 128
        %1407 = vxpose.xlu0.b32.cont [8/16] 0.0, 128
        %1408 = vxpose.xlu0.b32.cont [9/16] 0.0, 128
        %1409 = vxpose.xlu0.b32.cont [10/16] 0.0, 128
        %1410 = vxpose.xlu0.b32.cont [11/16] 0.0, 128
        %1411 = vxpose.xlu0.b32.cont [12/16] 0.0, 128
        %1412 = vxpose.xlu0.b32.cont [13/16] 0.0, 128
        %1413 = vxpose.xlu0.b32.cont [14/16] 0.0, 128
        %1414 = vxpose.xlu0.b32.cont [15/16] 0.0, 128
        %1415 = vxpose.xlu0.b32.end [16/16] 0.0, 128
        %v1416 = vpop.trf.xlu0
        %v1417 = vpop.trf.xlu0
        %v1418 = vpop.trf.xlu0
        %v1419 = vpop.trf.xlu0
        %v1420 = vpop.trf.xlu0
        %v1421 = vpop.trf.xlu0
        %v1422 = vpop.trf.xlu0
        %v1423 = vpop.trf.xlu0
        %v1424 = vpop.trf.xlu0
        %v1425 = vpop.trf.xlu0
        %v1426 = vpop.trf.xlu0
        %v1427 = vpop.trf.xlu0
        %v1428 = vpop.trf.xlu0
        %v1429 = vpop.trf.xlu0
        %v1430 = vpop.trf.xlu0
        %v1431 = vpop.trf.xlu0
        %v1433 = vsel %vm784, %v1416, 0
        %v1436 = vsel %vm784, %v1417, 0
        %v1439 = vsel %vm784, %v1418, 0
        %v1442 = vsel %vm784, %v1419, 0
        %v1445 = vsel %vm784, %v1420, 0
        %v1448 = vsel %vm784, %v1421, 0
        %v1451 = vsel %vm784, %v1422, 0
        %v1454 = vsel %vm784, %v1423, 0
        %v1457 = vsel %vm784, %v1424, 0
        %v1460 = vsel %vm784, %v1425, 0
        %v1463 = vsel %vm784, %v1426, 0
        %v1466 = vsel %vm784, %v1427, 0
        %v1469 = vsel %vm784, %v1428, 0
        %v1472 = vsel %vm784, %v1429, 0
        %v1475 = vsel %vm784, %v1430, 0
        %v1478 = vsel %vm784, %v1431, 0
        %1480 = vmatprep.subr.mxu0 0.0
        %1481 = vmatpush1.msra.mxu0 0.0
        %1482 = vmatprep.subr.mxu0 0.0
        %1483 = vmatpush1.msra.mxu0 0.0
        %1484 = vmatprep.subr.mxu0 0.0
        %1485 = vmatpush1.msra.mxu0 0.0
        %1486 = vmatprep.subr.mxu0 0.0
        %1487 = vmatpush1.msra.mxu0 0.0
        %1488 = vmatprep.subr.mxu0 0.0
        %1489 = vmatpush1.msra.mxu0 0.0
        %1490 = vmatprep.subr.mxu0 0.0
        %1491 = vmatpush1.msra.mxu0 0.0
        %1492 = vmatprep.subr.mxu0 0.0
        %1493 = vmatpush1.msra.mxu0 0.0
        %1494 = vmatprep.subr.mxu0 0.0
        %1495 = vmatpush1.msra.mxu0 0.0
        %1496 = vmatprep.subr.mxu0 0.0
        %1497 = vmatpush1.msra.mxu0 0.0
        %1498 = vmatprep.subr.mxu0 0.0
        %1499 = vmatpush1.msra.mxu0 0.0
        %1500 = vmatprep.subr.mxu0 0.0
        %1501 = vmatpush1.msra.mxu0 0.0
        %1502 = vmatprep.subr.mxu0 0.0
        %1503 = vmatpush1.msra.mxu0 0.0
        %1504 = vmatprep.subr.mxu0 0.0
        %1505 = vmatpush1.msra.mxu0 %v947
        %1506 = vmatprep.subr.mxu0 0.0
        %1507 = vmatpush1.msra.mxu0 %v944
        %1508 = vmatprep.subr.mxu0 0.0
        %1509 = vmatpush1.msra.mxu0 %v939
        %1510 = vmatprep.subr.mxu0 0.0
        %1511 = vmatpush1.msra.mxu0 %v936
        %1512 = vmatprep.subr.mxu0 0.0
        %1513 = vmatpush2.msra.mxu0 0.0
        %1514 = vmatprep.subr.mxu0 0.0
        %1515 = vmatpush2.msra.mxu0 0.0
        %1516 = vmatprep.subr.mxu0 0.0
        %1517 = vmatpush2.msra.mxu0 0.0
        %1518 = vmatprep.subr.mxu0 0.0
        %1519 = vmatpush2.msra.mxu0 0.0
        %1520 = vmatprep.subr.mxu0 0.0
        %1521 = vmatpush2.msra.mxu0 0.0
        %1522 = vmatprep.subr.mxu0 0.0
        %1523 = vmatpush2.msra.mxu0 0.0
        %1524 = vmatprep.subr.mxu0 0.0
        %1525 = vmatpush2.msra.mxu0 0.0
        %1526 = vmatprep.subr.mxu0 0.0
        %1527 = vmatpush2.msra.mxu0 0.0
        %1528 = vmatprep.subr.mxu0 0.0
        %1529 = vmatpush2.msra.mxu0 0.0
        %1530 = vmatprep.subr.mxu0 0.0
        %1531 = vmatpush2.msra.mxu0 0.0
        %1532 = vmatprep.subr.mxu0 0.0
        %1533 = vmatpush2.msra.mxu0 0.0
        %1534 = vmatprep.subr.mxu0 0.0
        %1535 = vmatpush2.msra.mxu0 0.0
        %1536 = vmatprep.subr.mxu0 0.0
        %1537 = vmatpush2.msra.mxu0 0.0
        %1538 = vmatprep.subr.mxu0 0.0
        %1539 = vmatpush2.msra.mxu0 0.0
        %1540 = vmatprep.subr.mxu0 0.0
        %1541 = vmatpush2.msra.mxu0 0.0
        %1542 = vmatprep.subr.mxu0 0.0
        %1543 = vmatpush2.msra.mxu0 0.0
        %1544 = vmatprep.mubr.f32.mxu0 0.0
        %1545 = vmatmul.mubr.f32.gmra.mxu0 %v1433
        %v1546 = vpop.f32.mrf.mxu0
        %v1547 = vadd.f32 0.0, %v1546
        %v1548 = vpop.f32.mrf.mxu0
        %1549 = vmatprep.mubr.f32.mxu0 0.0
        %1550 = vmatmul.mubr.f32.gmra.mxu0 %v1436
        %v1551 = vpop.f32.mrf.mxu0
        %v1552 = vadd.f32 0.0, %v1551
        %v1553 = vpop.f32.mrf.mxu0
        %1554 = vmatprep.mubr.f32.mxu0 0.0
        %1555 = vmatmul.mubr.f32.gmra.mxu0 %v1439
        %v1556 = vpop.f32.mrf.mxu0
        %v1557 = vadd.f32 0.0, %v1556
        %v1558 = vpop.f32.mrf.mxu0
        %1559 = vmatprep.mubr.f32.mxu0 0.0
        %1560 = vmatmul.mubr.f32.gmra.mxu0 %v1442
        %v1561 = vpop.f32.mrf.mxu0
        %v1562 = vadd.f32 0.0, %v1561
        %v1563 = vpop.f32.mrf.mxu0
        %1564 = vmatprep.mubr.f32.mxu0 0.0
        %1565 = vmatmul.mubr.f32.gmra.mxu0 %v1445
        %v1566 = vpop.f32.mrf.mxu0
        %v1567 = vadd.f32 0.0, %v1566
        %v1568 = vpop.f32.mrf.mxu0
        %1569 = vmatprep.mubr.f32.mxu0 0.0
        %1570 = vmatmul.mubr.f32.gmra.mxu0 %v1448
        %v1571 = vpop.f32.mrf.mxu0
        %v1572 = vadd.f32 0.0, %v1571
        %v1573 = vpop.f32.mrf.mxu0
        %1574 = vmatprep.mubr.f32.mxu0 0.0
        %1575 = vmatmul.mubr.f32.gmra.mxu0 %v1451
        %v1576 = vpop.f32.mrf.mxu0
        %v1577 = vadd.f32 0.0, %v1576
        %v1578 = vpop.f32.mrf.mxu0
        %1579 = vmatprep.mubr.f32.mxu0 0.0
        %1580 = vmatmul.mubr.f32.gmra.mxu0 %v1454
        %v1581 = vpop.f32.mrf.mxu0
        %v1582 = vadd.f32 0.0, %v1581
        %v1583 = vpop.f32.mrf.mxu0
        %1584 = vmatprep.mubr.f32.mxu0 0.0
        %1585 = vmatmul.mubr.f32.gmra.mxu0 %v1457
        %v1586 = vpop.f32.mrf.mxu0
        %v1587 = vadd.f32 0.0, %v1586
        %v1588 = vpop.f32.mrf.mxu0
        %1589 = vmatprep.mubr.f32.mxu0 0.0
        %1590 = vmatmul.mubr.f32.gmra.mxu0 %v1460
        %v1591 = vpop.f32.mrf.mxu0
        %v1592 = vadd.f32 0.0, %v1591
        %v1593 = vpop.f32.mrf.mxu0
        %1594 = vmatprep.mubr.f32.mxu0 0.0
        %1595 = vmatmul.mubr.f32.gmra.mxu0 %v1463
        %v1596 = vpop.f32.mrf.mxu0
        %v1597 = vadd.f32 0.0, %v1596
        %v1598 = vpop.f32.mrf.mxu0
        %1599 = vmatprep.mubr.f32.mxu0 0.0
        %1600 = vmatmul.mubr.f32.gmra.mxu0 %v1466
        %v1601 = vpop.f32.mrf.mxu0
        %v1602 = vadd.f32 0.0, %v1601
        %v1603 = vpop.f32.mrf.mxu0
        %1604 = vmatprep.mubr.f32.mxu0 0.0
        %1605 = vmatmul.mubr.f32.gmra.mxu0 %v1469
        %v1606 = vpop.f32.mrf.mxu0
        %v1607 = vadd.f32 0.0, %v1606
        %v1608 = vpop.f32.mrf.mxu0
        %1609 = vmatprep.mubr.f32.mxu0 0.0
        %1610 = vmatmul.mubr.f32.gmra.mxu0 %v1472
        %v1611 = vpop.f32.mrf.mxu0
        %v1612 = vadd.f32 0.0, %v1611
        %v1613 = vpop.f32.mrf.mxu0
        %1614 = vmatprep.mubr.f32.mxu0 0.0
        %1615 = vmatmul.mubr.f32.gmra.mxu0 %v1475
        %v1616 = vpop.f32.mrf.mxu0
        %v1617 = vadd.f32 0.0, %v1616
        %v1618 = vpop.f32.mrf.mxu0
        %1619 = vmatprep.mubr.f32.mxu0 0.0
        %1620 = vmatmul.mubr.f32.gmra.mxu0 %v1478
        %v1621 = vpop.f32.mrf.mxu0
        %v1622 = vadd.f32 0.0, %v1621
        %v1623 = vpop.f32.mrf.mxu0
        %1624 = vdwg.mxu0
        %v1625 = vld [vmem:[%s4] sm:$0xff]
        %v1626 = vld [vmem:[%s4 + $0x8] sm:$0xff]
        %v1627 = vld [vmem:[%s4 + $0x10] sm:$0xff]
        %v1628 = vld [vmem:[%s4 + $0x18] sm:$0xff]
        %v1629 = vld [vmem:[%s4 + $0x20] sm:$0xff]
        %v1630 = vld [vmem:[%s4 + $0x28] sm:$0xff]
        %v1631 = vld [vmem:[%s4 + $0x30] sm:$0xff]
        %v1632 = vld [vmem:[%s4 + $0x38] sm:$0xff]
        %v1633 = vld [vmem:[%s4 + $0x40] sm:$0xff]
        %v1634 = vld [vmem:[%s4 + $0x48] sm:$0xff]
        %v1635 = vld [vmem:[%s4 + $0x50] sm:$0xff]
        %v1636 = vld [vmem:[%s4 + $0x58] sm:$0xff]
        %v1637 = vld [vmem:[%s4 + $0x60] sm:$0xff]
        %v1638 = vld [vmem:[%s4 + $0x68] sm:$0xff]
        %v1639 = vld [vmem:[%s4 + $0x70] sm:$0xff]
        %v1640 = vld [vmem:[%s4 + $0x78] sm:$0xff]
        %v1641 = vld [vmem:[%s4 + $0x80] sm:$0xff]
        %v1642 = vld [vmem:[%s4 + $0x88] sm:$0xff]
        %v1643 = vld [vmem:[%s4 + $0x90] sm:$0xff]
        %v1644 = vld [vmem:[%s4 + $0x98] sm:$0xff]
        %v1645 = vld [vmem:[%s4 + $0xa0] sm:$0xff]
        %v1646 = vld [vmem:[%s4 + $0xa8] sm:$0xff]
        %v1647 = vld [vmem:[%s4 + $0xb0] sm:$0xff]
        %v1648 = vld [vmem:[%s4 + $0xb8] sm:$0xff]
        %v1649 = vld [vmem:[%s4 + $0xc0] sm:$0xff]
        %v1650 = vld [vmem:[%s4 + $0xc8] sm:$0xff]
        %v1651 = vld [vmem:[%s4 + $0xd0] sm:$0xff]
        %v1652 = vld [vmem:[%s4 + $0xd8] sm:$0xff]
        %v1653 = vld [vmem:[%s4 + $0xe0] sm:$0xff]
        %v1654 = vld [vmem:[%s4 + $0xe8] sm:$0xff]
        %v1655 = vld [vmem:[%s4 + $0xf0] sm:$0xff]
        %v1656 = vld [vmem:[%s4 + $0xf8] sm:$0xff]
        %v1657 = vld [vmem:[%s4 + $0x100] sm:$0xff]
        %v1658 = vld [vmem:[%s4 + $0x108] sm:$0xff]
        %v1659 = vld [vmem:[%s4 + $0x110] sm:$0xff]
        %v1660 = vld [vmem:[%s4 + $0x118] sm:$0xff]
        %v1661 = vld [vmem:[%s4 + $0x120] sm:$0xff]
        %v1662 = vld [vmem:[%s4 + $0x128] sm:$0xff]
        %v1663 = vld [vmem:[%s4 + $0x130] sm:$0xff]
        %v1664 = vld [vmem:[%s4 + $0x138] sm:$0xff]
        %v1665 = vld [vmem:[%s4 + $0x140] sm:$0xff]
        %v1666 = vld [vmem:[%s4 + $0x148] sm:$0xff]
        %v1667 = vld [vmem:[%s4 + $0x150] sm:$0xff]
        %v1668 = vld [vmem:[%s4 + $0x158] sm:$0xff]
        %v1669 = vld [vmem:[%s4 + $0x160] sm:$0xff]
        %v1670 = vld [vmem:[%s4 + $0x168] sm:$0xff]
        %v1671 = vld [vmem:[%s4 + $0x170] sm:$0xff]
        %v1672 = vld [vmem:[%s4 + $0x178] sm:$0xff]
        %v1673 = vmul.f32 %v1097, 0.03125
        %v1674 = vmul.f32 %v1322, 0.03125
        %v1675 = vmul.f32 %v1547, 0.03125
        %v1676 = vmul.f32 %v1102, 0.03125
        %v1677 = vmul.f32 %v1327, 0.03125
        %v1678 = vmul.f32 %v1552, 0.03125
        %v1679 = vmul.f32 %v1107, 0.03125
        %v1680 = vmul.f32 %v1332, 0.03125
        %v1681 = vmul.f32 %v1557, 0.03125
        %v1682 = vmul.f32 %v1112, 0.03125
        %v1683 = vmul.f32 %v1337, 0.03125
        %v1684 = vmul.f32 %v1562, 0.03125
        %v1685 = vmul.f32 %v1117, 0.03125
        %v1686 = vmul.f32 %v1342, 0.03125
        %v1687 = vmul.f32 %v1567, 0.03125
        %v1688 = vmul.f32 %v1122, 0.03125
        %v1689 = vmul.f32 %v1347, 0.03125
        %v1690 = vmul.f32 %v1572, 0.03125
        %v1691 = vmul.f32 %v1127, 0.03125
        %v1692 = vmul.f32 %v1352, 0.03125
        %v1693 = vmul.f32 %v1577, 0.03125
        %v1694 = vmul.f32 %v1132, 0.03125
        %v1695 = vmul.f32 %v1357, 0.03125
        %v1696 = vmul.f32 %v1582, 0.03125
        %v1697 = vmul.f32 %v1137, 0.03125
        %v1698 = vmul.f32 %v1362, 0.03125
        %v1699 = vmul.f32 %v1587, 0.03125
        %v1700 = vmul.f32 %v1142, 0.03125
        %v1701 = vmul.f32 %v1367, 0.03125
        %v1702 = vmul.f32 %v1592, 0.03125
        %v1703 = vmul.f32 %v1147, 0.03125
        %v1704 = vmul.f32 %v1372, 0.03125
        %v1705 = vmul.f32 %v1597, 0.03125
        %v1706 = vmul.f32 %v1152, 0.03125
        %v1707 = vmul.f32 %v1377, 0.03125
        %v1708 = vmul.f32 %v1602, 0.03125
        %v1709 = vmul.f32 %v1157, 0.03125
        %v1710 = vmul.f32 %v1382, 0.03125
        %v1711 = vmul.f32 %v1607, 0.03125
        %v1712 = vmul.f32 %v1162, 0.03125
        %v1713 = vmul.f32 %v1387, 0.03125
        %v1714 = vmul.f32 %v1612, 0.03125
        %v1715 = vmul.f32 %v1167, 0.03125
        %v1716 = vmul.f32 %v1392, 0.03125
        %v1717 = vmul.f32 %v1617, 0.03125
        %v1718 = vmul.f32 %v1172, 0.03125
        %v1719 = vmul.f32 %v1397, 0.03125
        %v1720 = vmul.f32 %v1622, 0.03125
        %v1721 = vtanh.pop %v1673
        %v1722 = vtanh.pop %v1674
        %v1723 = vtanh.pop %v1675
        %v1724 = vtanh.pop %v1676
        %v1725 = vtanh.pop %v1677
        %v1726 = vtanh.pop %v1678
        %v1727 = vtanh.pop %v1679
        %v1728 = vtanh.pop %v1680
        %v1729 = vtanh.pop %v1681
        %v1730 = vtanh.pop %v1682
        %v1731 = vtanh.pop %v1683
        %v1732 = vtanh.pop %v1684
        %v1733 = vtanh.pop %v1685
        %v1734 = vtanh.pop %v1686
        %v1735 = vtanh.pop %v1687
        %v1736 = vtanh.pop %v1688
        %v1737 = vtanh.pop %v1689
        %v1738 = vtanh.pop %v1690
        %v1739 = vtanh.pop %v1691
        %v1740 = vtanh.pop %v1692
        %v1741 = vtanh.pop %v1693
        %v1742 = vtanh.pop %v1694
        %v1743 = vtanh.pop %v1695
        %v1744 = vtanh.pop %v1696
        %v1745 = vtanh.pop %v1697
        %v1746 = vtanh.pop %v1698
        %v1747 = vtanh.pop %v1699
        %v1748 = vtanh.pop %v1700
        %v1749 = vtanh.pop %v1701
        %v1750 = vtanh.pop %v1702
        %v1751 = vtanh.pop %v1703
        %v1752 = vtanh.pop %v1704
        %v1753 = vtanh.pop %v1705
        %v1754 = vtanh.pop %v1706
        %v1755 = vtanh.pop %v1707
        %v1756 = vtanh.pop %v1708
        %v1757 = vtanh.pop %v1709
        %v1758 = vtanh.pop %v1710
        %v1759 = vtanh.pop %v1711
        %v1760 = vtanh.pop %v1712
        %v1761 = vtanh.pop %v1713
        %v1762 = vtanh.pop %v1714
        %v1763 = vtanh.pop %v1715
        %v1764 = vtanh.pop %v1716
        %v1765 = vtanh.pop %v1717
        %v1766 = vtanh.pop %v1718
        %v1767 = vtanh.pop %v1719
        %v1768 = vtanh.pop %v1720
        %v1769 = vstv %s541
        %v1770 = vmul.f32 %v1769, %v1721
        %v1771 = vmul.f32 %v1769, %v1722
        %v1772 = vmul.f32 %v1769, %v1723
        %v1773 = vmul.f32 %v1769, %v1724
        %v1774 = vmul.f32 %v1769, %v1725
        %v1775 = vmul.f32 %v1769, %v1726
        %v1776 = vmul.f32 %v1769, %v1727
        %v1777 = vmul.f32 %v1769, %v1728
        %v1778 = vmul.f32 %v1769, %v1729
        %v1779 = vmul.f32 %v1769, %v1730
        %v1780 = vmul.f32 %v1769, %v1731
        %v1781 = vmul.f32 %v1769, %v1732
        %v1782 = vmul.f32 %v1769, %v1733
        %v1783 = vmul.f32 %v1769, %v1734
        %v1784 = vmul.f32 %v1769, %v1735
        %v1785 = vmul.f32 %v1769, %v1736
        %v1786 = vmul.f32 %v1769, %v1737
        %v1787 = vmul.f32 %v1769, %v1738
        %v1788 = vmul.f32 %v1769, %v1739
        %v1789 = vmul.f32 %v1769, %v1740
        %v1790 = vmul.f32 %v1769, %v1741
        %v1791 = vmul.f32 %v1769, %v1742
        %v1792 = vmul.f32 %v1769, %v1743
        %v1793 = vmul.f32 %v1769, %v1744
        %v1794 = vmul.f32 %v1769, %v1745
        %v1795 = vmul.f32 %v1769, %v1746
        %v1796 = vmul.f32 %v1769, %v1747
        %v1797 = vmul.f32 %v1769, %v1748
        %v1798 = vmul.f32 %v1769, %v1749
        %v1799 = vmul.f32 %v1769, %v1750
        %v1800 = vmul.f32 %v1769, %v1751
        %v1801 = vmul.f32 %v1769, %v1752
        %v1802 = vmul.f32 %v1769, %v1753
        %v1803 = vmul.f32 %v1769, %v1754
        %v1804 = vmul.f32 %v1769, %v1755
        %v1805 = vmul.f32 %v1769, %v1756
        %v1806 = vmul.f32 %v1769, %v1757
        %v1807 = vmul.f32 %v1769, %v1758
        %v1808 = vmul.f32 %v1769, %v1759
        %v1809 = vmul.f32 %v1769, %v1760
        %v1810 = vmul.f32 %v1769, %v1761
        %v1811 = vmul.f32 %v1769, %v1762
        %v1812 = vmul.f32 %v1769, %v1763
        %v1813 = vmul.f32 %v1769, %v1764
        %v1814 = vmul.f32 %v1769, %v1765
        %v1815 = vmul.f32 %v1769, %v1766
        %v1816 = vmul.f32 %v1769, %v1767
        %v1817 = vmul.f32 %v1769, %v1768
        %v1818 = vadd.f32 %v1625, %v1770
        %v1819 = vadd.f32 %v1626, %v1771
        %v1820 = vadd.f32 %v1627, %v1772
        %v1821 = vadd.f32 %v1628, %v1773
        %v1822 = vadd.f32 %v1629, %v1774
        %v1823 = vadd.f32 %v1630, %v1775
        %v1824 = vadd.f32 %v1631, %v1776
        %v1825 = vadd.f32 %v1632, %v1777
        %v1826 = vadd.f32 %v1633, %v1778
        %v1827 = vadd.f32 %v1634, %v1779
        %v1828 = vadd.f32 %v1635, %v1780
        %v1829 = vadd.f32 %v1636, %v1781
        %v1830 = vadd.f32 %v1637, %v1782
        %v1831 = vadd.f32 %v1638, %v1783
        %v1832 = vadd.f32 %v1639, %v1784
        %v1833 = vadd.f32 %v1640, %v1785
        %v1834 = vadd.f32 %v1641, %v1786
        %v1835 = vadd.f32 %v1642, %v1787
        %v1836 = vadd.f32 %v1643, %v1788
        %v1837 = vadd.f32 %v1644, %v1789
        %v1838 = vadd.f32 %v1645, %v1790
        %v1839 = vadd.f32 %v1646, %v1791
        %v1840 = vadd.f32 %v1647, %v1792
        %v1841 = vadd.f32 %v1648, %v1793
        %v1842 = vadd.f32 %v1649, %v1794
        %v1843 = vadd.f32 %v1650, %v1795
        %v1844 = vadd.f32 %v1651, %v1796
        %v1845 = vadd.f32 %v1652, %v1797
        %v1846 = vadd.f32 %v1653, %v1798
        %v1847 = vadd.f32 %v1654, %v1799
        %v1848 = vadd.f32 %v1655, %v1800
        %v1849 = vadd.f32 %v1656, %v1801
        %v1850 = vadd.f32 %v1657, %v1802
        %v1851 = vadd.f32 %v1658, %v1803
        %v1852 = vadd.f32 %v1659, %v1804
        %v1853 = vadd.f32 %v1660, %v1805
        %v1854 = vadd.f32 %v1661, %v1806
        %v1855 = vadd.f32 %v1662, %v1807
        %v1856 = vadd.f32 %v1663, %v1808
        %v1857 = vadd.f32 %v1664, %v1809
        %v1858 = vadd.f32 %v1665, %v1810
        %v1859 = vadd.f32 %v1666, %v1811
        %v1860 = vadd.f32 %v1667, %v1812
        %v1861 = vadd.f32 %v1668, %v1813
        %v1862 = vadd.f32 %v1669, %v1814
        %v1863 = vadd.f32 %v1670, %v1815
        %v1864 = vadd.f32 %v1671, %v1816
        %v1865 = vadd.f32 %v1672, %v1817
        %v1866 = vpack.c.bf16 %v1821, %v1818
        %v1867 = vpack.c.bf16 %v1822, %v1819
        %v1868 = vpack.c.bf16 %v1823, %v1820
        %v1869 = vpack.c.bf16 %v1827, %v1824
        %v1870 = vpack.c.bf16 %v1828, %v1825
        %v1871 = vpack.c.bf16 %v1829, %v1826
        %v1872 = vpack.c.bf16 %v1833, %v1830
        %v1873 = vpack.c.bf16 %v1834, %v1831
        %v1874 = vpack.c.bf16 %v1835, %v1832
        %v1875 = vpack.c.bf16 %v1839, %v1836
        %v1876 = vpack.c.bf16 %v1840, %v1837
        %v1877 = vpack.c.bf16 %v1841, %v1838
        %v1878 = vpack.c.bf16 %v1845, %v1842
        %v1879 = vpack.c.bf16 %v1846, %v1843
        %v1880 = vpack.c.bf16 %v1847, %v1844
        %v1881 = vpack.c.bf16 %v1851, %v1848
        %v1882 = vpack.c.bf16 %v1852, %v1849
        %v1883 = vpack.c.bf16 %v1853, %v1850
        %v1884 = vpack.c.bf16 %v1857, %v1854
        %v1885 = vpack.c.bf16 %v1858, %v1855
        %v1886 = vpack.c.bf16 %v1859, %v1856
        %v1887 = vpack.c.bf16 %v1863, %v1860
        %v1888 = vpack.c.bf16 %v1864, %v1861
        %v1889 = vpack.c.bf16 %v1865, %v1862
        %1890 = vmatprep.subr.bf16.mxu0 %v1888
        %1891 = vmatpush1.bf16.msra.mxu0 %v1887
        %1892 = vmatprep.subr.bf16.mxu0 %v1885
        %1893 = vmatpush1.bf16.msra.mxu0 %v1884
        %1894 = vmatprep.subr.bf16.mxu0 %v1882
        %1895 = vmatpush1.bf16.msra.mxu0 %v1881
        %1896 = vmatprep.subr.bf16.mxu0 %v1879
        %1897 = vmatpush1.bf16.msra.mxu0 %v1878
        %1898 = vmatprep.subr.bf16.mxu0 %v1876
        %1899 = vmatpush1.bf16.msra.mxu0 %v1875
        %1900 = vmatprep.subr.bf16.mxu0 %v1873
        %1901 = vmatpush1.bf16.msra.mxu0 %v1872
        %1902 = vmatprep.subr.bf16.mxu0 %v1870
        %1903 = vmatpush1.bf16.msra.mxu0 %v1869
        %1904 = vmatprep.subr.bf16.mxu0 %v1867
        %1905 = vmatpush1.bf16.msra.mxu0 %v1866
        %1906 = vmatprep.subr.bf16.mxu0 0
        %1907 = vmatpush2.bf16.msra.mxu0 0
        %1908 = vmatprep.subr.bf16.mxu0 0
        %1909 = vmatpush2.bf16.msra.mxu0 0
        %1910 = vmatprep.subr.bf16.mxu0 0
        %1911 = vmatpush2.bf16.msra.mxu0 0
        %1912 = vmatprep.subr.bf16.mxu0 0
        %1913 = vmatpush2.bf16.msra.mxu0 0
        %1914 = vmatprep.subr.bf16.mxu0 0
        %1915 = vmatpush2.bf16.msra.mxu0 0
        %1916 = vmatprep.subr.bf16.mxu0 0
        %1917 = vmatpush2.bf16.msra.mxu0 0
        %1918 = vmatprep.subr.bf16.mxu0 0
        %1919 = vmatpush2.bf16.msra.mxu0 0
        %1920 = vmatprep.subr.bf16.mxu0 0
        %1921 = vmatpush2.bf16.msra.mxu0 0
        %1922 = vmatprep.mubr.bf16.mxu0 0
        %1923 = vmatmul.mubr.bf16.gmra.mxu0 %v780
        %v1924 = vpop.f32.mrf.mxu0
        %v1925 = vadd.f32 0.0, %v1924
        %v1926 = vpop.f32.mrf.mxu0
        %v1927 = vadd.f32 0.0, %v1926
        %v1928 = vpop.f32.mrf.mxu0
        %v1929 = vadd.f32 0.0, %v1928
        %v1930 = vpop.f32.mrf.mxu0
        %v1931 = vadd.f32 0.0, %v1930
        %1932 = vmatprep.mubr.bf16.mxu0 0
        %1933 = vmatmul.mubr.bf16.gmra.mxu0 %v781
        %v1934 = vpop.f32.mrf.mxu0
        %v1935 = vadd.f32 0.0, %v1934
        %v1936 = vpop.f32.mrf.mxu0
        %v1937 = vadd.f32 0.0, %v1936
        %v1938 = vpop.f32.mrf.mxu0
        %v1939 = vadd.f32 0.0, %v1938
        %v1940 = vpop.f32.mrf.mxu0
        %v1941 = vadd.f32 0.0, %v1940
        %1942 = vdwg.mxu0
        %1943 = vmatprep.subr.bf16.mxu0 0
        %1944 = vmatpush1.bf16.msra.mxu0 %v1889
        %1945 = vmatprep.subr.bf16.mxu0 0
        %1946 = vmatpush1.bf16.msra.mxu0 %v1886
        %1947 = vmatprep.subr.bf16.mxu0 0
        %1948 = vmatpush1.bf16.msra.mxu0 %v1883
        %1949 = vmatprep.subr.bf16.mxu0 0
        %1950 = vmatpush1.bf16.msra.mxu0 %v1880
        %1951 = vmatprep.subr.bf16.mxu0 0
        %1952 = vmatpush1.bf16.msra.mxu0 %v1877
        %1953 = vmatprep.subr.bf16.mxu0 0
        %1954 = vmatpush1.bf16.msra.mxu0 %v1874
        %1955 = vmatprep.subr.bf16.mxu0 0
        %1956 = vmatpush1.bf16.msra.mxu0 %v1871
        %1957 = vmatprep.subr.bf16.mxu0 0
        %1958 = vmatpush1.bf16.msra.mxu0 %v1868
        %1959 = vmatprep.subr.bf16.mxu0 0
        %1960 = vmatpush2.bf16.msra.mxu0 0
        %1961 = vmatprep.subr.bf16.mxu0 0
        %1962 = vmatpush2.bf16.msra.mxu0 0
        %1963 = vmatprep.subr.bf16.mxu0 0
        %1964 = vmatpush2.bf16.msra.mxu0 0
        %1965 = vmatprep.subr.bf16.mxu0 0
        %1966 = vmatpush2.bf16.msra.mxu0 0
        %1967 = vmatprep.subr.bf16.mxu0 0
        %1968 = vmatpush2.bf16.msra.mxu0 0
        %1969 = vmatprep.subr.bf16.mxu0 0
        %1970 = vmatpush2.bf16.msra.mxu0 0
        %1971 = vmatprep.subr.bf16.mxu0 0
        %1972 = vmatpush2.bf16.msra.mxu0 0
        %1973 = vmatprep.subr.bf16.mxu0 0
        %1974 = vmatpush2.bf16.msra.mxu0 0
        %1975 = vmatprep.mubr.bf16.mxu0 0
        %1976 = vmatmul.mubr.bf16.gmra.mxu0 %v780
        %v1977 = vpop.f32.mrf.mxu0
        %v1978 = vadd.f32 0.0, %v1977
        %v1979 = vpop.f32.mrf.mxu0
        %v1980 = vpop.f32.mrf.mxu0
        %v1981 = vadd.f32 0.0, %v1980
        %v1982 = vpop.f32.mrf.mxu0
        %1983 = vmatprep.mubr.bf16.mxu0 0
        %1984 = vmatmul.mubr.bf16.gmra.mxu0 %v781
        %v1985 = vpop.f32.mrf.mxu0
        %v1986 = vadd.f32 0.0, %v1985
        %v1987 = vpop.f32.mrf.mxu0
        %v1988 = vpop.f32.mrf.mxu0
        %v1989 = vadd.f32 0.0, %v1988
        %v1990 = vpop.f32.mrf.mxu0
        %1991 = vdwg.mxu0
        %v1992 = vpack.c.bf16 %v1929, %v1925
        %v1993 = vpack.c.bf16 %v1931, %v1927
        %v1994 = vpack.c.bf16 %v1981, %v1978
        %v1995 = vpack.c.bf16 %v1939, %v1935
        %v1996 = vpack.c.bf16 %v1941, %v1937
        %v1997 = vpack.c.bf16 %v1989, %v1986
        %v1998 = vld [vmem:[%s5] sm:$0xf]
        %v1999 = vld [vmem:[%s5 + $0x4] sm:$0xf]
        %v2000 = vld [vmem:[%s5 + $0x8] sm:$0xf]
        %v2001 = vld [vmem:[%s5 + $0xc] sm:$0xf]
        %v2002 = vld [vmem:[%s5 + $0x10] sm:$0xf]
        %v2003 = vld [vmem:[%s5 + $0x14] sm:$0xf]
        %v2004 = vld [vmem:[%s5 + $0x18] sm:$0xf]
        %v2005 = vld [vmem:[%s5 + $0x1c] sm:$0xf]
        %v2006 = vld [vmem:[%s5 + $0x20] sm:$0xf]
        %v2007 = vld [vmem:[%s5 + $0x24] sm:$0xf]
        %v2008 = vld [vmem:[%s5 + $0x28] sm:$0xf]
        %v2009 = vld [vmem:[%s5 + $0x2c] sm:$0xf]
        %v2010 = vld [vmem:[%s5 + $0x30] sm:$0xf]
        %v2011 = vld [vmem:[%s5 + $0x34] sm:$0xf]
        %v2012 = vld [vmem:[%s5 + $0x38] sm:$0xf]
        %v2013 = vld [vmem:[%s5 + $0x3c] sm:$0xf]
        %v2014 = vld [vmem:[%s6] sm:$0xff]
        %v2015 = vld [vmem:[%s6 + $0x8] sm:$0xff]
        %v2016 = vld [vmem:[%s6 + $0x10] sm:$0xff]
        %v2017 = vld [vmem:[%s6 + $0x18] sm:$0xff]
        %v2018 = vld [vmem:[%s6 + $0x20] sm:$0xff]
        %v2019 = vld [vmem:[%s6 + $0x28] sm:$0xff]
        %v2020 = vld [vmem:[%s6 + $0x30] sm:$0xff]
        %v2021 = vld [vmem:[%s6 + $0x38] sm:$0xff]
        %v2022 = vld [vmem:[%s6 + $0x40] sm:$0xff]
        %v2023 = vld [vmem:[%s6 + $0x48] sm:$0xff]
        %v2024 = vld [vmem:[%s6 + $0x50] sm:$0xff]
        %v2025 = vld [vmem:[%s6 + $0x58] sm:$0xff]
        %v2026 = vld [vmem:[%s6 + $0x60] sm:$0xff]
        %v2027 = vld [vmem:[%s6 + $0x68] sm:$0xff]
        %v2028 = vld [vmem:[%s6 + $0x70] sm:$0xff]
        %v2029 = vld [vmem:[%s6 + $0x78] sm:$0xff]
        %2031 = vset.pattern.permute.xlu0 0
        %2032 = vperm.xlu0 %2031, %v2014
        %v2033 = vpop.permute.xlu0 %2032
        %2036 = vset.pattern.permute.xlu0 0
        %2037 = vperm.xlu0 %2036, %v2015
        %v2038 = vpop.permute.xlu0 %2037
        %2041 = vset.pattern.permute.xlu0 0
        %2042 = vperm.xlu0 %2041, %v2016
        %v2043 = vpop.permute.xlu0 %2042
        %2046 = vset.pattern.permute.xlu0 0
        %2047 = vperm.xlu0 %2046, %v2017
        %v2048 = vpop.permute.xlu0 %2047
        %2051 = vset.pattern.permute.xlu0 0
        %2052 = vperm.xlu0 %2051, %v2018
        %v2053 = vpop.permute.xlu0 %2052
        %2056 = vset.pattern.permute.xlu0 0
        %2057 = vperm.xlu0 %2056, %v2019
        %v2058 = vpop.permute.xlu0 %2057
        %2061 = vset.pattern.permute.xlu0 0
        %2062 = vperm.xlu0 %2061, %v2020
        %v2063 = vpop.permute.xlu0 %2062
        %2066 = vset.pattern.permute.xlu0 0
        %2067 = vperm.xlu0 %2066, %v2021
        %v2068 = vpop.permute.xlu0 %2067
        %2071 = vset.pattern.permute.xlu0 0
        %2072 = vperm.xlu0 %2071, %v2022
        %v2073 = vpop.permute.xlu0 %2072
        %2076 = vset.pattern.permute.xlu0 0
        %2077 = vperm.xlu0 %2076, %v2023
        %v2078 = vpop.permute.xlu0 %2077
        %2081 = vset.pattern.permute.xlu0 0
        %2082 = vperm.xlu0 %2081, %v2024
        %v2083 = vpop.permute.xlu0 %2082
        %2086 = vset.pattern.permute.xlu0 0
        %2087 = vperm.xlu0 %2086, %v2025
        %v2088 = vpop.permute.xlu0 %2087
        %2091 = vset.pattern.permute.xlu0 0
        %2092 = vperm.xlu0 %2091, %v2026
        %v2093 = vpop.permute.xlu0 %2092
        %2096 = vset.pattern.permute.xlu0 0
        %2097 = vperm.xlu0 %2096, %v2027
        %v2098 = vpop.permute.xlu0 %2097
        %2101 = vset.pattern.permute.xlu0 0
        %2102 = vperm.xlu0 %2101, %v2028
        %v2103 = vpop.permute.xlu0 %2102
        %2106 = vset.pattern.permute.xlu0 0
        %2107 = vperm.xlu0 %2106, %v2029
        %v2108 = vpop.permute.xlu0 %2107
        %v2126 = vunpack.c.l.b16 %v1998
        %v2127 = vunpack.c.l.b16 %v1999
        %v2128 = vunpack.c.l.b16 %v2000
        %v2129 = vunpack.c.l.b16 %v2001
        %v2130 = vunpack.c.l.b16 %v2002
        %v2131 = vunpack.c.l.b16 %v2003
        %v2132 = vunpack.c.l.b16 %v2004
        %v2133 = vunpack.c.l.b16 %v2005
        %v2134 = vunpack.c.l.b16 %v2006
        %v2135 = vunpack.c.l.b16 %v2007
        %v2136 = vunpack.c.l.b16 %v2008
        %v2137 = vunpack.c.l.b16 %v2009
        %v2138 = vunpack.c.l.b16 %v2010
        %v2139 = vunpack.c.l.b16 %v2011
        %v2140 = vunpack.c.l.b16 %v2012
        %v2141 = vunpack.c.l.b16 %v2013
        %v2142 = vpack.c.b16 %v2127, %v2126
        %v2143 = vpack.c.b16 %v2129, %v2128
        %v2144 = vpack.c.b16 %v2131, %v2130
        %v2145 = vpack.c.b16 %v2133, %v2132
        %v2146 = vpack.c.b16 %v2135, %v2134
        %v2147 = vpack.c.b16 %v2137, %v2136
        %v2148 = vpack.c.b16 %v2139, %v2138
        %v2149 = vpack.c.b16 %v2141, %v2140
        %2158 = vmatprep.subr.bf16.mxu0 0
        %2159 = vmatpush1.bf16.msra.mxu0 %v781
        %2160 = vmatprep.subr.bf16.mxu0 0
        %2161 = vmatpush1.bf16.msra.mxu0 %v780
        %2162 = vmatprep.subr.bf16.mxu0 0
        %2163 = vmatpush1.bf16.msra.mxu0 %v1997
        %2164 = vmatprep.subr.bf16.mxu0 0
        %2165 = vmatpush1.bf16.msra.mxu0 %v1994
        %2166 = vmatprep.subr.bf16.mxu0 0
        %2167 = vmatpush1.bf16.msra.mxu0 %v1996
        %2168 = vmatprep.subr.bf16.mxu0 0
        %2169 = vmatpush1.bf16.msra.mxu0 %v1993
        %2170 = vmatprep.subr.bf16.mxu0 0
        %2171 = vmatpush1.bf16.msra.mxu0 %v1995
        %2172 = vmatprep.subr.bf16.mxu0 0
        %2173 = vmatpush1.bf16.msra.mxu0 %v1992
        %2174 = vmatprep.subr.bf16.mxu0 0
        %2175 = vmatpush2.bf16.msra.mxu0 0
        %2176 = vmatprep.subr.bf16.mxu0 0
        %2177 = vmatpush2.bf16.msra.mxu0 0
        %2178 = vmatprep.subr.bf16.mxu0 0
        %2179 = vmatpush2.bf16.msra.mxu0 0
        %2180 = vmatprep.subr.bf16.mxu0 0
        %2181 = vmatpush2.bf16.msra.mxu0 0
        %2182 = vmatprep.subr.bf16.mxu0 0
        %2183 = vmatpush2.bf16.msra.mxu0 0
        %2184 = vmatprep.subr.bf16.mxu0 0
        %2185 = vmatpush2.bf16.msra.mxu0 0
        %2186 = vmatprep.subr.bf16.mxu0 0
        %2187 = vmatpush2.bf16.msra.mxu0 0
        %2188 = vmatprep.subr.bf16.mxu0 0
        %2189 = vmatpush2.bf16.msra.mxu0 0
        %2190 = vmatprep.mubr.bf16.mxu0 0
        %2191 = vmatmul.mubr.bf16.gmra.mxu0 %v2142
        %v2192 = vpop.f32.mrf.mxu0
        %v2193 = vadd.f32 %v2033, %v2192
        %v2194 = vpop.f32.mrf.mxu0
        %v2195 = vpop.f32.mrf.mxu0
        %v2196 = vadd.f32 %v2038, %v2195
        %v2197 = vpop.f32.mrf.mxu0
        %2198 = vmatprep.mubr.bf16.mxu0 0
        %2199 = vmatmul.mubr.bf16.gmra.mxu0 %v2143
        %v2200 = vpop.f32.mrf.mxu0
        %v2201 = vadd.f32 %v2043, %v2200
        %v2202 = vpop.f32.mrf.mxu0
        %v2203 = vpop.f32.mrf.mxu0
        %v2204 = vadd.f32 %v2048, %v2203
        %v2205 = vpop.f32.mrf.mxu0
        %2206 = vmatprep.mubr.bf16.mxu0 0
        %2207 = vmatmul.mubr.bf16.gmra.mxu0 %v2144
        %v2208 = vpop.f32.mrf.mxu0
        %v2209 = vadd.f32 %v2053, %v2208
        %v2210 = vpop.f32.mrf.mxu0
        %v2211 = vpop.f32.mrf.mxu0
        %v2212 = vadd.f32 %v2058, %v2211
        %v2213 = vpop.f32.mrf.mxu0
        %2214 = vmatprep.mubr.bf16.mxu0 0
        %2215 = vmatmul.mubr.bf16.gmra.mxu0 %v2145
        %v2216 = vpop.f32.mrf.mxu0
        %v2217 = vadd.f32 %v2063, %v2216
        %v2218 = vpop.f32.mrf.mxu0
        %v2219 = vpop.f32.mrf.mxu0
        %v2220 = vadd.f32 %v2068, %v2219
        %v2221 = vpop.f32.mrf.mxu0
        %2222 = vmatprep.mubr.bf16.mxu0 0
        %2223 = vmatmul.mubr.bf16.gmra.mxu0 %v2146
        %v2224 = vpop.f32.mrf.mxu0
        %v2225 = vadd.f32 %v2073, %v2224
        %v2226 = vpop.f32.mrf.mxu0
        %v2227 = vpop.f32.mrf.mxu0
        %v2228 = vadd.f32 %v2078, %v2227
        %v2229 = vpop.f32.mrf.mxu0
        %2230 = vmatprep.mubr.bf16.mxu0 0
        %2231 = vmatmul.mubr.bf16.gmra.mxu0 %v2147
        %v2232 = vpop.f32.mrf.mxu0
        %v2233 = vadd.f32 %v2083, %v2232
        %v2234 = vpop.f32.mrf.mxu0
        %v2235 = vpop.f32.mrf.mxu0
        %v2236 = vadd.f32 %v2088, %v2235
        %v2237 = vpop.f32.mrf.mxu0
        %2238 = vmatprep.mubr.bf16.mxu0 0
        %2239 = vmatmul.mubr.bf16.gmra.mxu0 %v2148
        %v2240 = vpop.f32.mrf.mxu0
        %v2241 = vadd.f32 %v2093, %v2240
        %v2242 = vpop.f32.mrf.mxu0
        %v2243 = vpop.f32.mrf.mxu0
        %v2244 = vadd.f32 %v2098, %v2243
        %v2245 = vpop.f32.mrf.mxu0
        %2246 = vmatprep.mubr.bf16.mxu0 0
        %2247 = vmatmul.mubr.bf16.gmra.mxu0 %v2149
        %v2248 = vpop.f32.mrf.mxu0
        %v2249 = vadd.f32 %v2103, %v2248
        %v2250 = vpop.f32.mrf.mxu0
        %v2251 = vpop.f32.mrf.mxu0
        %v2252 = vadd.f32 %v2108, %v2251
        %v2253 = vpop.f32.mrf.mxu0
        %2254 = vdwg.mxu0
        %v2255 = vmax.f32 %v2193, 0.0
        %v2256 = vmax.f32 %v2196, 0.0
        %v2257 = vmax.f32 %v2201, 0.0
        %v2258 = vmax.f32 %v2204, 0.0
        %v2259 = vmax.f32 %v2209, 0.0
        %v2260 = vmax.f32 %v2212, 0.0
        %v2261 = vmax.f32 %v2217, 0.0
        %v2262 = vmax.f32 %v2220, 0.0
        %v2263 = vmax.f32 %v2225, 0.0
        %v2264 = vmax.f32 %v2228, 0.0
        %v2265 = vmax.f32 %v2233, 0.0
        %v2266 = vmax.f32 %v2236, 0.0
        %v2267 = vmax.f32 %v2241, 0.0
        %v2268 = vmax.f32 %v2244, 0.0
        %v2269 = vmax.f32 %v2249, 0.0
        %v2270 = vmax.f32 %v2252, 0.0
        %v2271 = vlaneseq
        %v2272 = vand.u32 %v2271, 127
        %vm2273 = vcmp.lt.s32.totalorder %v2272, 39
        %v2274 = vsel %vm2273, 1, 0
        %v2275 = vcvt.s32.f32 %v2274
        %v2276 = vmul.f32 %v2255, %v2275
        %v2277 = vmul.f32 %v2256, %v2275
        %v2278 = vmul.f32 %v2257, %v2275
        %v2279 = vmul.f32 %v2258, %v2275
        %v2280 = vmul.f32 %v2259, %v2275
        %v2281 = vmul.f32 %v2260, %v2275
        %v2282 = vmul.f32 %v2261, %v2275
        %v2283 = vmul.f32 %v2262, %v2275
        %v2284 = vmul.f32 %v2263, %v2275
        %v2285 = vmul.f32 %v2264, %v2275
        %v2286 = vmul.f32 %v2265, %v2275
        %v2287 = vmul.f32 %v2266, %v2275
        %v2288 = vmul.f32 %v2267, %v2275
        %v2289 = vmul.f32 %v2268, %v2275
        %v2290 = vmul.f32 %v2269, %v2275
        %v2291 = vmul.f32 %v2270, %v2275
        %v2292 = vld [vmem:[%s7] sm:$0xff]
        %v2293 = vld [vmem:[%s7 + $0x8] sm:$0xff]
        %2294 = vmatprep.subr.mxu0 0.0
        %2295 = vmatpush1.msra.mxu0 %v2291
        %2296 = vmatprep.subr.mxu0 0.0
        %2297 = vmatpush1.msra.mxu0 %v2290
        %2298 = vmatprep.subr.mxu0 0.0
        %2299 = vmatpush1.msra.mxu0 %v2289
        %2300 = vmatprep.subr.mxu0 0.0
        %2301 = vmatpush1.msra.mxu0 %v2288
        %2302 = vmatprep.subr.mxu0 0.0
        %2303 = vmatpush1.msra.mxu0 %v2287
        %2304 = vmatprep.subr.mxu0 0.0
        %2305 = vmatpush1.msra.mxu0 %v2286
        %2306 = vmatprep.subr.mxu0 0.0
        %2307 = vmatpush1.msra.mxu0 %v2285
        %2308 = vmatprep.subr.mxu0 0.0
        %2309 = vmatpush1.msra.mxu0 %v2284
        %2310 = vmatprep.subr.mxu0 0.0
        %2311 = vmatpush1.msra.mxu0 %v2283
        %2312 = vmatprep.subr.mxu0 0.0
        %2313 = vmatpush1.msra.mxu0 %v2282
        %2314 = vmatprep.subr.mxu0 0.0
        %2315 = vmatpush1.msra.mxu0 %v2281
        %2316 = vmatprep.subr.mxu0 0.0
        %2317 = vmatpush1.msra.mxu0 %v2280
        %2318 = vmatprep.subr.mxu0 0.0
        %2319 = vmatpush1.msra.mxu0 %v2279
        %2320 = vmatprep.subr.mxu0 0.0
        %2321 = vmatpush1.msra.mxu0 %v2278
        %2322 = vmatprep.subr.mxu0 0.0
        %2323 = vmatpush1.msra.mxu0 %v2277
        %2324 = vmatprep.subr.mxu0 0.0
        %2325 = vmatpush1.msra.mxu0 %v2276
        %2326 = vmatprep.subr.mxu0 0.0
        %2327 = vmatpush2.msra.mxu0 0.0
        %2328 = vmatprep.subr.mxu0 0.0
        %2329 = vmatpush2.msra.mxu0 0.0
        %2330 = vmatprep.subr.mxu0 0.0
        %2331 = vmatpush2.msra.mxu0 0.0
        %2332 = vmatprep.subr.mxu0 0.0
        %2333 = vmatpush2.msra.mxu0 0.0
        %2334 = vmatprep.subr.mxu0 0.0
        %2335 = vmatpush2.msra.mxu0 0.0
        %2336 = vmatprep.subr.mxu0 0.0
        %2337 = vmatpush2.msra.mxu0 0.0
        %2338 = vmatprep.subr.mxu0 0.0
        %2339 = vmatpush2.msra.mxu0 0.0
        %2340 = vmatprep.subr.mxu0 0.0
        %2341 = vmatpush2.msra.mxu0 0.0
        %2342 = vmatprep.subr.mxu0 0.0
        %2343 = vmatpush2.msra.mxu0 0.0
        %2344 = vmatprep.subr.mxu0 0.0
        %2345 = vmatpush2.msra.mxu0 0.0
        %2346 = vmatprep.subr.mxu0 0.0
        %2347 = vmatpush2.msra.mxu0 0.0
        %2348 = vmatprep.subr.mxu0 0.0
        %2349 = vmatpush2.msra.mxu0 0.0
        %2350 = vmatprep.subr.mxu0 0.0
        %2351 = vmatpush2.msra.mxu0 0.0
        %2352 = vmatprep.subr.mxu0 0.0
        %2353 = vmatpush2.msra.mxu0 0.0
        %2354 = vmatprep.subr.mxu0 0.0
        %2355 = vmatpush2.msra.mxu0 0.0
        %2356 = vmatprep.subr.mxu0 0.0
        %2357 = vmatpush2.msra.mxu0 0.0
        %2358 = vmatprep.mubr.f32.mxu0 0.0
        %2359 = vmatmul.mubr.f32.gmra.mxu0 %v2292
        %v2360 = vpop.f32.mrf.mxu0
        %v2361 = vadd.f32 0.0, %v2360
        %v2362 = vpop.f32.mrf.mxu0
        %2363 = vmatprep.mubr.f32.mxu0 0.0
        %2364 = vmatmul.mubr.f32.gmra.mxu0 %v2293
        %v2365 = vpop.f32.mrf.mxu0
        %v2366 = vadd.f32 0.0, %v2365
        %v2367 = vpop.f32.mrf.mxu0
        %2368 = vdwg.mxu0
        %v2369 = vld [vmem:[%s8] sm:$0xff]
        %v2370 = vld [vmem:[%s8 + $0x8] sm:$0x1]
        %vm2371 = vcmask 130048
        %v2373 = vsel %vm2371, %v2369, 0
        %v2376 = vsel %vm2371, %v2370, 0
        %2378 = vmatprep.subr.mxu0 0.0
        %2379 = vmatpush1.msra.mxu0 0.0
        %2380 = vmatprep.subr.mxu0 0.0
        %2381 = vmatpush1.msra.mxu0 0.0
        %2382 = vmatprep.subr.mxu0 0.0
        %2383 = vmatpush1.msra.mxu0 0.0
        %2384 = vmatprep.subr.mxu0 0.0
        %2385 = vmatpush1.msra.mxu0 0.0
        %2386 = vmatprep.subr.mxu0 0.0
        %2387 = vmatpush1.msra.mxu0 0.0
        %2388 = vmatprep.subr.mxu0 0.0
        %2389 = vmatpush1.msra.mxu0 0.0
        %2390 = vmatprep.subr.mxu0 0.0
        %2391 = vmatpush1.msra.mxu0 0.0
        %2392 = vmatprep.subr.mxu0 0.0
        %2393 = vmatpush1.msra.mxu0 0.0
        %2394 = vmatprep.subr.mxu0 0.0
        %2395 = vmatpush1.msra.mxu0 0.0
        %2396 = vmatprep.subr.mxu0 0.0
        %2397 = vmatpush1.msra.mxu0 0.0
        %2398 = vmatprep.subr.mxu0 0.0
        %2399 = vmatpush1.msra.mxu0 0.0
        %2400 = vmatprep.subr.mxu0 0.0
        %2401 = vmatpush1.msra.mxu0 0.0
        %2402 = vmatprep.subr.mxu0 0.0
        %2403 = vmatpush1.msra.mxu0 0.0
        %2404 = vmatprep.subr.mxu0 0.0
        %2405 = vmatpush1.msra.mxu0 0.0
        %2406 = vmatprep.subr.mxu0 0.0
        %2407 = vmatpush1.msra.mxu0 %v2366
        %2408 = vmatprep.subr.mxu0 0.0
        %2409 = vmatpush1.msra.mxu0 %v2361
        %2410 = vmatprep.subr.mxu0 0.0
        %2411 = vmatpush2.msra.mxu0 0.0
        %2412 = vmatprep.subr.mxu0 0.0
        %2413 = vmatpush2.msra.mxu0 0.0
        %2414 = vmatprep.subr.mxu0 0.0
        %2415 = vmatpush2.msra.mxu0 0.0
        %2416 = vmatprep.subr.mxu0 0.0
        %2417 = vmatpush2.msra.mxu0 0.0
        %2418 = vmatprep.subr.mxu0 0.0
        %2419 = vmatpush2.msra.mxu0 0.0
        %2420 = vmatprep.subr.mxu0 0.0
        %2421 = vmatpush2.msra.mxu0 0.0
        %2422 = vmatprep.subr.mxu0 0.0
        %2423 = vmatpush2.msra.mxu0 0.0
        %2424 = vmatprep.subr.mxu0 0.0
        %2425 = vmatpush2.msra.mxu0 0.0
        %2426 = vmatprep.subr.mxu0 0.0
        %2427 = vmatpush2.msra.mxu0 0.0
        %2428 = vmatprep.subr.mxu0 0.0
        %2429 = vmatpush2.msra.mxu0 0.0
        %2430 = vmatprep.subr.mxu0 0.0
        %2431 = vmatpush2.msra.mxu0 0.0
        %2432 = vmatprep.subr.mxu0 0.0
        %2433 = vmatpush2.msra.mxu0 0.0
        %2434 = vmatprep.subr.mxu0 0.0
        %2435 = vmatpush2.msra.mxu0 0.0
        %2436 = vmatprep.subr.mxu0 0.0
        %2437 = vmatpush2.msra.mxu0 0.0
        %2438 = vmatprep.subr.mxu0 0.0
        %2439 = vmatpush2.msra.mxu0 0.0
        %2440 = vmatprep.subr.mxu0 0.0
        %2441 = vmatpush2.msra.mxu0 0.0
        %2442 = vmatprep.mubr.f32.mxu0 0.0
        %2443 = vmatmul.mubr.f32.gmra.mxu0 %v2373
        %v2444 = vpop.f32.mrf.mxu0
        %v2445 = vadd.f32 0.0, %v2444
        %v2446 = vpop.f32.mrf.mxu0
        %2447 = vmatprep.mubr.f32.mxu0 0.0
        %2448 = vmatmul.mubr.f32.gmra.mxu0 %v2376
        %v2449 = vpop.f32.mrf.mxu0
        %v2450 = vadd.f32 0.0, %v2449
        %v2451 = vpop.f32.mrf.mxu0
        %2452 = vdwg.mxu0
        %2453 = vrot.lane.b32.xlu0 %v2445, 4
        %v2454 = vpop.permute.xlu0 %2453
        %v2455 = vadd.f32 %v2454, 0.0
        %v2457 = vrot.slane %v2445, 1
        %2459 = vrot.lane.b32.xlu0 %v2457, 3
        %v2460 = vpop.permute.xlu0 %2459
        %v2461 = vadd.f32 %v2455, %v2460
        %v2462 = vrot.slane %v2445, 2
        %2464 = vrot.lane.b32.xlu0 %v2462, 2
        %v2465 = vpop.permute.xlu0 %2464
        %v2466 = vadd.f32 %v2461, %v2465
        %v2467 = vrot.slane %v2445, 3
        %2469 = vrot.lane.b32.xlu0 %v2467, 1
        %v2470 = vpop.permute.xlu0 %2469
        %v2471 = vadd.f32 %v2466, %v2470
        %v2472 = vrot.slane %v2445, 4
        %v2474 = vadd.f32 %v2471, %v2472
        %v2475 = vrot.slane %v2445, 5
        %2477 = vrot.lane.b32.xlu0 %v2475, 127
        %v2478 = vpop.permute.xlu0 %2477
        %v2479 = vadd.f32 %v2474, %v2478
        %v2480 = vrot.slane %v2445, 6
        %2482 = vrot.lane.b32.xlu0 %v2480, 126
        %v2483 = vpop.permute.xlu0 %2482
        %v2484 = vadd.f32 %v2479, %v2483
        %v2485 = vrot.slane %v2445, 7
        %2487 = vrot.lane.b32.xlu0 %v2485, 125
        %v2488 = vpop.permute.xlu0 %2487
        %v2489 = vadd.f32 %v2484, %v2488
        %2490 = vrot.lane.b32.xlu0 %v2450, 124
        %v2491 = vpop.permute.xlu0 %2490
        %v2492 = vadd.f32 %v2489, %v2491
        %v2493 = vstv %s542
        %v2494 = vadd.f32 %v2492, %v2493
        %v2495 = vxor.u32 %v2494, 2147483648
        %v2496 = vmul.f32 %v2495, 1.442695
        %v2497 = vpow.pop %v2496
        %v2498 = vadd.f32 %v2497, 1.0
        %v2499 = vrcp.pop %v2498
        %v2500 = vmul.f32 1.0, %v2499
        %v2501 = vadd.f32 %v2500, 1.0
        %v2502 = vlaneseq
        %v2503 = vshrl.u32 %v2502, 7
        %v2504 = vsub.s32 0, %v2503
        %v2505 = vrot.slane %v2501, %v2504
        %v2506 = vmul.f32 %v2276, %v2505
        %v2507 = vmul.f32 %v2277, %v2505
        %v2508 = vmul.f32 %v2278, %v2505
        %v2509 = vmul.f32 %v2279, %v2505
        %v2510 = vmul.f32 %v2280, %v2505
        %v2511 = vmul.f32 %v2281, %v2505
        %v2512 = vmul.f32 %v2282, %v2505
        %v2513 = vmul.f32 %v2283, %v2505
        %v2514 = vmul.f32 %v2284, %v2505
        %v2515 = vmul.f32 %v2285, %v2505
        %v2516 = vmul.f32 %v2286, %v2505
        %v2517 = vmul.f32 %v2287, %v2505
        %v2518 = vmul.f32 %v2288, %v2505
        %v2519 = vmul.f32 %v2289, %v2505
        %v2520 = vmul.f32 %v2290, %v2505
        %v2521 = vmul.f32 %v2291, %v2505
        %2522 = vadd.xlane.f32.xlu0 %v2506
        %v2523 = vpop.xlane.xlu0 %2522
        %2524 = vadd.xlane.f32.xlu0 %v2507
        %v2525 = vpop.xlane.xlu0 %2524
        %2526 = vadd.xlane.f32.xlu0 %v2508
        %v2527 = vpop.xlane.xlu0 %2526
        %2528 = vadd.xlane.f32.xlu0 %v2509
        %v2529 = vpop.xlane.xlu0 %2528
        %2530 = vadd.xlane.f32.xlu0 %v2510
        %v2531 = vpop.xlane.xlu0 %2530
        %2532 = vadd.xlane.f32.xlu0 %v2511
        %v2533 = vpop.xlane.xlu0 %2532
        %2534 = vadd.xlane.f32.xlu0 %v2512
        %v2535 = vpop.xlane.xlu0 %2534
        %2536 = vadd.xlane.f32.xlu0 %v2513
        %v2537 = vpop.xlane.xlu0 %2536
        %2538 = vadd.xlane.f32.xlu0 %v2514
        %v2539 = vpop.xlane.xlu0 %2538
        %2540 = vadd.xlane.f32.xlu0 %v2515
        %v2541 = vpop.xlane.xlu0 %2540
        %2542 = vadd.xlane.f32.xlu0 %v2516
        %v2543 = vpop.xlane.xlu0 %2542
        %2544 = vadd.xlane.f32.xlu0 %v2517
        %v2545 = vpop.xlane.xlu0 %2544
        %2546 = vadd.xlane.f32.xlu0 %v2518
        %v2547 = vpop.xlane.xlu0 %2546
        %2548 = vadd.xlane.f32.xlu0 %v2519
        %v2549 = vpop.xlane.xlu0 %2548
        %2550 = vadd.xlane.f32.xlu0 %v2520
        %v2551 = vpop.xlane.xlu0 %2550
        %2552 = vadd.xlane.f32.xlu0 %v2521
        %v2553 = vpop.xlane.xlu0 %2552
        %v2554 = vld [vmem:[%s9] sm:$0xff]
        %v2555 = vld [vmem:[%s9 + $0x8] sm:$0xff]
        %v2556 = vld [vmem:[%s9 + $0x10] sm:$0xff]
        %v2557 = vld [vmem:[%s9 + $0x18] sm:$0xff]
        %v2558 = vld [vmem:[%s9 + $0x20] sm:$0xff]
        %v2559 = vld [vmem:[%s9 + $0x28] sm:$0xff]
        %v2560 = vld [vmem:[%s9 + $0x30] sm:$0xff]
        %v2561 = vld [vmem:[%s9 + $0x38] sm:$0xff]
        %v2562 = vld [vmem:[%s9 + $0x40] sm:$0xff]
        %v2563 = vld [vmem:[%s9 + $0x48] sm:$0xff]
        %v2564 = vld [vmem:[%s9 + $0x50] sm:$0xff]
        %v2565 = vld [vmem:[%s9 + $0x58] sm:$0xff]
        %v2566 = vld [vmem:[%s9 + $0x60] sm:$0xff]
        %v2567 = vld [vmem:[%s9 + $0x68] sm:$0xff]
        %v2568 = vld [vmem:[%s9 + $0x70] sm:$0xff]
        %v2569 = vld [vmem:[%s9 + $0x78] sm:$0xff]
        %v2570 = vstv %s543
        %2571 = vmatprep.subr.mxu0 0.0
        %2572 = vmatpush1.msra.mxu0 %v2553
        %2573 = vmatprep.subr.mxu0 0.0
        %2574 = vmatpush1.msra.mxu0 %v2551
        %2575 = vmatprep.subr.mxu0 0.0
        %2576 = vmatpush1.msra.mxu0 %v2549
        %2577 = vmatprep.subr.mxu0 0.0
        %2578 = vmatpush1.msra.mxu0 %v2547
        %2579 = vmatprep.subr.mxu0 0.0
        %2580 = vmatpush1.msra.mxu0 %v2545
        %2581 = vmatprep.subr.mxu0 0.0
        %2582 = vmatpush1.msra.mxu0 %v2543
        %2583 = vmatprep.subr.mxu0 0.0
        %2584 = vmatpush1.msra.mxu0 %v2541
        %2585 = vmatprep.subr.mxu0 0.0
        %2586 = vmatpush1.msra.mxu0 %v2539
        %2587 = vmatprep.subr.mxu0 0.0
        %2588 = vmatpush1.msra.mxu0 %v2537
        %2589 = vmatprep.subr.mxu0 0.0
        %2590 = vmatpush1.msra.mxu0 %v2535
        %2591 = vmatprep.subr.mxu0 0.0
        %2592 = vmatpush1.msra.mxu0 %v2533
        %2593 = vmatprep.subr.mxu0 0.0
        %2594 = vmatpush1.msra.mxu0 %v2531
        %2595 = vmatprep.subr.mxu0 0.0
        %2596 = vmatpush1.msra.mxu0 %v2529
        %2597 = vmatprep.subr.mxu0 0.0
        %2598 = vmatpush1.msra.mxu0 %v2527
        %2599 = vmatprep.subr.mxu0 0.0
        %2600 = vmatpush1.msra.mxu0 %v2525
        %2601 = vmatprep.subr.mxu0 0.0
        %2602 = vmatpush1.msra.mxu0 %v2523
        %2603 = vmatprep.subr.mxu0 0.0
        %2604 = vmatpush2.msra.mxu0 0.0
        %2605 = vmatprep.subr.mxu0 0.0
        %2606 = vmatpush2.msra.mxu0 0.0
        %2607 = vmatprep.subr.mxu0 0.0
        %2608 = vmatpush2.msra.mxu0 0.0
        %2609 = vmatprep.subr.mxu0 0.0
        %2610 = vmatpush2.msra.mxu0 0.0
        %2611 = vmatprep.subr.mxu0 0.0
        %2612 = vmatpush2.msra.mxu0 0.0
        %2613 = vmatprep.subr.mxu0 0.0
        %2614 = vmatpush2.msra.mxu0 0.0
        %2615 = vmatprep.subr.mxu0 0.0
        %2616 = vmatpush2.msra.mxu0 0.0
        %2617 = vmatprep.subr.mxu0 0.0
        %2618 = vmatpush2.msra.mxu0 0.0
        %2619 = vmatprep.subr.mxu0 0.0
        %2620 = vmatpush2.msra.mxu0 0.0
        %2621 = vmatprep.subr.mxu0 0.0
        %2622 = vmatpush2.msra.mxu0 0.0
        %2623 = vmatprep.subr.mxu0 0.0
        %2624 = vmatpush2.msra.mxu0 0.0
        %2625 = vmatprep.subr.mxu0 0.0
        %2626 = vmatpush2.msra.mxu0 0.0
        %2627 = vmatprep.subr.mxu0 0.0
        %2628 = vmatpush2.msra.mxu0 0.0
        %2629 = vmatprep.subr.mxu0 0.0
        %2630 = vmatpush2.msra.mxu0 0.0
        %2631 = vmatprep.subr.mxu0 0.0
        %2632 = vmatpush2.msra.mxu0 0.0
        %2633 = vmatprep.subr.mxu0 0.0
        %2634 = vmatpush2.msra.mxu0 0.0
        %2635 = vmatprep.mubr.f32.mxu0 0.0
        %2636 = vmatmul.mubr.f32.gmra.mxu0 %v2554
        %v2637 = vpop.f32.mrf.mxu0
        %v2638 = vadd.f32 %v2570, %v2637
        %v2639 = vpop.f32.mrf.mxu0
        %2640 = vmatprep.mubr.f32.mxu0 0.0
        %2641 = vmatmul.mubr.f32.gmra.mxu0 %v2555
        %v2642 = vpop.f32.mrf.mxu0
        %v2643 = vadd.f32 %v2570, %v2642
        %v2644 = vpop.f32.mrf.mxu0
        %2645 = vmatprep.mubr.f32.mxu0 0.0
        %2646 = vmatmul.mubr.f32.gmra.mxu0 %v2556
        %v2647 = vpop.f32.mrf.mxu0
        %v2648 = vadd.f32 %v2570, %v2647
        %v2649 = vpop.f32.mrf.mxu0
        %2650 = vmatprep.mubr.f32.mxu0 0.0
        %2651 = vmatmul.mubr.f32.gmra.mxu0 %v2557
        %v2652 = vpop.f32.mrf.mxu0
        %v2653 = vadd.f32 %v2570, %v2652
        %v2654 = vpop.f32.mrf.mxu0
        %2655 = vmatprep.mubr.f32.mxu0 0.0
        %2656 = vmatmul.mubr.f32.gmra.mxu0 %v2558
        %v2657 = vpop.f32.mrf.mxu0
        %v2658 = vadd.f32 %v2570, %v2657
        %v2659 = vpop.f32.mrf.mxu0
        %2660 = vmatprep.mubr.f32.mxu0 0.0
        %2661 = vmatmul.mubr.f32.gmra.mxu0 %v2559
        %v2662 = vpop.f32.mrf.mxu0
        %v2663 = vadd.f32 %v2570, %v2662
        %v2664 = vpop.f32.mrf.mxu0
        %2665 = vmatprep.mubr.f32.mxu0 0.0
        %2666 = vmatmul.mubr.f32.gmra.mxu0 %v2560
        %v2667 = vpop.f32.mrf.mxu0
        %v2668 = vadd.f32 %v2570, %v2667
        %v2669 = vpop.f32.mrf.mxu0
        %2670 = vmatprep.mubr.f32.mxu0 0.0
        %2671 = vmatmul.mubr.f32.gmra.mxu0 %v2561
        %v2672 = vpop.f32.mrf.mxu0
        %v2673 = vadd.f32 %v2570, %v2672
        %v2674 = vpop.f32.mrf.mxu0
        %2675 = vmatprep.mubr.f32.mxu0 0.0
        %2676 = vmatmul.mubr.f32.gmra.mxu0 %v2562
        %v2677 = vpop.f32.mrf.mxu0
        %v2678 = vadd.f32 %v2570, %v2677
        %v2679 = vpop.f32.mrf.mxu0
        %2680 = vmatprep.mubr.f32.mxu0 0.0
        %2681 = vmatmul.mubr.f32.gmra.mxu0 %v2563
        %v2682 = vpop.f32.mrf.mxu0
        %v2683 = vadd.f32 %v2570, %v2682
        %v2684 = vpop.f32.mrf.mxu0
        %2685 = vmatprep.mubr.f32.mxu0 0.0
        %2686 = vmatmul.mubr.f32.gmra.mxu0 %v2564
        %v2687 = vpop.f32.mrf.mxu0
        %v2688 = vadd.f32 %v2570, %v2687
        %v2689 = vpop.f32.mrf.mxu0
        %2690 = vmatprep.mubr.f32.mxu0 0.0
        %2691 = vmatmul.mubr.f32.gmra.mxu0 %v2565
        %v2692 = vpop.f32.mrf.mxu0
        %v2693 = vadd.f32 %v2570, %v2692
        %v2694 = vpop.f32.mrf.mxu0
        %2695 = vmatprep.mubr.f32.mxu0 0.0
        %2696 = vmatmul.mubr.f32.gmra.mxu0 %v2566
        %v2697 = vpop.f32.mrf.mxu0
        %v2698 = vadd.f32 %v2570, %v2697
        %v2699 = vpop.f32.mrf.mxu0
        %2700 = vmatprep.mubr.f32.mxu0 0.0
        %2701 = vmatmul.mubr.f32.gmra.mxu0 %v2567
        %v2702 = vpop.f32.mrf.mxu0
        %v2703 = vadd.f32 %v2570, %v2702
        %v2704 = vpop.f32.mrf.mxu0
        %2705 = vmatprep.mubr.f32.mxu0 0.0
        %2706 = vmatmul.mubr.f32.gmra.mxu0 %v2568
        %v2707 = vpop.f32.mrf.mxu0
        %v2708 = vadd.f32 %v2570, %v2707
        %v2709 = vpop.f32.mrf.mxu0
        %2710 = vmatprep.mubr.f32.mxu0 0.0
        %2711 = vmatmul.mubr.f32.gmra.mxu0 %v2569
        %v2712 = vpop.f32.mrf.mxu0
        %v2713 = vadd.f32 %v2570, %v2712
        %v2714 = vpop.f32.mrf.mxu0
        %2715 = vdwg.mxu0
        %v2716 = vxor.u32 %v2638, 2147483648
        %v2717 = vxor.u32 %v2643, 2147483648
        %v2718 = vxor.u32 %v2648, 2147483648
        %v2719 = vxor.u32 %v2653, 2147483648
        %v2720 = vxor.u32 %v2658, 2147483648
        %v2721 = vxor.u32 %v2663, 2147483648
        %v2722 = vxor.u32 %v2668, 2147483648
        %v2723 = vxor.u32 %v2673, 2147483648
        %v2724 = vxor.u32 %v2678, 2147483648
        %v2725 = vxor.u32 %v2683, 2147483648
        %v2726 = vxor.u32 %v2688, 2147483648
        %v2727 = vxor.u32 %v2693, 2147483648
        %v2728 = vxor.u32 %v2698, 2147483648
        %v2729 = vxor.u32 %v2703, 2147483648
        %v2730 = vxor.u32 %v2708, 2147483648
        %v2731 = vxor.u32 %v2713, 2147483648
        %v2732 = vmul.f32 %v2716, 1.442695
        %v2733 = vpow.pop %v2732
        %v2734 = vmul.f32 %v2717, 1.442695
        %v2735 = vpow.pop %v2734
        %v2736 = vmul.f32 %v2718, 1.442695
        %v2737 = vpow.pop %v2736
        %v2738 = vmul.f32 %v2719, 1.442695
        %v2739 = vpow.pop %v2738
        %v2740 = vmul.f32 %v2720, 1.442695
        %v2741 = vpow.pop %v2740
        %v2742 = vmul.f32 %v2721, 1.442695
        %v2743 = vpow.pop %v2742
        %v2744 = vmul.f32 %v2722, 1.442695
        %v2745 = vpow.pop %v2744
        %v2746 = vmul.f32 %v2723, 1.442695
        %v2747 = vpow.pop %v2746
        %v2748 = vmul.f32 %v2724, 1.442695
        %v2749 = vpow.pop %v2748
        %v2750 = vmul.f32 %v2725, 1.442695
        %v2751 = vpow.pop %v2750
        %v2752 = vmul.f32 %v2726, 1.442695
        %v2753 = vpow.pop %v2752
        %v2754 = vmul.f32 %v2727, 1.442695
        %v2755 = vpow.pop %v2754
        %v2756 = vmul.f32 %v2728, 1.442695
        %v2757 = vpow.pop %v2756
        %v2758 = vmul.f32 %v2729, 1.442695
        %v2759 = vpow.pop %v2758
        %v2760 = vmul.f32 %v2730, 1.442695
        %v2761 = vpow.pop %v2760
        %v2762 = vmul.f32 %v2731, 1.442695
        %v2763 = vpow.pop %v2762
        %v2764 = vadd.f32 %v2733, 1.0
        %v2765 = vadd.f32 %v2735, 1.0
        %v2766 = vadd.f32 %v2737, 1.0
        %v2767 = vadd.f32 %v2739, 1.0
        %v2768 = vadd.f32 %v2741, 1.0
        %v2769 = vadd.f32 %v2743, 1.0
        %v2770 = vadd.f32 %v2745, 1.0
        %v2771 = vadd.f32 %v2747, 1.0
        %v2772 = vadd.f32 %v2749, 1.0
        %v2773 = vadd.f32 %v2751, 1.0
        %v2774 = vadd.f32 %v2753, 1.0
        %v2775 = vadd.f32 %v2755, 1.0
        %v2776 = vadd.f32 %v2757, 1.0
        %v2777 = vadd.f32 %v2759, 1.0
        %v2778 = vadd.f32 %v2761, 1.0
        %v2779 = vadd.f32 %v2763, 1.0
        %v2780 = vrcp.pop %v2764
        %v2781 = vmul.f32 1.0, %v2780
        %v2782 = vrcp.pop %v2765
        %v2783 = vmul.f32 1.0, %v2782
        %v2784 = vrcp.pop %v2766
        %v2785 = vmul.f32 1.0, %v2784
        %v2786 = vrcp.pop %v2767
        %v2787 = vmul.f32 1.0, %v2786
        %v2788 = vrcp.pop %v2768
        %v2789 = vmul.f32 1.0, %v2788
        %v2790 = vrcp.pop %v2769
        %v2791 = vmul.f32 1.0, %v2790
        %v2792 = vrcp.pop %v2770
        %v2793 = vmul.f32 1.0, %v2792
        %v2794 = vrcp.pop %v2771
        %v2795 = vmul.f32 1.0, %v2794
        %v2796 = vrcp.pop %v2772
        %v2797 = vmul.f32 1.0, %v2796
        %v2798 = vrcp.pop %v2773
        %v2799 = vmul.f32 1.0, %v2798
        %v2800 = vrcp.pop %v2774
        %v2801 = vmul.f32 1.0, %v2800
        %v2802 = vrcp.pop %v2775
        %v2803 = vmul.f32 1.0, %v2802
        %v2804 = vrcp.pop %v2776
        %v2805 = vmul.f32 1.0, %v2804
        %v2806 = vrcp.pop %v2777
        %v2807 = vmul.f32 1.0, %v2806
        %v2808 = vrcp.pop %v2778
        %v2809 = vmul.f32 1.0, %v2808
        %v2810 = vrcp.pop %v2779
        %v2811 = vmul.f32 1.0, %v2810
        %v2812 = vadd.f32 %v2781, 1.0
        %v2813 = vadd.f32 %v2783, 1.0
        %v2814 = vadd.f32 %v2785, 1.0
        %v2815 = vadd.f32 %v2787, 1.0
        %v2816 = vadd.f32 %v2789, 1.0
        %v2817 = vadd.f32 %v2791, 1.0
        %v2818 = vadd.f32 %v2793, 1.0
        %v2819 = vadd.f32 %v2795, 1.0
        %v2820 = vadd.f32 %v2797, 1.0
        %v2821 = vadd.f32 %v2799, 1.0
        %v2822 = vadd.f32 %v2801, 1.0
        %v2823 = vadd.f32 %v2803, 1.0
        %v2824 = vadd.f32 %v2805, 1.0
        %v2825 = vadd.f32 %v2807, 1.0
        %v2826 = vadd.f32 %v2809, 1.0
        %v2827 = vadd.f32 %v2811, 1.0
        %2829 = vset.pattern.permute.xlu0 0
        %2830 = vperm.xlu0 %2829, %v2812
        %v2831 = vpop.permute.xlu0 %2830
        %2834 = vset.pattern.permute.xlu0 0
        %2835 = vperm.xlu0 %2834, %v2813
        %v2836 = vpop.permute.xlu0 %2835
        %2839 = vset.pattern.permute.xlu0 0
        %2840 = vperm.xlu0 %2839, %v2814
        %v2841 = vpop.permute.xlu0 %2840
        %2844 = vset.pattern.permute.xlu0 0
        %2845 = vperm.xlu0 %2844, %v2815
        %v2846 = vpop.permute.xlu0 %2845
        %2849 = vset.pattern.permute.xlu0 0
        %2850 = vperm.xlu0 %2849, %v2816
        %v2851 = vpop.permute.xlu0 %2850
        %2854 = vset.pattern.permute.xlu0 0
        %2855 = vperm.xlu0 %2854, %v2817
        %v2856 = vpop.permute.xlu0 %2855
        %2859 = vset.pattern.permute.xlu0 0
        %2860 = vperm.xlu0 %2859, %v2818
        %v2861 = vpop.permute.xlu0 %2860
        %2864 = vset.pattern.permute.xlu0 0
        %2865 = vperm.xlu0 %2864, %v2819
        %v2866 = vpop.permute.xlu0 %2865
        %2869 = vset.pattern.permute.xlu0 0
        %2870 = vperm.xlu0 %2869, %v2820
        %v2871 = vpop.permute.xlu0 %2870
        %2874 = vset.pattern.permute.xlu0 0
        %2875 = vperm.xlu0 %2874, %v2821
        %v2876 = vpop.permute.xlu0 %2875
        %2879 = vset.pattern.permute.xlu0 0
        %2880 = vperm.xlu0 %2879, %v2822
        %v2881 = vpop.permute.xlu0 %2880
        %2884 = vset.pattern.permute.xlu0 0
        %2885 = vperm.xlu0 %2884, %v2823
        %v2886 = vpop.permute.xlu0 %2885
        %2889 = vset.pattern.permute.xlu0 0
        %2890 = vperm.xlu0 %2889, %v2824
        %v2891 = vpop.permute.xlu0 %2890
        %2894 = vset.pattern.permute.xlu0 0
        %2895 = vperm.xlu0 %2894, %v2825
        %v2896 = vpop.permute.xlu0 %2895
        %2899 = vset.pattern.permute.xlu0 0
        %2900 = vperm.xlu0 %2899, %v2826
        %v2901 = vpop.permute.xlu0 %2900
        %2904 = vset.pattern.permute.xlu0 0
        %2905 = vperm.xlu0 %2904, %v2827
        %v2906 = vpop.permute.xlu0 %2905
        %v2908 = vmul.f32 %v2506, %v2831
        %v2909 = vmul.f32 %v2507, %v2836
        %v2910 = vmul.f32 %v2508, %v2841
        %v2911 = vmul.f32 %v2509, %v2846
        %v2912 = vmul.f32 %v2510, %v2851
        %v2913 = vmul.f32 %v2511, %v2856
        %v2914 = vmul.f32 %v2512, %v2861
        %v2915 = vmul.f32 %v2513, %v2866
        %v2916 = vmul.f32 %v2514, %v2871
        %v2917 = vmul.f32 %v2515, %v2876
        %v2918 = vmul.f32 %v2516, %v2881
        %v2919 = vmul.f32 %v2517, %v2886
        %v2920 = vmul.f32 %v2518, %v2891
        %v2921 = vmul.f32 %v2519, %v2896
        %v2922 = vmul.f32 %v2520, %v2901
        %v2923 = vmul.f32 %v2521, %v2906
        %2924 = vadd.xlane.f32.xlu0 %v2908
        %v2925 = vpop.xlane.xlu0 %2924
        %2926 = vadd.xlane.f32.xlu0 %v2909
        %v2927 = vpop.xlane.xlu0 %2926
        %2928 = vadd.xlane.f32.xlu0 %v2910
        %v2929 = vpop.xlane.xlu0 %2928
        %2930 = vadd.xlane.f32.xlu0 %v2911
        %v2931 = vpop.xlane.xlu0 %2930
        %2932 = vadd.xlane.f32.xlu0 %v2912
        %v2933 = vpop.xlane.xlu0 %2932
        %2934 = vadd.xlane.f32.xlu0 %v2913
        %v2935 = vpop.xlane.xlu0 %2934
        %2936 = vadd.xlane.f32.xlu0 %v2914
        %v2937 = vpop.xlane.xlu0 %2936
        %2938 = vadd.xlane.f32.xlu0 %v2915
        %v2939 = vpop.xlane.xlu0 %2938
        %2940 = vadd.xlane.f32.xlu0 %v2916
        %v2941 = vpop.xlane.xlu0 %2940
        %2942 = vadd.xlane.f32.xlu0 %v2917
        %v2943 = vpop.xlane.xlu0 %2942
        %2944 = vadd.xlane.f32.xlu0 %v2918
        %v2945 = vpop.xlane.xlu0 %2944
        %2946 = vadd.xlane.f32.xlu0 %v2919
        %v2947 = vpop.xlane.xlu0 %2946
        %2948 = vadd.xlane.f32.xlu0 %v2920
        %v2949 = vpop.xlane.xlu0 %2948
        %2950 = vadd.xlane.f32.xlu0 %v2921
        %v2951 = vpop.xlane.xlu0 %2950
        %2952 = vadd.xlane.f32.xlu0 %v2922
        %v2953 = vpop.xlane.xlu0 %2952
        %2954 = vadd.xlane.f32.xlu0 %v2923
        %v2955 = vpop.xlane.xlu0 %2954
        %2956 = vmatprep.subr.mxu0 0.0
        %2957 = vmatpush1.msra.mxu0 %v2955
        %2958 = vmatprep.subr.mxu0 0.0
        %2959 = vmatpush1.msra.mxu0 %v2953
        %2960 = vmatprep.subr.mxu0 0.0
        %2961 = vmatpush1.msra.mxu0 %v2951
        %2962 = vmatprep.subr.mxu0 0.0
        %2963 = vmatpush1.msra.mxu0 %v2949
        %2964 = vmatprep.subr.mxu0 0.0
        %2965 = vmatpush1.msra.mxu0 %v2947
        %2966 = vmatprep.subr.mxu0 0.0
        %2967 = vmatpush1.msra.mxu0 %v2945
        %2968 = vmatprep.subr.mxu0 0.0
        %2969 = vmatpush1.msra.mxu0 %v2943
        %2970 = vmatprep.subr.mxu0 0.0
        %2971 = vmatpush1.msra.mxu0 %v2941
        %2972 = vmatprep.subr.mxu0 0.0
        %2973 = vmatpush1.msra.mxu0 %v2939
        %2974 = vmatprep.subr.mxu0 0.0
        %2975 = vmatpush1.msra.mxu0 %v2937
        %2976 = vmatprep.subr.mxu0 0.0
        %2977 = vmatpush1.msra.mxu0 %v2935
        %2978 = vmatprep.subr.mxu0 0.0
        %2979 = vmatpush1.msra.mxu0 %v2933
        %2980 = vmatprep.subr.mxu0 0.0
        %2981 = vmatpush1.msra.mxu0 %v2931
        %2982 = vmatprep.subr.mxu0 0.0
        %2983 = vmatpush1.msra.mxu0 %v2929
        %2984 = vmatprep.subr.mxu0 0.0
        %2985 = vmatpush1.msra.mxu0 %v2927
        %2986 = vmatprep.subr.mxu0 0.0
        %2987 = vmatpush1.msra.mxu0 %v2925
        %2988 = vmatprep.subr.mxu0 0.0
        %2989 = vmatpush2.msra.mxu0 0.0
        %2990 = vmatprep.subr.mxu0 0.0
        %2991 = vmatpush2.msra.mxu0 0.0
        %2992 = vmatprep.subr.mxu0 0.0
        %2993 = vmatpush2.msra.mxu0 0.0
        %2994 = vmatprep.subr.mxu0 0.0
        %2995 = vmatpush2.msra.mxu0 0.0
        %2996 = vmatprep.subr.mxu0 0.0
        %2997 = vmatpush2.msra.mxu0 0.0
        %2998 = vmatprep.subr.mxu0 0.0
        %2999 = vmatpush2.msra.mxu0 0.0
        %3000 = vmatprep.subr.mxu0 0.0
        %3001 = vmatpush2.msra.mxu0 0.0
        %3002 = vmatprep.subr.mxu0 0.0
        %3003 = vmatpush2.msra.mxu0 0.0
        %3004 = vmatprep.subr.mxu0 0.0
        %3005 = vmatpush2.msra.mxu0 0.0
        %3006 = vmatprep.subr.mxu0 0.0
        %3007 = vmatpush2.msra.mxu0 0.0
        %3008 = vmatprep.subr.mxu0 0.0
        %3009 = vmatpush2.msra.mxu0 0.0
        %3010 = vmatprep.subr.mxu0 0.0
        %3011 = vmatpush2.msra.mxu0 0.0
        %3012 = vmatprep.subr.mxu0 0.0
        %3013 = vmatpush2.msra.mxu0 0.0
        %3014 = vmatprep.subr.mxu0 0.0
        %3015 = vmatpush2.msra.mxu0 0.0
        %3016 = vmatprep.subr.mxu0 0.0
        %3017 = vmatpush2.msra.mxu0 0.0
        %3018 = vmatprep.subr.mxu0 0.0
        %3019 = vmatpush2.msra.mxu0 0.0
        %3020 = vmatprep.mubr.f32.mxu0 0.0
        %3021 = vmatmul.mubr.f32.gmra.mxu0 %v2292
        %v3022 = vpop.f32.mrf.mxu0
        %v3023 = vadd.f32 0.0, %v3022
        %v3024 = vpop.f32.mrf.mxu0
        %3025 = vmatprep.mubr.f32.mxu0 0.0
        %3026 = vmatmul.mubr.f32.gmra.mxu0 %v2293
        %v3027 = vpop.f32.mrf.mxu0
        %v3028 = vadd.f32 0.0, %v3027
        %v3029 = vpop.f32.mrf.mxu0
        %3030 = vdwg.mxu0
        %v3031 = vmul.f32 %v3023, 0.025641026
        %v3032 = vmul.f32 %v3028, 0.025641026
        %v3033 = vld [vmem:[%s10] sm:$0xff]
        %v3034 = vld [vmem:[%s11] sm:$0xff]
        %v3036 = vsel %vm2371, %v3033, 0
        %3038 = vmatprep.subr.mxu0 0.0
        %3039 = vmatpush1.msra.mxu0 0.0
        %3040 = vmatprep.subr.mxu0 0.0
        %3041 = vmatpush1.msra.mxu0 0.0
        %3042 = vmatprep.subr.mxu0 0.0
        %3043 = vmatpush1.msra.mxu0 0.0
        %3044 = vmatprep.subr.mxu0 0.0
        %3045 = vmatpush1.msra.mxu0 0.0
        %3046 = vmatprep.subr.mxu0 0.0
        %3047 = vmatpush1.msra.mxu0 0.0
        %3048 = vmatprep.subr.mxu0 0.0
        %3049 = vmatpush1.msra.mxu0 0.0
        %3050 = vmatprep.subr.mxu0 0.0
        %3051 = vmatpush1.msra.mxu0 0.0
        %3052 = vmatprep.subr.mxu0 0.0
        %3053 = vmatpush1.msra.mxu0 0.0
        %3054 = vmatprep.subr.mxu0 0.0
        %3055 = vmatpush1.msra.mxu0 0.0
        %3056 = vmatprep.subr.mxu0 0.0
        %3057 = vmatpush1.msra.mxu0 0.0
        %3058 = vmatprep.subr.mxu0 0.0
        %3059 = vmatpush1.msra.mxu0 0.0
        %3060 = vmatprep.subr.mxu0 0.0
        %3061 = vmatpush1.msra.mxu0 0.0
        %3062 = vmatprep.subr.mxu0 0.0
        %3063 = vmatpush1.msra.mxu0 0.0
        %3064 = vmatprep.subr.mxu0 0.0
        %3065 = vmatpush1.msra.mxu0 0.0
        %3066 = vmatprep.subr.mxu0 0.0
        %3067 = vmatpush1.msra.mxu0 %v3032
        %3068 = vmatprep.subr.mxu0 0.0
        %3069 = vmatpush1.msra.mxu0 %v3031
        %3070 = vmatprep.subr.mxu0 0.0
        %3071 = vmatpush2.msra.mxu0 0.0
        %3072 = vmatprep.subr.mxu0 0.0
        %3073 = vmatpush2.msra.mxu0 0.0
        %3074 = vmatprep.subr.mxu0 0.0
        %3075 = vmatpush2.msra.mxu0 0.0
        %3076 = vmatprep.subr.mxu0 0.0
        %3077 = vmatpush2.msra.mxu0 0.0
        %3078 = vmatprep.subr.mxu0 0.0
        %3079 = vmatpush2.msra.mxu0 0.0
        %3080 = vmatprep.subr.mxu0 0.0
        %3081 = vmatpush2.msra.mxu0 0.0
        %3082 = vmatprep.subr.mxu0 0.0
        %3083 = vmatpush2.msra.mxu0 0.0
        %3084 = vmatprep.subr.mxu0 0.0
        %3085 = vmatpush2.msra.mxu0 0.0
        %3086 = vmatprep.subr.mxu0 0.0
        %3087 = vmatpush2.msra.mxu0 0.0
        %3088 = vmatprep.subr.mxu0 0.0
        %3089 = vmatpush2.msra.mxu0 0.0
        %3090 = vmatprep.subr.mxu0 0.0
        %3091 = vmatpush2.msra.mxu0 0.0
        %3092 = vmatprep.subr.mxu0 0.0
        %3093 = vmatpush2.msra.mxu0 0.0
        %3094 = vmatprep.subr.mxu0 0.0
        %3095 = vmatpush2.msra.mxu0 0.0
        %3096 = vmatprep.subr.mxu0 0.0
        %3097 = vmatpush2.msra.mxu0 0.0
        %3098 = vmatprep.subr.mxu0 0.0
        %3099 = vmatpush2.msra.mxu0 0.0
        %3100 = vmatprep.subr.mxu0 0.0
        %3101 = vmatpush2.msra.mxu0 0.0
        %3102 = vmatprep.mubr.f32.mxu0 0.0
        %3103 = vmatmul.mubr.f32.gmra.mxu0 %v3036
        %v3104 = vpop.f32.mrf.mxu0
        %v3105 = vadd.f32 %v3034, %v3104
        %v3106 = vpop.f32.mrf.mxu0
        %3107 = vdwg.mxu0
        %v3108 = vmax.f32 %v3105, 0.0
        %v3109 = vld [vmem:[%s12] sm:$0xff]
        %v3110 = vld [vmem:[%s12 + $0x8] sm:$0xff]
        %v3111 = vld [vmem:[%s12 + $0x10] sm:$0xff]
        %v3112 = vld [vmem:[%s12 + $0x18] sm:$0xff]
        %v3113 = vld [vmem:[%s12 + $0x20] sm:$0xff]
        %v3114 = vld [vmem:[%s12 + $0x28] sm:$0xff]
        %v3115 = vld [vmem:[%s12 + $0x30] sm:$0xff]
        %v3116 = vld [vmem:[%s12 + $0x38] sm:$0xff]
        %v3117 = vld [vmem:[%s12 + $0x40] sm:$0xff]
        %v3118 = vld [vmem:[%s12 + $0x48] sm:$0xff]
        %v3119 = vld [vmem:[%s12 + $0x50] sm:$0xff]
        %v3120 = vld [vmem:[%s12 + $0x58] sm:$0xff]
        %v3121 = vld [vmem:[%s12 + $0x60] sm:$0xff]
        %v3122 = vld [vmem:[%s12 + $0x68] sm:$0xff]
        %v3123 = vld [vmem:[%s12 + $0x70] sm:$0xff]
        %v3124 = vld [vmem:[%s12 + $0x78] sm:$0xff]
        %v3125 = vld [vmem:[%s13] sm:$0xff]
        %v3126 = vld [vmem:[%s13 + $0x8] sm:$0xff]
        %v3127 = vld [vmem:[%s13 + $0x10] sm:$0xff]
        %v3128 = vld [vmem:[%s13 + $0x18] sm:$0xff]
        %v3129 = vld [vmem:[%s13 + $0x20] sm:$0xff]
        %v3130 = vld [vmem:[%s13 + $0x28] sm:$0xff]
        %v3131 = vld [vmem:[%s13 + $0x30] sm:$0xff]
        %v3132 = vld [vmem:[%s13 + $0x38] sm:$0xff]
        %v3133 = vld [vmem:[%s13 + $0x40] sm:$0xff]
        %v3134 = vld [vmem:[%s13 + $0x48] sm:$0xff]
        %v3135 = vld [vmem:[%s13 + $0x50] sm:$0xff]
        %v3136 = vld [vmem:[%s13 + $0x58] sm:$0xff]
        %v3137 = vld [vmem:[%s13 + $0x60] sm:$0xff]
        %v3138 = vld [vmem:[%s13 + $0x68] sm:$0xff]
        %v3139 = vld [vmem:[%s13 + $0x70] sm:$0xff]
        %v3140 = vld [vmem:[%s13 + $0x78] sm:$0xff]
        %vm3141 = vcmask 64512
        %v3143 = vsel %vm3141, %v3109, 0
        %v3146 = vsel %vm3141, %v3110, 0
        %v3149 = vsel %vm3141, %v3111, 0
        %v3152 = vsel %vm3141, %v3112, 0
        %v3155 = vsel %vm3141, %v3113, 0
        %v3158 = vsel %vm3141, %v3114, 0
        %v3161 = vsel %vm3141, %v3115, 0
        %v3164 = vsel %vm3141, %v3116, 0
        %v3167 = vsel %vm3141, %v3117, 0
        %v3170 = vsel %vm3141, %v3118, 0
        %v3173 = vsel %vm3141, %v3119, 0
        %v3176 = vsel %vm3141, %v3120, 0
        %v3179 = vsel %vm3141, %v3121, 0
        %v3182 = vsel %vm3141, %v3122, 0
        %v3185 = vsel %vm3141, %v3123, 0
        %v3188 = vsel %vm3141, %v3124, 0
        %3190 = vmatprep.subr.mxu0 0.0
        %3191 = vmatpush1.msra.mxu0 0.0
        %3192 = vmatprep.subr.mxu0 0.0
        %3193 = vmatpush1.msra.mxu0 0.0
        %3194 = vmatprep.subr.mxu0 0.0
        %3195 = vmatpush1.msra.mxu0 0.0
        %3196 = vmatprep.subr.mxu0 0.0
        %3197 = vmatpush1.msra.mxu0 0.0
        %3198 = vmatprep.subr.mxu0 0.0
        %3199 = vmatpush1.msra.mxu0 0.0
        %3200 = vmatprep.subr.mxu0 0.0
        %3201 = vmatpush1.msra.mxu0 0.0
        %3202 = vmatprep.subr.mxu0 0.0
        %3203 = vmatpush1.msra.mxu0 0.0
        %3204 = vmatprep.subr.mxu0 0.0
        %3205 = vmatpush1.msra.mxu0 0.0
        %3206 = vmatprep.subr.mxu0 0.0
        %3207 = vmatpush1.msra.mxu0 0.0
        %3208 = vmatprep.subr.mxu0 0.0
        %3209 = vmatpush1.msra.mxu0 0.0
        %3210 = vmatprep.subr.mxu0 0.0
        %3211 = vmatpush1.msra.mxu0 0.0
        %3212 = vmatprep.subr.mxu0 0.0
        %3213 = vmatpush1.msra.mxu0 0.0
        %3214 = vmatprep.subr.mxu0 0.0
        %3215 = vmatpush1.msra.mxu0 0.0
        %3216 = vmatprep.subr.mxu0 0.0
        %3217 = vmatpush1.msra.mxu0 0.0
        %3218 = vmatprep.subr.mxu0 0.0
        %3219 = vmatpush1.msra.mxu0 0.0
        %3220 = vmatprep.subr.mxu0 0.0
        %3221 = vmatpush1.msra.mxu0 %v3108
        %3222 = vmatprep.subr.mxu0 0.0
        %3223 = vmatpush2.msra.mxu0 0.0
        %3224 = vmatprep.subr.mxu0 0.0
        %3225 = vmatpush2.msra.mxu0 0.0
        %3226 = vmatprep.subr.mxu0 0.0
        %3227 = vmatpush2.msra.mxu0 0.0
        %3228 = vmatprep.subr.mxu0 0.0
        %3229 = vmatpush2.msra.mxu0 0.0
        %3230 = vmatprep.subr.mxu0 0.0
        %3231 = vmatpush2.msra.mxu0 0.0
        %3232 = vmatprep.subr.mxu0 0.0
        %3233 = vmatpush2.msra.mxu0 0.0
        %3234 = vmatprep.subr.mxu0 0.0
        %3235 = vmatpush2.msra.mxu0 0.0
        %3236 = vmatprep.subr.mxu0 0.0
        %3237 = vmatpush2.msra.mxu0 0.0
        %3238 = vmatprep.subr.mxu0 0.0
        %3239 = vmatpush2.msra.mxu0 0.0
        %3240 = vmatprep.subr.mxu0 0.0
        %3241 = vmatpush2.msra.mxu0 0.0
        %3242 = vmatprep.subr.mxu0 0.0
        %3243 = vmatpush2.msra.mxu0 0.0
        %3244 = vmatprep.subr.mxu0 0.0
        %3245 = vmatpush2.msra.mxu0 0.0
        %3246 = vmatprep.subr.mxu0 0.0
        %3247 = vmatpush2.msra.mxu0 0.0
        %3248 = vmatprep.subr.mxu0 0.0
        %3249 = vmatpush2.msra.mxu0 0.0
        %3250 = vmatprep.subr.mxu0 0.0
        %3251 = vmatpush2.msra.mxu0 0.0
        %3252 = vmatprep.subr.mxu0 0.0
        %3253 = vmatpush2.msra.mxu0 0.0
        %3254 = vmatprep.mubr.f32.mxu0 0.0
        %3255 = vmatmul.mubr.f32.gmra.mxu0 %v3143
        %v3256 = vpop.f32.mrf.mxu0
        %v3257 = vadd.f32 %v3125, %v3256
        %v3258 = vpop.f32.mrf.mxu0
        %3259 = vmatprep.mubr.f32.mxu0 0.0
        %3260 = vmatmul.mubr.f32.gmra.mxu0 %v3146
        %v3261 = vpop.f32.mrf.mxu0
        %v3262 = vadd.f32 %v3126, %v3261
        %v3263 = vpop.f32.mrf.mxu0
        %3264 = vmatprep.mubr.f32.mxu0 0.0
        %3265 = vmatmul.mubr.f32.gmra.mxu0 %v3149
        %v3266 = vpop.f32.mrf.mxu0
        %v3267 = vadd.f32 %v3127, %v3266
        %v3268 = vpop.f32.mrf.mxu0
        %3269 = vmatprep.mubr.f32.mxu0 0.0
        %3270 = vmatmul.mubr.f32.gmra.mxu0 %v3152
        %v3271 = vpop.f32.mrf.mxu0
        %v3272 = vadd.f32 %v3128, %v3271
        %v3273 = vpop.f32.mrf.mxu0
        %3274 = vmatprep.mubr.f32.mxu0 0.0
        %3275 = vmatmul.mubr.f32.gmra.mxu0 %v3155
        %v3276 = vpop.f32.mrf.mxu0
        %v3277 = vadd.f32 %v3129, %v3276
        %v3278 = vpop.f32.mrf.mxu0
        %3279 = vmatprep.mubr.f32.mxu0 0.0
        %3280 = vmatmul.mubr.f32.gmra.mxu0 %v3158
        %v3281 = vpop.f32.mrf.mxu0
        %v3282 = vadd.f32 %v3130, %v3281
        %v3283 = vpop.f32.mrf.mxu0
        %3284 = vmatprep.mubr.f32.mxu0 0.0
        %3285 = vmatmul.mubr.f32.gmra.mxu0 %v3161
        %v3286 = vpop.f32.mrf.mxu0
        %v3287 = vadd.f32 %v3131, %v3286
        %v3288 = vpop.f32.mrf.mxu0
        %3289 = vmatprep.mubr.f32.mxu0 0.0
        %3290 = vmatmul.mubr.f32.gmra.mxu0 %v3164
        %v3291 = vpop.f32.mrf.mxu0
        %v3292 = vadd.f32 %v3132, %v3291
        %v3293 = vpop.f32.mrf.mxu0
        %3294 = vmatprep.mubr.f32.mxu0 0.0
        %3295 = vmatmul.mubr.f32.gmra.mxu0 %v3167
        %v3296 = vpop.f32.mrf.mxu0
        %v3297 = vadd.f32 %v3133, %v3296
        %v3298 = vpop.f32.mrf.mxu0
        %3299 = vmatprep.mubr.f32.mxu0 0.0
        %3300 = vmatmul.mubr.f32.gmra.mxu0 %v3170
        %v3301 = vpop.f32.mrf.mxu0
        %v3302 = vadd.f32 %v3134, %v3301
        %v3303 = vpop.f32.mrf.mxu0
        %3304 = vmatprep.mubr.f32.mxu0 0.0
        %3305 = vmatmul.mubr.f32.gmra.mxu0 %v3173
        %v3306 = vpop.f32.mrf.mxu0
        %v3307 = vadd.f32 %v3135, %v3306
        %v3308 = vpop.f32.mrf.mxu0
        %3309 = vmatprep.mubr.f32.mxu0 0.0
        %3310 = vmatmul.mubr.f32.gmra.mxu0 %v3176
        %v3311 = vpop.f32.mrf.mxu0
        %v3312 = vadd.f32 %v3136, %v3311
        %v3313 = vpop.f32.mrf.mxu0
        %3314 = vmatprep.mubr.f32.mxu0 0.0
        %3315 = vmatmul.mubr.f32.gmra.mxu0 %v3179
        %v3316 = vpop.f32.mrf.mxu0
        %v3317 = vadd.f32 %v3137, %v3316
        %v3318 = vpop.f32.mrf.mxu0
        %3319 = vmatprep.mubr.f32.mxu0 0.0
        %3320 = vmatmul.mubr.f32.gmra.mxu0 %v3182
        %v3321 = vpop.f32.mrf.mxu0
        %v3322 = vadd.f32 %v3138, %v3321
        %v3323 = vpop.f32.mrf.mxu0
        %3324 = vmatprep.mubr.f32.mxu0 0.0
        %3325 = vmatmul.mubr.f32.gmra.mxu0 %v3185
        %v3326 = vpop.f32.mrf.mxu0
        %v3327 = vadd.f32 %v3139, %v3326
        %v3328 = vpop.f32.mrf.mxu0
        %3329 = vmatprep.mubr.f32.mxu0 0.0
        %3330 = vmatmul.mubr.f32.gmra.mxu0 %v3188
        %v3331 = vpop.f32.mrf.mxu0
        %v3332 = vadd.f32 %v3140, %v3331
        %v3333 = vpop.f32.mrf.mxu0
        %3334 = vdwg.mxu0
        %v3335 = vxor.u32 %v3257, 2147483648
        %v3336 = vxor.u32 %v3262, 2147483648
        %v3337 = vxor.u32 %v3267, 2147483648
        %v3338 = vxor.u32 %v3272, 2147483648
        %v3339 = vxor.u32 %v3277, 2147483648
        %v3340 = vxor.u32 %v3282, 2147483648
        %v3341 = vxor.u32 %v3287, 2147483648
        %v3342 = vxor.u32 %v3292, 2147483648
        %v3343 = vxor.u32 %v3297, 2147483648
        %v3344 = vxor.u32 %v3302, 2147483648
        %v3345 = vxor.u32 %v3307, 2147483648
        %v3346 = vxor.u32 %v3312, 2147483648
        %v3347 = vxor.u32 %v3317, 2147483648
        %v3348 = vxor.u32 %v3322, 2147483648
        %v3349 = vxor.u32 %v3327, 2147483648
        %v3350 = vxor.u32 %v3332, 2147483648
        %v3351 = vmul.f32 %v3335, 1.442695
        %v3352 = vpow.pop %v3351
        %v3353 = vmul.f32 %v3336, 1.442695
        %v3354 = vpow.pop %v3353
        %v3355 = vmul.f32 %v3337, 1.442695
        %v3356 = vpow.pop %v3355
        %v3357 = vmul.f32 %v3338, 1.442695
        %v3358 = vpow.pop %v3357
        %v3359 = vmul.f32 %v3339, 1.442695
        %v3360 = vpow.pop %v3359
        %v3361 = vmul.f32 %v3340, 1.442695
        %v3362 = vpow.pop %v3361
        %v3363 = vmul.f32 %v3341, 1.442695
        %v3364 = vpow.pop %v3363
        %v3365 = vmul.f32 %v3342, 1.442695
        %v3366 = vpow.pop %v3365
        %v3367 = vmul.f32 %v3343, 1.442695
        %v3368 = vpow.pop %v3367
        %v3369 = vmul.f32 %v3344, 1.442695
        %v3370 = vpow.pop %v3369
        %v3371 = vmul.f32 %v3345, 1.442695
        %v3372 = vpow.pop %v3371
        %v3373 = vmul.f32 %v3346, 1.442695
        %v3374 = vpow.pop %v3373
        %v3375 = vmul.f32 %v3347, 1.442695
        %v3376 = vpow.pop %v3375
        %v3377 = vmul.f32 %v3348, 1.442695
        %v3378 = vpow.pop %v3377
        %v3379 = vmul.f32 %v3349, 1.442695
        %v3380 = vpow.pop %v3379
        %v3381 = vmul.f32 %v3350, 1.442695
        %v3382 = vpow.pop %v3381
        %v3383 = vadd.f32 %v3352, 1.0
        %v3384 = vadd.f32 %v3354, 1.0
        %v3385 = vadd.f32 %v3356, 1.0
        %v3386 = vadd.f32 %v3358, 1.0
        %v3387 = vadd.f32 %v3360, 1.0
        %v3388 = vadd.f32 %v3362, 1.0
        %v3389 = vadd.f32 %v3364, 1.0
        %v3390 = vadd.f32 %v3366, 1.0
        %v3391 = vadd.f32 %v3368, 1.0
        %v3392 = vadd.f32 %v3370, 1.0
        %v3393 = vadd.f32 %v3372, 1.0
        %v3394 = vadd.f32 %v3374, 1.0
        %v3395 = vadd.f32 %v3376, 1.0
        %v3396 = vadd.f32 %v3378, 1.0
        %v3397 = vadd.f32 %v3380, 1.0
        %v3398 = vadd.f32 %v3382, 1.0
        %v3399 = vrcp.pop %v3383
        %v3400 = vmul.f32 1.0, %v3399
        %v3401 = vrcp.pop %v3384
        %v3402 = vmul.f32 1.0, %v3401
        %v3403 = vrcp.pop %v3385
        %v3404 = vmul.f32 1.0, %v3403
        %v3405 = vrcp.pop %v3386
        %v3406 = vmul.f32 1.0, %v3405
        %v3407 = vrcp.pop %v3387
        %v3408 = vmul.f32 1.0, %v3407
        %v3409 = vrcp.pop %v3388
        %v3410 = vmul.f32 1.0, %v3409
        %v3411 = vrcp.pop %v3389
        %v3412 = vmul.f32 1.0, %v3411
        %v3413 = vrcp.pop %v3390
        %v3414 = vmul.f32 1.0, %v3413
        %v3415 = vrcp.pop %v3391
        %v3416 = vmul.f32 1.0, %v3415
        %v3417 = vrcp.pop %v3392
        %v3418 = vmul.f32 1.0, %v3417
        %v3419 = vrcp.pop %v3393
        %v3420 = vmul.f32 1.0, %v3419
        %v3421 = vrcp.pop %v3394
        %v3422 = vmul.f32 1.0, %v3421
        %v3423 = vrcp.pop %v3395
        %v3424 = vmul.f32 1.0, %v3423
        %v3425 = vrcp.pop %v3396
        %v3426 = vmul.f32 1.0, %v3425
        %v3427 = vrcp.pop %v3397
        %v3428 = vmul.f32 1.0, %v3427
        %v3429 = vrcp.pop %v3398
        %v3430 = vmul.f32 1.0, %v3429
        %v3431 = vadd.f32 %v3400, 1.0
        %v3432 = vadd.f32 %v3402, 1.0
        %v3433 = vadd.f32 %v3404, 1.0
        %v3434 = vadd.f32 %v3406, 1.0
        %v3435 = vadd.f32 %v3408, 1.0
        %v3436 = vadd.f32 %v3410, 1.0
        %v3437 = vadd.f32 %v3412, 1.0
        %v3438 = vadd.f32 %v3414, 1.0
        %v3439 = vadd.f32 %v3416, 1.0
        %v3440 = vadd.f32 %v3418, 1.0
        %v3441 = vadd.f32 %v3420, 1.0
        %v3442 = vadd.f32 %v3422, 1.0
        %v3443 = vadd.f32 %v3424, 1.0
        %v3444 = vadd.f32 %v3426, 1.0
        %v3445 = vadd.f32 %v3428, 1.0
        %v3446 = vadd.f32 %v3430, 1.0
        %3448 = vset.pattern.permute.xlu0 0
        %3449 = vperm.xlu0 %3448, %v3431
        %v3450 = vpop.permute.xlu0 %3449
        %3453 = vset.pattern.permute.xlu0 0
        %3454 = vperm.xlu0 %3453, %v3432
        %v3455 = vpop.permute.xlu0 %3454
        %3458 = vset.pattern.permute.xlu0 0
        %3459 = vperm.xlu0 %3458, %v3433
        %v3460 = vpop.permute.xlu0 %3459
        %3463 = vset.pattern.permute.xlu0 0
        %3464 = vperm.xlu0 %3463, %v3434
        %v3465 = vpop.permute.xlu0 %3464
        %3468 = vset.pattern.permute.xlu0 0
        %3469 = vperm.xlu0 %3468, %v3435
        %v3470 = vpop.permute.xlu0 %3469
        %3473 = vset.pattern.permute.xlu0 0
        %3474 = vperm.xlu0 %3473, %v3436
        %v3475 = vpop.permute.xlu0 %3474
        %3478 = vset.pattern.permute.xlu0 0
        %3479 = vperm.xlu0 %3478, %v3437
        %v3480 = vpop.permute.xlu0 %3479
        %3483 = vset.pattern.permute.xlu0 0
        %3484 = vperm.xlu0 %3483, %v3438
        %v3485 = vpop.permute.xlu0 %3484
        %3488 = vset.pattern.permute.xlu0 0
        %3489 = vperm.xlu0 %3488, %v3439
        %v3490 = vpop.permute.xlu0 %3489
        %3493 = vset.pattern.permute.xlu0 0
        %3494 = vperm.xlu0 %3493, %v3440
        %v3495 = vpop.permute.xlu0 %3494
        %3498 = vset.pattern.permute.xlu0 0
        %3499 = vperm.xlu0 %3498, %v3441
        %v3500 = vpop.permute.xlu0 %3499
        %3503 = vset.pattern.permute.xlu0 0
        %3504 = vperm.xlu0 %3503, %v3442
        %v3505 = vpop.permute.xlu0 %3504
        %3508 = vset.pattern.permute.xlu0 0
        %3509 = vperm.xlu0 %3508, %v3443
        %v3510 = vpop.permute.xlu0 %3509
        %3513 = vset.pattern.permute.xlu0 0
        %3514 = vperm.xlu0 %3513, %v3444
        %v3515 = vpop.permute.xlu0 %3514
        %3518 = vset.pattern.permute.xlu0 0
        %3519 = vperm.xlu0 %3518, %v3445
        %v3520 = vpop.permute.xlu0 %3519
        %3523 = vset.pattern.permute.xlu0 0
        %3524 = vperm.xlu0 %3523, %v3446
        %v3525 = vpop.permute.xlu0 %3524
        %v3527 = vmul.f32 %v2908, %v3450
        %v3528 = vmul.f32 %v2909, %v3455
        %v3529 = vmul.f32 %v2910, %v3460
        %v3530 = vmul.f32 %v2911, %v3465
        %v3531 = vmul.f32 %v2912, %v3470
        %v3532 = vmul.f32 %v2913, %v3475
        %v3533 = vmul.f32 %v2914, %v3480
        %v3534 = vmul.f32 %v2915, %v3485
        %v3535 = vmul.f32 %v2916, %v3490
        %v3536 = vmul.f32 %v2917, %v3495
        %v3537 = vmul.f32 %v2918, %v3500
        %v3538 = vmul.f32 %v2919, %v3505
        %v3539 = vmul.f32 %v2920, %v3510
        %v3540 = vmul.f32 %v2921, %v3515
        %v3541 = vmul.f32 %v2922, %v3520
        %v3542 = vmul.f32 %v2923, %v3525
        %v3543 = vpack.c.bf16 %v3528, %v3527
        %v3544 = vpack.c.bf16 %v3530, %v3529
        %v3545 = vpack.c.bf16 %v3532, %v3531
        %v3546 = vpack.c.bf16 %v3534, %v3533
        %v3547 = vpack.c.bf16 %v3536, %v3535
        %v3548 = vpack.c.bf16 %v3538, %v3537
        %v3549 = vpack.c.bf16 %v3540, %v3539
        %v3550 = vpack.c.bf16 %v3542, %v3541
        %v3551 = vld [vmem:[%s14] sm:$0xff]
        %v3552 = vld [vmem:[%s14 + $0x8] sm:$0xff]
        %v3553 = vld [vmem:[%s14 + $0x10] sm:$0xff]
        %v3554 = vld [vmem:[%s14 + $0x18] sm:$0xff]
        %v3555 = vld [vmem:[%s14 + $0x20] sm:$0xff]
        %v3556 = vld [vmem:[%s14 + $0x28] sm:$0xff]
        %v3557 = vld [vmem:[%s14 + $0x30] sm:$0xff]
        %v3558 = vld [vmem:[%s14 + $0x38] sm:$0xff]
        %v3559 = vld [vmem:[%s14 + $0x40] sm:$0xff]
        %v3560 = vld [vmem:[%s14 + $0x48] sm:$0xff]
        %v3561 = vld [vmem:[%s14 + $0x50] sm:$0xff]
        %v3562 = vld [vmem:[%s14 + $0x58] sm:$0xff]
        %v3563 = vld [vmem:[%s14 + $0x60] sm:$0xff]
        %v3564 = vld [vmem:[%s14 + $0x68] sm:$0xff]
        %v3565 = vld [vmem:[%s14 + $0x70] sm:$0xff]
        %v3566 = vld [vmem:[%s14 + $0x78] sm:$0xff]
        %v3567 = vld [vmem:[%s15] sm:$0xff]
        %v3568 = vld [vmem:[%s15 + $0x8] sm:$0xff]
        %v3569 = vld [vmem:[%s15 + $0x10] sm:$0xff]
        %v3570 = vld [vmem:[%s15 + $0x18] sm:$0xff]
        %v3571 = vld [vmem:[%s15 + $0x20] sm:$0xff]
        %v3572 = vld [vmem:[%s15 + $0x28] sm:$0xff]
        %v3573 = vld [vmem:[%s15 + $0x30] sm:$0xff]
        %v3574 = vld [vmem:[%s15 + $0x38] sm:$0xff]
        %v3575 = vld [vmem:[%s15 + $0x40] sm:$0xff]
        %v3576 = vld [vmem:[%s15 + $0x48] sm:$0xff]
        %v3577 = vld [vmem:[%s15 + $0x50] sm:$0xff]
        %v3578 = vld [vmem:[%s15 + $0x58] sm:$0xff]
        %v3579 = vld [vmem:[%s15 + $0x60] sm:$0xff]
        %v3580 = vld [vmem:[%s15 + $0x68] sm:$0xff]
        %v3581 = vld [vmem:[%s15 + $0x70] sm:$0xff]
        %v3582 = vld [vmem:[%s15 + $0x78] sm:$0xff]
        %3584 = vset.pattern.permute.xlu0 0
        %3585 = vperm.xlu0 %3584, %v3567
        %v3586 = vpop.permute.xlu0 %3585
        %3589 = vset.pattern.permute.xlu0 0
        %3590 = vperm.xlu0 %3589, %v3568
        %v3591 = vpop.permute.xlu0 %3590
        %3594 = vset.pattern.permute.xlu0 0
        %3595 = vperm.xlu0 %3594, %v3569
        %v3596 = vpop.permute.xlu0 %3595
        %3599 = vset.pattern.permute.xlu0 0
        %3600 = vperm.xlu0 %3599, %v3570
        %v3601 = vpop.permute.xlu0 %3600
        %3604 = vset.pattern.permute.xlu0 0
        %3605 = vperm.xlu0 %3604, %v3571
        %v3606 = vpop.permute.xlu0 %3605
        %3609 = vset.pattern.permute.xlu0 0
        %3610 = vperm.xlu0 %3609, %v3572
        %v3611 = vpop.permute.xlu0 %3610
        %3614 = vset.pattern.permute.xlu0 0
        %3615 = vperm.xlu0 %3614, %v3573
        %v3616 = vpop.permute.xlu0 %3615
        %3619 = vset.pattern.permute.xlu0 0
        %3620 = vperm.xlu0 %3619, %v3574
        %v3621 = vpop.permute.xlu0 %3620
        %3624 = vset.pattern.permute.xlu0 0
        %3625 = vperm.xlu0 %3624, %v3575
        %v3626 = vpop.permute.xlu0 %3625
        %3629 = vset.pattern.permute.xlu0 0
        %3630 = vperm.xlu0 %3629, %v3576
        %v3631 = vpop.permute.xlu0 %3630
        %3634 = vset.pattern.permute.xlu0 0
        %3635 = vperm.xlu0 %3634, %v3577
        %v3636 = vpop.permute.xlu0 %3635
        %3639 = vset.pattern.permute.xlu0 0
        %3640 = vperm.xlu0 %3639, %v3578
        %v3641 = vpop.permute.xlu0 %3640
        %3644 = vset.pattern.permute.xlu0 0
        %3645 = vperm.xlu0 %3644, %v3579
        %v3646 = vpop.permute.xlu0 %3645
        %3649 = vset.pattern.permute.xlu0 0
        %3650 = vperm.xlu0 %3649, %v3580
        %v3651 = vpop.permute.xlu0 %3650
        %3654 = vset.pattern.permute.xlu0 0
        %3655 = vperm.xlu0 %3654, %v3581
        %v3656 = vpop.permute.xlu0 %3655
        %3659 = vset.pattern.permute.xlu0 0
        %3660 = vperm.xlu0 %3659, %v3582
        %v3661 = vpop.permute.xlu0 %3660
        %v3679 = vunpack.c.l.b16 %v3551
        %v3680 = vunpack.c.h.b16 %v3551
        %v3681 = vunpack.c.l.b16 %v3552
        %v3682 = vunpack.c.h.b16 %v3552
        %v3683 = vunpack.c.l.b16 %v3553
        %v3684 = vunpack.c.h.b16 %v3553
        %v3685 = vunpack.c.l.b16 %v3554
        %v3686 = vunpack.c.h.b16 %v3554
        %v3687 = vunpack.c.l.b16 %v3555
        %v3688 = vunpack.c.h.b16 %v3555
        %v3689 = vunpack.c.l.b16 %v3556
        %v3690 = vunpack.c.h.b16 %v3556
        %v3691 = vunpack.c.l.b16 %v3557
        %v3692 = vunpack.c.h.b16 %v3557
        %v3693 = vunpack.c.l.b16 %v3558
        %v3694 = vunpack.c.h.b16 %v3558
        %v3695 = vunpack.c.l.b16 %v3559
        %v3696 = vunpack.c.h.b16 %v3559
        %v3697 = vunpack.c.l.b16 %v3560
        %v3698 = vunpack.c.h.b16 %v3560
        %v3699 = vunpack.c.l.b16 %v3561
        %v3700 = vunpack.c.h.b16 %v3561
        %v3701 = vunpack.c.l.b16 %v3562
        %v3702 = vunpack.c.h.b16 %v3562
        %v3703 = vunpack.c.l.b16 %v3563
        %v3704 = vunpack.c.h.b16 %v3563
        %v3705 = vunpack.c.l.b16 %v3564
        %v3706 = vunpack.c.h.b16 %v3564
        %v3707 = vunpack.c.l.b16 %v3565
        %v3708 = vunpack.c.h.b16 %v3565
        %v3709 = vunpack.c.l.b16 %v3566
        %v3710 = vunpack.c.h.b16 %v3566
        %v3711 = vpack.c.b16 %v3681, %v3679
        %v3712 = vpack.c.b16 %v3682, %v3680
        %v3713 = vpack.c.b16 %v3685, %v3683
        %v3714 = vpack.c.b16 %v3686, %v3684
        %v3715 = vpack.c.b16 %v3689, %v3687
        %v3716 = vpack.c.b16 %v3690, %v3688
        %v3717 = vpack.c.b16 %v3693, %v3691
        %v3718 = vpack.c.b16 %v3694, %v3692
        %v3719 = vpack.c.b16 %v3697, %v3695
        %v3720 = vpack.c.b16 %v3698, %v3696
        %v3721 = vpack.c.b16 %v3701, %v3699
        %v3722 = vpack.c.b16 %v3702, %v3700
        %v3723 = vpack.c.b16 %v3705, %v3703
        %v3724 = vpack.c.b16 %v3706, %v3704
        %v3725 = vpack.c.b16 %v3709, %v3707
        %v3726 = vpack.c.b16 %v3710, %v3708
        %v3736 = vsel %vm784, %v3712, 0
        %v3739 = vsel %vm784, %v3714, 0
        %v3742 = vsel %vm784, %v3716, 0
        %v3745 = vsel %vm784, %v3718, 0
        %v3748 = vsel %vm784, %v3720, 0
        %v3751 = vsel %vm784, %v3722, 0
        %v3754 = vsel %vm784, %v3724, 0
        %v3757 = vsel %vm784, %v3726, 0
        %3759 = vmatprep.subr.bf16.mxu0 0
        %3760 = vmatpush1.bf16.msra.mxu0 %v3550
        %3761 = vmatprep.subr.bf16.mxu0 0
        %3762 = vmatpush1.bf16.msra.mxu0 %v3549
        %3763 = vmatprep.subr.bf16.mxu0 0
        %3764 = vmatpush1.bf16.msra.mxu0 %v3548
        %3765 = vmatprep.subr.bf16.mxu0 0
        %3766 = vmatpush1.bf16.msra.mxu0 %v3547
        %3767 = vmatprep.subr.bf16.mxu0 0
        %3768 = vmatpush1.bf16.msra.mxu0 %v3546
        %3769 = vmatprep.subr.bf16.mxu0 0
        %3770 = vmatpush1.bf16.msra.mxu0 %v3545
        %3771 = vmatprep.subr.bf16.mxu0 0
        %3772 = vmatpush1.bf16.msra.mxu0 %v3544
        %3773 = vmatprep.subr.bf16.mxu0 0
        %3774 = vmatpush1.bf16.msra.mxu0 %v3543
        %3775 = vmatprep.subr.bf16.mxu0 0
        %3776 = vmatpush2.bf16.msra.mxu0 0
        %3777 = vmatprep.subr.bf16.mxu0 0
        %3778 = vmatpush2.bf16.msra.mxu0 0
        %3779 = vmatprep.subr.bf16.mxu0 0
        %3780 = vmatpush2.bf16.msra.mxu0 0
        %3781 = vmatprep.subr.bf16.mxu0 0
        %3782 = vmatpush2.bf16.msra.mxu0 0
        %3783 = vmatprep.subr.bf16.mxu0 0
        %3784 = vmatpush2.bf16.msra.mxu0 0
        %3785 = vmatprep.subr.bf16.mxu0 0
        %3786 = vmatpush2.bf16.msra.mxu0 0
        %3787 = vmatprep.subr.bf16.mxu0 0
        %3788 = vmatpush2.bf16.msra.mxu0 %v781
        %3789 = vmatprep.subr.bf16.mxu0 0
        %3790 = vmatpush2.bf16.msra.mxu0 %v780
        %3791 = vmatprep.mubr.bf16.mxu0 %v3736
        %3792 = vmatmul.mubr.bf16.gmra.mxu0 %v3711
        %v3793 = vpop.f32.mrf.mxu0
        %v3794 = vadd.f32 %v3586, %v3793
        %v3795 = vpop.f32.mrf.mxu0
        %v3796 = vpop.f32.mrf.mxu0
        %v3797 = vadd.f32 %v3591, %v3796
        %v3798 = vpop.f32.mrf.mxu0
        %3799 = vmatprep.mubr.bf16.mxu0 %v3739
        %3800 = vmatmul.mubr.bf16.gmra.mxu0 %v3713
        %v3801 = vpop.f32.mrf.mxu0
        %v3802 = vadd.f32 %v3596, %v3801
        %v3803 = vpop.f32.mrf.mxu0
        %v3804 = vpop.f32.mrf.mxu0
        %v3805 = vadd.f32 %v3601, %v3804
        %v3806 = vpop.f32.mrf.mxu0
        %3807 = vmatprep.mubr.bf16.mxu0 %v3742
        %3808 = vmatmul.mubr.bf16.gmra.mxu0 %v3715
        %v3809 = vpop.f32.mrf.mxu0
        %v3810 = vadd.f32 %v3606, %v3809
        %v3811 = vpop.f32.mrf.mxu0
        %v3812 = vpop.f32.mrf.mxu0
        %v3813 = vadd.f32 %v3611, %v3812
        %v3814 = vpop.f32.mrf.mxu0
        %3815 = vmatprep.mubr.bf16.mxu0 %v3745
        %3816 = vmatmul.mubr.bf16.gmra.mxu0 %v3717
        %v3817 = vpop.f32.mrf.mxu0
        %v3818 = vadd.f32 %v3616, %v3817
        %v3819 = vpop.f32.mrf.mxu0
        %v3820 = vpop.f32.mrf.mxu0
        %v3821 = vadd.f32 %v3621, %v3820
        %v3822 = vpop.f32.mrf.mxu0
        %3823 = vmatprep.mubr.bf16.mxu0 %v3748
        %3824 = vmatmul.mubr.bf16.gmra.mxu0 %v3719
        %v3825 = vpop.f32.mrf.mxu0
        %v3826 = vadd.f32 %v3626, %v3825
        %v3827 = vpop.f32.mrf.mxu0
        %v3828 = vpop.f32.mrf.mxu0
        %v3829 = vadd.f32 %v3631, %v3828
        %v3830 = vpop.f32.mrf.mxu0
        %3831 = vmatprep.mubr.bf16.mxu0 %v3751
        %3832 = vmatmul.mubr.bf16.gmra.mxu0 %v3721
        %v3833 = vpop.f32.mrf.mxu0
        %v3834 = vadd.f32 %v3636, %v3833
        %v3835 = vpop.f32.mrf.mxu0
        %v3836 = vpop.f32.mrf.mxu0
        %v3837 = vadd.f32 %v3641, %v3836
        %v3838 = vpop.f32.mrf.mxu0
        %3839 = vmatprep.mubr.bf16.mxu0 %v3754
        %3840 = vmatmul.mubr.bf16.gmra.mxu0 %v3723
        %v3841 = vpop.f32.mrf.mxu0
        %v3842 = vadd.f32 %v3646, %v3841
        %v3843 = vpop.f32.mrf.mxu0
        %v3844 = vpop.f32.mrf.mxu0
        %v3845 = vadd.f32 %v3651, %v3844
        %v3846 = vpop.f32.mrf.mxu0
        %3847 = vmatprep.mubr.bf16.mxu0 %v3757
        %3848 = vmatmul.mubr.bf16.gmra.mxu0 %v3725
        %v3849 = vpop.f32.mrf.mxu0
        %v3850 = vadd.f32 %v3656, %v3849
        %v3851 = vpop.f32.mrf.mxu0
        %v3852 = vpop.f32.mrf.mxu0
        %v3853 = vadd.f32 %v3661, %v3852
        %v3854 = vpop.f32.mrf.mxu0
        %3855 = vdwg.mxu0
        %v3856 = vmax.f32 %v3794, 0.0
        %v3857 = vmax.f32 %v3797, 0.0
        %v3858 = vmax.f32 %v3802, 0.0
        %v3859 = vmax.f32 %v3805, 0.0
        %v3860 = vmax.f32 %v3810, 0.0
        %v3861 = vmax.f32 %v3813, 0.0
        %v3862 = vmax.f32 %v3818, 0.0
        %v3863 = vmax.f32 %v3821, 0.0
        %v3864 = vmax.f32 %v3826, 0.0
        %v3865 = vmax.f32 %v3829, 0.0
        %v3866 = vmax.f32 %v3834, 0.0
        %v3867 = vmax.f32 %v3837, 0.0
        %v3868 = vmax.f32 %v3842, 0.0
        %v3869 = vmax.f32 %v3845, 0.0
        %v3870 = vmax.f32 %v3850, 0.0
        %v3871 = vmax.f32 %v3853, 0.0
        %v3872 = vmul.f32 %v3856, %v2275
        %v3873 = vmul.f32 %v3857, %v2275
        %v3874 = vmul.f32 %v3858, %v2275
        %v3875 = vmul.f32 %v3859, %v2275
        %v3876 = vmul.f32 %v3860, %v2275
        %v3877 = vmul.f32 %v3861, %v2275
        %v3878 = vmul.f32 %v3862, %v2275
        %v3879 = vmul.f32 %v3863, %v2275
        %v3880 = vmul.f32 %v3864, %v2275
        %v3881 = vmul.f32 %v3865, %v2275
        %v3882 = vmul.f32 %v3866, %v2275
        %v3883 = vmul.f32 %v3867, %v2275
        %v3884 = vmul.f32 %v3868, %v2275
        %v3885 = vmul.f32 %v3869, %v2275
        %v3886 = vmul.f32 %v3870, %v2275
        %v3887 = vmul.f32 %v3871, %v2275
        %v3888 = vpack.c.bf16 %v3873, %v3872
        %v3889 = vpack.c.bf16 %v3875, %v3874
        %v3890 = vpack.c.bf16 %v3877, %v3876
        %v3891 = vpack.c.bf16 %v3879, %v3878
        %v3892 = vpack.c.bf16 %v3881, %v3880
        %v3893 = vpack.c.bf16 %v3883, %v3882
        %v3894 = vpack.c.bf16 %v3885, %v3884
        %v3895 = vpack.c.bf16 %v3887, %v3886
        %v3904 = vunpack.c.l.b16 %v3888
        %v3905 = vunpack.c.h.b16 %v3888
        %v3906 = vunpack.c.l.b16 %v3889
        %v3907 = vunpack.c.h.b16 %v3889
        %v3908 = vunpack.c.l.b16 %v3890
        %v3909 = vunpack.c.h.b16 %v3890
        %v3910 = vunpack.c.l.b16 %v3891
        %v3911 = vunpack.c.h.b16 %v3891
        %v3912 = vunpack.c.l.b16 %v3892
        %v3913 = vunpack.c.h.b16 %v3892
        %v3914 = vunpack.c.l.b16 %v3893
        %v3915 = vunpack.c.h.b16 %v3893
        %v3916 = vunpack.c.l.b16 %v3894
        %v3917 = vunpack.c.h.b16 %v3894
        %v3918 = vunpack.c.l.b16 %v3895
        %v3919 = vunpack.c.h.b16 %v3895
        %v3920 = vpack.c.b16 %v3904, %v3904
        %v3921 = vpack.c.b16 %v3905, %v3905
        %v3922 = vpack.c.b16 %v3906, %v3906
        %v3923 = vpack.c.b16 %v3907, %v3907
        %v3924 = vpack.c.b16 %v3908, %v3908
        %v3925 = vpack.c.b16 %v3909, %v3909
        %v3926 = vpack.c.b16 %v3910, %v3910
        %v3927 = vpack.c.b16 %v3911, %v3911
        %v3928 = vpack.c.b16 %v3912, %v3912
        %v3929 = vpack.c.b16 %v3913, %v3913
        %v3930 = vpack.c.b16 %v3914, %v3914
        %v3931 = vpack.c.b16 %v3915, %v3915
        %v3932 = vpack.c.b16 %v3916, %v3916
        %v3933 = vpack.c.b16 %v3917, %v3917
        %v3934 = vpack.c.b16 %v3918, %v3918
        %v3935 = vpack.c.b16 %v3919, %v3919
        %3952 = vst [vmem:[%s535] sm:$0xf] %v3920
        %3953 = vst [vmem:[%s535 + $0x4] sm:$0xf] %v3921
        %3954 = vst [vmem:[%s535 + $0x8] sm:$0xf] %v3922
        %3955 = vst [vmem:[%s535 + $0xc] sm:$0xf] %v3923
        %3956 = vst [vmem:[%s535 + $0x10] sm:$0xf] %v3924
        %3957 = vst [vmem:[%s535 + $0x14] sm:$0xf] %v3925
        %3958 = vst [vmem:[%s535 + $0x18] sm:$0xf] %v3926
        %3959 = vst [vmem:[%s535 + $0x1c] sm:$0xf] %v3927
        %3960 = vst [vmem:[%s535 + $0x20] sm:$0xf] %v3928
        %3961 = vst [vmem:[%s535 + $0x24] sm:$0xf] %v3929
        %3962 = vst [vmem:[%s535 + $0x28] sm:$0xf] %v3930
        %3963 = vst [vmem:[%s535 + $0x2c] sm:$0xf] %v3931
        %3964 = vst [vmem:[%s535 + $0x30] sm:$0xf] %v3932
        %3965 = vst [vmem:[%s535 + $0x34] sm:$0xf] %v3933
        %3966 = vst [vmem:[%s535 + $0x38] sm:$0xf] %v3934
        %3967 = vst [vmem:[%s535 + $0x3c] sm:$0xf] %v3935
        %p3968 = scmp.lt.s32.totalorder %s28, 1
        %s3969 = scalar_select %p3968, %s28, 1
        %s3970 = smul.addr %s3969, 16
        %s3971 = smul.addr %s3970, 4
        %s3972 = scalar_lea.vmem %s16, %s3971
        // Predicated region
        $region89: #{_lambda_.2} parent=83 // pred_check
          %p3973 = pneg %p387
        $region90: #{_lambda_.2} parent=83 // pred_check_branch
          %3975 = sbr.rel (%p3973) target = $region92
        $region91: #{_lambda_.2} parent=83 // pred_region
          _
        $region92: #{_lambda_.2} parent=83 // pred_fallthru
          _
      $region84: #{_lambda_.2} parent=5 // pred_fallthru
        _
      %p3976 = scmp.le.s32.totalorder 2, %s23
      // Predicated region
      $region93: #{_lambda_.2} parent=5 // pred_check
        %p3977 = pneg %p3976
      $region94: #{_lambda_.2} parent=5 // pred_check_branch
        %3979 = sbr.rel (%p3977) target = $region96
      $region95: #{_lambda_.2} parent=5 // pred_region
        %s3980 = ssub.s32 %s23, 2
        // Predicated region
        $region97: #{_lambda_.2} parent=95 // pred_check
          %p3981 = pneg %p393
        $region98: #{_lambda_.2} parent=95 // pred_check_branch
          %3983 = sbr.rel (%p3981) target = $region100
        $region99: #{_lambda_.2} parent=95 // pred_region
          %p3984 = scmp.lt.s32.totalorder %s29, 1
          %s3985 = scalar_select %p3984, %s29, 1
          %s3986 = smul.addr %s3985, 16
          %s3987 = smul.addr %s3986, 4
          %s3988 = scalar_lea.vmem %s16, %s3987
        $region100: #{_lambda_.2} parent=95 // pred_fallthru
          _
      $region96: #{_lambda_.2} parent=5 // pred_fallthru
        _
    $region6: #{_lambda_.2} parent=1 // loop_footer
      %s27 = sadd.s32 1, %s23
    $region7: #{_lambda_.2} parent=1 // loop_footer_branch
      %22 = sbr.rel target = $region3
    $region8: #{_lambda_.2} parent=1 // loop_exit
      _
    %3989 = vsyncpa [#allocation3], 1
    %s3990 = scalar_lea.sflag [#allocation3], 1
    %3991 = vsyncpa %s3990, 1

// kernel: _lambda_.3
$region0: #{_lambda_.3}
  #allocation0 [shape = 'u32[]', space=smem, size = 0x4, offset = 0x4, fixed_abs, tag = 'smem constant byte address 0x4 - core index']
  #allocation1 [shape = 'u32[144,128]{1,0:T(1,128)}', space=vmem, size = 0x12000, scoped, tag = 'internal scratch']
  %s0 = inlined_call_operand.vmem [shape: f32[3], index: 0, kind: input, shape index: {}]
  %s1 = inlined_call_operand.vmem [shape: bf16[2,128,128], index: 1, kind: input, shape index: {}]
  %s2 = inlined_call_operand.vmem [shape: bf16[384,128], index: 2, kind: input, shape index: {}]
  %s3 = inlined_call_operand.vmem [shape: f32[384,1], index: 3, kind: input, shape index: {}]
  %s4 = inlined_call_operand.vmem [shape: f32[128,384], index: 4, kind: input, shape index: {}]
  %s5 = inlined_call_operand.vmem [shape: bf16[256,512], index: 5, kind: input, shape index: {}]
  %s6 = inlined_call_operand.vmem [shape: f32[256,1], index: 6, kind: input, shape index: {}]
  %s7 = inlined_call_operand.vmem [shape: f32[32,256], index: 7, kind: input, shape index: {}]
  %s8 = inlined_call_operand.vmem [shape: f32[9,32], index: 8, kind: input, shape index: {}]
  %s9 = inlined_call_operand.vmem [shape: f32[256,256], index: 9, kind: input, shape index: {}]
  %s10 = inlined_call_operand.vmem [shape: f32[16,32], index: 10, kind: input, shape index: {}]
  %s11 = inlined_call_operand.vmem [shape: f32[16,1], index: 11, kind: input, shape index: {}]
  %s12 = inlined_call_operand.vmem [shape: f32[256,16], index: 12, kind: input, shape index: {}]
  %s13 = inlined_call_operand.vmem [shape: f32[256,1], index: 13, kind: input, shape index: {}]
  %s14 = inlined_call_operand.vmem [shape: bf16[256,384], index: 14, kind: input, shape index: {}]
  %s15 = inlined_call_operand.vmem [shape: f32[256,1], index: 15, kind: input, shape index: {}]
  %s16 = inlined_call_operand.vmem [shape: f32[2,256,128], index: 16, kind: output, shape index: {}]
  %s17 = sld [smem:[#allocation0]]
  $region101: #{_lambda_.3} parent=0
    _
  %s19 = ssub.s32 1, %s17
  %s20 = scalar_select 0, %s19, %s17
  $region1: #{_lambda_.3} parent=0
    #allocation2 [shape = 'u8[512]{0}', space=smem, size = 0x200, scoped, tag = 'input window, operand 0, single buffered']
    #allocation3 [shape = 's32[2]{0}', space=sflag, size = 0x8, scoped, tag = 'scoped memory for _lambda_.3']
    %21 = vsyncpa [#allocation3], 0
    loop: start=0, step=1, limit=4
    $region2: #{_lambda_.3} parent=1 // loop_pre_header
      _
    $region3: #{_lambda_.3} parent=1 // loop_header
      %s23 = sphi 0, %s27
      %p24 = scmp.ge.s32.totalorder %s23, 4
      %s31 = sphi 0, %s31
      %s33 = sphi 0, %s31
      %s34 = sphi 0, %s33
      %s48 = sphi 0, %s34
      %s54 = sphi 0, %s56
      %s57 = sphi 0, %s54
      %s58 = sphi 0, %s57
      %s74 = sphi 0, %s58
      %s78 = sphi 0, %s78
      %s80 = sphi 0, %s78
      %s81 = sphi 0, %s80
      %s95 = sphi 0, %s81
      %s99 = sphi 0, %s99
      %s101 = sphi 0, %s99
      %s102 = sphi 0, %s101
      %s116 = sphi 0, %s102
      %s120 = sphi 0, %s120
      %s122 = sphi 0, %s120
      %s123 = sphi 0, %s122
      %s137 = sphi 0, %s123
      %s141 = sphi 0, %s141
      %s143 = sphi 0, %s141
      %s144 = sphi 0, %s143
      %s158 = sphi 0, %s144
      %s162 = sphi 0, %s162
      %s164 = sphi 0, %s162
      %s165 = sphi 0, %s164
      %s179 = sphi 0, %s165
      %s183 = sphi 0, %s183
      %s185 = sphi 0, %s183
      %s186 = sphi 0, %s185
      %s200 = sphi 0, %s186
      %s204 = sphi 0, %s204
      %s206 = sphi 0, %s204
      %s207 = sphi 0, %s206
      %s221 = sphi 0, %s207
      %s225 = sphi 0, %s225
      %s227 = sphi 0, %s225
      %s228 = sphi 0, %s227
      %s242 = sphi 0, %s228
      %s246 = sphi 0, %s246
      %s248 = sphi 0, %s246
      %s249 = sphi 0, %s248
      %s263 = sphi 0, %s249
      %s267 = sphi 0, %s267
      %s269 = sphi 0, %s267
      %s270 = sphi 0, %s269
      %s284 = sphi 0, %s270
      %s288 = sphi 0, %s288
      %s290 = sphi 0, %s288
      %s291 = sphi 0, %s290
      %s305 = sphi 0, %s291
      %s309 = sphi 0, %s309
      %s311 = sphi 0, %s309
      %s312 = sphi 0, %s311
      %s326 = sphi 0, %s312
      %s330 = sphi 0, %s330
      %s332 = sphi 0, %s330
      %s333 = sphi 0, %s332
      %s347 = sphi 0, %s333
      %s351 = sphi 0, %s351
      %s353 = sphi 0, %s351
      %s354 = sphi 0, %s353
      %s368 = sphi 0, %s354
      %s374 = sphi 0, %s376
      %s377 = sphi 0, %s374
      %s378 = sphi 0, %s377
      %s394 = sphi 0, %s378
    $region4: #{_lambda_.3} parent=1 // loop_header_branch
      %26 = sbr.rel (%p24) target = $region8
    $region5: #{_lambda_.3} parent=1 // loop_body
      %s28 = ssub.s32 %s23, 1
      %s29 = ssub.s32 %s23, 2
      %s30 = sadd.s32 %s23, 1
      %s32 = sadd.s32 %s31, 1
      %p35 = scmp.eq.s32.totalorder %s23, 1
      %p36 = scmp.ne.s32.totalorder %s31, %s33
      %p37 = scmp.eq.s32.totalorder %s23, 0
      %p38 = por %p36, %p37
      %p39 = scmp.ne.s32.totalorder %s31, %s33
      %p40 = scmp.eq.s32.totalorder %s28, 1
      %p41 = por %p39, %p40
      %p42 = scmp.ne.s32.totalorder %s33, %s34
      %p43 = scmp.eq.s32.totalorder %s28, 0
      %p44 = por %p42, %p43
      %p45 = scmp.ne.s32.totalorder %s33, %s34
      %p46 = scmp.eq.s32.totalorder %s29, 1
      %p47 = por %p45, %p46
      %p49 = scmp.ne.s32.totalorder %s34, %s48
      %p50 = scmp.eq.s32.totalorder %s29, 0
      %p51 = por %p49, %p50
      %s52 = ssub.s32 %s23, %s30
      %p53 = scmp.eq.s32.totalorder %s52, 0
      %s55 = sadd.s32 %s54, 1
      %s56 = scalar_select %p53, %s54, %s55
      %p59 = pneg %p53
      %p60 = scmp.eq.s32.totalorder %s23, 1
      %p61 = por %p59, %p60
      %p62 = scmp.ne.s32.totalorder %s54, %s57
      %p63 = scmp.eq.s32.totalorder %s23, 0
      %p64 = por %p62, %p63
      %p65 = scmp.ne.s32.totalorder %s54, %s57
      %p66 = scmp.eq.s32.totalorder %s28, 1
      %p67 = por %p65, %p66
      %p68 = scmp.ne.s32.totalorder %s57, %s58
      %p69 = scmp.eq.s32.totalorder %s28, 0
      %p70 = por %p68, %p69
      %p71 = scmp.ne.s32.totalorder %s57, %s58
      %p72 = scmp.eq.s32.totalorder %s29, 1
      %p73 = por %p71, %p72
      %p75 = scmp.ne.s32.totalorder %s58, %s74
      %p76 = scmp.eq.s32.totalorder %s29, 0
      %p77 = por %p75, %p76
      %s79 = sadd.s32 %s78, 1
      %p82 = scmp.eq.s32.totalorder %s23, 1
      %p83 = scmp.ne.s32.totalorder %s78, %s80
      %p84 = scmp.eq.s32.totalorder %s23, 0
      %p85 = por %p83, %p84
      %p86 = scmp.ne.s32.totalorder %s78, %s80
      %p87 = scmp.eq.s32.totalorder %s28, 1
      %p88 = por %p86, %p87
      %p89 = scmp.ne.s32.totalorder %s80, %s81
      %p90 = scmp.eq.s32.totalorder %s28, 0
      %p91 = por %p89, %p90
      %p92 = scmp.ne.s32.totalorder %s80, %s81
      %p93 = scmp.eq.s32.totalorder %s29, 1
      %p94 = por %p92, %p93
      %p96 = scmp.ne.s32.totalorder %s81, %s95
      %p97 = scmp.eq.s32.totalorder %s29, 0
      %p98 = por %p96, %p97
      %s100 = sadd.s32 %s99, 1
      %p103 = scmp.eq.s32.totalorder %s23, 1
      %p104 = scmp.ne.s32.totalorder %s99, %s101
      %p105 = scmp.eq.s32.totalorder %s23, 0
      %p106 = por %p104, %p105
      %p107 = scmp.ne.s32.totalorder %s99, %s101
      %p108 = scmp.eq.s32.totalorder %s28, 1
      %p109 = por %p107, %p108
      %p110 = scmp.ne.s32.totalorder %s101, %s102
      %p111 = scmp.eq.s32.totalorder %s28, 0
      %p112 = por %p110, %p111
      %p113 = scmp.ne.s32.totalorder %s101, %s102
      %p114 = scmp.eq.s32.totalorder %s29, 1
      %p115 = por %p113, %p114
      %p117 = scmp.ne.s32.totalorder %s102, %s116
      %p118 = scmp.eq.s32.totalorder %s29, 0
      %p119 = por %p117, %p118
      %s121 = sadd.s32 %s120, 1
      %p124 = scmp.eq.s32.totalorder %s23, 1
      %p125 = scmp.ne.s32.totalorder %s120, %s122
      %p126 = scmp.eq.s32.totalorder %s23, 0
      %p127 = por %p125, %p126
      %p128 = scmp.ne.s32.totalorder %s120, %s122
      %p129 = scmp.eq.s32.totalorder %s28, 1
      %p130 = por %p128, %p129
      %p131 = scmp.ne.s32.totalorder %s122, %s123
      %p132 = scmp.eq.s32.totalorder %s28, 0
      %p133 = por %p131, %p132
      %p134 = scmp.ne.s32.totalorder %s122, %s123
      %p135 = scmp.eq.s32.totalorder %s29, 1
      %p136 = por %p134, %p135
      %p138 = scmp.ne.s32.totalorder %s123, %s137
      %p139 = scmp.eq.s32.totalorder %s29, 0
      %p140 = por %p138, %p139
      %s142 = sadd.s32 %s141, 1
      %p145 = scmp.eq.s32.totalorder %s23, 1
      %p146 = scmp.ne.s32.totalorder %s141, %s143
      %p147 = scmp.eq.s32.totalorder %s23, 0
      %p148 = por %p146, %p147
      %p149 = scmp.ne.s32.totalorder %s141, %s143
      %p150 = scmp.eq.s32.totalorder %s28, 1
      %p151 = por %p149, %p150
      %p152 = scmp.ne.s32.totalorder %s143, %s144
      %p153 = scmp.eq.s32.totalorder %s28, 0
      %p154 = por %p152, %p153
      %p155 = scmp.ne.s32.totalorder %s143, %s144
      %p156 = scmp.eq.s32.totalorder %s29, 1
      %p157 = por %p155, %p156
      %p159 = scmp.ne.s32.totalorder %s144, %s158
      %p160 = scmp.eq.s32.totalorder %s29, 0
      %p161 = por %p159, %p160
      %s163 = sadd.s32 %s162, 1
      %p166 = scmp.eq.s32.totalorder %s23, 1
      %p167 = scmp.ne.s32.totalorder %s162, %s164
      %p168 = scmp.eq.s32.totalorder %s23, 0
      %p169 = por %p167, %p168
      %p170 = scmp.ne.s32.totalorder %s162, %s164
      %p171 = scmp.eq.s32.totalorder %s28, 1
      %p172 = por %p170, %p171
      %p173 = scmp.ne.s32.totalorder %s164, %s165
      %p174 = scmp.eq.s32.totalorder %s28, 0
      %p175 = por %p173, %p174
      %p176 = scmp.ne.s32.totalorder %s164, %s165
      %p177 = scmp.eq.s32.totalorder %s29, 1
      %p178 = por %p176, %p177
      %p180 = scmp.ne.s32.totalorder %s165, %s179
      %p181 = scmp.eq.s32.totalorder %s29, 0
      %p182 = por %p180, %p181
      %s184 = sadd.s32 %s183, 1
      %p187 = scmp.eq.s32.totalorder %s23, 1
      %p188 = scmp.ne.s32.totalorder %s183, %s185
      %p189 = scmp.eq.s32.totalorder %s23, 0
      %p190 = por %p188, %p189
      %p191 = scmp.ne.s32.totalorder %s183, %s185
      %p192 = scmp.eq.s32.totalorder %s28, 1
      %p193 = por %p191, %p192
      %p194 = scmp.ne.s32.totalorder %s185, %s186
      %p195 = scmp.eq.s32.totalorder %s28, 0
      %p196 = por %p194, %p195
      %p197 = scmp.ne.s32.totalorder %s185, %s186
      %p198 = scmp.eq.s32.totalorder %s29, 1
      %p199 = por %p197, %p198
      %p201 = scmp.ne.s32.totalorder %s186, %s200
      %p202 = scmp.eq.s32.totalorder %s29, 0
      %p203 = por %p201, %p202
      %s205 = sadd.s32 %s204, 1
      %p208 = scmp.eq.s32.totalorder %s23, 1
      %p209 = scmp.ne.s32.totalorder %s204, %s206
      %p210 = scmp.eq.s32.totalorder %s23, 0
      %p211 = por %p209, %p210
      %p212 = scmp.ne.s32.totalorder %s204, %s206
      %p213 = scmp.eq.s32.totalorder %s28, 1
      %p214 = por %p212, %p213
      %p215 = scmp.ne.s32.totalorder %s206, %s207
      %p216 = scmp.eq.s32.totalorder %s28, 0
      %p217 = por %p215, %p216
      %p218 = scmp.ne.s32.totalorder %s206, %s207
      %p219 = scmp.eq.s32.totalorder %s29, 1
      %p220 = por %p218, %p219
      %p222 = scmp.ne.s32.totalorder %s207, %s221
      %p223 = scmp.eq.s32.totalorder %s29, 0
      %p224 = por %p222, %p223
      %s226 = sadd.s32 %s225, 1
      %p229 = scmp.eq.s32.totalorder %s23, 1
      %p230 = scmp.ne.s32.totalorder %s225, %s227
      %p231 = scmp.eq.s32.totalorder %s23, 0
      %p232 = por %p230, %p231
      %p233 = scmp.ne.s32.totalorder %s225, %s227
      %p234 = scmp.eq.s32.totalorder %s28, 1
      %p235 = por %p233, %p234
      %p236 = scmp.ne.s32.totalorder %s227, %s228
      %p237 = scmp.eq.s32.totalorder %s28, 0
      %p238 = por %p236, %p237
      %p239 = scmp.ne.s32.totalorder %s227, %s228
      %p240 = scmp.eq.s32.totalorder %s29, 1
      %p241 = por %p239, %p240
      %p243 = scmp.ne.s32.totalorder %s228, %s242
      %p244 = scmp.eq.s32.totalorder %s29, 0
      %p245 = por %p243, %p244
      %s247 = sadd.s32 %s246, 1
      %p250 = scmp.eq.s32.totalorder %s23, 1
      %p251 = scmp.ne.s32.totalorder %s246, %s248
      %p252 = scmp.eq.s32.totalorder %s23, 0
      %p253 = por %p251, %p252
      %p254 = scmp.ne.s32.totalorder %s246, %s248
      %p255 = scmp.eq.s32.totalorder %s28, 1
      %p256 = por %p254, %p255
      %p257 = scmp.ne.s32.totalorder %s248, %s249
      %p258 = scmp.eq.s32.totalorder %s28, 0
      %p259 = por %p257, %p258
      %p260 = scmp.ne.s32.totalorder %s248, %s249
      %p261 = scmp.eq.s32.totalorder %s29, 1
      %p262 = por %p260, %p261
      %p264 = scmp.ne.s32.totalorder %s249, %s263
      %p265 = scmp.eq.s32.totalorder %s29, 0
      %p266 = por %p264, %p265
      %s268 = sadd.s32 %s267, 1
      %p271 = scmp.eq.s32.totalorder %s23, 1
      %p272 = scmp.ne.s32.totalorder %s267, %s269
      %p273 = scmp.eq.s32.totalorder %s23, 0
      %p274 = por %p272, %p273
      %p275 = scmp.ne.s32.totalorder %s267, %s269
      %p276 = scmp.eq.s32.totalorder %s28, 1
      %p277 = por %p275, %p276
      %p278 = scmp.ne.s32.totalorder %s269, %s270
      %p279 = scmp.eq.s32.totalorder %s28, 0
      %p280 = por %p278, %p279
      %p281 = scmp.ne.s32.totalorder %s269, %s270
      %p282 = scmp.eq.s32.totalorder %s29, 1
      %p283 = por %p281, %p282
      %p285 = scmp.ne.s32.totalorder %s270, %s284
      %p286 = scmp.eq.s32.totalorder %s29, 0
      %p287 = por %p285, %p286
      %s289 = sadd.s32 %s288, 1
      %p292 = scmp.eq.s32.totalorder %s23, 1
      %p293 = scmp.ne.s32.totalorder %s288, %s290
      %p294 = scmp.eq.s32.totalorder %s23, 0
      %p295 = por %p293, %p294
      %p296 = scmp.ne.s32.totalorder %s288, %s290
      %p297 = scmp.eq.s32.totalorder %s28, 1
      %p298 = por %p296, %p297
      %p299 = scmp.ne.s32.totalorder %s290, %s291
      %p300 = scmp.eq.s32.totalorder %s28, 0
      %p301 = por %p299, %p300
      %p302 = scmp.ne.s32.totalorder %s290, %s291
      %p303 = scmp.eq.s32.totalorder %s29, 1
      %p304 = por %p302, %p303
      %p306 = scmp.ne.s32.totalorder %s291, %s305
      %p307 = scmp.eq.s32.totalorder %s29, 0
      %p308 = por %p306, %p307
      %s310 = sadd.s32 %s309, 1
      %p313 = scmp.eq.s32.totalorder %s23, 1
      %p314 = scmp.ne.s32.totalorder %s309, %s311
      %p315 = scmp.eq.s32.totalorder %s23, 0
      %p316 = por %p314, %p315
      %p317 = scmp.ne.s32.totalorder %s309, %s311
      %p318 = scmp.eq.s32.totalorder %s28, 1
      %p319 = por %p317, %p318
      %p320 = scmp.ne.s32.totalorder %s311, %s312
      %p321 = scmp.eq.s32.totalorder %s28, 0
      %p322 = por %p320, %p321
      %p323 = scmp.ne.s32.totalorder %s311, %s312
      %p324 = scmp.eq.s32.totalorder %s29, 1
      %p325 = por %p323, %p324
      %p327 = scmp.ne.s32.totalorder %s312, %s326
      %p328 = scmp.eq.s32.totalorder %s29, 0
      %p329 = por %p327, %p328
      %s331 = sadd.s32 %s330, 1
      %p334 = scmp.eq.s32.totalorder %s23, 1
      %p335 = scmp.ne.s32.totalorder %s330, %s332
      %p336 = scmp.eq.s32.totalorder %s23, 0
      %p337 = por %p335, %p336
      %p338 = scmp.ne.s32.totalorder %s330, %s332
      %p339 = scmp.eq.s32.totalorder %s28, 1
      %p340 = por %p338, %p339
      %p341 = scmp.ne.s32.totalorder %s332, %s333
      %p342 = scmp.eq.s32.totalorder %s28, 0
      %p343 = por %p341, %p342
      %p344 = scmp.ne.s32.totalorder %s332, %s333
      %p345 = scmp.eq.s32.totalorder %s29, 1
      %p346 = por %p344, %p345
      %p348 = scmp.ne.s32.totalorder %s333, %s347
      %p349 = scmp.eq.s32.totalorder %s29, 0
      %p350 = por %p348, %p349
      %s352 = sadd.s32 %s351, 1
      %p355 = scmp.eq.s32.totalorder %s23, 1
      %p356 = scmp.ne.s32.totalorder %s351, %s353
      %p357 = scmp.eq.s32.totalorder %s23, 0
      %p358 = por %p356, %p357
      %p359 = scmp.ne.s32.totalorder %s351, %s353
      %p360 = scmp.eq.s32.totalorder %s28, 1
      %p361 = por %p359, %p360
      %p362 = scmp.ne.s32.totalorder %s353, %s354
      %p363 = scmp.eq.s32.totalorder %s28, 0
      %p364 = por %p362, %p363
      %p365 = scmp.ne.s32.totalorder %s353, %s354
      %p366 = scmp.eq.s32.totalorder %s29, 1
      %p367 = por %p365, %p366
      %p369 = scmp.ne.s32.totalorder %s354, %s368
      %p370 = scmp.eq.s32.totalorder %s29, 0
      %p371 = por %p369, %p370
      %s372 = ssub.s32 %s23, %s30
      %p373 = scmp.eq.s32.totalorder %s372, 0
      %s375 = sadd.s32 %s374, 1
      %s376 = scalar_select %p373, %s374, %s375
      %p379 = pneg %p373
      %p380 = scmp.eq.s32.totalorder %s23, 1
      %p381 = por %p379, %p380
      %p382 = scmp.ne.s32.totalorder %s374, %s377
      %p383 = scmp.eq.s32.totalorder %s23, 0
      %p384 = por %p382, %p383
      %p385 = scmp.ne.s32.totalorder %s374, %s377
      %p386 = scmp.eq.s32.totalorder %s28, 1
      %p387 = por %p385, %p386
      %p388 = scmp.ne.s32.totalorder %s377, %s378
      %p389 = scmp.eq.s32.totalorder %s28, 0
      %p390 = por %p388, %p389
      %p391 = scmp.ne.s32.totalorder %s377, %s378
      %p392 = scmp.eq.s32.totalorder %s29, 1
      %p393 = por %p391, %p392
      %p395 = scmp.ne.s32.totalorder %s378, %s394
      %p396 = scmp.eq.s32.totalorder %s29, 0
      %p397 = por %p395, %p396
      %p398 = scmp.le.s32.totalorder 1, %s23
      %p399 = scmp.lt.s32.totalorder %s23, 3
      %p400 = pnand %p398, %p399
      %p401 = pneg %p400
      // Predicated region
      $region9: #{_lambda_.3} parent=5 // pred_check
        _
      $region10: #{_lambda_.3} parent=5 // pred_check_branch
        %403 = sbr.rel (%p400) target = $region12
      $region11: #{_lambda_.3} parent=5 // pred_region
        %s404 = ssub.s32 %s23, 1
        // Predicated region
        $region13: #{_lambda_.3} parent=11 // pred_check
          %p405 = pneg %p44
        $region14: #{_lambda_.3} parent=11 // pred_check_branch
          %407 = sbr.rel (%p405) target = $region16
        $region15: #{_lambda_.3} parent=11 // pred_region
          %s409 = ssub.s32 16, 16
          %410 = vsyncadd [#allocation3], %s409
          %s412 = sshll.u32 %s0, 4
          %s413 = int_to_ptr.vmem [resolvable:$true] %s412
          %415 = dma.vmem_to_smem %s413, 16, [#allocation2], [#allocation3]
        $region16: #{_lambda_.3} parent=11 // pred_fallthru
          _
        // Predicated region
        $region17: #{_lambda_.3} parent=11 // pred_check
          %p416 = pneg %p91
        $region18: #{_lambda_.3} parent=11 // pred_check_branch
          %418 = sbr.rel (%p416) target = $region20
        $region19: #{_lambda_.3} parent=11 // pred_region
          _
        $region20: #{_lambda_.3} parent=11 // pred_fallthru
          _
        // Predicated region
        $region21: #{_lambda_.3} parent=11 // pred_check
          %p419 = pneg %p112
        $region22: #{_lambda_.3} parent=11 // pred_check_branch
          %421 = sbr.rel (%p419) target = $region24
        $region23: #{_lambda_.3} parent=11 // pred_region
          _
        $region24: #{_lambda_.3} parent=11 // pred_fallthru
          _
        // Predicated region
        $region25: #{_lambda_.3} parent=11 // pred_check
          %p422 = pneg %p133
        $region26: #{_lambda_.3} parent=11 // pred_check_branch
          %424 = sbr.rel (%p422) target = $region28
        $region27: #{_lambda_.3} parent=11 // pred_region
          _
        $region28: #{_lambda_.3} parent=11 // pred_fallthru
          _
        // Predicated region
        $region29: #{_lambda_.3} parent=11 // pred_check
          %p425 = pneg %p154
        $region30: #{_lambda_.3} parent=11 // pred_check_branch
          %427 = sbr.rel (%p425) target = $region32
        $region31: #{_lambda_.3} parent=11 // pred_region
          _
        $region32: #{_lambda_.3} parent=11 // pred_fallthru
          _
        // Predicated region
        $region33: #{_lambda_.3} parent=11 // pred_check
          %p428 = pneg %p175
        $region34: #{_lambda_.3} parent=11 // pred_check_branch
          %430 = sbr.rel (%p428) target = $region36
        $region35: #{_lambda_.3} parent=11 // pred_region
          _
        $region36: #{_lambda_.3} parent=11 // pred_fallthru
          _
        // Predicated region
        $region37: #{_lambda_.3} parent=11 // pred_check
          %p431 = pneg %p196
        $region38: #{_lambda_.3} parent=11 // pred_check_branch
          %433 = sbr.rel (%p431) target = $region40
        $region39: #{_lambda_.3} parent=11 // pred_region
          _
        $region40: #{_lambda_.3} parent=11 // pred_fallthru
          _
        // Predicated region
        $region41: #{_lambda_.3} parent=11 // pred_check
          %p434 = pneg %p217
        $region42: #{_lambda_.3} parent=11 // pred_check_branch
          %436 = sbr.rel (%p434) target = $region44
        $region43: #{_lambda_.3} parent=11 // pred_region
          _
        $region44: #{_lambda_.3} parent=11 // pred_fallthru
          _
        // Predicated region
        $region45: #{_lambda_.3} parent=11 // pred_check
          %p437 = pneg %p238
        $region46: #{_lambda_.3} parent=11 // pred_check_branch
          %439 = sbr.rel (%p437) target = $region48
        $region47: #{_lambda_.3} parent=11 // pred_region
          _
        $region48: #{_lambda_.3} parent=11 // pred_fallthru
          _
        // Predicated region
        $region49: #{_lambda_.3} parent=11 // pred_check
          %p440 = pneg %p259
        $region50: #{_lambda_.3} parent=11 // pred_check_branch
          %442 = sbr.rel (%p440) target = $region52
        $region51: #{_lambda_.3} parent=11 // pred_region
          _
        $region52: #{_lambda_.3} parent=11 // pred_fallthru
          _
        // Predicated region
        $region53: #{_lambda_.3} parent=11 // pred_check
          %p443 = pneg %p280
        $region54: #{_lambda_.3} parent=11 // pred_check_branch
          %445 = sbr.rel (%p443) target = $region56
        $region55: #{_lambda_.3} parent=11 // pred_region
          _
        $region56: #{_lambda_.3} parent=11 // pred_fallthru
          _
        // Predicated region
        $region57: #{_lambda_.3} parent=11 // pred_check
          %p446 = pneg %p301
        $region58: #{_lambda_.3} parent=11 // pred_check_branch
          %448 = sbr.rel (%p446) target = $region60
        $region59: #{_lambda_.3} parent=11 // pred_region
          _
        $region60: #{_lambda_.3} parent=11 // pred_fallthru
          _
        // Predicated region
        $region61: #{_lambda_.3} parent=11 // pred_check
          %p449 = pneg %p322
        $region62: #{_lambda_.3} parent=11 // pred_check_branch
          %451 = sbr.rel (%p449) target = $region64
        $region63: #{_lambda_.3} parent=11 // pred_region
          _
        $region64: #{_lambda_.3} parent=11 // pred_fallthru
          _
        // Predicated region
        $region65: #{_lambda_.3} parent=11 // pred_check
          %p452 = pneg %p343
        $region66: #{_lambda_.3} parent=11 // pred_check_branch
          %454 = sbr.rel (%p452) target = $region68
        $region67: #{_lambda_.3} parent=11 // pred_region
          _
        $region68: #{_lambda_.3} parent=11 // pred_fallthru
          _
        // Predicated region
        $region69: #{_lambda_.3} parent=11 // pred_check
          %p455 = pneg %p364
        $region70: #{_lambda_.3} parent=11 // pred_check_branch
          %457 = sbr.rel (%p455) target = $region72
        $region71: #{_lambda_.3} parent=11 // pred_region
          _
        $region72: #{_lambda_.3} parent=11 // pred_fallthru
          _
      $region12: #{_lambda_.3} parent=5 // pred_fallthru
        _
      %p458 = scmp.lt.s32.totalorder %s23, 2
      // Predicated region
      $region73: #{_lambda_.3} parent=5 // pred_check
        %p459 = pneg %p458
      $region74: #{_lambda_.3} parent=5 // pred_check_branch
        %461 = sbr.rel (%p459) target = $region76
      $region75: #{_lambda_.3} parent=5 // pred_region
        // Predicated region
        $region77: #{_lambda_.3} parent=75 // pred_check
          %p462 = pneg %p64
        $region78: #{_lambda_.3} parent=75 // pred_check_branch
          %464 = sbr.rel (%p462) target = $region80
        $region79: #{_lambda_.3} parent=75 // pred_region
          %p465 = scmp.lt.s32.totalorder %s23, 1
          %s466 = scalar_select %p465, %s23, 1
          %s467 = smul.addr %s466, 16
          %s468 = smul.addr %s467, 4
          %s469 = scalar_lea.vmem %s1, %s468
        $region80: #{_lambda_.3} parent=75 // pred_fallthru
          _
      $region76: #{_lambda_.3} parent=5 // pred_fallthru
        _
      %p470 = scmp.le.s32.totalorder 1, %s23
      %p471 = scmp.lt.s32.totalorder %s23, 3
      %p472 = pnand %p470, %p471
      %p473 = pneg %p472
      // Predicated region
      $region81: #{_lambda_.3} parent=5 // pred_check
        _
      $region82: #{_lambda_.3} parent=5 // pred_check_branch
        %475 = sbr.rel (%p472) target = $region84
      $region83: #{_lambda_.3} parent=5 // pred_region
        %s476 = ssub.s32 %s23, 1
        // Predicated region
        $region85: #{_lambda_.3} parent=83 // pred_check
          %p477 = pneg %p44
        $region86: #{_lambda_.3} parent=83 // pred_check_branch
          %479 = sbr.rel (%p477) target = $region88
        $region87: #{_lambda_.3} parent=83 // pred_region
          %480 = dma.done [#allocation3], 16
        $region88: #{_lambda_.3} parent=83 // pred_fallthru
          _
        %481 = sfence
        %p482 = pneg %p44
        %p483 = pneg %p41
        %p484 = scmp.lt.s32.totalorder %s28, 1
        %s485 = scalar_select %p484, %s28, 1
        %s486 = smul.addr %s485, 16
        %s487 = smul.addr %s486, 4
        %s488 = scalar_lea.vmem %s1, %s487
        %p489 = pneg %p70
        %p490 = pneg %p67
        %p491 = pneg %p91
        %p492 = pneg %p88
        %p493 = pneg %p112
        %p494 = pneg %p109
        %p495 = pneg %p133
        %p496 = pneg %p130
        %p497 = pneg %p154
        %p498 = pneg %p151
        %p499 = pneg %p175
        %p500 = pneg %p172
        %p501 = pneg %p196
        %p502 = pneg %p193
        %p503 = pneg %p217
        %p504 = pneg %p214
        %p505 = pneg %p238
        %p506 = pneg %p235
        %p507 = pneg %p259
        %p508 = pneg %p256
        %p509 = pneg %p280
        %p510 = pneg %p277
        %p511 = pneg %p301
        %p512 = pneg %p298
        %p513 = pneg %p322
        %p514 = pneg %p319
        %p515 = pneg %p343
        %p516 = pneg %p340
        %p517 = pneg %p364
        %p518 = pneg %p361
        %p519 = pneg %p390
        %p520 = pneg %p387
        %p521 = scmp.lt.s32.totalorder %s28, 1
        %s522 = scalar_select %p521, %s28, 1
        %s523 = smul.addr %s522, 32
        %s524 = smul.addr %s523, 8
        %s525 = scalar_lea.vmem %s16, %s524
        %p526 = scmp.lt.s32.totalorder %s28, 1
        %s527 = scalar_select %p526, %s28, 1
        %s528 = smul.addr %s527, 16
        %s529 = smul.addr %s528, 4
        %s530 = scalar_lea.vmem %s1, %s529
        %p531 = scmp.lt.s32.totalorder %s28, 1
        %s532 = scalar_select %p531, %s28, 1
        %s533 = smul.addr %s532, 32
        %s534 = smul.addr %s533, 8
        %s535 = scalar_lea.vmem %s16, %s534
        %v537 = vld [vmem:[%s530] sm:$0xf]
        %v538 = vld [vmem:[%s530 + $0x4] sm:$0xf]
        %v539 = vld [vmem:[%s530 + $0x8] sm:$0xf]
        %v540 = vld [vmem:[%s530 + $0xc] sm:$0xf]
        %v541 = vld [vmem:[%s530 + $0x10] sm:$0xf]
        %v542 = vld [vmem:[%s530 + $0x14] sm:$0xf]
        %v543 = vld [vmem:[%s530 + $0x18] sm:$0xf]
        %v544 = vld [vmem:[%s530 + $0x1c] sm:$0xf]
        %v545 = vld [vmem:[%s530 + $0x20] sm:$0xf]
        %v546 = vld [vmem:[%s530 + $0x24] sm:$0xf]
        %v547 = vld [vmem:[%s530 + $0x28] sm:$0xf]
        %v548 = vld [vmem:[%s530 + $0x2c] sm:$0xf]
        %v549 = vld [vmem:[%s530 + $0x30] sm:$0xf]
        %v550 = vld [vmem:[%s530 + $0x34] sm:$0xf]
        %v551 = vld [vmem:[%s530 + $0x38] sm:$0xf]
        %v552 = vld [vmem:[%s530 + $0x3c] sm:$0xf]
        %s553 = sld [smem:[#allocation2]]
        %s554 = sld [smem:[#allocation2 + $0x1]]
        %s555 = sld [smem:[#allocation2 + $0x2]]
        %v556 = vld [vmem:[%s2] sm:$0xf]
        %v557 = vld [vmem:[%s2 + $0x4] sm:$0xf]
        %v558 = vld [vmem:[%s2 + $0x8] sm:$0xf]
        %v559 = vld [vmem:[%s2 + $0xc] sm:$0xf]
        %v560 = vld [vmem:[%s2 + $0x10] sm:$0xf]
        %v561 = vld [vmem:[%s2 + $0x14] sm:$0xf]
        %v562 = vld [vmem:[%s2 + $0x18] sm:$0xf]
        %v563 = vld [vmem:[%s2 + $0x1c] sm:$0xf]
        %v564 = vld [vmem:[%s2 + $0x20] sm:$0xf]
        %v565 = vld [vmem:[%s2 + $0x24] sm:$0xf]
        %v566 = vld [vmem:[%s2 + $0x28] sm:$0xf]
        %v567 = vld [vmem:[%s2 + $0x2c] sm:$0xf]
        %v568 = vld [vmem:[%s2 + $0x30] sm:$0xf]
        %v569 = vld [vmem:[%s2 + $0x34] sm:$0xf]
        %v570 = vld [vmem:[%s2 + $0x38] sm:$0xf]
        %v571 = vld [vmem:[%s2 + $0x3c] sm:$0xf]
        %v572 = vld [vmem:[%s2 + $0x40] sm:$0xf]
        %v573 = vld [vmem:[%s2 + $0x44] sm:$0xf]
        %v574 = vld [vmem:[%s2 + $0x48] sm:$0xf]
        %v575 = vld [vmem:[%s2 + $0x4c] sm:$0xf]
        %v576 = vld [vmem:[%s2 + $0x50] sm:$0xf]
        %v577 = vld [vmem:[%s2 + $0x54] sm:$0xf]
        %v578 = vld [vmem:[%s2 + $0x58] sm:$0xf]
        %v579 = vld [vmem:[%s2 + $0x5c] sm:$0xf]
        %v580 = vld [vmem:[%s2 + $0x60] sm:$0xf]
        %v581 = vld [vmem:[%s2 + $0x64] sm:$0xf]
        %v582 = vld [vmem:[%s2 + $0x68] sm:$0xf]
        %v583 = vld [vmem:[%s2 + $0x6c] sm:$0xf]
        %v584 = vld [vmem:[%s2 + $0x70] sm:$0xf]
        %v585 = vld [vmem:[%s2 + $0x74] sm:$0xf]
        %v586 = vld [vmem:[%s2 + $0x78] sm:$0xf]
        %v587 = vld [vmem:[%s2 + $0x7c] sm:$0xf]
        %v588 = vld [vmem:[%s2 + $0x80] sm:$0xf]
        %v589 = vld [vmem:[%s2 + $0x84] sm:$0xf]
        %v590 = vld [vmem:[%s2 + $0x88] sm:$0xf]
        %v591 = vld [vmem:[%s2 + $0x8c] sm:$0xf]
        %v592 = vld [vmem:[%s2 + $0x90] sm:$0xf]
        %v593 = vld [vmem:[%s2 + $0x94] sm:$0xf]
        %v594 = vld [vmem:[%s2 + $0x98] sm:$0xf]
        %v595 = vld [vmem:[%s2 + $0x9c] sm:$0xf]
        %v596 = vld [vmem:[%s2 + $0xa0] sm:$0xf]
        %v597 = vld [vmem:[%s2 + $0xa4] sm:$0xf]
        %v598 = vld [vmem:[%s2 + $0xa8] sm:$0xf]
        %v599 = vld [vmem:[%s2 + $0xac] sm:$0xf]
        %v600 = vld [vmem:[%s2 + $0xb0] sm:$0xf]
        %v601 = vld [vmem:[%s2 + $0xb4] sm:$0xf]
        %v602 = vld [vmem:[%s2 + $0xb8] sm:$0xf]
        %v603 = vld [vmem:[%s2 + $0xbc] sm:$0xf]
        %v604 = vld [vmem:[%s3] sm:$0xff]
        %v605 = vld [vmem:[%s3 + $0x8] sm:$0xff]
        %v606 = vld [vmem:[%s3 + $0x10] sm:$0xff]
        %v607 = vld [vmem:[%s3 + $0x18] sm:$0xff]
        %v608 = vld [vmem:[%s3 + $0x20] sm:$0xff]
        %v609 = vld [vmem:[%s3 + $0x28] sm:$0xff]
        %v610 = vld [vmem:[%s3 + $0x30] sm:$0xff]
        %v611 = vld [vmem:[%s3 + $0x38] sm:$0xff]
        %v612 = vld [vmem:[%s3 + $0x40] sm:$0xff]
        %v613 = vld [vmem:[%s3 + $0x48] sm:$0xff]
        %v614 = vld [vmem:[%s3 + $0x50] sm:$0xff]
        %v615 = vld [vmem:[%s3 + $0x58] sm:$0xff]
        %v616 = vld [vmem:[%s3 + $0x60] sm:$0xff]
        %v617 = vld [vmem:[%s3 + $0x68] sm:$0xff]
        %v618 = vld [vmem:[%s3 + $0x70] sm:$0xff]
        %v619 = vld [vmem:[%s3 + $0x78] sm:$0xff]
        %v620 = vld [vmem:[%s3 + $0x80] sm:$0xff]
        %v621 = vld [vmem:[%s3 + $0x88] sm:$0xff]
        %v622 = vld [vmem:[%s3 + $0x90] sm:$0xff]
        %v623 = vld [vmem:[%s3 + $0x98] sm:$0xff]
        %v624 = vld [vmem:[%s3 + $0xa0] sm:$0xff]
        %v625 = vld [vmem:[%s3 + $0xa8] sm:$0xff]
        %v626 = vld [vmem:[%s3 + $0xb0] sm:$0xff]
        %v627 = vld [vmem:[%s3 + $0xb8] sm:$0xff]
        %v628 = vld [vmem:[%s3 + $0xc0] sm:$0xff]
        %v629 = vld [vmem:[%s3 + $0xc8] sm:$0xff]
        %v630 = vld [vmem:[%s3 + $0xd0] sm:$0xff]
        %v631 = vld [vmem:[%s3 + $0xd8] sm:$0xff]
        %v632 = vld [vmem:[%s3 + $0xe0] sm:$0xff]
        %v633 = vld [vmem:[%s3 + $0xe8] sm:$0xff]
        %v634 = vld [vmem:[%s3 + $0xf0] sm:$0xff]
        %v635 = vld [vmem:[%s3 + $0xf8] sm:$0xff]
        %v636 = vld [vmem:[%s3 + $0x100] sm:$0xff]
        %v637 = vld [vmem:[%s3 + $0x108] sm:$0xff]
        %v638 = vld [vmem:[%s3 + $0x110] sm:$0xff]
        %v639 = vld [vmem:[%s3 + $0x118] sm:$0xff]
        %v640 = vld [vmem:[%s3 + $0x120] sm:$0xff]
        %v641 = vld [vmem:[%s3 + $0x128] sm:$0xff]
        %v642 = vld [vmem:[%s3 + $0x130] sm:$0xff]
        %v643 = vld [vmem:[%s3 + $0x138] sm:$0xff]
        %v644 = vld [vmem:[%s3 + $0x140] sm:$0xff]
        %v645 = vld [vmem:[%s3 + $0x148] sm:$0xff]
        %v646 = vld [vmem:[%s3 + $0x150] sm:$0xff]
        %v647 = vld [vmem:[%s3 + $0x158] sm:$0xff]
        %v648 = vld [vmem:[%s3 + $0x160] sm:$0xff]
        %v649 = vld [vmem:[%s3 + $0x168] sm:$0xff]
        %v650 = vld [vmem:[%s3 + $0x170] sm:$0xff]
        %v651 = vld [vmem:[%s3 + $0x178] sm:$0xff]
        %653 = vset.pattern.permute.xlu0 0
        %654 = vperm.xlu0 %653, %v604
        %v655 = vpop.permute.xlu0 %654
        %658 = vset.pattern.permute.xlu0 0
        %659 = vperm.xlu0 %658, %v605
        %v660 = vpop.permute.xlu0 %659
        %663 = vset.pattern.permute.xlu0 0
        %664 = vperm.xlu0 %663, %v606
        %v665 = vpop.permute.xlu0 %664
        %668 = vset.pattern.permute.xlu0 0
        %669 = vperm.xlu0 %668, %v607
        %v670 = vpop.permute.xlu0 %669
        %673 = vset.pattern.permute.xlu0 0
        %674 = vperm.xlu0 %673, %v608
        %v675 = vpop.permute.xlu0 %674
        %678 = vset.pattern.permute.xlu0 0
        %679 = vperm.xlu0 %678, %v609
        %v680 = vpop.permute.xlu0 %679
        %683 = vset.pattern.permute.xlu0 0
        %684 = vperm.xlu0 %683, %v610
        %v685 = vpop.permute.xlu0 %684
        %688 = vset.pattern.permute.xlu0 0
        %689 = vperm.xlu0 %688, %v611
        %v690 = vpop.permute.xlu0 %689
        %693 = vset.pattern.permute.xlu0 0
        %694 = vperm.xlu0 %693, %v612
        %v695 = vpop.permute.xlu0 %694
        %698 = vset.pattern.permute.xlu0 0
        %699 = vperm.xlu0 %698, %v613
        %v700 = vpop.permute.xlu0 %699
        %703 = vset.pattern.permute.xlu0 0
        %704 = vperm.xlu0 %703, %v614
        %v705 = vpop.permute.xlu0 %704
        %708 = vset.pattern.permute.xlu0 0
        %709 = vperm.xlu0 %708, %v615
        %v710 = vpop.permute.xlu0 %709
        %713 = vset.pattern.permute.xlu0 0
        %714 = vperm.xlu0 %713, %v616
        %v715 = vpop.permute.xlu0 %714
        %718 = vset.pattern.permute.xlu0 0
        %719 = vperm.xlu0 %718, %v617
        %v720 = vpop.permute.xlu0 %719
        %723 = vset.pattern.permute.xlu0 0
        %724 = vperm.xlu0 %723, %v618
        %v725 = vpop.permute.xlu0 %724
        %728 = vset.pattern.permute.xlu0 0
        %729 = vperm.xlu0 %728, %v619
        %v730 = vpop.permute.xlu0 %729
        %733 = vset.pattern.permute.xlu0 0
        %734 = vperm.xlu0 %733, %v620
        %v735 = vpop.permute.xlu0 %734
        %738 = vset.pattern.permute.xlu0 0
        %739 = vperm.xlu0 %738, %v621
        %v740 = vpop.permute.xlu0 %739
        %743 = vset.pattern.permute.xlu0 0
        %744 = vperm.xlu0 %743, %v622
        %v745 = vpop.permute.xlu0 %744
        %748 = vset.pattern.permute.xlu0 0
        %749 = vperm.xlu0 %748, %v623
        %v750 = vpop.permute.xlu0 %749
        %753 = vset.pattern.permute.xlu0 0
        %754 = vperm.xlu0 %753, %v624
        %v755 = vpop.permute.xlu0 %754
        %758 = vset.pattern.permute.xlu0 0
        %759 = vperm.xlu0 %758, %v625
        %v760 = vpop.permute.xlu0 %759
        %763 = vset.pattern.permute.xlu0 0
        %764 = vperm.xlu0 %763, %v626
        %v765 = vpop.permute.xlu0 %764
        %768 = vset.pattern.permute.xlu0 0
        %769 = vperm.xlu0 %768, %v627
        %v770 = vpop.permute.xlu0 %769
        %773 = vset.pattern.permute.xlu0 0
        %774 = vperm.xlu0 %773, %v628
        %v775 = vpop.permute.xlu0 %774
        %778 = vset.pattern.permute.xlu0 0
        %779 = vperm.xlu0 %778, %v629
        %v780 = vpop.permute.xlu0 %779
        %783 = vset.pattern.permute.xlu0 0
        %784 = vperm.xlu0 %783, %v630
        %v785 = vpop.permute.xlu0 %784
        %788 = vset.pattern.permute.xlu0 0
        %789 = vperm.xlu0 %788, %v631
        %v790 = vpop.permute.xlu0 %789
        %793 = vset.pattern.permute.xlu0 0
        %794 = vperm.xlu0 %793, %v632
        %v795 = vpop.permute.xlu0 %794
        %798 = vset.pattern.permute.xlu0 0
        %799 = vperm.xlu0 %798, %v633
        %v800 = vpop.permute.xlu0 %799
        %803 = vset.pattern.permute.xlu0 0
        %804 = vperm.xlu0 %803, %v634
        %v805 = vpop.permute.xlu0 %804
        %808 = vset.pattern.permute.xlu0 0
        %809 = vperm.xlu0 %808, %v635
        %v810 = vpop.permute.xlu0 %809
        %813 = vset.pattern.permute.xlu0 0
        %814 = vperm.xlu0 %813, %v636
        %v815 = vpop.permute.xlu0 %814
        %818 = vset.pattern.permute.xlu0 0
        %819 = vperm.xlu0 %818, %v637
        %v820 = vpop.permute.xlu0 %819
        %823 = vset.pattern.permute.xlu0 0
        %824 = vperm.xlu0 %823, %v638
        %v825 = vpop.permute.xlu0 %824
        %828 = vset.pattern.permute.xlu0 0
        %829 = vperm.xlu0 %828, %v639
        %v830 = vpop.permute.xlu0 %829
        %833 = vset.pattern.permute.xlu0 0
        %834 = vperm.xlu0 %833, %v640
        %v835 = vpop.permute.xlu0 %834
        %838 = vset.pattern.permute.xlu0 0
        %839 = vperm.xlu0 %838, %v641
        %v840 = vpop.permute.xlu0 %839
        %843 = vset.pattern.permute.xlu0 0
        %844 = vperm.xlu0 %843, %v642
        %v845 = vpop.permute.xlu0 %844
        %848 = vset.pattern.permute.xlu0 0
        %849 = vperm.xlu0 %848, %v643
        %v850 = vpop.permute.xlu0 %849
        %853 = vset.pattern.permute.xlu0 0
        %854 = vperm.xlu0 %853, %v644
        %v855 = vpop.permute.xlu0 %854
        %858 = vset.pattern.permute.xlu0 0
        %859 = vperm.xlu0 %858, %v645
        %v860 = vpop.permute.xlu0 %859
        %863 = vset.pattern.permute.xlu0 0
        %864 = vperm.xlu0 %863, %v646
        %v865 = vpop.permute.xlu0 %864
        %868 = vset.pattern.permute.xlu0 0
        %869 = vperm.xlu0 %868, %v647
        %v870 = vpop.permute.xlu0 %869
        %873 = vset.pattern.permute.xlu0 0
        %874 = vperm.xlu0 %873, %v648
        %v875 = vpop.permute.xlu0 %874
        %878 = vset.pattern.permute.xlu0 0
        %879 = vperm.xlu0 %878, %v649
        %v880 = vpop.permute.xlu0 %879
        %883 = vset.pattern.permute.xlu0 0
        %884 = vperm.xlu0 %883, %v650
        %v885 = vpop.permute.xlu0 %884
        %888 = vset.pattern.permute.xlu0 0
        %889 = vperm.xlu0 %888, %v651
        %v890 = vpop.permute.xlu0 %889
        %v940 = vunpack.c.l.b16 %v556
        %v941 = vunpack.c.l.b16 %v557
        %v942 = vunpack.c.l.b16 %v558
        %v943 = vunpack.c.l.b16 %v559
        %v944 = vunpack.c.l.b16 %v560
        %v945 = vunpack.c.l.b16 %v561
        %v946 = vunpack.c.l.b16 %v562
        %v947 = vunpack.c.l.b16 %v563
        %v948 = vunpack.c.l.b16 %v564
        %v949 = vunpack.c.l.b16 %v565
        %v950 = vunpack.c.l.b16 %v566
        %v951 = vunpack.c.l.b16 %v567
        %v952 = vunpack.c.l.b16 %v568
        %v953 = vunpack.c.l.b16 %v569
        %v954 = vunpack.c.l.b16 %v570
        %v955 = vunpack.c.l.b16 %v571
        %v956 = vunpack.c.l.b16 %v572
        %v957 = vunpack.c.l.b16 %v573
        %v958 = vunpack.c.l.b16 %v574
        %v959 = vunpack.c.l.b16 %v575
        %v960 = vunpack.c.l.b16 %v576
        %v961 = vunpack.c.l.b16 %v577
        %v962 = vunpack.c.l.b16 %v578
        %v963 = vunpack.c.l.b16 %v579
        %v964 = vunpack.c.l.b16 %v580
        %v965 = vunpack.c.l.b16 %v581
        %v966 = vunpack.c.l.b16 %v582
        %v967 = vunpack.c.l.b16 %v583
        %v968 = vunpack.c.l.b16 %v584
        %v969 = vunpack.c.l.b16 %v585
        %v970 = vunpack.c.l.b16 %v586
        %v971 = vunpack.c.l.b16 %v587
        %v972 = vunpack.c.l.b16 %v588
        %v973 = vunpack.c.l.b16 %v589
        %v974 = vunpack.c.l.b16 %v590
        %v975 = vunpack.c.l.b16 %v591
        %v976 = vunpack.c.l.b16 %v592
        %v977 = vunpack.c.l.b16 %v593
        %v978 = vunpack.c.l.b16 %v594
        %v979 = vunpack.c.l.b16 %v595
        %v980 = vunpack.c.l.b16 %v596
        %v981 = vunpack.c.l.b16 %v597
        %v982 = vunpack.c.l.b16 %v598
        %v983 = vunpack.c.l.b16 %v599
        %v984 = vunpack.c.l.b16 %v600
        %v985 = vunpack.c.l.b16 %v601
        %v986 = vunpack.c.l.b16 %v602
        %v987 = vunpack.c.l.b16 %v603
        %v988 = vpack.c.b16 %v941, %v940
        %v989 = vpack.c.b16 %v943, %v942
        %v990 = vpack.c.b16 %v945, %v944
        %v991 = vpack.c.b16 %v947, %v946
        %v992 = vpack.c.b16 %v949, %v948
        %v993 = vpack.c.b16 %v951, %v950
        %v994 = vpack.c.b16 %v953, %v952
        %v995 = vpack.c.b16 %v955, %v954
        %v996 = vpack.c.b16 %v957, %v956
        %v997 = vpack.c.b16 %v959, %v958
        %v998 = vpack.c.b16 %v961, %v960
        %v999 = vpack.c.b16 %v963, %v962
        %v1000 = vpack.c.b16 %v965, %v964
        %v1001 = vpack.c.b16 %v967, %v966
        %v1002 = vpack.c.b16 %v969, %v968
        %v1003 = vpack.c.b16 %v971, %v970
        %v1004 = vpack.c.b16 %v973, %v972
        %v1005 = vpack.c.b16 %v975, %v974
        %v1006 = vpack.c.b16 %v977, %v976
        %v1007 = vpack.c.b16 %v979, %v978
        %v1008 = vpack.c.b16 %v981, %v980
        %v1009 = vpack.c.b16 %v983, %v982
        %v1010 = vpack.c.b16 %v985, %v984
        %v1011 = vpack.c.b16 %v987, %v986
        %v1052 = vunpack.c.l.b16 %v537
        %v1053 = vunpack.c.l.b16 %v538
        %v1054 = vunpack.c.l.b16 %v539
        %v1055 = vunpack.c.l.b16 %v540
        %v1056 = vunpack.c.l.b16 %v541
        %v1057 = vunpack.c.l.b16 %v542
        %v1058 = vunpack.c.l.b16 %v543
        %v1059 = vunpack.c.l.b16 %v544
        %v1060 = vunpack.c.l.b16 %v545
        %v1061 = vunpack.c.l.b16 %v546
        %v1062 = vunpack.c.l.b16 %v547
        %v1063 = vunpack.c.l.b16 %v548
        %v1064 = vunpack.c.l.b16 %v549
        %v1065 = vunpack.c.l.b16 %v550
        %v1066 = vunpack.c.l.b16 %v551
        %v1067 = vunpack.c.l.b16 %v552
        %v1068 = vpack.c.b16 %v1053, %v1052
        %v1069 = vpack.c.b16 %v1055, %v1054
        %v1070 = vpack.c.b16 %v1057, %v1056
        %v1071 = vpack.c.b16 %v1059, %v1058
        %v1072 = vpack.c.b16 %v1061, %v1060
        %v1073 = vpack.c.b16 %v1063, %v1062
        %v1074 = vpack.c.b16 %v1065, %v1064
        %v1075 = vpack.c.b16 %v1067, %v1066
        %1084 = vmatprep.subr.bf16.mxu0 0
        %1085 = vmatpush1.bf16.msra.mxu0 %v1075
        %1086 = vmatprep.subr.bf16.mxu0 0
        %1087 = vmatpush1.bf16.msra.mxu0 %v1074
        %1088 = vmatprep.subr.bf16.mxu0 0
        %1089 = vmatpush1.bf16.msra.mxu0 %v1073
        %1090 = vmatprep.subr.bf16.mxu0 0
        %1091 = vmatpush1.bf16.msra.mxu0 %v1072
        %1092 = vmatprep.subr.bf16.mxu0 0
        %1093 = vmatpush1.bf16.msra.mxu0 %v1071
        %1094 = vmatprep.subr.bf16.mxu0 0
        %1095 = vmatpush1.bf16.msra.mxu0 %v1070
        %1096 = vmatprep.subr.bf16.mxu0 0
        %1097 = vmatpush1.bf16.msra.mxu0 %v1069
        %1098 = vmatprep.subr.bf16.mxu0 0
        %1099 = vmatpush1.bf16.msra.mxu0 %v1068
        %1100 = vmatprep.subr.bf16.mxu0 0
        %1101 = vmatpush2.bf16.msra.mxu0 0
        %1102 = vmatprep.subr.bf16.mxu0 0
        %1103 = vmatpush2.bf16.msra.mxu0 0
        %1104 = vmatprep.subr.bf16.mxu0 0
        %1105 = vmatpush2.bf16.msra.mxu0 0
        %1106 = vmatprep.subr.bf16.mxu0 0
        %1107 = vmatpush2.bf16.msra.mxu0 0
        %1108 = vmatprep.subr.bf16.mxu0 0
        %1109 = vmatpush2.bf16.msra.mxu0 0
        %1110 = vmatprep.subr.bf16.mxu0 0
        %1111 = vmatpush2.bf16.msra.mxu0 0
        %1112 = vmatprep.subr.bf16.mxu0 0
        %1113 = vmatpush2.bf16.msra.mxu0 0
        %1114 = vmatprep.subr.bf16.mxu0 0
        %1115 = vmatpush2.bf16.msra.mxu0 0
        %1116 = vmatprep.mubr.bf16.mxu0 0
        %1117 = vmatmul.mubr.bf16.gmra.mxu0 %v988
        %v1118 = vpop.f32.mrf.mxu0
        %v1119 = vadd.f32 %v655, %v1118
        %v1120 = vpop.f32.mrf.mxu0
        %v1121 = vpop.f32.mrf.mxu0
        %v1122 = vadd.f32 %v660, %v1121
        %v1123 = vpop.f32.mrf.mxu0
        %1124 = vmatprep.mubr.bf16.mxu0 0
        %1125 = vmatmul.mubr.bf16.gmra.mxu0 %v989
        %v1126 = vpop.f32.mrf.mxu0
        %v1127 = vadd.f32 %v665, %v1126
        %v1128 = vpop.f32.mrf.mxu0
        %v1129 = vpop.f32.mrf.mxu0
        %v1130 = vadd.f32 %v670, %v1129
        %v1131 = vpop.f32.mrf.mxu0
        %1132 = vmatprep.mubr.bf16.mxu0 0
        %1133 = vmatmul.mubr.bf16.gmra.mxu0 %v990
        %v1134 = vpop.f32.mrf.mxu0
        %v1135 = vadd.f32 %v675, %v1134
        %v1136 = vpop.f32.mrf.mxu0
        %v1137 = vpop.f32.mrf.mxu0
        %v1138 = vadd.f32 %v680, %v1137
        %v1139 = vpop.f32.mrf.mxu0
        %1140 = vmatprep.mubr.bf16.mxu0 0
        %1141 = vmatmul.mubr.bf16.gmra.mxu0 %v991
        %v1142 = vpop.f32.mrf.mxu0
        %v1143 = vadd.f32 %v685, %v1142
        %v1144 = vpop.f32.mrf.mxu0
        %v1145 = vpop.f32.mrf.mxu0
        %v1146 = vadd.f32 %v690, %v1145
        %v1147 = vpop.f32.mrf.mxu0
        %1148 = vmatprep.mubr.bf16.mxu0 0
        %1149 = vmatmul.mubr.bf16.gmra.mxu0 %v992
        %v1150 = vpop.f32.mrf.mxu0
        %v1151 = vadd.f32 %v695, %v1150
        %v1152 = vpop.f32.mrf.mxu0
        %v1153 = vpop.f32.mrf.mxu0
        %v1154 = vadd.f32 %v700, %v1153
        %v1155 = vpop.f32.mrf.mxu0
        %1156 = vmatprep.mubr.bf16.mxu0 0
        %1157 = vmatmul.mubr.bf16.gmra.mxu0 %v993
        %v1158 = vpop.f32.mrf.mxu0
        %v1159 = vadd.f32 %v705, %v1158
        %v1160 = vpop.f32.mrf.mxu0
        %v1161 = vpop.f32.mrf.mxu0
        %v1162 = vadd.f32 %v710, %v1161
        %v1163 = vpop.f32.mrf.mxu0
        %1164 = vmatprep.mubr.bf16.mxu0 0
        %1165 = vmatmul.mubr.bf16.gmra.mxu0 %v994
        %v1166 = vpop.f32.mrf.mxu0
        %v1167 = vadd.f32 %v715, %v1166
        %v1168 = vpop.f32.mrf.mxu0
        %v1169 = vpop.f32.mrf.mxu0
        %v1170 = vadd.f32 %v720, %v1169
        %v1171 = vpop.f32.mrf.mxu0
        %1172 = vmatprep.mubr.bf16.mxu0 0
        %1173 = vmatmul.mubr.bf16.gmra.mxu0 %v995
        %v1174 = vpop.f32.mrf.mxu0
        %v1175 = vadd.f32 %v725, %v1174
        %v1176 = vpop.f32.mrf.mxu0
        %v1177 = vpop.f32.mrf.mxu0
        %v1178 = vadd.f32 %v730, %v1177
        %v1179 = vpop.f32.mrf.mxu0
        %1180 = vmatprep.mubr.bf16.mxu0 0
        %1181 = vmatmul.mubr.bf16.gmra.mxu0 %v996
        %v1182 = vpop.f32.mrf.mxu0
        %v1183 = vadd.f32 %v735, %v1182
        %v1184 = vpop.f32.mrf.mxu0
        %v1185 = vpop.f32.mrf.mxu0
        %v1186 = vadd.f32 %v740, %v1185
        %v1187 = vpop.f32.mrf.mxu0
        %1188 = vmatprep.mubr.bf16.mxu0 0
        %1189 = vmatmul.mubr.bf16.gmra.mxu0 %v997
        %v1190 = vpop.f32.mrf.mxu0
        %v1191 = vadd.f32 %v745, %v1190
        %v1192 = vpop.f32.mrf.mxu0
        %v1193 = vpop.f32.mrf.mxu0
        %v1194 = vadd.f32 %v750, %v1193
        %v1195 = vpop.f32.mrf.mxu0
        %1196 = vmatprep.mubr.bf16.mxu0 0
        %1197 = vmatmul.mubr.bf16.gmra.mxu0 %v998
        %v1198 = vpop.f32.mrf.mxu0
        %v1199 = vadd.f32 %v755, %v1198
        %v1200 = vpop.f32.mrf.mxu0
        %v1201 = vpop.f32.mrf.mxu0
        %v1202 = vadd.f32 %v760, %v1201
        %v1203 = vpop.f32.mrf.mxu0
        %1204 = vmatprep.mubr.bf16.mxu0 0
        %1205 = vmatmul.mubr.bf16.gmra.mxu0 %v999
        %v1206 = vpop.f32.mrf.mxu0
        %v1207 = vadd.f32 %v765, %v1206
        %v1208 = vpop.f32.mrf.mxu0
        %v1209 = vpop.f32.mrf.mxu0
        %v1210 = vadd.f32 %v770, %v1209
        %v1211 = vpop.f32.mrf.mxu0
        %1212 = vmatprep.mubr.bf16.mxu0 0
        %1213 = vmatmul.mubr.bf16.gmra.mxu0 %v1000
        %v1214 = vpop.f32.mrf.mxu0
        %v1215 = vadd.f32 %v775, %v1214
        %v1216 = vpop.f32.mrf.mxu0
        %v1217 = vpop.f32.mrf.mxu0
        %v1218 = vadd.f32 %v780, %v1217
        %v1219 = vpop.f32.mrf.mxu0
        %1220 = vmatprep.mubr.bf16.mxu0 0
        %1221 = vmatmul.mubr.bf16.gmra.mxu0 %v1001
        %v1222 = vpop.f32.mrf.mxu0
        %v1223 = vadd.f32 %v785, %v1222
        %v1224 = vpop.f32.mrf.mxu0
        %v1225 = vpop.f32.mrf.mxu0
        %v1226 = vadd.f32 %v790, %v1225
        %v1227 = vpop.f32.mrf.mxu0
        %1228 = vmatprep.mubr.bf16.mxu0 0
        %1229 = vmatmul.mubr.bf16.gmra.mxu0 %v1002
        %v1230 = vpop.f32.mrf.mxu0
        %v1231 = vadd.f32 %v795, %v1230
        %v1232 = vpop.f32.mrf.mxu0
        %v1233 = vpop.f32.mrf.mxu0
        %v1234 = vadd.f32 %v800, %v1233
        %v1235 = vpop.f32.mrf.mxu0
        %1236 = vmatprep.mubr.bf16.mxu0 0
        %1237 = vmatmul.mubr.bf16.gmra.mxu0 %v1003
        %v1238 = vpop.f32.mrf.mxu0
        %v1239 = vadd.f32 %v805, %v1238
        %v1240 = vpop.f32.mrf.mxu0
        %v1241 = vpop.f32.mrf.mxu0
        %v1242 = vadd.f32 %v810, %v1241
        %v1243 = vpop.f32.mrf.mxu0
        %1244 = vmatprep.mubr.bf16.mxu0 0
        %1245 = vmatmul.mubr.bf16.gmra.mxu0 %v1004
        %v1246 = vpop.f32.mrf.mxu0
        %v1247 = vadd.f32 %v815, %v1246
        %v1248 = vpop.f32.mrf.mxu0
        %v1249 = vpop.f32.mrf.mxu0
        %v1250 = vadd.f32 %v820, %v1249
        %v1251 = vpop.f32.mrf.mxu0
        %1252 = vmatprep.mubr.bf16.mxu0 0
        %1253 = vmatmul.mubr.bf16.gmra.mxu0 %v1005
        %v1254 = vpop.f32.mrf.mxu0
        %v1255 = vadd.f32 %v825, %v1254
        %v1256 = vpop.f32.mrf.mxu0
        %v1257 = vpop.f32.mrf.mxu0
        %v1258 = vadd.f32 %v830, %v1257
        %v1259 = vpop.f32.mrf.mxu0
        %1260 = vmatprep.mubr.bf16.mxu0 0
        %1261 = vmatmul.mubr.bf16.gmra.mxu0 %v1006
        %v1262 = vpop.f32.mrf.mxu0
        %v1263 = vadd.f32 %v835, %v1262
        %v1264 = vpop.f32.mrf.mxu0
        %v1265 = vpop.f32.mrf.mxu0
        %v1266 = vadd.f32 %v840, %v1265
        %v1267 = vpop.f32.mrf.mxu0
        %1268 = vmatprep.mubr.bf16.mxu0 0
        %1269 = vmatmul.mubr.bf16.gmra.mxu0 %v1007
        %v1270 = vpop.f32.mrf.mxu0
        %v1271 = vadd.f32 %v845, %v1270
        %v1272 = vpop.f32.mrf.mxu0
        %v1273 = vpop.f32.mrf.mxu0
        %v1274 = vadd.f32 %v850, %v1273
        %v1275 = vpop.f32.mrf.mxu0
        %1276 = vmatprep.mubr.bf16.mxu0 0
        %1277 = vmatmul.mubr.bf16.gmra.mxu0 %v1008
        %v1278 = vpop.f32.mrf.mxu0
        %v1279 = vadd.f32 %v855, %v1278
        %v1280 = vpop.f32.mrf.mxu0
        %v1281 = vpop.f32.mrf.mxu0
        %v1282 = vadd.f32 %v860, %v1281
        %v1283 = vpop.f32.mrf.mxu0
        %1284 = vmatprep.mubr.bf16.mxu0 0
        %1285 = vmatmul.mubr.bf16.gmra.mxu0 %v1009
        %v1286 = vpop.f32.mrf.mxu0
        %v1287 = vadd.f32 %v865, %v1286
        %v1288 = vpop.f32.mrf.mxu0
        %v1289 = vpop.f32.mrf.mxu0
        %v1290 = vadd.f32 %v870, %v1289
        %v1291 = vpop.f32.mrf.mxu0
        %1292 = vmatprep.mubr.bf16.mxu0 0
        %1293 = vmatmul.mubr.bf16.gmra.mxu0 %v1010
        %v1294 = vpop.f32.mrf.mxu0
        %v1295 = vadd.f32 %v875, %v1294
        %v1296 = vpop.f32.mrf.mxu0
        %v1297 = vpop.f32.mrf.mxu0
        %v1298 = vadd.f32 %v880, %v1297
        %v1299 = vpop.f32.mrf.mxu0
        %1300 = vmatprep.mubr.bf16.mxu0 0
        %1301 = vmatmul.mubr.bf16.gmra.mxu0 %v1011
        %v1302 = vpop.f32.mrf.mxu0
        %v1303 = vadd.f32 %v885, %v1302
        %v1304 = vpop.f32.mrf.mxu0
        %v1305 = vpop.f32.mrf.mxu0
        %v1306 = vadd.f32 %v890, %v1305
        %v1307 = vpop.f32.mrf.mxu0
        %1308 = vdwg.mxu0
        %1309 = vxpose.xlu0.b32.start [1/16] %v1119, 128
        %1310 = vxpose.xlu0.b32.cont [2/16] %v1122, 128
        %1311 = vxpose.xlu0.b32.cont [3/16] %v1127, 128
        %1312 = vxpose.xlu0.b32.cont [4/16] %v1130, 128
        %1313 = vxpose.xlu0.b32.cont [5/16] %v1135, 128
        %1314 = vxpose.xlu0.b32.cont [6/16] %v1138, 128
        %1315 = vxpose.xlu0.b32.cont [7/16] %v1143, 128
        %1316 = vxpose.xlu0.b32.cont [8/16] %v1146, 128
        %1317 = vxpose.xlu0.b32.cont [9/16] 0.0, 128
        %1318 = vxpose.xlu0.b32.cont [10/16] 0.0, 128
        %1319 = vxpose.xlu0.b32.cont [11/16] 0.0, 128
        %1320 = vxpose.xlu0.b32.cont [12/16] 0.0, 128
        %1321 = vxpose.xlu0.b32.cont [13/16] 0.0, 128
        %1322 = vxpose.xlu0.b32.cont [14/16] 0.0, 128
        %1323 = vxpose.xlu0.b32.cont [15/16] 0.0, 128
        %1324 = vxpose.xlu0.b32.end [16/16] 0.0, 128
        %v1325 = vpop.trf.xlu0
        %v1326 = vpop.trf.xlu0
        %v1327 = vpop.trf.xlu0
        %v1328 = vpop.trf.xlu0
        %v1329 = vpop.trf.xlu0
        %v1330 = vpop.trf.xlu0
        %v1331 = vpop.trf.xlu0
        %v1332 = vpop.trf.xlu0
        %v1333 = vpop.trf.xlu0
        %v1334 = vpop.trf.xlu0
        %v1335 = vpop.trf.xlu0
        %v1336 = vpop.trf.xlu0
        %v1337 = vpop.trf.xlu0
        %v1338 = vpop.trf.xlu0
        %v1339 = vpop.trf.xlu0
        %v1340 = vpop.trf.xlu0
        %vm1341 = vcmask 523264
        %v1343 = vsel %vm1341, %v1325, 0
        %v1346 = vsel %vm1341, %v1326, 0
        %v1349 = vsel %vm1341, %v1327, 0
        %v1352 = vsel %vm1341, %v1328, 0
        %v1355 = vsel %vm1341, %v1329, 0
        %v1358 = vsel %vm1341, %v1330, 0
        %v1361 = vsel %vm1341, %v1331, 0
        %v1364 = vsel %vm1341, %v1332, 0
        %v1367 = vsel %vm1341, %v1333, 0
        %v1370 = vsel %vm1341, %v1334, 0
        %v1373 = vsel %vm1341, %v1335, 0
        %v1376 = vsel %vm1341, %v1336, 0
        %v1379 = vsel %vm1341, %v1337, 0
        %v1382 = vsel %vm1341, %v1338, 0
        %v1385 = vsel %vm1341, %v1339, 0
        %v1388 = vsel %vm1341, %v1340, 0
        %1390 = vmatprep.subr.mxu0 0.0
        %1391 = vmatpush1.msra.mxu0 0.0
        %1392 = vmatprep.subr.mxu0 0.0
        %1393 = vmatpush1.msra.mxu0 0.0
        %1394 = vmatprep.subr.mxu0 0.0
        %1395 = vmatpush1.msra.mxu0 0.0
        %1396 = vmatprep.subr.mxu0 0.0
        %1397 = vmatpush1.msra.mxu0 0.0
        %1398 = vmatprep.subr.mxu0 0.0
        %1399 = vmatpush1.msra.mxu0 0.0
        %1400 = vmatprep.subr.mxu0 0.0
        %1401 = vmatpush1.msra.mxu0 0.0
        %1402 = vmatprep.subr.mxu0 0.0
        %1403 = vmatpush1.msra.mxu0 0.0
        %1404 = vmatprep.subr.mxu0 0.0
        %1405 = vmatpush1.msra.mxu0 0.0
        %1406 = vmatprep.subr.mxu0 0.0
        %1407 = vmatpush1.msra.mxu0 %v1242
        %1408 = vmatprep.subr.mxu0 0.0
        %1409 = vmatpush1.msra.mxu0 %v1239
        %1410 = vmatprep.subr.mxu0 0.0
        %1411 = vmatpush1.msra.mxu0 %v1234
        %1412 = vmatprep.subr.mxu0 0.0
        %1413 = vmatpush1.msra.mxu0 %v1231
        %1414 = vmatprep.subr.mxu0 0.0
        %1415 = vmatpush1.msra.mxu0 %v1226
        %1416 = vmatprep.subr.mxu0 0.0
        %1417 = vmatpush1.msra.mxu0 %v1223
        %1418 = vmatprep.subr.mxu0 0.0
        %1419 = vmatpush1.msra.mxu0 %v1218
        %1420 = vmatprep.subr.mxu0 0.0
        %1421 = vmatpush1.msra.mxu0 %v1215
        %1422 = vmatprep.subr.mxu0 0.0
        %1423 = vmatpush2.msra.mxu0 0.0
        %1424 = vmatprep.subr.mxu0 0.0
        %1425 = vmatpush2.msra.mxu0 0.0
        %1426 = vmatprep.subr.mxu0 0.0
        %1427 = vmatpush2.msra.mxu0 0.0
        %1428 = vmatprep.subr.mxu0 0.0
        %1429 = vmatpush2.msra.mxu0 0.0
        %1430 = vmatprep.subr.mxu0 0.0
        %1431 = vmatpush2.msra.mxu0 0.0
        %1432 = vmatprep.subr.mxu0 0.0
        %1433 = vmatpush2.msra.mxu0 0.0
        %1434 = vmatprep.subr.mxu0 0.0
        %1435 = vmatpush2.msra.mxu0 0.0
        %1436 = vmatprep.subr.mxu0 0.0
        %1437 = vmatpush2.msra.mxu0 0.0
        %1438 = vmatprep.subr.mxu0 0.0
        %1439 = vmatpush2.msra.mxu0 0.0
        %1440 = vmatprep.subr.mxu0 0.0
        %1441 = vmatpush2.msra.mxu0 0.0
        %1442 = vmatprep.subr.mxu0 0.0
        %1443 = vmatpush2.msra.mxu0 0.0
        %1444 = vmatprep.subr.mxu0 0.0
        %1445 = vmatpush2.msra.mxu0 0.0
        %1446 = vmatprep.subr.mxu0 0.0
        %1447 = vmatpush2.msra.mxu0 0.0
        %1448 = vmatprep.subr.mxu0 0.0
        %1449 = vmatpush2.msra.mxu0 0.0
        %1450 = vmatprep.subr.mxu0 0.0
        %1451 = vmatpush2.msra.mxu0 0.0
        %1452 = vmatprep.subr.mxu0 0.0
        %1453 = vmatpush2.msra.mxu0 0.0
        %1454 = vmatprep.mubr.f32.mxu0 0.0
        %1455 = vmatmul.mubr.f32.gmra.mxu0 %v1343
        %v1456 = vpop.f32.mrf.mxu0
        %v1457 = vadd.f32 0.0, %v1456
        %v1458 = vpop.f32.mrf.mxu0
        %1459 = vmatprep.mubr.f32.mxu0 0.0
        %1460 = vmatmul.mubr.f32.gmra.mxu0 %v1346
        %v1461 = vpop.f32.mrf.mxu0
        %v1462 = vadd.f32 0.0, %v1461
        %v1463 = vpop.f32.mrf.mxu0
        %1464 = vmatprep.mubr.f32.mxu0 0.0
        %1465 = vmatmul.mubr.f32.gmra.mxu0 %v1349
        %v1466 = vpop.f32.mrf.mxu0
        %v1467 = vadd.f32 0.0, %v1466
        %v1468 = vpop.f32.mrf.mxu0
        %1469 = vmatprep.mubr.f32.mxu0 0.0
        %1470 = vmatmul.mubr.f32.gmra.mxu0 %v1352
        %v1471 = vpop.f32.mrf.mxu0
        %v1472 = vadd.f32 0.0, %v1471
        %v1473 = vpop.f32.mrf.mxu0
        %1474 = vmatprep.mubr.f32.mxu0 0.0
        %1475 = vmatmul.mubr.f32.gmra.mxu0 %v1355
        %v1476 = vpop.f32.mrf.mxu0
        %v1477 = vadd.f32 0.0, %v1476
        %v1478 = vpop.f32.mrf.mxu0
        %1479 = vmatprep.mubr.f32.mxu0 0.0
        %1480 = vmatmul.mubr.f32.gmra.mxu0 %v1358
        %v1481 = vpop.f32.mrf.mxu0
        %v1482 = vadd.f32 0.0, %v1481
        %v1483 = vpop.f32.mrf.mxu0
        %1484 = vmatprep.mubr.f32.mxu0 0.0
        %1485 = vmatmul.mubr.f32.gmra.mxu0 %v1361
        %v1486 = vpop.f32.mrf.mxu0
        %v1487 = vadd.f32 0.0, %v1486
        %v1488 = vpop.f32.mrf.mxu0
        %1489 = vmatprep.mubr.f32.mxu0 0.0
        %1490 = vmatmul.mubr.f32.gmra.mxu0 %v1364
        %v1491 = vpop.f32.mrf.mxu0
        %v1492 = vadd.f32 0.0, %v1491
        %v1493 = vpop.f32.mrf.mxu0
        %1494 = vmatprep.mubr.f32.mxu0 0.0
        %1495 = vmatmul.mubr.f32.gmra.mxu0 %v1367
        %v1496 = vpop.f32.mrf.mxu0
        %v1497 = vadd.f32 0.0, %v1496
        %v1498 = vpop.f32.mrf.mxu0
        %1499 = vmatprep.mubr.f32.mxu0 0.0
        %1500 = vmatmul.mubr.f32.gmra.mxu0 %v1370
        %v1501 = vpop.f32.mrf.mxu0
        %v1502 = vadd.f32 0.0, %v1501
        %v1503 = vpop.f32.mrf.mxu0
        %1504 = vmatprep.mubr.f32.mxu0 0.0
        %1505 = vmatmul.mubr.f32.gmra.mxu0 %v1373
        %v1506 = vpop.f32.mrf.mxu0
        %v1507 = vadd.f32 0.0, %v1506
        %v1508 = vpop.f32.mrf.mxu0
        %1509 = vmatprep.mubr.f32.mxu0 0.0
        %1510 = vmatmul.mubr.f32.gmra.mxu0 %v1376
        %v1511 = vpop.f32.mrf.mxu0
        %v1512 = vadd.f32 0.0, %v1511
        %v1513 = vpop.f32.mrf.mxu0
        %1514 = vmatprep.mubr.f32.mxu0 0.0
        %1515 = vmatmul.mubr.f32.gmra.mxu0 %v1379
        %v1516 = vpop.f32.mrf.mxu0
        %v1517 = vadd.f32 0.0, %v1516
        %v1518 = vpop.f32.mrf.mxu0
        %1519 = vmatprep.mubr.f32.mxu0 0.0
        %1520 = vmatmul.mubr.f32.gmra.mxu0 %v1382
        %v1521 = vpop.f32.mrf.mxu0
        %v1522 = vadd.f32 0.0, %v1521
        %v1523 = vpop.f32.mrf.mxu0
        %1524 = vmatprep.mubr.f32.mxu0 0.0
        %1525 = vmatmul.mubr.f32.gmra.mxu0 %v1385
        %v1526 = vpop.f32.mrf.mxu0
        %v1527 = vadd.f32 0.0, %v1526
        %v1528 = vpop.f32.mrf.mxu0
        %1529 = vmatprep.mubr.f32.mxu0 0.0
        %1530 = vmatmul.mubr.f32.gmra.mxu0 %v1388
        %v1531 = vpop.f32.mrf.mxu0
        %v1532 = vadd.f32 0.0, %v1531
        %v1533 = vpop.f32.mrf.mxu0
        %1534 = vdwg.mxu0
        %1535 = vxpose.xlu0.b32.start [1/16] %v1151, 128
        %1536 = vxpose.xlu0.b32.cont [2/16] %v1154, 128
        %1537 = vxpose.xlu0.b32.cont [3/16] %v1159, 128
        %1538 = vxpose.xlu0.b32.cont [4/16] %v1162, 128
        %1539 = vxpose.xlu0.b32.cont [5/16] %v1167, 128
        %1540 = vxpose.xlu0.b32.cont [6/16] %v1170, 128
        %1541 = vxpose.xlu0.b32.cont [7/16] %v1175, 128
        %1542 = vxpose.xlu0.b32.cont [8/16] %v1178, 128
        %1543 = vxpose.xlu0.b32.cont [9/16] 0.0, 128
        %1544 = vxpose.xlu0.b32.cont [10/16] 0.0, 128
        %1545 = vxpose.xlu0.b32.cont [11/16] 0.0, 128
        %1546 = vxpose.xlu0.b32.cont [12/16] 0.0, 128
        %1547 = vxpose.xlu0.b32.cont [13/16] 0.0, 128
        %1548 = vxpose.xlu0.b32.cont [14/16] 0.0, 128
        %1549 = vxpose.xlu0.b32.cont [15/16] 0.0, 128
        %1550 = vxpose.xlu0.b32.end [16/16] 0.0, 128
        %v1551 = vpop.trf.xlu0
        %v1552 = vpop.trf.xlu0
        %v1553 = vpop.trf.xlu0
        %v1554 = vpop.trf.xlu0
        %v1555 = vpop.trf.xlu0
        %v1556 = vpop.trf.xlu0
        %v1557 = vpop.trf.xlu0
        %v1558 = vpop.trf.xlu0
        %v1559 = vpop.trf.xlu0
        %v1560 = vpop.trf.xlu0
        %v1561 = vpop.trf.xlu0
        %v1562 = vpop.trf.xlu0
        %v1563 = vpop.trf.xlu0
        %v1564 = vpop.trf.xlu0
        %v1565 = vpop.trf.xlu0
        %v1566 = vpop.trf.xlu0
        %v1568 = vsel %vm1341, %v1551, 0
        %v1571 = vsel %vm1341, %v1552, 0
        %v1574 = vsel %vm1341, %v1553, 0
        %v1577 = vsel %vm1341, %v1554, 0
        %v1580 = vsel %vm1341, %v1555, 0
        %v1583 = vsel %vm1341, %v1556, 0
        %v1586 = vsel %vm1341, %v1557, 0
        %v1589 = vsel %vm1341, %v1558, 0
        %v1592 = vsel %vm1341, %v1559, 0
        %v1595 = vsel %vm1341, %v1560, 0
        %v1598 = vsel %vm1341, %v1561, 0
        %v1601 = vsel %vm1341, %v1562, 0
        %v1604 = vsel %vm1341, %v1563, 0
        %v1607 = vsel %vm1341, %v1564, 0
        %v1610 = vsel %vm1341, %v1565, 0
        %v1613 = vsel %vm1341, %v1566, 0
        %1615 = vmatprep.subr.mxu0 0.0
        %1616 = vmatpush1.msra.mxu0 0.0
        %1617 = vmatprep.subr.mxu0 0.0
        %1618 = vmatpush1.msra.mxu0 0.0
        %1619 = vmatprep.subr.mxu0 0.0
        %1620 = vmatpush1.msra.mxu0 0.0
        %1621 = vmatprep.subr.mxu0 0.0
        %1622 = vmatpush1.msra.mxu0 0.0
        %1623 = vmatprep.subr.mxu0 0.0
        %1624 = vmatpush1.msra.mxu0 0.0
        %1625 = vmatprep.subr.mxu0 0.0
        %1626 = vmatpush1.msra.mxu0 0.0
        %1627 = vmatprep.subr.mxu0 0.0
        %1628 = vmatpush1.msra.mxu0 0.0
        %1629 = vmatprep.subr.mxu0 0.0
        %1630 = vmatpush1.msra.mxu0 0.0
        %1631 = vmatprep.subr.mxu0 0.0
        %1632 = vmatpush1.msra.mxu0 %v1274
        %1633 = vmatprep.subr.mxu0 0.0
        %1634 = vmatpush1.msra.mxu0 %v1271
        %1635 = vmatprep.subr.mxu0 0.0
        %1636 = vmatpush1.msra.mxu0 %v1266
        %1637 = vmatprep.subr.mxu0 0.0
        %1638 = vmatpush1.msra.mxu0 %v1263
        %1639 = vmatprep.subr.mxu0 0.0
        %1640 = vmatpush1.msra.mxu0 %v1258
        %1641 = vmatprep.subr.mxu0 0.0
        %1642 = vmatpush1.msra.mxu0 %v1255
        %1643 = vmatprep.subr.mxu0 0.0
        %1644 = vmatpush1.msra.mxu0 %v1250
        %1645 = vmatprep.subr.mxu0 0.0
        %1646 = vmatpush1.msra.mxu0 %v1247
        %1647 = vmatprep.subr.mxu0 0.0
        %1648 = vmatpush2.msra.mxu0 0.0
        %1649 = vmatprep.subr.mxu0 0.0
        %1650 = vmatpush2.msra.mxu0 0.0
        %1651 = vmatprep.subr.mxu0 0.0
        %1652 = vmatpush2.msra.mxu0 0.0
        %1653 = vmatprep.subr.mxu0 0.0
        %1654 = vmatpush2.msra.mxu0 0.0
        %1655 = vmatprep.subr.mxu0 0.0
        %1656 = vmatpush2.msra.mxu0 0.0
        %1657 = vmatprep.subr.mxu0 0.0
        %1658 = vmatpush2.msra.mxu0 0.0
        %1659 = vmatprep.subr.mxu0 0.0
        %1660 = vmatpush2.msra.mxu0 0.0
        %1661 = vmatprep.subr.mxu0 0.0
        %1662 = vmatpush2.msra.mxu0 0.0
        %1663 = vmatprep.subr.mxu0 0.0
        %1664 = vmatpush2.msra.mxu0 0.0
        %1665 = vmatprep.subr.mxu0 0.0
        %1666 = vmatpush2.msra.mxu0 0.0
        %1667 = vmatprep.subr.mxu0 0.0
        %1668 = vmatpush2.msra.mxu0 0.0
        %1669 = vmatprep.subr.mxu0 0.0
        %1670 = vmatpush2.msra.mxu0 0.0
        %1671 = vmatprep.subr.mxu0 0.0
        %1672 = vmatpush2.msra.mxu0 0.0
        %1673 = vmatprep.subr.mxu0 0.0
        %1674 = vmatpush2.msra.mxu0 0.0
        %1675 = vmatprep.subr.mxu0 0.0
        %1676 = vmatpush2.msra.mxu0 0.0
        %1677 = vmatprep.subr.mxu0 0.0
        %1678 = vmatpush2.msra.mxu0 0.0
        %1679 = vmatprep.mubr.f32.mxu0 0.0
        %1680 = vmatmul.mubr.f32.gmra.mxu0 %v1568
        %v1681 = vpop.f32.mrf.mxu0
        %v1682 = vadd.f32 0.0, %v1681
        %v1683 = vpop.f32.mrf.mxu0
        %1684 = vmatprep.mubr.f32.mxu0 0.0
        %1685 = vmatmul.mubr.f32.gmra.mxu0 %v1571
        %v1686 = vpop.f32.mrf.mxu0
        %v1687 = vadd.f32 0.0, %v1686
        %v1688 = vpop.f32.mrf.mxu0
        %1689 = vmatprep.mubr.f32.mxu0 0.0
        %1690 = vmatmul.mubr.f32.gmra.mxu0 %v1574
        %v1691 = vpop.f32.mrf.mxu0
        %v1692 = vadd.f32 0.0, %v1691
        %v1693 = vpop.f32.mrf.mxu0
        %1694 = vmatprep.mubr.f32.mxu0 0.0
        %1695 = vmatmul.mubr.f32.gmra.mxu0 %v1577
        %v1696 = vpop.f32.mrf.mxu0
        %v1697 = vadd.f32 0.0, %v1696
        %v1698 = vpop.f32.mrf.mxu0
        %1699 = vmatprep.mubr.f32.mxu0 0.0
        %1700 = vmatmul.mubr.f32.gmra.mxu0 %v1580
        %v1701 = vpop.f32.mrf.mxu0
        %v1702 = vadd.f32 0.0, %v1701
        %v1703 = vpop.f32.mrf.mxu0
        %1704 = vmatprep.mubr.f32.mxu0 0.0
        %1705 = vmatmul.mubr.f32.gmra.mxu0 %v1583
        %v1706 = vpop.f32.mrf.mxu0
        %v1707 = vadd.f32 0.0, %v1706
        %v1708 = vpop.f32.mrf.mxu0
        %1709 = vmatprep.mubr.f32.mxu0 0.0
        %1710 = vmatmul.mubr.f32.gmra.mxu0 %v1586
        %v1711 = vpop.f32.mrf.mxu0
        %v1712 = vadd.f32 0.0, %v1711
        %v1713 = vpop.f32.mrf.mxu0
        %1714 = vmatprep.mubr.f32.mxu0 0.0
        %1715 = vmatmul.mubr.f32.gmra.mxu0 %v1589
        %v1716 = vpop.f32.mrf.mxu0
        %v1717 = vadd.f32 0.0, %v1716
        %v1718 = vpop.f32.mrf.mxu0
        %1719 = vmatprep.mubr.f32.mxu0 0.0
        %1720 = vmatmul.mubr.f32.gmra.mxu0 %v1592
        %v1721 = vpop.f32.mrf.mxu0
        %v1722 = vadd.f32 0.0, %v1721
        %v1723 = vpop.f32.mrf.mxu0
        %1724 = vmatprep.mubr.f32.mxu0 0.0
        %1725 = vmatmul.mubr.f32.gmra.mxu0 %v1595
        %v1726 = vpop.f32.mrf.mxu0
        %v1727 = vadd.f32 0.0, %v1726
        %v1728 = vpop.f32.mrf.mxu0
        %1729 = vmatprep.mubr.f32.mxu0 0.0
        %1730 = vmatmul.mubr.f32.gmra.mxu0 %v1598
        %v1731 = vpop.f32.mrf.mxu0
        %v1732 = vadd.f32 0.0, %v1731
        %v1733 = vpop.f32.mrf.mxu0
        %1734 = vmatprep.mubr.f32.mxu0 0.0
        %1735 = vmatmul.mubr.f32.gmra.mxu0 %v1601
        %v1736 = vpop.f32.mrf.mxu0
        %v1737 = vadd.f32 0.0, %v1736
        %v1738 = vpop.f32.mrf.mxu0
        %1739 = vmatprep.mubr.f32.mxu0 0.0
        %1740 = vmatmul.mubr.f32.gmra.mxu0 %v1604
        %v1741 = vpop.f32.mrf.mxu0
        %v1742 = vadd.f32 0.0, %v1741
        %v1743 = vpop.f32.mrf.mxu0
        %1744 = vmatprep.mubr.f32.mxu0 0.0
        %1745 = vmatmul.mubr.f32.gmra.mxu0 %v1607
        %v1746 = vpop.f32.mrf.mxu0
        %v1747 = vadd.f32 0.0, %v1746
        %v1748 = vpop.f32.mrf.mxu0
        %1749 = vmatprep.mubr.f32.mxu0 0.0
        %1750 = vmatmul.mubr.f32.gmra.mxu0 %v1610
        %v1751 = vpop.f32.mrf.mxu0
        %v1752 = vadd.f32 0.0, %v1751
        %v1753 = vpop.f32.mrf.mxu0
        %1754 = vmatprep.mubr.f32.mxu0 0.0
        %1755 = vmatmul.mubr.f32.gmra.mxu0 %v1613
        %v1756 = vpop.f32.mrf.mxu0
        %v1757 = vadd.f32 0.0, %v1756
        %v1758 = vpop.f32.mrf.mxu0
        %1759 = vdwg.mxu0
        %1760 = vxpose.xlu0.b32.start [1/16] %v1183, 128
        %1761 = vxpose.xlu0.b32.cont [2/16] %v1186, 128
        %1762 = vxpose.xlu0.b32.cont [3/16] %v1191, 128
        %1763 = vxpose.xlu0.b32.cont [4/16] %v1194, 128
        %1764 = vxpose.xlu0.b32.cont [5/16] %v1199, 128
        %1765 = vxpose.xlu0.b32.cont [6/16] %v1202, 128
        %1766 = vxpose.xlu0.b32.cont [7/16] %v1207, 128
        %1767 = vxpose.xlu0.b32.cont [8/16] %v1210, 128
        %1768 = vxpose.xlu0.b32.cont [9/16] 0.0, 128
        %1769 = vxpose.xlu0.b32.cont [10/16] 0.0, 128
        %1770 = vxpose.xlu0.b32.cont [11/16] 0.0, 128
        %1771 = vxpose.xlu0.b32.cont [12/16] 0.0, 128
        %1772 = vxpose.xlu0.b32.cont [13/16] 0.0, 128
        %1773 = vxpose.xlu0.b32.cont [14/16] 0.0, 128
        %1774 = vxpose.xlu0.b32.cont [15/16] 0.0, 128
        %1775 = vxpose.xlu0.b32.end [16/16] 0.0, 128
        %v1776 = vpop.trf.xlu0
        %v1777 = vpop.trf.xlu0
        %v1778 = vpop.trf.xlu0
        %v1779 = vpop.trf.xlu0
        %v1780 = vpop.trf.xlu0
        %v1781 = vpop.trf.xlu0
        %v1782 = vpop.trf.xlu0
        %v1783 = vpop.trf.xlu0
        %v1784 = vpop.trf.xlu0
        %v1785 = vpop.trf.xlu0
        %v1786 = vpop.trf.xlu0
        %v1787 = vpop.trf.xlu0
        %v1788 = vpop.trf.xlu0
        %v1789 = vpop.trf.xlu0
        %v1790 = vpop.trf.xlu0
        %v1791 = vpop.trf.xlu0
        %v1793 = vsel %vm1341, %v1776, 0
        %v1796 = vsel %vm1341, %v1777, 0
        %v1799 = vsel %vm1341, %v1778, 0
        %v1802 = vsel %vm1341, %v1779, 0
        %v1805 = vsel %vm1341, %v1780, 0
        %v1808 = vsel %vm1341, %v1781, 0
        %v1811 = vsel %vm1341, %v1782, 0
        %v1814 = vsel %vm1341, %v1783, 0
        %v1817 = vsel %vm1341, %v1784, 0
        %v1820 = vsel %vm1341, %v1785, 0
        %v1823 = vsel %vm1341, %v1786, 0
        %v1826 = vsel %vm1341, %v1787, 0
        %v1829 = vsel %vm1341, %v1788, 0
        %v1832 = vsel %vm1341, %v1789, 0
        %v1835 = vsel %vm1341, %v1790, 0
        %v1838 = vsel %vm1341, %v1791, 0
        %1840 = vmatprep.subr.mxu0 0.0
        %1841 = vmatpush1.msra.mxu0 0.0
        %1842 = vmatprep.subr.mxu0 0.0
        %1843 = vmatpush1.msra.mxu0 0.0
        %1844 = vmatprep.subr.mxu0 0.0
        %1845 = vmatpush1.msra.mxu0 0.0
        %1846 = vmatprep.subr.mxu0 0.0
        %1847 = vmatpush1.msra.mxu0 0.0
        %1848 = vmatprep.subr.mxu0 0.0
        %1849 = vmatpush1.msra.mxu0 0.0
        %1850 = vmatprep.subr.mxu0 0.0
        %1851 = vmatpush1.msra.mxu0 0.0
        %1852 = vmatprep.subr.mxu0 0.0
        %1853 = vmatpush1.msra.mxu0 0.0
        %1854 = vmatprep.subr.mxu0 0.0
        %1855 = vmatpush1.msra.mxu0 0.0
        %1856 = vmatprep.subr.mxu0 0.0
        %1857 = vmatpush1.msra.mxu0 %v1306
        %1858 = vmatprep.subr.mxu0 0.0
        %1859 = vmatpush1.msra.mxu0 %v1303
        %1860 = vmatprep.subr.mxu0 0.0
        %1861 = vmatpush1.msra.mxu0 %v1298
        %1862 = vmatprep.subr.mxu0 0.0
        %1863 = vmatpush1.msra.mxu0 %v1295
        %1864 = vmatprep.subr.mxu0 0.0
        %1865 = vmatpush1.msra.mxu0 %v1290
        %1866 = vmatprep.subr.mxu0 0.0
        %1867 = vmatpush1.msra.mxu0 %v1287
        %1868 = vmatprep.subr.mxu0 0.0
        %1869 = vmatpush1.msra.mxu0 %v1282
        %1870 = vmatprep.subr.mxu0 0.0
        %1871 = vmatpush1.msra.mxu0 %v1279
        %1872 = vmatprep.subr.mxu0 0.0
        %1873 = vmatpush2.msra.mxu0 0.0
        %1874 = vmatprep.subr.mxu0 0.0
        %1875 = vmatpush2.msra.mxu0 0.0
        %1876 = vmatprep.subr.mxu0 0.0
        %1877 = vmatpush2.msra.mxu0 0.0
        %1878 = vmatprep.subr.mxu0 0.0
        %1879 = vmatpush2.msra.mxu0 0.0
        %1880 = vmatprep.subr.mxu0 0.0
        %1881 = vmatpush2.msra.mxu0 0.0
        %1882 = vmatprep.subr.mxu0 0.0
        %1883 = vmatpush2.msra.mxu0 0.0
        %1884 = vmatprep.subr.mxu0 0.0
        %1885 = vmatpush2.msra.mxu0 0.0
        %1886 = vmatprep.subr.mxu0 0.0
        %1887 = vmatpush2.msra.mxu0 0.0
        %1888 = vmatprep.subr.mxu0 0.0
        %1889 = vmatpush2.msra.mxu0 0.0
        %1890 = vmatprep.subr.mxu0 0.0
        %1891 = vmatpush2.msra.mxu0 0.0
        %1892 = vmatprep.subr.mxu0 0.0
        %1893 = vmatpush2.msra.mxu0 0.0
        %1894 = vmatprep.subr.mxu0 0.0
        %1895 = vmatpush2.msra.mxu0 0.0
        %1896 = vmatprep.subr.mxu0 0.0
        %1897 = vmatpush2.msra.mxu0 0.0
        %1898 = vmatprep.subr.mxu0 0.0
        %1899 = vmatpush2.msra.mxu0 0.0
        %1900 = vmatprep.subr.mxu0 0.0
        %1901 = vmatpush2.msra.mxu0 0.0
        %1902 = vmatprep.subr.mxu0 0.0
        %1903 = vmatpush2.msra.mxu0 0.0
        %1904 = vmatprep.mubr.f32.mxu0 0.0
        %1905 = vmatmul.mubr.f32.gmra.mxu0 %v1793
        %v1906 = vpop.f32.mrf.mxu0
        %v1907 = vadd.f32 0.0, %v1906
        %v1908 = vpop.f32.mrf.mxu0
        %1909 = vmatprep.mubr.f32.mxu0 0.0
        %1910 = vmatmul.mubr.f32.gmra.mxu0 %v1796
        %v1911 = vpop.f32.mrf.mxu0
        %v1912 = vadd.f32 0.0, %v1911
        %v1913 = vpop.f32.mrf.mxu0
        %1914 = vmatprep.mubr.f32.mxu0 0.0
        %1915 = vmatmul.mubr.f32.gmra.mxu0 %v1799
        %v1916 = vpop.f32.mrf.mxu0
        %v1917 = vadd.f32 0.0, %v1916
        %v1918 = vpop.f32.mrf.mxu0
        %1919 = vmatprep.mubr.f32.mxu0 0.0
        %1920 = vmatmul.mubr.f32.gmra.mxu0 %v1802
        %v1921 = vpop.f32.mrf.mxu0
        %v1922 = vadd.f32 0.0, %v1921
        %v1923 = vpop.f32.mrf.mxu0
        %1924 = vmatprep.mubr.f32.mxu0 0.0
        %1925 = vmatmul.mubr.f32.gmra.mxu0 %v1805
        %v1926 = vpop.f32.mrf.mxu0
        %v1927 = vadd.f32 0.0, %v1926
        %v1928 = vpop.f32.mrf.mxu0
        %1929 = vmatprep.mubr.f32.mxu0 0.0
        %1930 = vmatmul.mubr.f32.gmra.mxu0 %v1808
        %v1931 = vpop.f32.mrf.mxu0
        %v1932 = vadd.f32 0.0, %v1931
        %v1933 = vpop.f32.mrf.mxu0
        %1934 = vmatprep.mubr.f32.mxu0 0.0
        %1935 = vmatmul.mubr.f32.gmra.mxu0 %v1811
        %v1936 = vpop.f32.mrf.mxu0
        %v1937 = vadd.f32 0.0, %v1936
        %v1938 = vpop.f32.mrf.mxu0
        %1939 = vmatprep.mubr.f32.mxu0 0.0
        %1940 = vmatmul.mubr.f32.gmra.mxu0 %v1814
        %v1941 = vpop.f32.mrf.mxu0
        %v1942 = vadd.f32 0.0, %v1941
        %v1943 = vpop.f32.mrf.mxu0
        %1944 = vmatprep.mubr.f32.mxu0 0.0
        %1945 = vmatmul.mubr.f32.gmra.mxu0 %v1817
        %v1946 = vpop.f32.mrf.mxu0
        %v1947 = vadd.f32 0.0, %v1946
        %v1948 = vpop.f32.mrf.mxu0
        %1949 = vmatprep.mubr.f32.mxu0 0.0
        %1950 = vmatmul.mubr.f32.gmra.mxu0 %v1820
        %v1951 = vpop.f32.mrf.mxu0
        %v1952 = vadd.f32 0.0, %v1951
        %v1953 = vpop.f32.mrf.mxu0
        %1954 = vmatprep.mubr.f32.mxu0 0.0
        %1955 = vmatmul.mubr.f32.gmra.mxu0 %v1823
        %v1956 = vpop.f32.mrf.mxu0
        %v1957 = vadd.f32 0.0, %v1956
        %v1958 = vpop.f32.mrf.mxu0
        %1959 = vmatprep.mubr.f32.mxu0 0.0
        %1960 = vmatmul.mubr.f32.gmra.mxu0 %v1826
        %v1961 = vpop.f32.mrf.mxu0
        %v1962 = vadd.f32 0.0, %v1961
        %v1963 = vpop.f32.mrf.mxu0
        %1964 = vmatprep.mubr.f32.mxu0 0.0
        %1965 = vmatmul.mubr.f32.gmra.mxu0 %v1829
        %v1966 = vpop.f32.mrf.mxu0
        %v1967 = vadd.f32 0.0, %v1966
        %v1968 = vpop.f32.mrf.mxu0
        %1969 = vmatprep.mubr.f32.mxu0 0.0
        %1970 = vmatmul.mubr.f32.gmra.mxu0 %v1832
        %v1971 = vpop.f32.mrf.mxu0
        %v1972 = vadd.f32 0.0, %v1971
        %v1973 = vpop.f32.mrf.mxu0
        %1974 = vmatprep.mubr.f32.mxu0 0.0
        %1975 = vmatmul.mubr.f32.gmra.mxu0 %v1835
        %v1976 = vpop.f32.mrf.mxu0
        %v1977 = vadd.f32 0.0, %v1976
        %v1978 = vpop.f32.mrf.mxu0
        %1979 = vmatprep.mubr.f32.mxu0 0.0
        %1980 = vmatmul.mubr.f32.gmra.mxu0 %v1838
        %v1981 = vpop.f32.mrf.mxu0
        %v1982 = vadd.f32 0.0, %v1981
        %v1983 = vpop.f32.mrf.mxu0
        %1984 = vdwg.mxu0
        %v1985 = vld [vmem:[%s4] sm:$0xff]
        %v1986 = vld [vmem:[%s4 + $0x8] sm:$0xff]
        %v1987 = vld [vmem:[%s4 + $0x10] sm:$0xff]
        %v1988 = vld [vmem:[%s4 + $0x18] sm:$0xff]
        %v1989 = vld [vmem:[%s4 + $0x20] sm:$0xff]
        %v1990 = vld [vmem:[%s4 + $0x28] sm:$0xff]
        %v1991 = vld [vmem:[%s4 + $0x30] sm:$0xff]
        %v1992 = vld [vmem:[%s4 + $0x38] sm:$0xff]
        %v1993 = vld [vmem:[%s4 + $0x40] sm:$0xff]
        %v1994 = vld [vmem:[%s4 + $0x48] sm:$0xff]
        %v1995 = vld [vmem:[%s4 + $0x50] sm:$0xff]
        %v1996 = vld [vmem:[%s4 + $0x58] sm:$0xff]
        %v1997 = vld [vmem:[%s4 + $0x60] sm:$0xff]
        %v1998 = vld [vmem:[%s4 + $0x68] sm:$0xff]
        %v1999 = vld [vmem:[%s4 + $0x70] sm:$0xff]
        %v2000 = vld [vmem:[%s4 + $0x78] sm:$0xff]
        %v2001 = vld [vmem:[%s4 + $0x80] sm:$0xff]
        %v2002 = vld [vmem:[%s4 + $0x88] sm:$0xff]
        %v2003 = vld [vmem:[%s4 + $0x90] sm:$0xff]
        %v2004 = vld [vmem:[%s4 + $0x98] sm:$0xff]
        %v2005 = vld [vmem:[%s4 + $0xa0] sm:$0xff]
        %v2006 = vld [vmem:[%s4 + $0xa8] sm:$0xff]
        %v2007 = vld [vmem:[%s4 + $0xb0] sm:$0xff]
        %v2008 = vld [vmem:[%s4 + $0xb8] sm:$0xff]
        %v2009 = vld [vmem:[%s4 + $0xc0] sm:$0xff]
        %v2010 = vld [vmem:[%s4 + $0xc8] sm:$0xff]
        %v2011 = vld [vmem:[%s4 + $0xd0] sm:$0xff]
        %v2012 = vld [vmem:[%s4 + $0xd8] sm:$0xff]
        %v2013 = vld [vmem:[%s4 + $0xe0] sm:$0xff]
        %v2014 = vld [vmem:[%s4 + $0xe8] sm:$0xff]
        %v2015 = vld [vmem:[%s4 + $0xf0] sm:$0xff]
        %v2016 = vld [vmem:[%s4 + $0xf8] sm:$0xff]
        %v2017 = vld [vmem:[%s4 + $0x100] sm:$0xff]
        %v2018 = vld [vmem:[%s4 + $0x108] sm:$0xff]
        %v2019 = vld [vmem:[%s4 + $0x110] sm:$0xff]
        %v2020 = vld [vmem:[%s4 + $0x118] sm:$0xff]
        %v2021 = vld [vmem:[%s4 + $0x120] sm:$0xff]
        %v2022 = vld [vmem:[%s4 + $0x128] sm:$0xff]
        %v2023 = vld [vmem:[%s4 + $0x130] sm:$0xff]
        %v2024 = vld [vmem:[%s4 + $0x138] sm:$0xff]
        %v2025 = vld [vmem:[%s4 + $0x140] sm:$0xff]
        %v2026 = vld [vmem:[%s4 + $0x148] sm:$0xff]
        %v2027 = vld [vmem:[%s4 + $0x150] sm:$0xff]
        %v2028 = vld [vmem:[%s4 + $0x158] sm:$0xff]
        %v2029 = vld [vmem:[%s4 + $0x160] sm:$0xff]
        %v2030 = vld [vmem:[%s4 + $0x168] sm:$0xff]
        %v2031 = vld [vmem:[%s4 + $0x170] sm:$0xff]
        %v2032 = vld [vmem:[%s4 + $0x178] sm:$0xff]
        %v2033 = vmul.f32 %v1457, 0.015625
        %v2034 = vmul.f32 %v1682, 0.015625
        %v2035 = vmul.f32 %v1907, 0.015625
        %v2036 = vmul.f32 %v1462, 0.015625
        %v2037 = vmul.f32 %v1687, 0.015625
        %v2038 = vmul.f32 %v1912, 0.015625
        %v2039 = vmul.f32 %v1467, 0.015625
        %v2040 = vmul.f32 %v1692, 0.015625
        %v2041 = vmul.f32 %v1917, 0.015625
        %v2042 = vmul.f32 %v1472, 0.015625
        %v2043 = vmul.f32 %v1697, 0.015625
        %v2044 = vmul.f32 %v1922, 0.015625
        %v2045 = vmul.f32 %v1477, 0.015625
        %v2046 = vmul.f32 %v1702, 0.015625
        %v2047 = vmul.f32 %v1927, 0.015625
        %v2048 = vmul.f32 %v1482, 0.015625
        %v2049 = vmul.f32 %v1707, 0.015625
        %v2050 = vmul.f32 %v1932, 0.015625
        %v2051 = vmul.f32 %v1487, 0.015625
        %v2052 = vmul.f32 %v1712, 0.015625
        %v2053 = vmul.f32 %v1937, 0.015625
        %v2054 = vmul.f32 %v1492, 0.015625
        %v2055 = vmul.f32 %v1717, 0.015625
        %v2056 = vmul.f32 %v1942, 0.015625
        %v2057 = vmul.f32 %v1497, 0.015625
        %v2058 = vmul.f32 %v1722, 0.015625
        %v2059 = vmul.f32 %v1947, 0.015625
        %v2060 = vmul.f32 %v1502, 0.015625
        %v2061 = vmul.f32 %v1727, 0.015625
        %v2062 = vmul.f32 %v1952, 0.015625
        %v2063 = vmul.f32 %v1507, 0.015625
        %v2064 = vmul.f32 %v1732, 0.015625
        %v2065 = vmul.f32 %v1957, 0.015625
        %v2066 = vmul.f32 %v1512, 0.015625
        %v2067 = vmul.f32 %v1737, 0.015625
        %v2068 = vmul.f32 %v1962, 0.015625
        %v2069 = vmul.f32 %v1517, 0.015625
        %v2070 = vmul.f32 %v1742, 0.015625
        %v2071 = vmul.f32 %v1967, 0.015625
        %v2072 = vmul.f32 %v1522, 0.015625
        %v2073 = vmul.f32 %v1747, 0.015625
        %v2074 = vmul.f32 %v1972, 0.015625
        %v2075 = vmul.f32 %v1527, 0.015625
        %v2076 = vmul.f32 %v1752, 0.015625
        %v2077 = vmul.f32 %v1977, 0.015625
        %v2078 = vmul.f32 %v1532, 0.015625
        %v2079 = vmul.f32 %v1757, 0.015625
        %v2080 = vmul.f32 %v1982, 0.015625
        %v2081 = vtanh.pop %v2033
        %v2082 = vtanh.pop %v2034
        %v2083 = vtanh.pop %v2035
        %v2084 = vtanh.pop %v2036
        %v2085 = vtanh.pop %v2037
        %v2086 = vtanh.pop %v2038
        %v2087 = vtanh.pop %v2039
        %v2088 = vtanh.pop %v2040
        %v2089 = vtanh.pop %v2041
        %v2090 = vtanh.pop %v2042
        %v2091 = vtanh.pop %v2043
        %v2092 = vtanh.pop %v2044
        %v2093 = vtanh.pop %v2045
        %v2094 = vtanh.pop %v2046
        %v2095 = vtanh.pop %v2047
        %v2096 = vtanh.pop %v2048
        %v2097 = vtanh.pop %v2049
        %v2098 = vtanh.pop %v2050
        %v2099 = vtanh.pop %v2051
        %v2100 = vtanh.pop %v2052
        %v2101 = vtanh.pop %v2053
        %v2102 = vtanh.pop %v2054
        %v2103 = vtanh.pop %v2055
        %v2104 = vtanh.pop %v2056
        %v2105 = vtanh.pop %v2057
        %v2106 = vtanh.pop %v2058
        %v2107 = vtanh.pop %v2059
        %v2108 = vtanh.pop %v2060
        %v2109 = vtanh.pop %v2061
        %v2110 = vtanh.pop %v2062
        %v2111 = vtanh.pop %v2063
        %v2112 = vtanh.pop %v2064
        %v2113 = vtanh.pop %v2065
        %v2114 = vtanh.pop %v2066
        %v2115 = vtanh.pop %v2067
        %v2116 = vtanh.pop %v2068
        %v2117 = vtanh.pop %v2069
        %v2118 = vtanh.pop %v2070
        %v2119 = vtanh.pop %v2071
        %v2120 = vtanh.pop %v2072
        %v2121 = vtanh.pop %v2073
        %v2122 = vtanh.pop %v2074
        %v2123 = vtanh.pop %v2075
        %v2124 = vtanh.pop %v2076
        %v2125 = vtanh.pop %v2077
        %v2126 = vtanh.pop %v2078
        %v2127 = vtanh.pop %v2079
        %v2128 = vtanh.pop %v2080
        %v2129 = vstv %s553
        %v2130 = vmul.f32 %v2129, %v2081
        %v2131 = vmul.f32 %v2129, %v2082
        %v2132 = vmul.f32 %v2129, %v2083
        %v2133 = vmul.f32 %v2129, %v2084
        %v2134 = vmul.f32 %v2129, %v2085
        %v2135 = vmul.f32 %v2129, %v2086
        %v2136 = vmul.f32 %v2129, %v2087
        %v2137 = vmul.f32 %v2129, %v2088
        %v2138 = vmul.f32 %v2129, %v2089
        %v2139 = vmul.f32 %v2129, %v2090
        %v2140 = vmul.f32 %v2129, %v2091
        %v2141 = vmul.f32 %v2129, %v2092
        %v2142 = vmul.f32 %v2129, %v2093
        %v2143 = vmul.f32 %v2129, %v2094
        %v2144 = vmul.f32 %v2129, %v2095
        %v2145 = vmul.f32 %v2129, %v2096
        %v2146 = vmul.f32 %v2129, %v2097
        %v2147 = vmul.f32 %v2129, %v2098
        %v2148 = vmul.f32 %v2129, %v2099
        %v2149 = vmul.f32 %v2129, %v2100
        %v2150 = vmul.f32 %v2129, %v2101
        %v2151 = vmul.f32 %v2129, %v2102
        %v2152 = vmul.f32 %v2129, %v2103
        %v2153 = vmul.f32 %v2129, %v2104
        %v2154 = vmul.f32 %v2129, %v2105
        %v2155 = vmul.f32 %v2129, %v2106
        %v2156 = vmul.f32 %v2129, %v2107
        %v2157 = vmul.f32 %v2129, %v2108
        %v2158 = vmul.f32 %v2129, %v2109
        %v2159 = vmul.f32 %v2129, %v2110
        %v2160 = vmul.f32 %v2129, %v2111
        %v2161 = vmul.f32 %v2129, %v2112
        %v2162 = vmul.f32 %v2129, %v2113
        %v2163 = vmul.f32 %v2129, %v2114
        %v2164 = vmul.f32 %v2129, %v2115
        %v2165 = vmul.f32 %v2129, %v2116
        %v2166 = vmul.f32 %v2129, %v2117
        %v2167 = vmul.f32 %v2129, %v2118
        %v2168 = vmul.f32 %v2129, %v2119
        %v2169 = vmul.f32 %v2129, %v2120
        %v2170 = vmul.f32 %v2129, %v2121
        %v2171 = vmul.f32 %v2129, %v2122
        %v2172 = vmul.f32 %v2129, %v2123
        %v2173 = vmul.f32 %v2129, %v2124
        %v2174 = vmul.f32 %v2129, %v2125
        %v2175 = vmul.f32 %v2129, %v2126
        %v2176 = vmul.f32 %v2129, %v2127
        %v2177 = vmul.f32 %v2129, %v2128
        %v2178 = vadd.f32 %v1985, %v2130
        %v2179 = vadd.f32 %v1986, %v2131
        %v2180 = vadd.f32 %v1987, %v2132
        %v2181 = vadd.f32 %v1988, %v2133
        %v2182 = vadd.f32 %v1989, %v2134
        %v2183 = vadd.f32 %v1990, %v2135
        %v2184 = vadd.f32 %v1991, %v2136
        %v2185 = vadd.f32 %v1992, %v2137
        %v2186 = vadd.f32 %v1993, %v2138
        %v2187 = vadd.f32 %v1994, %v2139
        %v2188 = vadd.f32 %v1995, %v2140
        %v2189 = vadd.f32 %v1996, %v2141
        %v2190 = vadd.f32 %v1997, %v2142
        %v2191 = vadd.f32 %v1998, %v2143
        %v2192 = vadd.f32 %v1999, %v2144
        %v2193 = vadd.f32 %v2000, %v2145
        %v2194 = vadd.f32 %v2001, %v2146
        %v2195 = vadd.f32 %v2002, %v2147
        %v2196 = vadd.f32 %v2003, %v2148
        %v2197 = vadd.f32 %v2004, %v2149
        %v2198 = vadd.f32 %v2005, %v2150
        %v2199 = vadd.f32 %v2006, %v2151
        %v2200 = vadd.f32 %v2007, %v2152
        %v2201 = vadd.f32 %v2008, %v2153
        %v2202 = vadd.f32 %v2009, %v2154
        %v2203 = vadd.f32 %v2010, %v2155
        %v2204 = vadd.f32 %v2011, %v2156
        %v2205 = vadd.f32 %v2012, %v2157
        %v2206 = vadd.f32 %v2013, %v2158
        %v2207 = vadd.f32 %v2014, %v2159
        %v2208 = vadd.f32 %v2015, %v2160
        %v2209 = vadd.f32 %v2016, %v2161
        %v2210 = vadd.f32 %v2017, %v2162
        %v2211 = vadd.f32 %v2018, %v2163
        %v2212 = vadd.f32 %v2019, %v2164
        %v2213 = vadd.f32 %v2020, %v2165
        %v2214 = vadd.f32 %v2021, %v2166
        %v2215 = vadd.f32 %v2022, %v2167
        %v2216 = vadd.f32 %v2023, %v2168
        %v2217 = vadd.f32 %v2024, %v2169
        %v2218 = vadd.f32 %v2025, %v2170
        %v2219 = vadd.f32 %v2026, %v2171
        %v2220 = vadd.f32 %v2027, %v2172
        %v2221 = vadd.f32 %v2028, %v2173
        %v2222 = vadd.f32 %v2029, %v2174
        %v2223 = vadd.f32 %v2030, %v2175
        %v2224 = vadd.f32 %v2031, %v2176
        %v2225 = vadd.f32 %v2032, %v2177
        %v2226 = vpack.c.bf16 %v2181, %v2178
        %v2227 = vpack.c.bf16 %v2182, %v2179
        %v2228 = vpack.c.bf16 %v2183, %v2180
        %v2229 = vpack.c.bf16 %v2187, %v2184
        %v2230 = vpack.c.bf16 %v2188, %v2185
        %v2231 = vpack.c.bf16 %v2189, %v2186
        %v2232 = vpack.c.bf16 %v2193, %v2190
        %v2233 = vpack.c.bf16 %v2194, %v2191
        %v2234 = vpack.c.bf16 %v2195, %v2192
        %v2235 = vpack.c.bf16 %v2199, %v2196
        %v2236 = vpack.c.bf16 %v2200, %v2197
        %v2237 = vpack.c.bf16 %v2201, %v2198
        %v2238 = vpack.c.bf16 %v2205, %v2202
        %v2239 = vpack.c.bf16 %v2206, %v2203
        %v2240 = vpack.c.bf16 %v2207, %v2204
        %v2241 = vpack.c.bf16 %v2211, %v2208
        %v2242 = vpack.c.bf16 %v2212, %v2209
        %v2243 = vpack.c.bf16 %v2213, %v2210
        %v2244 = vpack.c.bf16 %v2217, %v2214
        %v2245 = vpack.c.bf16 %v2218, %v2215
        %v2246 = vpack.c.bf16 %v2219, %v2216
        %v2247 = vpack.c.bf16 %v2223, %v2220
        %v2248 = vpack.c.bf16 %v2224, %v2221
        %v2249 = vpack.c.bf16 %v2225, %v2222
        %2250 = vmatprep.subr.bf16.mxu0 %v2248
        %2251 = vmatpush1.bf16.msra.mxu0 %v2247
        %2252 = vmatprep.subr.bf16.mxu0 %v2245
        %2253 = vmatpush1.bf16.msra.mxu0 %v2244
        %2254 = vmatprep.subr.bf16.mxu0 %v2242
        %2255 = vmatpush1.bf16.msra.mxu0 %v2241
        %2256 = vmatprep.subr.bf16.mxu0 %v2239
        %2257 = vmatpush1.bf16.msra.mxu0 %v2238
        %2258 = vmatprep.subr.bf16.mxu0 %v2236
        %2259 = vmatpush1.bf16.msra.mxu0 %v2235
        %2260 = vmatprep.subr.bf16.mxu0 %v2233
        %2261 = vmatpush1.bf16.msra.mxu0 %v2232
        %2262 = vmatprep.subr.bf16.mxu0 %v2230
        %2263 = vmatpush1.bf16.msra.mxu0 %v2229
        %2264 = vmatprep.subr.bf16.mxu0 %v2227
        %2265 = vmatpush1.bf16.msra.mxu0 %v2226
        %2266 = vmatprep.subr.bf16.mxu0 0
        %2267 = vmatpush2.bf16.msra.mxu0 0
        %2268 = vmatprep.subr.bf16.mxu0 0
        %2269 = vmatpush2.bf16.msra.mxu0 0
        %2270 = vmatprep.subr.bf16.mxu0 0
        %2271 = vmatpush2.bf16.msra.mxu0 0
        %2272 = vmatprep.subr.bf16.mxu0 0
        %2273 = vmatpush2.bf16.msra.mxu0 0
        %2274 = vmatprep.subr.bf16.mxu0 0
        %2275 = vmatpush2.bf16.msra.mxu0 0
        %2276 = vmatprep.subr.bf16.mxu0 0
        %2277 = vmatpush2.bf16.msra.mxu0 0
        %2278 = vmatprep.subr.bf16.mxu0 0
        %2279 = vmatpush2.bf16.msra.mxu0 0
        %2280 = vmatprep.subr.bf16.mxu0 0
        %2281 = vmatpush2.bf16.msra.mxu0 0
        %2282 = vmatprep.mubr.bf16.mxu0 0
        %2283 = vmatmul.mubr.bf16.gmra.mxu0 %v1068
        %v2284 = vpop.f32.mrf.mxu0
        %v2285 = vadd.f32 0.0, %v2284
        %v2286 = vpop.f32.mrf.mxu0
        %v2287 = vadd.f32 0.0, %v2286
        %v2288 = vpop.f32.mrf.mxu0
        %v2289 = vadd.f32 0.0, %v2288
        %v2290 = vpop.f32.mrf.mxu0
        %v2291 = vadd.f32 0.0, %v2290
        %2292 = vmatprep.mubr.bf16.mxu0 0
        %2293 = vmatmul.mubr.bf16.gmra.mxu0 %v1069
        %v2294 = vpop.f32.mrf.mxu0
        %v2295 = vadd.f32 0.0, %v2294
        %v2296 = vpop.f32.mrf.mxu0
        %v2297 = vadd.f32 0.0, %v2296
        %v2298 = vpop.f32.mrf.mxu0
        %v2299 = vadd.f32 0.0, %v2298
        %v2300 = vpop.f32.mrf.mxu0
        %v2301 = vadd.f32 0.0, %v2300
        %2302 = vmatprep.mubr.bf16.mxu0 0
        %2303 = vmatmul.mubr.bf16.gmra.mxu0 %v1070
        %v2304 = vpop.f32.mrf.mxu0
        %v2305 = vadd.f32 0.0, %v2304
        %v2306 = vpop.f32.mrf.mxu0
        %v2307 = vadd.f32 0.0, %v2306
        %v2308 = vpop.f32.mrf.mxu0
        %v2309 = vadd.f32 0.0, %v2308
        %v2310 = vpop.f32.mrf.mxu0
        %v2311 = vadd.f32 0.0, %v2310
        %2312 = vmatprep.mubr.bf16.mxu0 0
        %2313 = vmatmul.mubr.bf16.gmra.mxu0 %v1071
        %v2314 = vpop.f32.mrf.mxu0
        %v2315 = vadd.f32 0.0, %v2314
        %v2316 = vpop.f32.mrf.mxu0
        %v2317 = vadd.f32 0.0, %v2316
        %v2318 = vpop.f32.mrf.mxu0
        %v2319 = vadd.f32 0.0, %v2318
        %v2320 = vpop.f32.mrf.mxu0
        %v2321 = vadd.f32 0.0, %v2320
        %2322 = vmatprep.mubr.bf16.mxu0 0
        %2323 = vmatmul.mubr.bf16.gmra.mxu0 %v1072
        %v2324 = vpop.f32.mrf.mxu0
        %v2325 = vadd.f32 0.0, %v2324
        %v2326 = vpop.f32.mrf.mxu0
        %v2327 = vadd.f32 0.0, %v2326
        %v2328 = vpop.f32.mrf.mxu0
        %v2329 = vadd.f32 0.0, %v2328
        %v2330 = vpop.f32.mrf.mxu0
        %v2331 = vadd.f32 0.0, %v2330
        %2332 = vmatprep.mubr.bf16.mxu0 0
        %2333 = vmatmul.mubr.bf16.gmra.mxu0 %v1073
        %v2334 = vpop.f32.mrf.mxu0
        %v2335 = vadd.f32 0.0, %v2334
        %v2336 = vpop.f32.mrf.mxu0
        %v2337 = vadd.f32 0.0, %v2336
        %v2338 = vpop.f32.mrf.mxu0
        %v2339 = vadd.f32 0.0, %v2338
        %v2340 = vpop.f32.mrf.mxu0
        %v2341 = vadd.f32 0.0, %v2340
        %2342 = vmatprep.mubr.bf16.mxu0 0
        %2343 = vmatmul.mubr.bf16.gmra.mxu0 %v1074
        %v2344 = vpop.f32.mrf.mxu0
        %v2345 = vadd.f32 0.0, %v2344
        %v2346 = vpop.f32.mrf.mxu0
        %v2347 = vadd.f32 0.0, %v2346
        %v2348 = vpop.f32.mrf.mxu0
        %v2349 = vadd.f32 0.0, %v2348
        %v2350 = vpop.f32.mrf.mxu0
        %v2351 = vadd.f32 0.0, %v2350
        %2352 = vmatprep.mubr.bf16.mxu0 0
        %2353 = vmatmul.mubr.bf16.gmra.mxu0 %v1075
        %v2354 = vpop.f32.mrf.mxu0
        %v2355 = vadd.f32 0.0, %v2354
        %v2356 = vpop.f32.mrf.mxu0
        %v2357 = vadd.f32 0.0, %v2356
        %v2358 = vpop.f32.mrf.mxu0
        %v2359 = vadd.f32 0.0, %v2358
        %v2360 = vpop.f32.mrf.mxu0
        %v2361 = vadd.f32 0.0, %v2360
        %2362 = vdwg.mxu0
        %2363 = vmatprep.subr.bf16.mxu0 0
        %2364 = vmatpush1.bf16.msra.mxu0 %v2249
        %2365 = vmatprep.subr.bf16.mxu0 0
        %2366 = vmatpush1.bf16.msra.mxu0 %v2246
        %2367 = vmatprep.subr.bf16.mxu0 0
        %2368 = vmatpush1.bf16.msra.mxu0 %v2243
        %2369 = vmatprep.subr.bf16.mxu0 0
        %2370 = vmatpush1.bf16.msra.mxu0 %v2240
        %2371 = vmatprep.subr.bf16.mxu0 0
        %2372 = vmatpush1.bf16.msra.mxu0 %v2237
        %2373 = vmatprep.subr.bf16.mxu0 0
        %2374 = vmatpush1.bf16.msra.mxu0 %v2234
        %2375 = vmatprep.subr.bf16.mxu0 0
        %2376 = vmatpush1.bf16.msra.mxu0 %v2231
        %2377 = vmatprep.subr.bf16.mxu0 0
        %2378 = vmatpush1.bf16.msra.mxu0 %v2228
        %2379 = vmatprep.subr.bf16.mxu0 0
        %2380 = vmatpush2.bf16.msra.mxu0 0
        %2381 = vmatprep.subr.bf16.mxu0 0
        %2382 = vmatpush2.bf16.msra.mxu0 0
        %2383 = vmatprep.subr.bf16.mxu0 0
        %2384 = vmatpush2.bf16.msra.mxu0 0
        %2385 = vmatprep.subr.bf16.mxu0 0
        %2386 = vmatpush2.bf16.msra.mxu0 0
        %2387 = vmatprep.subr.bf16.mxu0 0
        %2388 = vmatpush2.bf16.msra.mxu0 0
        %2389 = vmatprep.subr.bf16.mxu0 0
        %2390 = vmatpush2.bf16.msra.mxu0 0
        %2391 = vmatprep.subr.bf16.mxu0 0
        %2392 = vmatpush2.bf16.msra.mxu0 0
        %2393 = vmatprep.subr.bf16.mxu0 0
        %2394 = vmatpush2.bf16.msra.mxu0 0
        %2395 = vmatprep.mubr.bf16.mxu0 0
        %2396 = vmatmul.mubr.bf16.gmra.mxu0 %v1068
        %v2397 = vpop.f32.mrf.mxu0
        %v2398 = vadd.f32 0.0, %v2397
        %v2399 = vpop.f32.mrf.mxu0
        %v2400 = vpop.f32.mrf.mxu0
        %v2401 = vadd.f32 0.0, %v2400
        %v2402 = vpop.f32.mrf.mxu0
        %2403 = vmatprep.mubr.bf16.mxu0 0
        %2404 = vmatmul.mubr.bf16.gmra.mxu0 %v1069
        %v2405 = vpop.f32.mrf.mxu0
        %v2406 = vadd.f32 0.0, %v2405
        %v2407 = vpop.f32.mrf.mxu0
        %v2408 = vpop.f32.mrf.mxu0
        %v2409 = vadd.f32 0.0, %v2408
        %v2410 = vpop.f32.mrf.mxu0
        %2411 = vmatprep.mubr.bf16.mxu0 0
        %2412 = vmatmul.mubr.bf16.gmra.mxu0 %v1070
        %v2413 = vpop.f32.mrf.mxu0
        %v2414 = vadd.f32 0.0, %v2413
        %v2415 = vpop.f32.mrf.mxu0
        %v2416 = vpop.f32.mrf.mxu0
        %v2417 = vadd.f32 0.0, %v2416
        %v2418 = vpop.f32.mrf.mxu0
        %2419 = vmatprep.mubr.bf16.mxu0 0
        %2420 = vmatmul.mubr.bf16.gmra.mxu0 %v1071
        %v2421 = vpop.f32.mrf.mxu0
        %v2422 = vadd.f32 0.0, %v2421
        %v2423 = vpop.f32.mrf.mxu0
        %v2424 = vpop.f32.mrf.mxu0
        %v2425 = vadd.f32 0.0, %v2424
        %v2426 = vpop.f32.mrf.mxu0
        %2427 = vmatprep.mubr.bf16.mxu0 0
        %2428 = vmatmul.mubr.bf16.gmra.mxu0 %v1072
        %v2429 = vpop.f32.mrf.mxu0
        %v2430 = vadd.f32 0.0, %v2429
        %v2431 = vpop.f32.mrf.mxu0
        %v2432 = vpop.f32.mrf.mxu0
        %v2433 = vadd.f32 0.0, %v2432
        %v2434 = vpop.f32.mrf.mxu0
        %2435 = vmatprep.mubr.bf16.mxu0 0
        %2436 = vmatmul.mubr.bf16.gmra.mxu0 %v1073
        %v2437 = vpop.f32.mrf.mxu0
        %v2438 = vadd.f32 0.0, %v2437
        %v2439 = vpop.f32.mrf.mxu0
        %v2440 = vpop.f32.mrf.mxu0
        %v2441 = vadd.f32 0.0, %v2440
        %v2442 = vpop.f32.mrf.mxu0
        %2443 = vmatprep.mubr.bf16.mxu0 0
        %2444 = vmatmul.mubr.bf16.gmra.mxu0 %v1074
        %v2445 = vpop.f32.mrf.mxu0
        %v2446 = vadd.f32 0.0, %v2445
        %v2447 = vpop.f32.mrf.mxu0
        %v2448 = vpop.f32.mrf.mxu0
        %v2449 = vadd.f32 0.0, %v2448
        %v2450 = vpop.f32.mrf.mxu0
        %2451 = vmatprep.mubr.bf16.mxu0 0
        %2452 = vmatmul.mubr.bf16.gmra.mxu0 %v1075
        %v2453 = vpop.f32.mrf.mxu0
        %v2454 = vadd.f32 0.0, %v2453
        %v2455 = vpop.f32.mrf.mxu0
        %v2456 = vpop.f32.mrf.mxu0
        %v2457 = vadd.f32 0.0, %v2456
        %v2458 = vpop.f32.mrf.mxu0
        %2459 = vdwg.mxu0
        %v2460 = vpack.c.bf16 %v2289, %v2285
        %v2461 = vpack.c.bf16 %v2291, %v2287
        %v2462 = vpack.c.bf16 %v2401, %v2398
        %v2463 = vpack.c.bf16 %v2299, %v2295
        %v2464 = vpack.c.bf16 %v2301, %v2297
        %v2465 = vpack.c.bf16 %v2409, %v2406
        %v2466 = vpack.c.bf16 %v2309, %v2305
        %v2467 = vpack.c.bf16 %v2311, %v2307
        %v2468 = vpack.c.bf16 %v2417, %v2414
        %v2469 = vpack.c.bf16 %v2319, %v2315
        %v2470 = vpack.c.bf16 %v2321, %v2317
        %v2471 = vpack.c.bf16 %v2425, %v2422
        %v2472 = vpack.c.bf16 %v2329, %v2325
        %v2473 = vpack.c.bf16 %v2331, %v2327
        %v2474 = vpack.c.bf16 %v2433, %v2430
        %v2475 = vpack.c.bf16 %v2339, %v2335
        %v2476 = vpack.c.bf16 %v2341, %v2337
        %v2477 = vpack.c.bf16 %v2441, %v2438
        %v2478 = vpack.c.bf16 %v2349, %v2345
        %v2479 = vpack.c.bf16 %v2351, %v2347
        %v2480 = vpack.c.bf16 %v2449, %v2446
        %v2481 = vpack.c.bf16 %v2359, %v2355
        %v2482 = vpack.c.bf16 %v2361, %v2357
        %v2483 = vpack.c.bf16 %v2457, %v2454
        %v2484 = vld [vmem:[%s5] sm:$0xff]
        %v2485 = vld [vmem:[%s5 + $0x8] sm:$0xff]
        %v2486 = vld [vmem:[%s5 + $0x10] sm:$0xff]
        %v2487 = vld [vmem:[%s5 + $0x18] sm:$0xff]
        %v2488 = vld [vmem:[%s5 + $0x20] sm:$0xff]
        %v2489 = vld [vmem:[%s5 + $0x28] sm:$0xff]
        %v2490 = vld [vmem:[%s5 + $0x30] sm:$0xff]
        %v2491 = vld [vmem:[%s5 + $0x38] sm:$0xff]
        %v2492 = vld [vmem:[%s5 + $0x40] sm:$0xff]
        %v2493 = vld [vmem:[%s5 + $0x48] sm:$0xff]
        %v2494 = vld [vmem:[%s5 + $0x50] sm:$0xff]
        %v2495 = vld [vmem:[%s5 + $0x58] sm:$0xff]
        %v2496 = vld [vmem:[%s5 + $0x60] sm:$0xff]
        %v2497 = vld [vmem:[%s5 + $0x68] sm:$0xff]
        %v2498 = vld [vmem:[%s5 + $0x70] sm:$0xff]
        %v2499 = vld [vmem:[%s5 + $0x78] sm:$0xff]
        %v2500 = vld [vmem:[%s5 + $0x80] sm:$0xff]
        %v2501 = vld [vmem:[%s5 + $0x88] sm:$0xff]
        %v2502 = vld [vmem:[%s5 + $0x90] sm:$0xff]
        %v2503 = vld [vmem:[%s5 + $0x98] sm:$0xff]
        %v2504 = vld [vmem:[%s5 + $0xa0] sm:$0xff]
        %v2505 = vld [vmem:[%s5 + $0xa8] sm:$0xff]
        %v2506 = vld [vmem:[%s5 + $0xb0] sm:$0xff]
        %v2507 = vld [vmem:[%s5 + $0xb8] sm:$0xff]
        %v2508 = vld [vmem:[%s5 + $0xc0] sm:$0xff]
        %v2509 = vld [vmem:[%s5 + $0xc8] sm:$0xff]
        %v2510 = vld [vmem:[%s5 + $0xd0] sm:$0xff]
        %v2511 = vld [vmem:[%s5 + $0xd8] sm:$0xff]
        %v2512 = vld [vmem:[%s5 + $0xe0] sm:$0xff]
        %v2513 = vld [vmem:[%s5 + $0xe8] sm:$0xff]
        %v2514 = vld [vmem:[%s5 + $0xf0] sm:$0xff]
        %v2515 = vld [vmem:[%s5 + $0xf8] sm:$0xff]
        %v2516 = vld [vmem:[%s5 + $0x100] sm:$0xff]
        %v2517 = vld [vmem:[%s5 + $0x108] sm:$0xff]
        %v2518 = vld [vmem:[%s5 + $0x110] sm:$0xff]
        %v2519 = vld [vmem:[%s5 + $0x118] sm:$0xff]
        %v2520 = vld [vmem:[%s5 + $0x120] sm:$0xff]
        %v2521 = vld [vmem:[%s5 + $0x128] sm:$0xff]
        %v2522 = vld [vmem:[%s5 + $0x130] sm:$0xff]
        %v2523 = vld [vmem:[%s5 + $0x138] sm:$0xff]
        %v2524 = vld [vmem:[%s5 + $0x140] sm:$0xff]
        %v2525 = vld [vmem:[%s5 + $0x148] sm:$0xff]
        %v2526 = vld [vmem:[%s5 + $0x150] sm:$0xff]
        %v2527 = vld [vmem:[%s5 + $0x158] sm:$0xff]
        %v2528 = vld [vmem:[%s5 + $0x160] sm:$0xff]
        %v2529 = vld [vmem:[%s5 + $0x168] sm:$0xff]
        %v2530 = vld [vmem:[%s5 + $0x170] sm:$0xff]
        %v2531 = vld [vmem:[%s5 + $0x178] sm:$0xff]
        %v2532 = vld [vmem:[%s5 + $0x180] sm:$0xff]
        %v2533 = vld [vmem:[%s5 + $0x188] sm:$0xff]
        %v2534 = vld [vmem:[%s5 + $0x190] sm:$0xff]
        %v2535 = vld [vmem:[%s5 + $0x198] sm:$0xff]
        %v2536 = vld [vmem:[%s5 + $0x1a0] sm:$0xff]
        %v2537 = vld [vmem:[%s5 + $0x1a8] sm:$0xff]
        %v2538 = vld [vmem:[%s5 + $0x1b0] sm:$0xff]
        %v2539 = vld [vmem:[%s5 + $0x1b8] sm:$0xff]
        %v2540 = vld [vmem:[%s5 + $0x1c0] sm:$0xff]
        %v2541 = vld [vmem:[%s5 + $0x1c8] sm:$0xff]
        %v2542 = vld [vmem:[%s5 + $0x1d0] sm:$0xff]
        %v2543 = vld [vmem:[%s5 + $0x1d8] sm:$0xff]
        %v2544 = vld [vmem:[%s5 + $0x1e0] sm:$0xff]
        %v2545 = vld [vmem:[%s5 + $0x1e8] sm:$0xff]
        %v2546 = vld [vmem:[%s5 + $0x1f0] sm:$0xff]
        %v2547 = vld [vmem:[%s5 + $0x1f8] sm:$0xff]
        %v2548 = vld [vmem:[%s6] sm:$0xff]
        %v2549 = vld [vmem:[%s6 + $0x8] sm:$0xff]
        %v2550 = vld [vmem:[%s6 + $0x10] sm:$0xff]
        %v2551 = vld [vmem:[%s6 + $0x18] sm:$0xff]
        %v2552 = vld [vmem:[%s6 + $0x20] sm:$0xff]
        %v2553 = vld [vmem:[%s6 + $0x28] sm:$0xff]
        %v2554 = vld [vmem:[%s6 + $0x30] sm:$0xff]
        %v2555 = vld [vmem:[%s6 + $0x38] sm:$0xff]
        %v2556 = vld [vmem:[%s6 + $0x40] sm:$0xff]
        %v2557 = vld [vmem:[%s6 + $0x48] sm:$0xff]
        %v2558 = vld [vmem:[%s6 + $0x50] sm:$0xff]
        %v2559 = vld [vmem:[%s6 + $0x58] sm:$0xff]
        %v2560 = vld [vmem:[%s6 + $0x60] sm:$0xff]
        %v2561 = vld [vmem:[%s6 + $0x68] sm:$0xff]
        %v2562 = vld [vmem:[%s6 + $0x70] sm:$0xff]
        %v2563 = vld [vmem:[%s6 + $0x78] sm:$0xff]
        %v2564 = vld [vmem:[%s6 + $0x80] sm:$0xff]
        %v2565 = vld [vmem:[%s6 + $0x88] sm:$0xff]
        %v2566 = vld [vmem:[%s6 + $0x90] sm:$0xff]
        %v2567 = vld [vmem:[%s6 + $0x98] sm:$0xff]
        %v2568 = vld [vmem:[%s6 + $0xa0] sm:$0xff]
        %v2569 = vld [vmem:[%s6 + $0xa8] sm:$0xff]
        %v2570 = vld [vmem:[%s6 + $0xb0] sm:$0xff]
        %v2571 = vld [vmem:[%s6 + $0xb8] sm:$0xff]
        %v2572 = vld [vmem:[%s6 + $0xc0] sm:$0xff]
        %v2573 = vld [vmem:[%s6 + $0xc8] sm:$0xff]
        %v2574 = vld [vmem:[%s6 + $0xd0] sm:$0xff]
        %v2575 = vld [vmem:[%s6 + $0xd8] sm:$0xff]
        %v2576 = vld [vmem:[%s6 + $0xe0] sm:$0xff]
        %v2577 = vld [vmem:[%s6 + $0xe8] sm:$0xff]
        %v2578 = vld [vmem:[%s6 + $0xf0] sm:$0xff]
        %v2579 = vld [vmem:[%s6 + $0xf8] sm:$0xff]
        %2581 = vset.pattern.permute.xlu0 0
        %2582 = vperm.xlu0 %2581, %v2548
        %v2583 = vpop.permute.xlu0 %2582
        %2586 = vset.pattern.permute.xlu0 0
        %2587 = vperm.xlu0 %2586, %v2549
        %v2588 = vpop.permute.xlu0 %2587
        %2591 = vset.pattern.permute.xlu0 0
        %2592 = vperm.xlu0 %2591, %v2550
        %v2593 = vpop.permute.xlu0 %2592
        %2596 = vset.pattern.permute.xlu0 0
        %2597 = vperm.xlu0 %2596, %v2551
        %v2598 = vpop.permute.xlu0 %2597
        %2601 = vset.pattern.permute.xlu0 0
        %2602 = vperm.xlu0 %2601, %v2552
        %v2603 = vpop.permute.xlu0 %2602
        %2606 = vset.pattern.permute.xlu0 0
        %2607 = vperm.xlu0 %2606, %v2553
        %v2608 = vpop.permute.xlu0 %2607
        %2611 = vset.pattern.permute.xlu0 0
        %2612 = vperm.xlu0 %2611, %v2554
        %v2613 = vpop.permute.xlu0 %2612
        %2616 = vset.pattern.permute.xlu0 0
        %2617 = vperm.xlu0 %2616, %v2555
        %v2618 = vpop.permute.xlu0 %2617
        %2621 = vset.pattern.permute.xlu0 0
        %2622 = vperm.xlu0 %2621, %v2556
        %v2623 = vpop.permute.xlu0 %2622
        %2626 = vset.pattern.permute.xlu0 0
        %2627 = vperm.xlu0 %2626, %v2557
        %v2628 = vpop.permute.xlu0 %2627
        %2631 = vset.pattern.permute.xlu0 0
        %2632 = vperm.xlu0 %2631, %v2558
        %v2633 = vpop.permute.xlu0 %2632
        %2636 = vset.pattern.permute.xlu0 0
        %2637 = vperm.xlu0 %2636, %v2559
        %v2638 = vpop.permute.xlu0 %2637
        %2641 = vset.pattern.permute.xlu0 0
        %2642 = vperm.xlu0 %2641, %v2560
        %v2643 = vpop.permute.xlu0 %2642
        %2646 = vset.pattern.permute.xlu0 0
        %2647 = vperm.xlu0 %2646, %v2561
        %v2648 = vpop.permute.xlu0 %2647
        %2651 = vset.pattern.permute.xlu0 0
        %2652 = vperm.xlu0 %2651, %v2562
        %v2653 = vpop.permute.xlu0 %2652
        %2656 = vset.pattern.permute.xlu0 0
        %2657 = vperm.xlu0 %2656, %v2563
        %v2658 = vpop.permute.xlu0 %2657
        %2661 = vset.pattern.permute.xlu0 0
        %2662 = vperm.xlu0 %2661, %v2564
        %v2663 = vpop.permute.xlu0 %2662
        %2666 = vset.pattern.permute.xlu0 0
        %2667 = vperm.xlu0 %2666, %v2565
        %v2668 = vpop.permute.xlu0 %2667
        %2671 = vset.pattern.permute.xlu0 0
        %2672 = vperm.xlu0 %2671, %v2566
        %v2673 = vpop.permute.xlu0 %2672
        %2676 = vset.pattern.permute.xlu0 0
        %2677 = vperm.xlu0 %2676, %v2567
        %v2678 = vpop.permute.xlu0 %2677
        %2681 = vset.pattern.permute.xlu0 0
        %2682 = vperm.xlu0 %2681, %v2568
        %v2683 = vpop.permute.xlu0 %2682
        %2686 = vset.pattern.permute.xlu0 0
        %2687 = vperm.xlu0 %2686, %v2569
        %v2688 = vpop.permute.xlu0 %2687
        %2691 = vset.pattern.permute.xlu0 0
        %2692 = vperm.xlu0 %2691, %v2570
        %v2693 = vpop.permute.xlu0 %2692
        %2696 = vset.pattern.permute.xlu0 0
        %2697 = vperm.xlu0 %2696, %v2571
        %v2698 = vpop.permute.xlu0 %2697
        %2701 = vset.pattern.permute.xlu0 0
        %2702 = vperm.xlu0 %2701, %v2572
        %v2703 = vpop.permute.xlu0 %2702
        %2706 = vset.pattern.permute.xlu0 0
        %2707 = vperm.xlu0 %2706, %v2573
        %v2708 = vpop.permute.xlu0 %2707
        %2711 = vset.pattern.permute.xlu0 0
        %2712 = vperm.xlu0 %2711, %v2574
        %v2713 = vpop.permute.xlu0 %2712
        %2716 = vset.pattern.permute.xlu0 0
        %2717 = vperm.xlu0 %2716, %v2575
        %v2718 = vpop.permute.xlu0 %2717
        %2721 = vset.pattern.permute.xlu0 0
        %2722 = vperm.xlu0 %2721, %v2576
        %v2723 = vpop.permute.xlu0 %2722
        %2726 = vset.pattern.permute.xlu0 0
        %2727 = vperm.xlu0 %2726, %v2577
        %v2728 = vpop.permute.xlu0 %2727
        %2731 = vset.pattern.permute.xlu0 0
        %2732 = vperm.xlu0 %2731, %v2578
        %v2733 = vpop.permute.xlu0 %2732
        %2736 = vset.pattern.permute.xlu0 0
        %2737 = vperm.xlu0 %2736, %v2579
        %v2738 = vpop.permute.xlu0 %2737
        %v2804 = vunpack.c.l.b16 %v2484
        %v2805 = vunpack.c.h.b16 %v2484
        %v2806 = vunpack.c.l.b16 %v2485
        %v2807 = vunpack.c.h.b16 %v2485
        %v2808 = vunpack.c.l.b16 %v2486
        %v2809 = vunpack.c.h.b16 %v2486
        %v2810 = vunpack.c.l.b16 %v2487
        %v2811 = vunpack.c.h.b16 %v2487
        %v2812 = vunpack.c.l.b16 %v2488
        %v2813 = vunpack.c.h.b16 %v2488
        %v2814 = vunpack.c.l.b16 %v2489
        %v2815 = vunpack.c.h.b16 %v2489
        %v2816 = vunpack.c.l.b16 %v2490
        %v2817 = vunpack.c.h.b16 %v2490
        %v2818 = vunpack.c.l.b16 %v2491
        %v2819 = vunpack.c.h.b16 %v2491
        %v2820 = vunpack.c.l.b16 %v2492
        %v2821 = vunpack.c.h.b16 %v2492
        %v2822 = vunpack.c.l.b16 %v2493
        %v2823 = vunpack.c.h.b16 %v2493
        %v2824 = vunpack.c.l.b16 %v2494
        %v2825 = vunpack.c.h.b16 %v2494
        %v2826 = vunpack.c.l.b16 %v2495
        %v2827 = vunpack.c.h.b16 %v2495
        %v2828 = vunpack.c.l.b16 %v2496
        %v2829 = vunpack.c.h.b16 %v2496
        %v2830 = vunpack.c.l.b16 %v2497
        %v2831 = vunpack.c.h.b16 %v2497
        %v2832 = vunpack.c.l.b16 %v2498
        %v2833 = vunpack.c.h.b16 %v2498
        %v2834 = vunpack.c.l.b16 %v2499
        %v2835 = vunpack.c.h.b16 %v2499
        %v2836 = vunpack.c.l.b16 %v2500
        %v2837 = vunpack.c.h.b16 %v2500
        %v2838 = vunpack.c.l.b16 %v2501
        %v2839 = vunpack.c.h.b16 %v2501
        %v2840 = vunpack.c.l.b16 %v2502
        %v2841 = vunpack.c.h.b16 %v2502
        %v2842 = vunpack.c.l.b16 %v2503
        %v2843 = vunpack.c.h.b16 %v2503
        %v2844 = vunpack.c.l.b16 %v2504
        %v2845 = vunpack.c.h.b16 %v2504
        %v2846 = vunpack.c.l.b16 %v2505
        %v2847 = vunpack.c.h.b16 %v2505
        %v2848 = vunpack.c.l.b16 %v2506
        %v2849 = vunpack.c.h.b16 %v2506
        %v2850 = vunpack.c.l.b16 %v2507
        %v2851 = vunpack.c.h.b16 %v2507
        %v2852 = vunpack.c.l.b16 %v2508
        %v2853 = vunpack.c.h.b16 %v2508
        %v2854 = vunpack.c.l.b16 %v2509
        %v2855 = vunpack.c.h.b16 %v2509
        %v2856 = vunpack.c.l.b16 %v2510
        %v2857 = vunpack.c.h.b16 %v2510
        %v2858 = vunpack.c.l.b16 %v2511
        %v2859 = vunpack.c.h.b16 %v2511
        %v2860 = vunpack.c.l.b16 %v2512
        %v2861 = vunpack.c.h.b16 %v2512
        %v2862 = vunpack.c.l.b16 %v2513
        %v2863 = vunpack.c.h.b16 %v2513
        %v2864 = vunpack.c.l.b16 %v2514
        %v2865 = vunpack.c.h.b16 %v2514
        %v2866 = vunpack.c.l.b16 %v2515
        %v2867 = vunpack.c.h.b16 %v2515
        %v2868 = vunpack.c.l.b16 %v2516
        %v2869 = vunpack.c.h.b16 %v2516
        %v2870 = vunpack.c.l.b16 %v2517
        %v2871 = vunpack.c.h.b16 %v2517
        %v2872 = vunpack.c.l.b16 %v2518
        %v2873 = vunpack.c.h.b16 %v2518
        %v2874 = vunpack.c.l.b16 %v2519
        %v2875 = vunpack.c.h.b16 %v2519
        %v2876 = vunpack.c.l.b16 %v2520
        %v2877 = vunpack.c.h.b16 %v2520
        %v2878 = vunpack.c.l.b16 %v2521
        %v2879 = vunpack.c.h.b16 %v2521
        %v2880 = vunpack.c.l.b16 %v2522
        %v2881 = vunpack.c.h.b16 %v2522
        %v2882 = vunpack.c.l.b16 %v2523
        %v2883 = vunpack.c.h.b16 %v2523
        %v2884 = vunpack.c.l.b16 %v2524
        %v2885 = vunpack.c.h.b16 %v2524
        %v2886 = vunpack.c.l.b16 %v2525
        %v2887 = vunpack.c.h.b16 %v2525
        %v2888 = vunpack.c.l.b16 %v2526
        %v2889 = vunpack.c.h.b16 %v2526
        %v2890 = vunpack.c.l.b16 %v2527
        %v2891 = vunpack.c.h.b16 %v2527
        %v2892 = vunpack.c.l.b16 %v2528
        %v2893 = vunpack.c.h.b16 %v2528
        %v2894 = vunpack.c.l.b16 %v2529
        %v2895 = vunpack.c.h.b16 %v2529
        %v2896 = vunpack.c.l.b16 %v2530
        %v2897 = vunpack.c.h.b16 %v2530
        %v2898 = vunpack.c.l.b16 %v2531
        %v2899 = vunpack.c.h.b16 %v2531
        %v2900 = vunpack.c.l.b16 %v2532
        %v2901 = vunpack.c.h.b16 %v2532
        %v2902 = vunpack.c.l.b16 %v2533
        %v2903 = vunpack.c.h.b16 %v2533
        %v2904 = vunpack.c.l.b16 %v2534
        %v2905 = vunpack.c.h.b16 %v2534
        %v2906 = vunpack.c.l.b16 %v2535
        %v2907 = vunpack.c.h.b16 %v2535
        %v2908 = vunpack.c.l.b16 %v2536
        %v2909 = vunpack.c.h.b16 %v2536
        %v2910 = vunpack.c.l.b16 %v2537
        %v2911 = vunpack.c.h.b16 %v2537
        %v2912 = vunpack.c.l.b16 %v2538
        %v2913 = vunpack.c.h.b16 %v2538
        %v2914 = vunpack.c.l.b16 %v2539
        %v2915 = vunpack.c.h.b16 %v2539
        %v2916 = vunpack.c.l.b16 %v2540
        %v2917 = vunpack.c.h.b16 %v2540
        %v2918 = vunpack.c.l.b16 %v2541
        %v2919 = vunpack.c.h.b16 %v2541
        %v2920 = vunpack.c.l.b16 %v2542
        %v2921 = vunpack.c.h.b16 %v2542
        %v2922 = vunpack.c.l.b16 %v2543
        %v2923 = vunpack.c.h.b16 %v2543
        %v2924 = vunpack.c.l.b16 %v2544
        %v2925 = vunpack.c.h.b16 %v2544
        %v2926 = vunpack.c.l.b16 %v2545
        %v2927 = vunpack.c.h.b16 %v2545
        %v2928 = vunpack.c.l.b16 %v2546
        %v2929 = vunpack.c.h.b16 %v2546
        %v2930 = vunpack.c.l.b16 %v2547
        %v2931 = vunpack.c.h.b16 %v2547
        %v2932 = vpack.c.b16 %v2808, %v2804
        %v2933 = vpack.c.b16 %v2809, %v2805
        %v2934 = vpack.c.b16 %v2810, %v2806
        %v2935 = vpack.c.b16 %v2811, %v2807
        %v2936 = vpack.c.b16 %v2816, %v2812
        %v2937 = vpack.c.b16 %v2817, %v2813
        %v2938 = vpack.c.b16 %v2818, %v2814
        %v2939 = vpack.c.b16 %v2819, %v2815
        %v2940 = vpack.c.b16 %v2824, %v2820
        %v2941 = vpack.c.b16 %v2825, %v2821
        %v2942 = vpack.c.b16 %v2826, %v2822
        %v2943 = vpack.c.b16 %v2827, %v2823
        %v2944 = vpack.c.b16 %v2832, %v2828
        %v2945 = vpack.c.b16 %v2833, %v2829
        %v2946 = vpack.c.b16 %v2834, %v2830
        %v2947 = vpack.c.b16 %v2835, %v2831
        %v2948 = vpack.c.b16 %v2840, %v2836
        %v2949 = vpack.c.b16 %v2841, %v2837
        %v2950 = vpack.c.b16 %v2842, %v2838
        %v2951 = vpack.c.b16 %v2843, %v2839
        %v2952 = vpack.c.b16 %v2848, %v2844
        %v2953 = vpack.c.b16 %v2849, %v2845
        %v2954 = vpack.c.b16 %v2850, %v2846
        %v2955 = vpack.c.b16 %v2851, %v2847
        %v2956 = vpack.c.b16 %v2856, %v2852
        %v2957 = vpack.c.b16 %v2857, %v2853
        %v2958 = vpack.c.b16 %v2858, %v2854
        %v2959 = vpack.c.b16 %v2859, %v2855
        %v2960 = vpack.c.b16 %v2864, %v2860
        %v2961 = vpack.c.b16 %v2865, %v2861
        %v2962 = vpack.c.b16 %v2866, %v2862
        %v2963 = vpack.c.b16 %v2867, %v2863
        %v2964 = vpack.c.b16 %v2872, %v2868
        %v2965 = vpack.c.b16 %v2873, %v2869
        %v2966 = vpack.c.b16 %v2874, %v2870
        %v2967 = vpack.c.b16 %v2875, %v2871
        %v2968 = vpack.c.b16 %v2880, %v2876
        %v2969 = vpack.c.b16 %v2881, %v2877
        %v2970 = vpack.c.b16 %v2882, %v2878
        %v2971 = vpack.c.b16 %v2883, %v2879
        %v2972 = vpack.c.b16 %v2888, %v2884
        %v2973 = vpack.c.b16 %v2889, %v2885
        %v2974 = vpack.c.b16 %v2890, %v2886
        %v2975 = vpack.c.b16 %v2891, %v2887
        %v2976 = vpack.c.b16 %v2896, %v2892
        %v2977 = vpack.c.b16 %v2897, %v2893
        %v2978 = vpack.c.b16 %v2898, %v2894
        %v2979 = vpack.c.b16 %v2899, %v2895
        %v2980 = vpack.c.b16 %v2904, %v2900
        %v2981 = vpack.c.b16 %v2905, %v2901
        %v2982 = vpack.c.b16 %v2906, %v2902
        %v2983 = vpack.c.b16 %v2907, %v2903
        %v2984 = vpack.c.b16 %v2912, %v2908
        %v2985 = vpack.c.b16 %v2913, %v2909
        %v2986 = vpack.c.b16 %v2914, %v2910
        %v2987 = vpack.c.b16 %v2915, %v2911
        %v2988 = vpack.c.b16 %v2920, %v2916
        %v2989 = vpack.c.b16 %v2921, %v2917
        %v2990 = vpack.c.b16 %v2922, %v2918
        %v2991 = vpack.c.b16 %v2923, %v2919
        %v2992 = vpack.c.b16 %v2928, %v2924
        %v2993 = vpack.c.b16 %v2929, %v2925
        %v2994 = vpack.c.b16 %v2930, %v2926
        %v2995 = vpack.c.b16 %v2931, %v2927
        %3060 = vmatprep.subr.bf16.mxu0 0
        %3061 = vmatpush1.bf16.msra.mxu0 %v2481
        %3062 = vmatprep.subr.bf16.mxu0 0
        %3063 = vmatpush1.bf16.msra.mxu0 %v2478
        %3064 = vmatprep.subr.bf16.mxu0 0
        %3065 = vmatpush1.bf16.msra.mxu0 %v2475
        %3066 = vmatprep.subr.bf16.mxu0 0
        %3067 = vmatpush1.bf16.msra.mxu0 %v2472
        %3068 = vmatprep.subr.bf16.mxu0 0
        %3069 = vmatpush1.bf16.msra.mxu0 %v2469
        %3070 = vmatprep.subr.bf16.mxu0 0
        %3071 = vmatpush1.bf16.msra.mxu0 %v2466
        %3072 = vmatprep.subr.bf16.mxu0 0
        %3073 = vmatpush1.bf16.msra.mxu0 %v2463
        %3074 = vmatprep.subr.bf16.mxu0 0
        %3075 = vmatpush1.bf16.msra.mxu0 %v2460
        %3076 = vmatprep.subr.bf16.mxu0 0
        %3077 = vmatpush2.bf16.msra.mxu0 %v2482
        %3078 = vmatprep.subr.bf16.mxu0 0
        %3079 = vmatpush2.bf16.msra.mxu0 %v2479
        %3080 = vmatprep.subr.bf16.mxu0 0
        %3081 = vmatpush2.bf16.msra.mxu0 %v2476
        %3082 = vmatprep.subr.bf16.mxu0 0
        %3083 = vmatpush2.bf16.msra.mxu0 %v2473
        %3084 = vmatprep.subr.bf16.mxu0 0
        %3085 = vmatpush2.bf16.msra.mxu0 %v2470
        %3086 = vmatprep.subr.bf16.mxu0 0
        %3087 = vmatpush2.bf16.msra.mxu0 %v2467
        %3088 = vmatprep.subr.bf16.mxu0 0
        %3089 = vmatpush2.bf16.msra.mxu0 %v2464
        %3090 = vmatprep.subr.bf16.mxu0 0
        %3091 = vmatpush2.bf16.msra.mxu0 %v2461
        %3092 = vmatprep.mubr.bf16.mxu0 %v2933
        %3093 = vmatmul.mubr.bf16.gmra.mxu0 %v2932
        %v3094 = vpop.f32.mrf.mxu0
        %v3095 = vadd.f32 %v2583, %v3094
        %v3096 = vpop.f32.mrf.mxu0
        %v3097 = vpop.f32.mrf.mxu0
        %v3098 = vadd.f32 %v2588, %v3097
        %v3099 = vpop.f32.mrf.mxu0
        %3100 = vmatprep.mubr.bf16.mxu0 %v2937
        %3101 = vmatmul.mubr.bf16.gmra.mxu0 %v2936
        %v3102 = vpop.f32.mrf.mxu0
        %v3103 = vadd.f32 %v2593, %v3102
        %v3104 = vpop.f32.mrf.mxu0
        %v3105 = vpop.f32.mrf.mxu0
        %v3106 = vadd.f32 %v2598, %v3105
        %v3107 = vpop.f32.mrf.mxu0
        %3108 = vmatprep.mubr.bf16.mxu0 %v2941
        %3109 = vmatmul.mubr.bf16.gmra.mxu0 %v2940
        %v3110 = vpop.f32.mrf.mxu0
        %v3111 = vadd.f32 %v2603, %v3110
        %v3112 = vpop.f32.mrf.mxu0
        %v3113 = vpop.f32.mrf.mxu0
        %v3114 = vadd.f32 %v2608, %v3113
        %v3115 = vpop.f32.mrf.mxu0
        %3116 = vmatprep.mubr.bf16.mxu0 %v2945
        %3117 = vmatmul.mubr.bf16.gmra.mxu0 %v2944
        %v3118 = vpop.f32.mrf.mxu0
        %v3119 = vadd.f32 %v2613, %v3118
        %v3120 = vpop.f32.mrf.mxu0
        %v3121 = vpop.f32.mrf.mxu0
        %v3122 = vadd.f32 %v2618, %v3121
        %v3123 = vpop.f32.mrf.mxu0
        %3124 = vmatprep.mubr.bf16.mxu0 %v2949
        %3125 = vmatmul.mubr.bf16.gmra.mxu0 %v2948
        %v3126 = vpop.f32.mrf.mxu0
        %v3127 = vadd.f32 %v2623, %v3126
        %v3128 = vpop.f32.mrf.mxu0
        %v3129 = vpop.f32.mrf.mxu0
        %v3130 = vadd.f32 %v2628, %v3129
        %v3131 = vpop.f32.mrf.mxu0
        %3132 = vmatprep.mubr.bf16.mxu0 %v2953
        %3133 = vmatmul.mubr.bf16.gmra.mxu0 %v2952
        %v3134 = vpop.f32.mrf.mxu0
        %v3135 = vadd.f32 %v2633, %v3134
        %v3136 = vpop.f32.mrf.mxu0
        %v3137 = vpop.f32.mrf.mxu0
        %v3138 = vadd.f32 %v2638, %v3137
        %v3139 = vpop.f32.mrf.mxu0
        %3140 = vmatprep.mubr.bf16.mxu0 %v2957
        %3141 = vmatmul.mubr.bf16.gmra.mxu0 %v2956
        %v3142 = vpop.f32.mrf.mxu0
        %v3143 = vadd.f32 %v2643, %v3142
        %v3144 = vpop.f32.mrf.mxu0
        %v3145 = vpop.f32.mrf.mxu0
        %v3146 = vadd.f32 %v2648, %v3145
        %v3147 = vpop.f32.mrf.mxu0
        %3148 = vmatprep.mubr.bf16.mxu0 %v2961
        %3149 = vmatmul.mubr.bf16.gmra.mxu0 %v2960
        %v3150 = vpop.f32.mrf.mxu0
        %v3151 = vadd.f32 %v2653, %v3150
        %v3152 = vpop.f32.mrf.mxu0
        %v3153 = vpop.f32.mrf.mxu0
        %v3154 = vadd.f32 %v2658, %v3153
        %v3155 = vpop.f32.mrf.mxu0
        %3156 = vmatprep.mubr.bf16.mxu0 %v2965
        %3157 = vmatmul.mubr.bf16.gmra.mxu0 %v2964
        %v3158 = vpop.f32.mrf.mxu0
        %v3159 = vadd.f32 %v2663, %v3158
        %v3160 = vpop.f32.mrf.mxu0
        %v3161 = vpop.f32.mrf.mxu0
        %v3162 = vadd.f32 %v2668, %v3161
        %v3163 = vpop.f32.mrf.mxu0
        %3164 = vmatprep.mubr.bf16.mxu0 %v2969
        %3165 = vmatmul.mubr.bf16.gmra.mxu0 %v2968
        %v3166 = vpop.f32.mrf.mxu0
        %v3167 = vadd.f32 %v2673, %v3166
        %v3168 = vpop.f32.mrf.mxu0
        %v3169 = vpop.f32.mrf.mxu0
        %v3170 = vadd.f32 %v2678, %v3169
        %v3171 = vpop.f32.mrf.mxu0
        %3172 = vmatprep.mubr.bf16.mxu0 %v2973
        %3173 = vmatmul.mubr.bf16.gmra.mxu0 %v2972
        %v3174 = vpop.f32.mrf.mxu0
        %v3175 = vadd.f32 %v2683, %v3174
        %v3176 = vpop.f32.mrf.mxu0
        %v3177 = vpop.f32.mrf.mxu0
        %v3178 = vadd.f32 %v2688, %v3177
        %v3179 = vpop.f32.mrf.mxu0
        %3180 = vmatprep.mubr.bf16.mxu0 %v2977
        %3181 = vmatmul.mubr.bf16.gmra.mxu0 %v2976
        %v3182 = vpop.f32.mrf.mxu0
        %v3183 = vadd.f32 %v2693, %v3182
        %v3184 = vpop.f32.mrf.mxu0
        %v3185 = vpop.f32.mrf.mxu0
        %v3186 = vadd.f32 %v2698, %v3185
        %v3187 = vpop.f32.mrf.mxu0
        %3188 = vmatprep.mubr.bf16.mxu0 %v2981
        %3189 = vmatmul.mubr.bf16.gmra.mxu0 %v2980
        %v3190 = vpop.f32.mrf.mxu0
        %v3191 = vadd.f32 %v2703, %v3190
        %v3192 = vpop.f32.mrf.mxu0
        %v3193 = vpop.f32.mrf.mxu0
        %v3194 = vadd.f32 %v2708, %v3193
        %v3195 = vpop.f32.mrf.mxu0
        %3196 = vmatprep.mubr.bf16.mxu0 %v2985
        %3197 = vmatmul.mubr.bf16.gmra.mxu0 %v2984
        %v3198 = vpop.f32.mrf.mxu0
        %v3199 = vadd.f32 %v2713, %v3198
        %v3200 = vpop.f32.mrf.mxu0
        %v3201 = vpop.f32.mrf.mxu0
        %v3202 = vadd.f32 %v2718, %v3201
        %v3203 = vpop.f32.mrf.mxu0
        %3204 = vmatprep.mubr.bf16.mxu0 %v2989
        %3205 = vmatmul.mubr.bf16.gmra.mxu0 %v2988
        %v3206 = vpop.f32.mrf.mxu0
        %v3207 = vadd.f32 %v2723, %v3206
        %v3208 = vpop.f32.mrf.mxu0
        %v3209 = vpop.f32.mrf.mxu0
        %v3210 = vadd.f32 %v2728, %v3209
        %v3211 = vpop.f32.mrf.mxu0
        %3212 = vmatprep.mubr.bf16.mxu0 %v2993
        %3213 = vmatmul.mubr.bf16.gmra.mxu0 %v2992
        %v3214 = vpop.f32.mrf.mxu0
        %v3215 = vadd.f32 %v2733, %v3214
        %v3216 = vpop.f32.mrf.mxu0
        %v3217 = vpop.f32.mrf.mxu0
        %v3218 = vadd.f32 %v2738, %v3217
        %v3219 = vpop.f32.mrf.mxu0
        %3220 = vdwg.mxu0
        %3221 = vmatprep.subr.bf16.mxu0 0
        %3222 = vmatpush1.bf16.msra.mxu0 %v2483
        %3223 = vmatprep.subr.bf16.mxu0 0
        %3224 = vmatpush1.bf16.msra.mxu0 %v2480
        %3225 = vmatprep.subr.bf16.mxu0 0
        %3226 = vmatpush1.bf16.msra.mxu0 %v2477
        %3227 = vmatprep.subr.bf16.mxu0 0
        %3228 = vmatpush1.bf16.msra.mxu0 %v2474
        %3229 = vmatprep.subr.bf16.mxu0 0
        %3230 = vmatpush1.bf16.msra.mxu0 %v2471
        %3231 = vmatprep.subr.bf16.mxu0 0
        %3232 = vmatpush1.bf16.msra.mxu0 %v2468
        %3233 = vmatprep.subr.bf16.mxu0 0
        %3234 = vmatpush1.bf16.msra.mxu0 %v2465
        %3235 = vmatprep.subr.bf16.mxu0 0
        %3236 = vmatpush1.bf16.msra.mxu0 %v2462
        %3237 = vmatprep.subr.bf16.mxu0 0
        %3238 = vmatpush2.bf16.msra.mxu0 %v1075
        %3239 = vmatprep.subr.bf16.mxu0 0
        %3240 = vmatpush2.bf16.msra.mxu0 %v1074
        %3241 = vmatprep.subr.bf16.mxu0 0
        %3242 = vmatpush2.bf16.msra.mxu0 %v1073
        %3243 = vmatprep.subr.bf16.mxu0 0
        %3244 = vmatpush2.bf16.msra.mxu0 %v1072
        %3245 = vmatprep.subr.bf16.mxu0 0
        %3246 = vmatpush2.bf16.msra.mxu0 %v1071
        %3247 = vmatprep.subr.bf16.mxu0 0
        %3248 = vmatpush2.bf16.msra.mxu0 %v1070
        %3249 = vmatprep.subr.bf16.mxu0 0
        %3250 = vmatpush2.bf16.msra.mxu0 %v1069
        %3251 = vmatprep.subr.bf16.mxu0 0
        %3252 = vmatpush2.bf16.msra.mxu0 %v1068
        %3253 = vmatprep.mubr.bf16.mxu0 %v2935
        %3254 = vmatmul.mubr.bf16.gmra.mxu0 %v2934
        %v3255 = vpop.f32.mrf.mxu0
        %v3256 = vadd.f32 %v3095, %v3255
        %v3257 = vpop.f32.mrf.mxu0
        %v3258 = vpop.f32.mrf.mxu0
        %v3259 = vadd.f32 %v3098, %v3258
        %v3260 = vpop.f32.mrf.mxu0
        %3261 = vmatprep.mubr.bf16.mxu0 %v2939
        %3262 = vmatmul.mubr.bf16.gmra.mxu0 %v2938
        %v3263 = vpop.f32.mrf.mxu0
        %v3264 = vadd.f32 %v3103, %v3263
        %v3265 = vpop.f32.mrf.mxu0
        %v3266 = vpop.f32.mrf.mxu0
        %v3267 = vadd.f32 %v3106, %v3266
        %v3268 = vpop.f32.mrf.mxu0
        %3269 = vmatprep.mubr.bf16.mxu0 %v2943
        %3270 = vmatmul.mubr.bf16.gmra.mxu0 %v2942
        %v3271 = vpop.f32.mrf.mxu0
        %v3272 = vadd.f32 %v3111, %v3271
        %v3273 = vpop.f32.mrf.mxu0
        %v3274 = vpop.f32.mrf.mxu0
        %v3275 = vadd.f32 %v3114, %v3274
        %v3276 = vpop.f32.mrf.mxu0
        %3277 = vmatprep.mubr.bf16.mxu0 %v2947
        %3278 = vmatmul.mubr.bf16.gmra.mxu0 %v2946
        %v3279 = vpop.f32.mrf.mxu0
        %v3280 = vadd.f32 %v3119, %v3279
        %v3281 = vpop.f32.mrf.mxu0
        %v3282 = vpop.f32.mrf.mxu0
        %v3283 = vadd.f32 %v3122, %v3282
        %v3284 = vpop.f32.mrf.mxu0
        %3285 = vmatprep.mubr.bf16.mxu0 %v2951
        %3286 = vmatmul.mubr.bf16.gmra.mxu0 %v2950
        %v3287 = vpop.f32.mrf.mxu0
        %v3288 = vadd.f32 %v3127, %v3287
        %v3289 = vpop.f32.mrf.mxu0
        %v3290 = vpop.f32.mrf.mxu0
        %v3291 = vadd.f32 %v3130, %v3290
        %v3292 = vpop.f32.mrf.mxu0
        %3293 = vmatprep.mubr.bf16.mxu0 %v2955
        %3294 = vmatmul.mubr.bf16.gmra.mxu0 %v2954
        %v3295 = vpop.f32.mrf.mxu0
        %v3296 = vadd.f32 %v3135, %v3295
        %v3297 = vpop.f32.mrf.mxu0
        %v3298 = vpop.f32.mrf.mxu0
        %v3299 = vadd.f32 %v3138, %v3298
        %v3300 = vpop.f32.mrf.mxu0
        %3301 = vmatprep.mubr.bf16.mxu0 %v2959
        %3302 = vmatmul.mubr.bf16.gmra.mxu0 %v2958
        %v3303 = vpop.f32.mrf.mxu0
        %v3304 = vadd.f32 %v3143, %v3303
        %v3305 = vpop.f32.mrf.mxu0
        %v3306 = vpop.f32.mrf.mxu0
        %v3307 = vadd.f32 %v3146, %v3306
        %v3308 = vpop.f32.mrf.mxu0
        %3309 = vmatprep.mubr.bf16.mxu0 %v2963
        %3310 = vmatmul.mubr.bf16.gmra.mxu0 %v2962
        %v3311 = vpop.f32.mrf.mxu0
        %v3312 = vadd.f32 %v3151, %v3311
        %v3313 = vpop.f32.mrf.mxu0
        %v3314 = vpop.f32.mrf.mxu0
        %v3315 = vadd.f32 %v3154, %v3314
        %v3316 = vpop.f32.mrf.mxu0
        %3317 = vmatprep.mubr.bf16.mxu0 %v2967
        %3318 = vmatmul.mubr.bf16.gmra.mxu0 %v2966
        %v3319 = vpop.f32.mrf.mxu0
        %v3320 = vadd.f32 %v3159, %v3319
        %v3321 = vpop.f32.mrf.mxu0
        %v3322 = vpop.f32.mrf.mxu0
        %v3323 = vadd.f32 %v3162, %v3322
        %v3324 = vpop.f32.mrf.mxu0
        %3325 = vmatprep.mubr.bf16.mxu0 %v2971
        %3326 = vmatmul.mubr.bf16.gmra.mxu0 %v2970
        %v3327 = vpop.f32.mrf.mxu0
        %v3328 = vadd.f32 %v3167, %v3327
        %v3329 = vpop.f32.mrf.mxu0
        %v3330 = vpop.f32.mrf.mxu0
        %v3331 = vadd.f32 %v3170, %v3330
        %v3332 = vpop.f32.mrf.mxu0
        %3333 = vmatprep.mubr.bf16.mxu0 %v2975
        %3334 = vmatmul.mubr.bf16.gmra.mxu0 %v2974
        %v3335 = vpop.f32.mrf.mxu0
        %v3336 = vadd.f32 %v3175, %v3335
        %v3337 = vpop.f32.mrf.mxu0
        %v3338 = vpop.f32.mrf.mxu0
        %v3339 = vadd.f32 %v3178, %v3338
        %v3340 = vpop.f32.mrf.mxu0
        %3341 = vmatprep.mubr.bf16.mxu0 %v2979
        %3342 = vmatmul.mubr.bf16.gmra.mxu0 %v2978
        %v3343 = vpop.f32.mrf.mxu0
        %v3344 = vadd.f32 %v3183, %v3343
        %v3345 = vpop.f32.mrf.mxu0
        %v3346 = vpop.f32.mrf.mxu0
        %v3347 = vadd.f32 %v3186, %v3346
        %v3348 = vpop.f32.mrf.mxu0
        %3349 = vmatprep.mubr.bf16.mxu0 %v2983
        %3350 = vmatmul.mubr.bf16.gmra.mxu0 %v2982
        %v3351 = vpop.f32.mrf.mxu0
        %v3352 = vadd.f32 %v3191, %v3351
        %v3353 = vpop.f32.mrf.mxu0
        %v3354 = vpop.f32.mrf.mxu0
        %v3355 = vadd.f32 %v3194, %v3354
        %v3356 = vpop.f32.mrf.mxu0
        %3357 = vmatprep.mubr.bf16.mxu0 %v2987
        %3358 = vmatmul.mubr.bf16.gmra.mxu0 %v2986
        %v3359 = vpop.f32.mrf.mxu0
        %v3360 = vadd.f32 %v3199, %v3359
        %v3361 = vpop.f32.mrf.mxu0
        %v3362 = vpop.f32.mrf.mxu0
        %v3363 = vadd.f32 %v3202, %v3362
        %v3364 = vpop.f32.mrf.mxu0
        %3365 = vmatprep.mubr.bf16.mxu0 %v2991
        %3366 = vmatmul.mubr.bf16.gmra.mxu0 %v2990
        %v3367 = vpop.f32.mrf.mxu0
        %v3368 = vadd.f32 %v3207, %v3367
        %v3369 = vpop.f32.mrf.mxu0
        %v3370 = vpop.f32.mrf.mxu0
        %v3371 = vadd.f32 %v3210, %v3370
        %v3372 = vpop.f32.mrf.mxu0
        %3373 = vmatprep.mubr.bf16.mxu0 %v2995
        %3374 = vmatmul.mubr.bf16.gmra.mxu0 %v2994
        %v3375 = vpop.f32.mrf.mxu0
        %v3376 = vadd.f32 %v3215, %v3375
        %v3377 = vpop.f32.mrf.mxu0
        %v3378 = vpop.f32.mrf.mxu0
        %v3379 = vadd.f32 %v3218, %v3378
        %v3380 = vpop.f32.mrf.mxu0
        %3381 = vdwg.mxu0
        %v3382 = vmax.f32 %v3256, 0.0
        %v3383 = vmax.f32 %v3259, 0.0
        %v3384 = vmax.f32 %v3264, 0.0
        %v3385 = vmax.f32 %v3267, 0.0
        %v3386 = vmax.f32 %v3272, 0.0
        %v3387 = vmax.f32 %v3275, 0.0
        %v3388 = vmax.f32 %v3280, 0.0
        %v3389 = vmax.f32 %v3283, 0.0
        %v3390 = vmax.f32 %v3288, 0.0
        %v3391 = vmax.f32 %v3291, 0.0
        %v3392 = vmax.f32 %v3296, 0.0
        %v3393 = vmax.f32 %v3299, 0.0
        %v3394 = vmax.f32 %v3304, 0.0
        %v3395 = vmax.f32 %v3307, 0.0
        %v3396 = vmax.f32 %v3312, 0.0
        %v3397 = vmax.f32 %v3315, 0.0
        %v3398 = vmax.f32 %v3320, 0.0
        %v3399 = vmax.f32 %v3323, 0.0
        %v3400 = vmax.f32 %v3328, 0.0
        %v3401 = vmax.f32 %v3331, 0.0
        %v3402 = vmax.f32 %v3336, 0.0
        %v3403 = vmax.f32 %v3339, 0.0
        %v3404 = vmax.f32 %v3344, 0.0
        %v3405 = vmax.f32 %v3347, 0.0
        %v3406 = vmax.f32 %v3352, 0.0
        %v3407 = vmax.f32 %v3355, 0.0
        %v3408 = vmax.f32 %v3360, 0.0
        %v3409 = vmax.f32 %v3363, 0.0
        %v3410 = vmax.f32 %v3368, 0.0
        %v3411 = vmax.f32 %v3371, 0.0
        %v3412 = vmax.f32 %v3376, 0.0
        %v3413 = vmax.f32 %v3379, 0.0
        %v3414 = vlaneseq
        %v3415 = vand.u32 %v3414, 127
        %vm3416 = vcmp.lt.s32.totalorder %v3415, 39
        %v3417 = vsel %vm3416, 1, 0
        %v3418 = vcvt.s32.f32 %v3417
        %v3419 = vmul.f32 %v3382, %v3418
        %v3420 = vmul.f32 %v3383, %v3418
        %v3421 = vmul.f32 %v3384, %v3418
        %v3422 = vmul.f32 %v3385, %v3418
        %v3423 = vmul.f32 %v3386, %v3418
        %v3424 = vmul.f32 %v3387, %v3418
        %v3425 = vmul.f32 %v3388, %v3418
        %v3426 = vmul.f32 %v3389, %v3418
        %v3427 = vmul.f32 %v3390, %v3418
        %v3428 = vmul.f32 %v3391, %v3418
        %v3429 = vmul.f32 %v3392, %v3418
        %v3430 = vmul.f32 %v3393, %v3418
        %v3431 = vmul.f32 %v3394, %v3418
        %v3432 = vmul.f32 %v3395, %v3418
        %v3433 = vmul.f32 %v3396, %v3418
        %v3434 = vmul.f32 %v3397, %v3418
        %v3435 = vmul.f32 %v3398, %v3418
        %v3436 = vmul.f32 %v3399, %v3418
        %v3437 = vmul.f32 %v3400, %v3418
        %v3438 = vmul.f32 %v3401, %v3418
        %v3439 = vmul.f32 %v3402, %v3418
        %v3440 = vmul.f32 %v3403, %v3418
        %v3441 = vmul.f32 %v3404, %v3418
        %v3442 = vmul.f32 %v3405, %v3418
        %v3443 = vmul.f32 %v3406, %v3418
        %v3444 = vmul.f32 %v3407, %v3418
        %v3445 = vmul.f32 %v3408, %v3418
        %v3446 = vmul.f32 %v3409, %v3418
        %v3447 = vmul.f32 %v3410, %v3418
        %v3448 = vmul.f32 %v3411, %v3418
        %v3449 = vmul.f32 %v3412, %v3418
        %v3450 = vmul.f32 %v3413, %v3418
        %v3451 = vld [vmem:[%s7] sm:$0xff]
        %v3452 = vld [vmem:[%s7 + $0x8] sm:$0xff]
        %v3453 = vld [vmem:[%s7 + $0x10] sm:$0xff]
        %v3454 = vld [vmem:[%s7 + $0x18] sm:$0xff]
        %v3455 = vld [vmem:[%s7 + $0x20] sm:$0xff]
        %v3456 = vld [vmem:[%s7 + $0x28] sm:$0xff]
        %v3457 = vld [vmem:[%s7 + $0x30] sm:$0xff]
        %v3458 = vld [vmem:[%s7 + $0x38] sm:$0xff]
        %3459 = vmatprep.subr.mxu0 0.0
        %3460 = vmatpush1.msra.mxu0 %v3434
        %3461 = vmatprep.subr.mxu0 0.0
        %3462 = vmatpush1.msra.mxu0 %v3433
        %3463 = vmatprep.subr.mxu0 0.0
        %3464 = vmatpush1.msra.mxu0 %v3432
        %3465 = vmatprep.subr.mxu0 0.0
        %3466 = vmatpush1.msra.mxu0 %v3431
        %3467 = vmatprep.subr.mxu0 0.0
        %3468 = vmatpush1.msra.mxu0 %v3430
        %3469 = vmatprep.subr.mxu0 0.0
        %3470 = vmatpush1.msra.mxu0 %v3429
        %3471 = vmatprep.subr.mxu0 0.0
        %3472 = vmatpush1.msra.mxu0 %v3428
        %3473 = vmatprep.subr.mxu0 0.0
        %3474 = vmatpush1.msra.mxu0 %v3427
        %3475 = vmatprep.subr.mxu0 0.0
        %3476 = vmatpush1.msra.mxu0 %v3426
        %3477 = vmatprep.subr.mxu0 0.0
        %3478 = vmatpush1.msra.mxu0 %v3425
        %3479 = vmatprep.subr.mxu0 0.0
        %3480 = vmatpush1.msra.mxu0 %v3424
        %3481 = vmatprep.subr.mxu0 0.0
        %3482 = vmatpush1.msra.mxu0 %v3423
        %3483 = vmatprep.subr.mxu0 0.0
        %3484 = vmatpush1.msra.mxu0 %v3422
        %3485 = vmatprep.subr.mxu0 0.0
        %3486 = vmatpush1.msra.mxu0 %v3421
        %3487 = vmatprep.subr.mxu0 0.0
        %3488 = vmatpush1.msra.mxu0 %v3420
        %3489 = vmatprep.subr.mxu0 0.0
        %3490 = vmatpush1.msra.mxu0 %v3419
        %3491 = vmatprep.subr.mxu0 0.0
        %3492 = vmatpush2.msra.mxu0 %v3450
        %3493 = vmatprep.subr.mxu0 0.0
        %3494 = vmatpush2.msra.mxu0 %v3449
        %3495 = vmatprep.subr.mxu0 0.0
        %3496 = vmatpush2.msra.mxu0 %v3448
        %3497 = vmatprep.subr.mxu0 0.0
        %3498 = vmatpush2.msra.mxu0 %v3447
        %3499 = vmatprep.subr.mxu0 0.0
        %3500 = vmatpush2.msra.mxu0 %v3446
        %3501 = vmatprep.subr.mxu0 0.0
        %3502 = vmatpush2.msra.mxu0 %v3445
        %3503 = vmatprep.subr.mxu0 0.0
        %3504 = vmatpush2.msra.mxu0 %v3444
        %3505 = vmatprep.subr.mxu0 0.0
        %3506 = vmatpush2.msra.mxu0 %v3443
        %3507 = vmatprep.subr.mxu0 0.0
        %3508 = vmatpush2.msra.mxu0 %v3442
        %3509 = vmatprep.subr.mxu0 0.0
        %3510 = vmatpush2.msra.mxu0 %v3441
        %3511 = vmatprep.subr.mxu0 0.0
        %3512 = vmatpush2.msra.mxu0 %v3440
        %3513 = vmatprep.subr.mxu0 0.0
        %3514 = vmatpush2.msra.mxu0 %v3439
        %3515 = vmatprep.subr.mxu0 0.0
        %3516 = vmatpush2.msra.mxu0 %v3438
        %3517 = vmatprep.subr.mxu0 0.0
        %3518 = vmatpush2.msra.mxu0 %v3437
        %3519 = vmatprep.subr.mxu0 0.0
        %3520 = vmatpush2.msra.mxu0 %v3436
        %3521 = vmatprep.subr.mxu0 0.0
        %3522 = vmatpush2.msra.mxu0 %v3435
        %3523 = vmatprep.mubr.f32.mxu0 %v3452
        %3524 = vmatmul.mubr.f32.gmra.mxu0 %v3451
        %v3525 = vpop.f32.mrf.mxu0
        %v3526 = vadd.f32 0.0, %v3525
        %v3527 = vpop.f32.mrf.mxu0
        %3528 = vmatprep.mubr.f32.mxu0 %v3454
        %3529 = vmatmul.mubr.f32.gmra.mxu0 %v3453
        %v3530 = vpop.f32.mrf.mxu0
        %v3531 = vadd.f32 0.0, %v3530
        %v3532 = vpop.f32.mrf.mxu0
        %3533 = vmatprep.mubr.f32.mxu0 %v3456
        %3534 = vmatmul.mubr.f32.gmra.mxu0 %v3455
        %v3535 = vpop.f32.mrf.mxu0
        %v3536 = vadd.f32 0.0, %v3535
        %v3537 = vpop.f32.mrf.mxu0
        %3538 = vmatprep.mubr.f32.mxu0 %v3458
        %3539 = vmatmul.mubr.f32.gmra.mxu0 %v3457
        %v3540 = vpop.f32.mrf.mxu0
        %v3541 = vadd.f32 0.0, %v3540
        %v3542 = vpop.f32.mrf.mxu0
        %3543 = vdwg.mxu0
        %v3544 = vld [vmem:[%s8] sm:$0xff]
        %v3545 = vld [vmem:[%s8 + $0x8] sm:$0x1]
        %vm3546 = vcmask 261120
        %v3548 = vsel %vm3546, %v3544, 0
        %v3551 = vsel %vm3546, %v3545, 0
        %3553 = vmatprep.subr.mxu0 0.0
        %3554 = vmatpush1.msra.mxu0 0.0
        %3555 = vmatprep.subr.mxu0 0.0
        %3556 = vmatpush1.msra.mxu0 0.0
        %3557 = vmatprep.subr.mxu0 0.0
        %3558 = vmatpush1.msra.mxu0 0.0
        %3559 = vmatprep.subr.mxu0 0.0
        %3560 = vmatpush1.msra.mxu0 0.0
        %3561 = vmatprep.subr.mxu0 0.0
        %3562 = vmatpush1.msra.mxu0 0.0
        %3563 = vmatprep.subr.mxu0 0.0
        %3564 = vmatpush1.msra.mxu0 0.0
        %3565 = vmatprep.subr.mxu0 0.0
        %3566 = vmatpush1.msra.mxu0 0.0
        %3567 = vmatprep.subr.mxu0 0.0
        %3568 = vmatpush1.msra.mxu0 0.0
        %3569 = vmatprep.subr.mxu0 0.0
        %3570 = vmatpush1.msra.mxu0 0.0
        %3571 = vmatprep.subr.mxu0 0.0
        %3572 = vmatpush1.msra.mxu0 0.0
        %3573 = vmatprep.subr.mxu0 0.0
        %3574 = vmatpush1.msra.mxu0 0.0
        %3575 = vmatprep.subr.mxu0 0.0
        %3576 = vmatpush1.msra.mxu0 0.0
        %3577 = vmatprep.subr.mxu0 0.0
        %3578 = vmatpush1.msra.mxu0 %v3541
        %3579 = vmatprep.subr.mxu0 0.0
        %3580 = vmatpush1.msra.mxu0 %v3536
        %3581 = vmatprep.subr.mxu0 0.0
        %3582 = vmatpush1.msra.mxu0 %v3531
        %3583 = vmatprep.subr.mxu0 0.0
        %3584 = vmatpush1.msra.mxu0 %v3526
        %3585 = vmatprep.subr.mxu0 0.0
        %3586 = vmatpush2.msra.mxu0 0.0
        %3587 = vmatprep.subr.mxu0 0.0
        %3588 = vmatpush2.msra.mxu0 0.0
        %3589 = vmatprep.subr.mxu0 0.0
        %3590 = vmatpush2.msra.mxu0 0.0
        %3591 = vmatprep.subr.mxu0 0.0
        %3592 = vmatpush2.msra.mxu0 0.0
        %3593 = vmatprep.subr.mxu0 0.0
        %3594 = vmatpush2.msra.mxu0 0.0
        %3595 = vmatprep.subr.mxu0 0.0
        %3596 = vmatpush2.msra.mxu0 0.0
        %3597 = vmatprep.subr.mxu0 0.0
        %3598 = vmatpush2.msra.mxu0 0.0
        %3599 = vmatprep.subr.mxu0 0.0
        %3600 = vmatpush2.msra.mxu0 0.0
        %3601 = vmatprep.subr.mxu0 0.0
        %3602 = vmatpush2.msra.mxu0 0.0
        %3603 = vmatprep.subr.mxu0 0.0
        %3604 = vmatpush2.msra.mxu0 0.0
        %3605 = vmatprep.subr.mxu0 0.0
        %3606 = vmatpush2.msra.mxu0 0.0
        %3607 = vmatprep.subr.mxu0 0.0
        %3608 = vmatpush2.msra.mxu0 0.0
        %3609 = vmatprep.subr.mxu0 0.0
        %3610 = vmatpush2.msra.mxu0 0.0
        %3611 = vmatprep.subr.mxu0 0.0
        %3612 = vmatpush2.msra.mxu0 0.0
        %3613 = vmatprep.subr.mxu0 0.0
        %3614 = vmatpush2.msra.mxu0 0.0
        %3615 = vmatprep.subr.mxu0 0.0
        %3616 = vmatpush2.msra.mxu0 0.0
        %3617 = vmatprep.mubr.f32.mxu0 0.0
        %3618 = vmatmul.mubr.f32.gmra.mxu0 %v3548
        %v3619 = vpop.f32.mrf.mxu0
        %v3620 = vadd.f32 0.0, %v3619
        %v3621 = vpop.f32.mrf.mxu0
        %3622 = vmatprep.mubr.f32.mxu0 0.0
        %3623 = vmatmul.mubr.f32.gmra.mxu0 %v3551
        %v3624 = vpop.f32.mrf.mxu0
        %v3625 = vadd.f32 0.0, %v3624
        %v3626 = vpop.f32.mrf.mxu0
        %3627 = vdwg.mxu0
        %3628 = vrot.lane.b32.xlu0 %v3620, 4
        %v3629 = vpop.permute.xlu0 %3628
        %v3630 = vadd.f32 %v3629, 0.0
        %v3632 = vrot.slane %v3620, 1
        %3634 = vrot.lane.b32.xlu0 %v3632, 3
        %v3635 = vpop.permute.xlu0 %3634
        %v3636 = vadd.f32 %v3630, %v3635
        %v3637 = vrot.slane %v3620, 2
        %3639 = vrot.lane.b32.xlu0 %v3637, 2
        %v3640 = vpop.permute.xlu0 %3639
        %v3641 = vadd.f32 %v3636, %v3640
        %v3642 = vrot.slane %v3620, 3
        %3644 = vrot.lane.b32.xlu0 %v3642, 1
        %v3645 = vpop.permute.xlu0 %3644
        %v3646 = vadd.f32 %v3641, %v3645
        %v3647 = vrot.slane %v3620, 4
        %v3649 = vadd.f32 %v3646, %v3647
        %v3650 = vrot.slane %v3620, 5
        %3652 = vrot.lane.b32.xlu0 %v3650, 127
        %v3653 = vpop.permute.xlu0 %3652
        %v3654 = vadd.f32 %v3649, %v3653
        %v3655 = vrot.slane %v3620, 6
        %3657 = vrot.lane.b32.xlu0 %v3655, 126
        %v3658 = vpop.permute.xlu0 %3657
        %v3659 = vadd.f32 %v3654, %v3658
        %v3660 = vrot.slane %v3620, 7
        %3662 = vrot.lane.b32.xlu0 %v3660, 125
        %v3663 = vpop.permute.xlu0 %3662
        %v3664 = vadd.f32 %v3659, %v3663
        %3665 = vrot.lane.b32.xlu0 %v3625, 124
        %v3666 = vpop.permute.xlu0 %3665
        %v3667 = vadd.f32 %v3664, %v3666
        %v3668 = vstv %s554
        %v3669 = vadd.f32 %v3667, %v3668
        %v3670 = vxor.u32 %v3669, 2147483648
        %v3671 = vmul.f32 %v3670, 1.442695
        %v3672 = vpow.pop %v3671
        %v3673 = vadd.f32 %v3672, 1.0
        %v3674 = vrcp.pop %v3673
        %v3675 = vmul.f32 1.0, %v3674
        %v3676 = vadd.f32 %v3675, 1.0
        %v3677 = vlaneseq
        %v3678 = vshrl.u32 %v3677, 7
        %v3679 = vsub.s32 0, %v3678
        %v3680 = vrot.slane %v3676, %v3679
        %v3681 = vmul.f32 %v3419, %v3680
        %v3682 = vmul.f32 %v3420, %v3680
        %v3683 = vmul.f32 %v3421, %v3680
        %v3684 = vmul.f32 %v3422, %v3680
        %v3685 = vmul.f32 %v3423, %v3680
        %v3686 = vmul.f32 %v3424, %v3680
        %v3687 = vmul.f32 %v3425, %v3680
        %v3688 = vmul.f32 %v3426, %v3680
        %v3689 = vmul.f32 %v3427, %v3680
        %v3690 = vmul.f32 %v3428, %v3680
        %v3691 = vmul.f32 %v3429, %v3680
        %v3692 = vmul.f32 %v3430, %v3680
        %v3693 = vmul.f32 %v3431, %v3680
        %v3694 = vmul.f32 %v3432, %v3680
        %v3695 = vmul.f32 %v3433, %v3680
        %v3696 = vmul.f32 %v3434, %v3680
        %v3697 = vmul.f32 %v3435, %v3680
        %v3698 = vmul.f32 %v3436, %v3680
        %v3699 = vmul.f32 %v3437, %v3680
        %v3700 = vmul.f32 %v3438, %v3680
        %v3701 = vmul.f32 %v3439, %v3680
        %v3702 = vmul.f32 %v3440, %v3680
        %v3703 = vmul.f32 %v3441, %v3680
        %v3704 = vmul.f32 %v3442, %v3680
        %v3705 = vmul.f32 %v3443, %v3680
        %v3706 = vmul.f32 %v3444, %v3680
        %v3707 = vmul.f32 %v3445, %v3680
        %v3708 = vmul.f32 %v3446, %v3680
        %v3709 = vmul.f32 %v3447, %v3680
        %v3710 = vmul.f32 %v3448, %v3680
        %v3711 = vmul.f32 %v3449, %v3680
        %v3712 = vmul.f32 %v3450, %v3680
        %3713 = vadd.xlane.f32.xlu0 %v3681
        %v3714 = vpop.xlane.xlu0 %3713
        %3715 = vadd.xlane.f32.xlu0 %v3682
        %v3716 = vpop.xlane.xlu0 %3715
        %3717 = vadd.xlane.f32.xlu0 %v3683
        %v3718 = vpop.xlane.xlu0 %3717
        %3719 = vadd.xlane.f32.xlu0 %v3684
        %v3720 = vpop.xlane.xlu0 %3719
        %3721 = vadd.xlane.f32.xlu0 %v3685
        %v3722 = vpop.xlane.xlu0 %3721
        %3723 = vadd.xlane.f32.xlu0 %v3686
        %v3724 = vpop.xlane.xlu0 %3723
        %3725 = vadd.xlane.f32.xlu0 %v3687
        %v3726 = vpop.xlane.xlu0 %3725
        %3727 = vadd.xlane.f32.xlu0 %v3688
        %v3728 = vpop.xlane.xlu0 %3727
        %3729 = vadd.xlane.f32.xlu0 %v3689
        %v3730 = vpop.xlane.xlu0 %3729
        %3731 = vadd.xlane.f32.xlu0 %v3690
        %v3732 = vpop.xlane.xlu0 %3731
        %3733 = vadd.xlane.f32.xlu0 %v3691
        %v3734 = vpop.xlane.xlu0 %3733
        %3735 = vadd.xlane.f32.xlu0 %v3692
        %v3736 = vpop.xlane.xlu0 %3735
        %3737 = vadd.xlane.f32.xlu0 %v3693
        %v3738 = vpop.xlane.xlu0 %3737
        %3739 = vadd.xlane.f32.xlu0 %v3694
        %v3740 = vpop.xlane.xlu0 %3739
        %3741 = vadd.xlane.f32.xlu0 %v3695
        %v3742 = vpop.xlane.xlu0 %3741
        %3743 = vadd.xlane.f32.xlu0 %v3696
        %v3744 = vpop.xlane.xlu0 %3743
        %3745 = vadd.xlane.f32.xlu0 %v3697
        %v3746 = vpop.xlane.xlu0 %3745
        %3747 = vadd.xlane.f32.xlu0 %v3698
        %v3748 = vpop.xlane.xlu0 %3747
        %3749 = vadd.xlane.f32.xlu0 %v3699
        %v3750 = vpop.xlane.xlu0 %3749
        %3751 = vadd.xlane.f32.xlu0 %v3700
        %v3752 = vpop.xlane.xlu0 %3751
        %3753 = vadd.xlane.f32.xlu0 %v3701
        %v3754 = vpop.xlane.xlu0 %3753
        %3755 = vadd.xlane.f32.xlu0 %v3702
        %v3756 = vpop.xlane.xlu0 %3755
        %3757 = vadd.xlane.f32.xlu0 %v3703
        %v3758 = vpop.xlane.xlu0 %3757
        %3759 = vadd.xlane.f32.xlu0 %v3704
        %v3760 = vpop.xlane.xlu0 %3759
        %3761 = vadd.xlane.f32.xlu0 %v3705
        %v3762 = vpop.xlane.xlu0 %3761
        %3763 = vadd.xlane.f32.xlu0 %v3706
        %v3764 = vpop.xlane.xlu0 %3763
        %3765 = vadd.xlane.f32.xlu0 %v3707
        %v3766 = vpop.xlane.xlu0 %3765
        %3767 = vadd.xlane.f32.xlu0 %v3708
        %v3768 = vpop.xlane.xlu0 %3767
        %3769 = vadd.xlane.f32.xlu0 %v3709
        %v3770 = vpop.xlane.xlu0 %3769
        %3771 = vadd.xlane.f32.xlu0 %v3710
        %v3772 = vpop.xlane.xlu0 %3771
        %3773 = vadd.xlane.f32.xlu0 %v3711
        %v3774 = vpop.xlane.xlu0 %3773
        %3775 = vadd.xlane.f32.xlu0 %v3712
        %v3776 = vpop.xlane.xlu0 %3775
        %v3777 = vld [vmem:[%s9] sm:$0xff]
        %v3778 = vld [vmem:[%s9 + $0x8] sm:$0xff]
        %v3779 = vld [vmem:[%s9 + $0x10] sm:$0xff]
        %v3780 = vld [vmem:[%s9 + $0x18] sm:$0xff]
        %v3781 = vld [vmem:[%s9 + $0x20] sm:$0xff]
        %v3782 = vld [vmem:[%s9 + $0x28] sm:$0xff]
        %v3783 = vld [vmem:[%s9 + $0x30] sm:$0xff]
        %v3784 = vld [vmem:[%s9 + $0x38] sm:$0xff]
        %v3785 = vld [vmem:[%s9 + $0x40] sm:$0xff]
        %v3786 = vld [vmem:[%s9 + $0x48] sm:$0xff]
        %v3787 = vld [vmem:[%s9 + $0x50] sm:$0xff]
        %v3788 = vld [vmem:[%s9 + $0x58] sm:$0xff]
        %v3789 = vld [vmem:[%s9 + $0x60] sm:$0xff]
        %v3790 = vld [vmem:[%s9 + $0x68] sm:$0xff]
        %v3791 = vld [vmem:[%s9 + $0x70] sm:$0xff]
        %v3792 = vld [vmem:[%s9 + $0x78] sm:$0xff]
        %v3793 = vld [vmem:[%s9 + $0x80] sm:$0xff]
        %v3794 = vld [vmem:[%s9 + $0x88] sm:$0xff]
        %v3795 = vld [vmem:[%s9 + $0x90] sm:$0xff]
        %v3796 = vld [vmem:[%s9 + $0x98] sm:$0xff]
        %v3797 = vld [vmem:[%s9 + $0xa0] sm:$0xff]
        %v3798 = vld [vmem:[%s9 + $0xa8] sm:$0xff]
        %v3799 = vld [vmem:[%s9 + $0xb0] sm:$0xff]
        %v3800 = vld [vmem:[%s9 + $0xb8] sm:$0xff]
        %v3801 = vld [vmem:[%s9 + $0xc0] sm:$0xff]
        %v3802 = vld [vmem:[%s9 + $0xc8] sm:$0xff]
        %v3803 = vld [vmem:[%s9 + $0xd0] sm:$0xff]
        %v3804 = vld [vmem:[%s9 + $0xd8] sm:$0xff]
        %v3805 = vld [vmem:[%s9 + $0xe0] sm:$0xff]
        %v3806 = vld [vmem:[%s9 + $0xe8] sm:$0xff]
        %v3807 = vld [vmem:[%s9 + $0xf0] sm:$0xff]
        %v3808 = vld [vmem:[%s9 + $0xf8] sm:$0xff]
        %v3809 = vld [vmem:[%s9 + $0x100] sm:$0xff]
        %v3810 = vld [vmem:[%s9 + $0x108] sm:$0xff]
        %v3811 = vld [vmem:[%s9 + $0x110] sm:$0xff]
        %v3812 = vld [vmem:[%s9 + $0x118] sm:$0xff]
        %v3813 = vld [vmem:[%s9 + $0x120] sm:$0xff]
        %v3814 = vld [vmem:[%s9 + $0x128] sm:$0xff]
        %v3815 = vld [vmem:[%s9 + $0x130] sm:$0xff]
        %v3816 = vld [vmem:[%s9 + $0x138] sm:$0xff]
        %v3817 = vld [vmem:[%s9 + $0x140] sm:$0xff]
        %v3818 = vld [vmem:[%s9 + $0x148] sm:$0xff]
        %v3819 = vld [vmem:[%s9 + $0x150] sm:$0xff]
        %v3820 = vld [vmem:[%s9 + $0x158] sm:$0xff]
        %v3821 = vld [vmem:[%s9 + $0x160] sm:$0xff]
        %v3822 = vld [vmem:[%s9 + $0x168] sm:$0xff]
        %v3823 = vld [vmem:[%s9 + $0x170] sm:$0xff]
        %v3824 = vld [vmem:[%s9 + $0x178] sm:$0xff]
        %v3825 = vld [vmem:[%s9 + $0x180] sm:$0xff]
        %v3826 = vld [vmem:[%s9 + $0x188] sm:$0xff]
        %v3827 = vld [vmem:[%s9 + $0x190] sm:$0xff]
        %v3828 = vld [vmem:[%s9 + $0x198] sm:$0xff]
        %v3829 = vld [vmem:[%s9 + $0x1a0] sm:$0xff]
        %v3830 = vld [vmem:[%s9 + $0x1a8] sm:$0xff]
        %v3831 = vld [vmem:[%s9 + $0x1b0] sm:$0xff]
        %v3832 = vld [vmem:[%s9 + $0x1b8] sm:$0xff]
        %v3833 = vld [vmem:[%s9 + $0x1c0] sm:$0xff]
        %v3834 = vld [vmem:[%s9 + $0x1c8] sm:$0xff]
        %v3835 = vld [vmem:[%s9 + $0x1d0] sm:$0xff]
        %v3836 = vld [vmem:[%s9 + $0x1d8] sm:$0xff]
        %v3837 = vld [vmem:[%s9 + $0x1e0] sm:$0xff]
        %v3838 = vld [vmem:[%s9 + $0x1e8] sm:$0xff]
        %v3839 = vld [vmem:[%s9 + $0x1f0] sm:$0xff]
        %v3840 = vld [vmem:[%s9 + $0x1f8] sm:$0xff]
        %v3841 = vstv %s555
        %3842 = vmatprep.subr.mxu0 0.0
        %3843 = vmatpush1.msra.mxu0 %v3744
        %3844 = vmatprep.subr.mxu0 0.0
        %3845 = vmatpush1.msra.mxu0 %v3742
        %3846 = vmatprep.subr.mxu0 0.0
        %3847 = vmatpush1.msra.mxu0 %v3740
        %3848 = vmatprep.subr.mxu0 0.0
        %3849 = vmatpush1.msra.mxu0 %v3738
        %3850 = vmatprep.subr.mxu0 0.0
        %3851 = vmatpush1.msra.mxu0 %v3736
        %3852 = vmatprep.subr.mxu0 0.0
        %3853 = vmatpush1.msra.mxu0 %v3734
        %3854 = vmatprep.subr.mxu0 0.0
        %3855 = vmatpush1.msra.mxu0 %v3732
        %3856 = vmatprep.subr.mxu0 0.0
        %3857 = vmatpush1.msra.mxu0 %v3730
        %3858 = vmatprep.subr.mxu0 0.0
        %3859 = vmatpush1.msra.mxu0 %v3728
        %3860 = vmatprep.subr.mxu0 0.0
        %3861 = vmatpush1.msra.mxu0 %v3726
        %3862 = vmatprep.subr.mxu0 0.0
        %3863 = vmatpush1.msra.mxu0 %v3724
        %3864 = vmatprep.subr.mxu0 0.0
        %3865 = vmatpush1.msra.mxu0 %v3722
        %3866 = vmatprep.subr.mxu0 0.0
        %3867 = vmatpush1.msra.mxu0 %v3720
        %3868 = vmatprep.subr.mxu0 0.0
        %3869 = vmatpush1.msra.mxu0 %v3718
        %3870 = vmatprep.subr.mxu0 0.0
        %3871 = vmatpush1.msra.mxu0 %v3716
        %3872 = vmatprep.subr.mxu0 0.0
        %3873 = vmatpush1.msra.mxu0 %v3714
        %3874 = vmatprep.subr.mxu0 0.0
        %3875 = vmatpush2.msra.mxu0 %v3776
        %3876 = vmatprep.subr.mxu0 0.0
        %3877 = vmatpush2.msra.mxu0 %v3774
        %3878 = vmatprep.subr.mxu0 0.0
        %3879 = vmatpush2.msra.mxu0 %v3772
        %3880 = vmatprep.subr.mxu0 0.0
        %3881 = vmatpush2.msra.mxu0 %v3770
        %3882 = vmatprep.subr.mxu0 0.0
        %3883 = vmatpush2.msra.mxu0 %v3768
        %3884 = vmatprep.subr.mxu0 0.0
        %3885 = vmatpush2.msra.mxu0 %v3766
        %3886 = vmatprep.subr.mxu0 0.0
        %3887 = vmatpush2.msra.mxu0 %v3764
        %3888 = vmatprep.subr.mxu0 0.0
        %3889 = vmatpush2.msra.mxu0 %v3762
        %3890 = vmatprep.subr.mxu0 0.0
        %3891 = vmatpush2.msra.mxu0 %v3760
        %3892 = vmatprep.subr.mxu0 0.0
        %3893 = vmatpush2.msra.mxu0 %v3758
        %3894 = vmatprep.subr.mxu0 0.0
        %3895 = vmatpush2.msra.mxu0 %v3756
        %3896 = vmatprep.subr.mxu0 0.0
        %3897 = vmatpush2.msra.mxu0 %v3754
        %3898 = vmatprep.subr.mxu0 0.0
        %3899 = vmatpush2.msra.mxu0 %v3752
        %3900 = vmatprep.subr.mxu0 0.0
        %3901 = vmatpush2.msra.mxu0 %v3750
        %3902 = vmatprep.subr.mxu0 0.0
        %3903 = vmatpush2.msra.mxu0 %v3748
        %3904 = vmatprep.subr.mxu0 0.0
        %3905 = vmatpush2.msra.mxu0 %v3746
        %3906 = vmatprep.mubr.f32.mxu0 %v3778
        %3907 = vmatmul.mubr.f32.gmra.mxu0 %v3777
        %v3908 = vpop.f32.mrf.mxu0
        %v3909 = vadd.f32 %v3841, %v3908
        %v3910 = vpop.f32.mrf.mxu0
        %3911 = vmatprep.mubr.f32.mxu0 %v3780
        %3912 = vmatmul.mubr.f32.gmra.mxu0 %v3779
        %v3913 = vpop.f32.mrf.mxu0
        %v3914 = vadd.f32 %v3841, %v3913
        %v3915 = vpop.f32.mrf.mxu0
        %3916 = vmatprep.mubr.f32.mxu0 %v3782
        %3917 = vmatmul.mubr.f32.gmra.mxu0 %v3781
        %v3918 = vpop.f32.mrf.mxu0
        %v3919 = vadd.f32 %v3841, %v3918
        %v3920 = vpop.f32.mrf.mxu0
        %3921 = vmatprep.mubr.f32.mxu0 %v3784
        %3922 = vmatmul.mubr.f32.gmra.mxu0 %v3783
        %v3923 = vpop.f32.mrf.mxu0
        %v3924 = vadd.f32 %v3841, %v3923
        %v3925 = vpop.f32.mrf.mxu0
        %3926 = vmatprep.mubr.f32.mxu0 %v3786
        %3927 = vmatmul.mubr.f32.gmra.mxu0 %v3785
        %v3928 = vpop.f32.mrf.mxu0
        %v3929 = vadd.f32 %v3841, %v3928
        %v3930 = vpop.f32.mrf.mxu0
        %3931 = vmatprep.mubr.f32.mxu0 %v3788
        %3932 = vmatmul.mubr.f32.gmra.mxu0 %v3787
        %v3933 = vpop.f32.mrf.mxu0
        %v3934 = vadd.f32 %v3841, %v3933
        %v3935 = vpop.f32.mrf.mxu0
        %3936 = vmatprep.mubr.f32.mxu0 %v3790
        %3937 = vmatmul.mubr.f32.gmra.mxu0 %v3789
        %v3938 = vpop.f32.mrf.mxu0
        %v3939 = vadd.f32 %v3841, %v3938
        %v3940 = vpop.f32.mrf.mxu0
        %3941 = vmatprep.mubr.f32.mxu0 %v3792
        %3942 = vmatmul.mubr.f32.gmra.mxu0 %v3791
        %v3943 = vpop.f32.mrf.mxu0
        %v3944 = vadd.f32 %v3841, %v3943
        %v3945 = vpop.f32.mrf.mxu0
        %3946 = vmatprep.mubr.f32.mxu0 %v3794
        %3947 = vmatmul.mubr.f32.gmra.mxu0 %v3793
        %v3948 = vpop.f32.mrf.mxu0
        %v3949 = vadd.f32 %v3841, %v3948
        %v3950 = vpop.f32.mrf.mxu0
        %3951 = vmatprep.mubr.f32.mxu0 %v3796
        %3952 = vmatmul.mubr.f32.gmra.mxu0 %v3795
        %v3953 = vpop.f32.mrf.mxu0
        %v3954 = vadd.f32 %v3841, %v3953
        %v3955 = vpop.f32.mrf.mxu0
        %3956 = vmatprep.mubr.f32.mxu0 %v3798
        %3957 = vmatmul.mubr.f32.gmra.mxu0 %v3797
        %v3958 = vpop.f32.mrf.mxu0
        %v3959 = vadd.f32 %v3841, %v3958
        %v3960 = vpop.f32.mrf.mxu0
        %3961 = vmatprep.mubr.f32.mxu0 %v3800
        %3962 = vmatmul.mubr.f32.gmra.mxu0 %v3799
        %v3963 = vpop.f32.mrf.mxu0
        %v3964 = vadd.f32 %v3841, %v3963
        %v3965 = vpop.f32.mrf.mxu0
        %3966 = vmatprep.mubr.f32.mxu0 %v3802
        %3967 = vmatmul.mubr.f32.gmra.mxu0 %v3801
        %v3968 = vpop.f32.mrf.mxu0
        %v3969 = vadd.f32 %v3841, %v3968
        %v3970 = vpop.f32.mrf.mxu0
        %3971 = vmatprep.mubr.f32.mxu0 %v3804
        %3972 = vmatmul.mubr.f32.gmra.mxu0 %v3803
        %v3973 = vpop.f32.mrf.mxu0
        %v3974 = vadd.f32 %v3841, %v3973
        %v3975 = vpop.f32.mrf.mxu0
        %3976 = vmatprep.mubr.f32.mxu0 %v3806
        %3977 = vmatmul.mubr.f32.gmra.mxu0 %v3805
        %v3978 = vpop.f32.mrf.mxu0
        %v3979 = vadd.f32 %v3841, %v3978
        %v3980 = vpop.f32.mrf.mxu0
        %3981 = vmatprep.mubr.f32.mxu0 %v3808
        %3982 = vmatmul.mubr.f32.gmra.mxu0 %v3807
        %v3983 = vpop.f32.mrf.mxu0
        %v3984 = vadd.f32 %v3841, %v3983
        %v3985 = vpop.f32.mrf.mxu0
        %3986 = vmatprep.mubr.f32.mxu0 %v3810
        %3987 = vmatmul.mubr.f32.gmra.mxu0 %v3809
        %v3988 = vpop.f32.mrf.mxu0
        %v3989 = vadd.f32 %v3841, %v3988
        %v3990 = vpop.f32.mrf.mxu0
        %3991 = vmatprep.mubr.f32.mxu0 %v3812
        %3992 = vmatmul.mubr.f32.gmra.mxu0 %v3811
        %v3993 = vpop.f32.mrf.mxu0
        %v3994 = vadd.f32 %v3841, %v3993
        %v3995 = vpop.f32.mrf.mxu0
        %3996 = vmatprep.mubr.f32.mxu0 %v3814
        %3997 = vmatmul.mubr.f32.gmra.mxu0 %v3813
        %v3998 = vpop.f32.mrf.mxu0
        %v3999 = vadd.f32 %v3841, %v3998
        %v4000 = vpop.f32.mrf.mxu0
        %4001 = vmatprep.mubr.f32.mxu0 %v3816
        %4002 = vmatmul.mubr.f32.gmra.mxu0 %v3815
        %v4003 = vpop.f32.mrf.mxu0
        %v4004 = vadd.f32 %v3841, %v4003
        %v4005 = vpop.f32.mrf.mxu0
        %4006 = vmatprep.mubr.f32.mxu0 %v3818
        %4007 = vmatmul.mubr.f32.gmra.mxu0 %v3817
        %v4008 = vpop.f32.mrf.mxu0
        %v4009 = vadd.f32 %v3841, %v4008
        %v4010 = vpop.f32.mrf.mxu0
        %4011 = vmatprep.mubr.f32.mxu0 %v3820
        %4012 = vmatmul.mubr.f32.gmra.mxu0 %v3819
        %v4013 = vpop.f32.mrf.mxu0
        %v4014 = vadd.f32 %v3841, %v4013
        %v4015 = vpop.f32.mrf.mxu0
        %4016 = vmatprep.mubr.f32.mxu0 %v3822
        %4017 = vmatmul.mubr.f32.gmra.mxu0 %v3821
        %v4018 = vpop.f32.mrf.mxu0
        %v4019 = vadd.f32 %v3841, %v4018
        %v4020 = vpop.f32.mrf.mxu0
        %4021 = vmatprep.mubr.f32.mxu0 %v3824
        %4022 = vmatmul.mubr.f32.gmra.mxu0 %v3823
        %v4023 = vpop.f32.mrf.mxu0
        %v4024 = vadd.f32 %v3841, %v4023
        %v4025 = vpop.f32.mrf.mxu0
        %4026 = vmatprep.mubr.f32.mxu0 %v3826
        %4027 = vmatmul.mubr.f32.gmra.mxu0 %v3825
        %v4028 = vpop.f32.mrf.mxu0
        %v4029 = vadd.f32 %v3841, %v4028
        %v4030 = vpop.f32.mrf.mxu0
        %4031 = vmatprep.mubr.f32.mxu0 %v3828
        %4032 = vmatmul.mubr.f32.gmra.mxu0 %v3827
        %v4033 = vpop.f32.mrf.mxu0
        %v4034 = vadd.f32 %v3841, %v4033
        %v4035 = vpop.f32.mrf.mxu0
        %4036 = vmatprep.mubr.f32.mxu0 %v3830
        %4037 = vmatmul.mubr.f32.gmra.mxu0 %v3829
        %v4038 = vpop.f32.mrf.mxu0
        %v4039 = vadd.f32 %v3841, %v4038
        %v4040 = vpop.f32.mrf.mxu0
        %4041 = vmatprep.mubr.f32.mxu0 %v3832
        %4042 = vmatmul.mubr.f32.gmra.mxu0 %v3831
        %v4043 = vpop.f32.mrf.mxu0
        %v4044 = vadd.f32 %v3841, %v4043
        %v4045 = vpop.f32.mrf.mxu0
        %4046 = vmatprep.mubr.f32.mxu0 %v3834
        %4047 = vmatmul.mubr.f32.gmra.mxu0 %v3833
        %v4048 = vpop.f32.mrf.mxu0
        %v4049 = vadd.f32 %v3841, %v4048
        %v4050 = vpop.f32.mrf.mxu0
        %4051 = vmatprep.mubr.f32.mxu0 %v3836
        %4052 = vmatmul.mubr.f32.gmra.mxu0 %v3835
        %v4053 = vpop.f32.mrf.mxu0
        %v4054 = vadd.f32 %v3841, %v4053
        %v4055 = vpop.f32.mrf.mxu0
        %4056 = vmatprep.mubr.f32.mxu0 %v3838
        %4057 = vmatmul.mubr.f32.gmra.mxu0 %v3837
        %v4058 = vpop.f32.mrf.mxu0
        %v4059 = vadd.f32 %v3841, %v4058
        %v4060 = vpop.f32.mrf.mxu0
        %4061 = vmatprep.mubr.f32.mxu0 %v3840
        %4062 = vmatmul.mubr.f32.gmra.mxu0 %v3839
        %v4063 = vpop.f32.mrf.mxu0
        %v4064 = vadd.f32 %v3841, %v4063
        %v4065 = vpop.f32.mrf.mxu0
        %4066 = vdwg.mxu0
        %v4067 = vxor.u32 %v3909, 2147483648
        %v4068 = vxor.u32 %v3914, 2147483648
        %v4069 = vxor.u32 %v3919, 2147483648
        %v4070 = vxor.u32 %v3924, 2147483648
        %v4071 = vxor.u32 %v3929, 2147483648
        %v4072 = vxor.u32 %v3934, 2147483648
        %v4073 = vxor.u32 %v3939, 2147483648
        %v4074 = vxor.u32 %v3944, 2147483648
        %v4075 = vxor.u32 %v3949, 2147483648
        %v4076 = vxor.u32 %v3954, 2147483648
        %v4077 = vxor.u32 %v3959, 2147483648
        %v4078 = vxor.u32 %v3964, 2147483648
        %v4079 = vxor.u32 %v3969, 2147483648
        %v4080 = vxor.u32 %v3974, 2147483648
        %v4081 = vxor.u32 %v3979, 2147483648
        %v4082 = vxor.u32 %v3984, 2147483648
        %v4083 = vxor.u32 %v3989, 2147483648
        %v4084 = vxor.u32 %v3994, 2147483648
        %v4085 = vxor.u32 %v3999, 2147483648
        %v4086 = vxor.u32 %v4004, 2147483648
        %v4087 = vxor.u32 %v4009, 2147483648
        %v4088 = vxor.u32 %v4014, 2147483648
        %v4089 = vxor.u32 %v4019, 2147483648
        %v4090 = vxor.u32 %v4024, 2147483648
        %v4091 = vxor.u32 %v4029, 2147483648
        %v4092 = vxor.u32 %v4034, 2147483648
        %v4093 = vxor.u32 %v4039, 2147483648
        %v4094 = vxor.u32 %v4044, 2147483648
        %v4095 = vxor.u32 %v4049, 2147483648
        %v4096 = vxor.u32 %v4054, 2147483648
        %v4097 = vxor.u32 %v4059, 2147483648
        %v4098 = vxor.u32 %v4064, 2147483648
        %v4099 = vmul.f32 %v4067, 1.442695
        %v4100 = vpow.pop %v4099
        %v4101 = vmul.f32 %v4068, 1.442695
        %v4102 = vpow.pop %v4101
        %v4103 = vmul.f32 %v4069, 1.442695
        %v4104 = vpow.pop %v4103
        %v4105 = vmul.f32 %v4070, 1.442695
        %v4106 = vpow.pop %v4105
        %v4107 = vmul.f32 %v4071, 1.442695
        %v4108 = vpow.pop %v4107
        %v4109 = vmul.f32 %v4072, 1.442695
        %v4110 = vpow.pop %v4109
        %v4111 = vmul.f32 %v4073, 1.442695
        %v4112 = vpow.pop %v4111
        %v4113 = vmul.f32 %v4074, 1.442695
        %v4114 = vpow.pop %v4113
        %v4115 = vmul.f32 %v4075, 1.442695
        %v4116 = vpow.pop %v4115
        %v4117 = vmul.f32 %v4076, 1.442695
        %v4118 = vpow.pop %v4117
        %v4119 = vmul.f32 %v4077, 1.442695
        %v4120 = vpow.pop %v4119
        %v4121 = vmul.f32 %v4078, 1.442695
        %v4122 = vpow.pop %v4121
        %v4123 = vmul.f32 %v4079, 1.442695
        %v4124 = vpow.pop %v4123
        %v4125 = vmul.f32 %v4080, 1.442695
        %v4126 = vpow.pop %v4125
        %v4127 = vmul.f32 %v4081, 1.442695
        %v4128 = vpow.pop %v4127
        %v4129 = vmul.f32 %v4082, 1.442695
        %v4130 = vpow.pop %v4129
        %v4131 = vmul.f32 %v4083, 1.442695
        %v4132 = vpow.pop %v4131
        %v4133 = vmul.f32 %v4084, 1.442695
        %v4134 = vpow.pop %v4133
        %v4135 = vmul.f32 %v4085, 1.442695
        %v4136 = vpow.pop %v4135
        %v4137 = vmul.f32 %v4086, 1.442695
        %v4138 = vpow.pop %v4137
        %v4139 = vmul.f32 %v4087, 1.442695
        %v4140 = vpow.pop %v4139
        %v4141 = vmul.f32 %v4088, 1.442695
        %v4142 = vpow.pop %v4141
        %v4143 = vmul.f32 %v4089, 1.442695
        %v4144 = vpow.pop %v4143
        %v4145 = vmul.f32 %v4090, 1.442695
        %v4146 = vpow.pop %v4145
        %v4147 = vmul.f32 %v4091, 1.442695
        %v4148 = vpow.pop %v4147
        %v4149 = vmul.f32 %v4092, 1.442695
        %v4150 = vpow.pop %v4149
        %v4151 = vmul.f32 %v4093, 1.442695
        %v4152 = vpow.pop %v4151
        %v4153 = vmul.f32 %v4094, 1.442695
        %v4154 = vpow.pop %v4153
        %v4155 = vmul.f32 %v4095, 1.442695
        %v4156 = vpow.pop %v4155
        %v4157 = vmul.f32 %v4096, 1.442695
        %v4158 = vpow.pop %v4157
        %v4159 = vmul.f32 %v4097, 1.442695
        %v4160 = vpow.pop %v4159
        %v4161 = vmul.f32 %v4098, 1.442695
        %v4162 = vpow.pop %v4161
        %v4163 = vadd.f32 %v4100, 1.0
        %v4164 = vadd.f32 %v4102, 1.0
        %v4165 = vadd.f32 %v4104, 1.0
        %v4166 = vadd.f32 %v4106, 1.0
        %v4167 = vadd.f32 %v4108, 1.0
        %v4168 = vadd.f32 %v4110, 1.0
        %v4169 = vadd.f32 %v4112, 1.0
        %v4170 = vadd.f32 %v4114, 1.0
        %v4171 = vadd.f32 %v4116, 1.0
        %v4172 = vadd.f32 %v4118, 1.0
        %v4173 = vadd.f32 %v4120, 1.0
        %v4174 = vadd.f32 %v4122, 1.0
        %v4175 = vadd.f32 %v4124, 1.0
        %v4176 = vadd.f32 %v4126, 1.0
        %v4177 = vadd.f32 %v4128, 1.0
        %v4178 = vadd.f32 %v4130, 1.0
        %v4179 = vadd.f32 %v4132, 1.0
        %v4180 = vadd.f32 %v4134, 1.0
        %v4181 = vadd.f32 %v4136, 1.0
        %v4182 = vadd.f32 %v4138, 1.0
        %v4183 = vadd.f32 %v4140, 1.0
        %v4184 = vadd.f32 %v4142, 1.0
        %v4185 = vadd.f32 %v4144, 1.0
        %v4186 = vadd.f32 %v4146, 1.0
        %v4187 = vadd.f32 %v4148, 1.0
        %v4188 = vadd.f32 %v4150, 1.0
        %v4189 = vadd.f32 %v4152, 1.0
        %v4190 = vadd.f32 %v4154, 1.0
        %v4191 = vadd.f32 %v4156, 1.0
        %v4192 = vadd.f32 %v4158, 1.0
        %v4193 = vadd.f32 %v4160, 1.0
        %v4194 = vadd.f32 %v4162, 1.0
        %v4195 = vrcp.pop %v4163
        %v4196 = vmul.f32 1.0, %v4195
        %v4197 = vrcp.pop %v4164
        %v4198 = vmul.f32 1.0, %v4197
        %v4199 = vrcp.pop %v4165
        %v4200 = vmul.f32 1.0, %v4199
        %v4201 = vrcp.pop %v4166
        %v4202 = vmul.f32 1.0, %v4201
        %v4203 = vrcp.pop %v4167
        %v4204 = vmul.f32 1.0, %v4203
        %v4205 = vrcp.pop %v4168
        %v4206 = vmul.f32 1.0, %v4205
        %v4207 = vrcp.pop %v4169
        %v4208 = vmul.f32 1.0, %v4207
        %v4209 = vrcp.pop %v4170
        %v4210 = vmul.f32 1.0, %v4209
        %v4211 = vrcp.pop %v4171
        %v4212 = vmul.f32 1.0, %v4211
        %v4213 = vrcp.pop %v4172
        %v4214 = vmul.f32 1.0, %v4213
        %v4215 = vrcp.pop %v4173
        %v4216 = vmul.f32 1.0, %v4215
        %v4217 = vrcp.pop %v4174
        %v4218 = vmul.f32 1.0, %v4217
        %v4219 = vrcp.pop %v4175
        %v4220 = vmul.f32 1.0, %v4219
        %v4221 = vrcp.pop %v4176
        %v4222 = vmul.f32 1.0, %v4221
        %v4223 = vrcp.pop %v4177
        %v4224 = vmul.f32 1.0, %v4223
        %v4225 = vrcp.pop %v4178
        %v4226 = vmul.f32 1.0, %v4225
        %v4227 = vrcp.pop %v4179
        %v4228 = vmul.f32 1.0, %v4227
        %v4229 = vrcp.pop %v4180
        %v4230 = vmul.f32 1.0, %v4229
        %v4231 = vrcp.pop %v4181
        %v4232 = vmul.f32 1.0, %v4231
        %v4233 = vrcp.pop %v4182
        %v4234 = vmul.f32 1.0, %v4233
        %v4235 = vrcp.pop %v4183
        %v4236 = vmul.f32 1.0, %v4235
        %v4237 = vrcp.pop %v4184
        %v4238 = vmul.f32 1.0, %v4237
        %v4239 = vrcp.pop %v4185
        %v4240 = vmul.f32 1.0, %v4239
        %v4241 = vrcp.pop %v4186
        %v4242 = vmul.f32 1.0, %v4241
        %v4243 = vrcp.pop %v4187
        %v4244 = vmul.f32 1.0, %v4243
        %v4245 = vrcp.pop %v4188
        %v4246 = vmul.f32 1.0, %v4245
        %v4247 = vrcp.pop %v4189
        %v4248 = vmul.f32 1.0, %v4247
        %v4249 = vrcp.pop %v4190
        %v4250 = vmul.f32 1.0, %v4249
        %v4251 = vrcp.pop %v4191
        %v4252 = vmul.f32 1.0, %v4251
        %v4253 = vrcp.pop %v4192
        %v4254 = vmul.f32 1.0, %v4253
        %v4255 = vrcp.pop %v4193
        %v4256 = vmul.f32 1.0, %v4255
        %v4257 = vrcp.pop %v4194
        %v4258 = vmul.f32 1.0, %v4257
        %v4259 = vadd.f32 %v4196, 1.0
        %v4260 = vadd.f32 %v4198, 1.0
        %v4261 = vadd.f32 %v4200, 1.0
        %v4262 = vadd.f32 %v4202, 1.0
        %v4263 = vadd.f32 %v4204, 1.0
        %v4264 = vadd.f32 %v4206, 1.0
        %v4265 = vadd.f32 %v4208, 1.0
        %v4266 = vadd.f32 %v4210, 1.0
        %v4267 = vadd.f32 %v4212, 1.0
        %v4268 = vadd.f32 %v4214, 1.0
        %v4269 = vadd.f32 %v4216, 1.0
        %v4270 = vadd.f32 %v4218, 1.0
        %v4271 = vadd.f32 %v4220, 1.0
        %v4272 = vadd.f32 %v4222, 1.0
        %v4273 = vadd.f32 %v4224, 1.0
        %v4274 = vadd.f32 %v4226, 1.0
        %v4275 = vadd.f32 %v4228, 1.0
        %v4276 = vadd.f32 %v4230, 1.0
        %v4277 = vadd.f32 %v4232, 1.0
        %v4278 = vadd.f32 %v4234, 1.0
        %v4279 = vadd.f32 %v4236, 1.0
        %v4280 = vadd.f32 %v4238, 1.0
        %v4281 = vadd.f32 %v4240, 1.0
        %v4282 = vadd.f32 %v4242, 1.0
        %v4283 = vadd.f32 %v4244, 1.0
        %v4284 = vadd.f32 %v4246, 1.0
        %v4285 = vadd.f32 %v4248, 1.0
        %v4286 = vadd.f32 %v4250, 1.0
        %v4287 = vadd.f32 %v4252, 1.0
        %v4288 = vadd.f32 %v4254, 1.0
        %v4289 = vadd.f32 %v4256, 1.0
        %v4290 = vadd.f32 %v4258, 1.0
        %4292 = vset.pattern.permute.xlu0 0
        %4293 = vperm.xlu0 %4292, %v4259
        %v4294 = vpop.permute.xlu0 %4293
        %4297 = vset.pattern.permute.xlu0 0
        %4298 = vperm.xlu0 %4297, %v4260
        %v4299 = vpop.permute.xlu0 %4298
        %4302 = vset.pattern.permute.xlu0 0
        %4303 = vperm.xlu0 %4302, %v4261
        %v4304 = vpop.permute.xlu0 %4303
        %4307 = vset.pattern.permute.xlu0 0
        %4308 = vperm.xlu0 %4307, %v4262
        %v4309 = vpop.permute.xlu0 %4308
        %4312 = vset.pattern.permute.xlu0 0
        %4313 = vperm.xlu0 %4312, %v4263
        %v4314 = vpop.permute.xlu0 %4313
        %4317 = vset.pattern.permute.xlu0 0
        %4318 = vperm.xlu0 %4317, %v4264
        %v4319 = vpop.permute.xlu0 %4318
        %4322 = vset.pattern.permute.xlu0 0
        %4323 = vperm.xlu0 %4322, %v4265
        %v4324 = vpop.permute.xlu0 %4323
        %4327 = vset.pattern.permute.xlu0 0
        %4328 = vperm.xlu0 %4327, %v4266
        %v4329 = vpop.permute.xlu0 %4328
        %4332 = vset.pattern.permute.xlu0 0
        %4333 = vperm.xlu0 %4332, %v4267
        %v4334 = vpop.permute.xlu0 %4333
        %4337 = vset.pattern.permute.xlu0 0
        %4338 = vperm.xlu0 %4337, %v4268
        %v4339 = vpop.permute.xlu0 %4338
        %4342 = vset.pattern.permute.xlu0 0
        %4343 = vperm.xlu0 %4342, %v4269
        %v4344 = vpop.permute.xlu0 %4343
        %4347 = vset.pattern.permute.xlu0 0
        %4348 = vperm.xlu0 %4347, %v4270
        %v4349 = vpop.permute.xlu0 %4348
        %4352 = vset.pattern.permute.xlu0 0
        %4353 = vperm.xlu0 %4352, %v4271
        %v4354 = vpop.permute.xlu0 %4353
        %4357 = vset.pattern.permute.xlu0 0
        %4358 = vperm.xlu0 %4357, %v4272
        %v4359 = vpop.permute.xlu0 %4358
        %4362 = vset.pattern.permute.xlu0 0
        %4363 = vperm.xlu0 %4362, %v4273
        %v4364 = vpop.permute.xlu0 %4363
        %4367 = vset.pattern.permute.xlu0 0
        %4368 = vperm.xlu0 %4367, %v4274
        %v4369 = vpop.permute.xlu0 %4368
        %4372 = vset.pattern.permute.xlu0 0
        %4373 = vperm.xlu0 %4372, %v4275
        %v4374 = vpop.permute.xlu0 %4373
        %4377 = vset.pattern.permute.xlu0 0
        %4378 = vperm.xlu0 %4377, %v4276
        %v4379 = vpop.permute.xlu0 %4378
        %4382 = vset.pattern.permute.xlu0 0
        %4383 = vperm.xlu0 %4382, %v4277
        %v4384 = vpop.permute.xlu0 %4383
        %4387 = vset.pattern.permute.xlu0 0
        %4388 = vperm.xlu0 %4387, %v4278
        %v4389 = vpop.permute.xlu0 %4388
        %4392 = vset.pattern.permute.xlu0 0
        %4393 = vperm.xlu0 %4392, %v4279
        %v4394 = vpop.permute.xlu0 %4393
        %4397 = vset.pattern.permute.xlu0 0
        %4398 = vperm.xlu0 %4397, %v4280
        %v4399 = vpop.permute.xlu0 %4398
        %4402 = vset.pattern.permute.xlu0 0
        %4403 = vperm.xlu0 %4402, %v4281
        %v4404 = vpop.permute.xlu0 %4403
        %4407 = vset.pattern.permute.xlu0 0
        %4408 = vperm.xlu0 %4407, %v4282
        %v4409 = vpop.permute.xlu0 %4408
        %4412 = vset.pattern.permute.xlu0 0
        %4413 = vperm.xlu0 %4412, %v4283
        %v4414 = vpop.permute.xlu0 %4413
        %4417 = vset.pattern.permute.xlu0 0
        %4418 = vperm.xlu0 %4417, %v4284
        %v4419 = vpop.permute.xlu0 %4418
        %4422 = vset.pattern.permute.xlu0 0
        %4423 = vperm.xlu0 %4422, %v4285
        %v4424 = vpop.permute.xlu0 %4423
        %4427 = vset.pattern.permute.xlu0 0
        %4428 = vperm.xlu0 %4427, %v4286
        %v4429 = vpop.permute.xlu0 %4428
        %4432 = vset.pattern.permute.xlu0 0
        %4433 = vperm.xlu0 %4432, %v4287
        %v4434 = vpop.permute.xlu0 %4433
        %4437 = vset.pattern.permute.xlu0 0
        %4438 = vperm.xlu0 %4437, %v4288
        %v4439 = vpop.permute.xlu0 %4438
        %4442 = vset.pattern.permute.xlu0 0
        %4443 = vperm.xlu0 %4442, %v4289
        %v4444 = vpop.permute.xlu0 %4443
        %4447 = vset.pattern.permute.xlu0 0
        %4448 = vperm.xlu0 %4447, %v4290
        %v4449 = vpop.permute.xlu0 %4448
        %v4451 = vmul.f32 %v3681, %v4294
        %v4452 = vmul.f32 %v3682, %v4299
        %v4453 = vmul.f32 %v3683, %v4304
        %v4454 = vmul.f32 %v3684, %v4309
        %v4455 = vmul.f32 %v3685, %v4314
        %v4456 = vmul.f32 %v3686, %v4319
        %v4457 = vmul.f32 %v3687, %v4324
        %v4458 = vmul.f32 %v3688, %v4329
        %v4459 = vmul.f32 %v3689, %v4334
        %v4460 = vmul.f32 %v3690, %v4339
        %v4461 = vmul.f32 %v3691, %v4344
        %v4462 = vmul.f32 %v3692, %v4349
        %v4463 = vmul.f32 %v3693, %v4354
        %v4464 = vmul.f32 %v3694, %v4359
        %v4465 = vmul.f32 %v3695, %v4364
        %v4466 = vmul.f32 %v3696, %v4369
        %v4467 = vmul.f32 %v3697, %v4374
        %v4468 = vmul.f32 %v3698, %v4379
        %v4469 = vmul.f32 %v3699, %v4384
        %v4470 = vmul.f32 %v3700, %v4389
        %v4471 = vmul.f32 %v3701, %v4394
        %v4472 = vmul.f32 %v3702, %v4399
        %v4473 = vmul.f32 %v3703, %v4404
        %v4474 = vmul.f32 %v3704, %v4409
        %v4475 = vmul.f32 %v3705, %v4414
        %v4476 = vmul.f32 %v3706, %v4419
        %v4477 = vmul.f32 %v3707, %v4424
        %v4478 = vmul.f32 %v3708, %v4429
        %v4479 = vmul.f32 %v3709, %v4434
        %v4480 = vmul.f32 %v3710, %v4439
        %v4481 = vmul.f32 %v3711, %v4444
        %v4482 = vmul.f32 %v3712, %v4449
        %4483 = vadd.xlane.f32.xlu0 %v4451
        %v4484 = vpop.xlane.xlu0 %4483
        %4485 = vadd.xlane.f32.xlu0 %v4452
        %v4486 = vpop.xlane.xlu0 %4485
        %4487 = vadd.xlane.f32.xlu0 %v4453
        %v4488 = vpop.xlane.xlu0 %4487
        %4489 = vadd.xlane.f32.xlu0 %v4454
        %v4490 = vpop.xlane.xlu0 %4489
        %4491 = vadd.xlane.f32.xlu0 %v4455
        %v4492 = vpop.xlane.xlu0 %4491
        %4493 = vadd.xlane.f32.xlu0 %v4456
        %v4494 = vpop.xlane.xlu0 %4493
        %4495 = vadd.xlane.f32.xlu0 %v4457
        %v4496 = vpop.xlane.xlu0 %4495
        %4497 = vadd.xlane.f32.xlu0 %v4458
        %v4498 = vpop.xlane.xlu0 %4497
        %4499 = vadd.xlane.f32.xlu0 %v4459
        %v4500 = vpop.xlane.xlu0 %4499
        %4501 = vadd.xlane.f32.xlu0 %v4460
        %v4502 = vpop.xlane.xlu0 %4501
        %4503 = vadd.xlane.f32.xlu0 %v4461
        %v4504 = vpop.xlane.xlu0 %4503
        %4505 = vadd.xlane.f32.xlu0 %v4462
        %v4506 = vpop.xlane.xlu0 %4505
        %4507 = vadd.xlane.f32.xlu0 %v4463
        %v4508 = vpop.xlane.xlu0 %4507
        %4509 = vadd.xlane.f32.xlu0 %v4464
        %v4510 = vpop.xlane.xlu0 %4509
        %4511 = vadd.xlane.f32.xlu0 %v4465
        %v4512 = vpop.xlane.xlu0 %4511
        %4513 = vadd.xlane.f32.xlu0 %v4466
        %v4514 = vpop.xlane.xlu0 %4513
        %4515 = vadd.xlane.f32.xlu0 %v4467
        %v4516 = vpop.xlane.xlu0 %4515
        %4517 = vadd.xlane.f32.xlu0 %v4468
        %v4518 = vpop.xlane.xlu0 %4517
        %4519 = vadd.xlane.f32.xlu0 %v4469
        %v4520 = vpop.xlane.xlu0 %4519
        %4521 = vadd.xlane.f32.xlu0 %v4470
        %v4522 = vpop.xlane.xlu0 %4521
        %4523 = vadd.xlane.f32.xlu0 %v4471
        %v4524 = vpop.xlane.xlu0 %4523
        %4525 = vadd.xlane.f32.xlu0 %v4472
        %v4526 = vpop.xlane.xlu0 %4525
        %4527 = vadd.xlane.f32.xlu0 %v4473
        %v4528 = vpop.xlane.xlu0 %4527
        %4529 = vadd.xlane.f32.xlu0 %v4474
        %v4530 = vpop.xlane.xlu0 %4529
        %4531 = vadd.xlane.f32.xlu0 %v4475
        %v4532 = vpop.xlane.xlu0 %4531
        %4533 = vadd.xlane.f32.xlu0 %v4476
        %v4534 = vpop.xlane.xlu0 %4533
        %4535 = vadd.xlane.f32.xlu0 %v4477
        %v4536 = vpop.xlane.xlu0 %4535
        %4537 = vadd.xlane.f32.xlu0 %v4478
        %v4538 = vpop.xlane.xlu0 %4537
        %4539 = vadd.xlane.f32.xlu0 %v4479
        %v4540 = vpop.xlane.xlu0 %4539
        %4541 = vadd.xlane.f32.xlu0 %v4480
        %v4542 = vpop.xlane.xlu0 %4541
        %4543 = vadd.xlane.f32.xlu0 %v4481
        %v4544 = vpop.xlane.xlu0 %4543
        %4545 = vadd.xlane.f32.xlu0 %v4482
        %v4546 = vpop.xlane.xlu0 %4545
        %4547 = vmatprep.subr.mxu0 0.0
        %4548 = vmatpush1.msra.mxu0 %v4514
        %4549 = vmatprep.subr.mxu0 0.0
        %4550 = vmatpush1.msra.mxu0 %v4512
        %4551 = vmatprep.subr.mxu0 0.0
        %4552 = vmatpush1.msra.mxu0 %v4510
        %4553 = vmatprep.subr.mxu0 0.0
        %4554 = vmatpush1.msra.mxu0 %v4508
        %4555 = vmatprep.subr.mxu0 0.0
        %4556 = vmatpush1.msra.mxu0 %v4506
        %4557 = vmatprep.subr.mxu0 0.0
        %4558 = vmatpush1.msra.mxu0 %v4504
        %4559 = vmatprep.subr.mxu0 0.0
        %4560 = vmatpush1.msra.mxu0 %v4502
        %4561 = vmatprep.subr.mxu0 0.0
        %4562 = vmatpush1.msra.mxu0 %v4500
        %4563 = vmatprep.subr.mxu0 0.0
        %4564 = vmatpush1.msra.mxu0 %v4498
        %4565 = vmatprep.subr.mxu0 0.0
        %4566 = vmatpush1.msra.mxu0 %v4496
        %4567 = vmatprep.subr.mxu0 0.0
        %4568 = vmatpush1.msra.mxu0 %v4494
        %4569 = vmatprep.subr.mxu0 0.0
        %4570 = vmatpush1.msra.mxu0 %v4492
        %4571 = vmatprep.subr.mxu0 0.0
        %4572 = vmatpush1.msra.mxu0 %v4490
        %4573 = vmatprep.subr.mxu0 0.0
        %4574 = vmatpush1.msra.mxu0 %v4488
        %4575 = vmatprep.subr.mxu0 0.0
        %4576 = vmatpush1.msra.mxu0 %v4486
        %4577 = vmatprep.subr.mxu0 0.0
        %4578 = vmatpush1.msra.mxu0 %v4484
        %4579 = vmatprep.subr.mxu0 0.0
        %4580 = vmatpush2.msra.mxu0 %v4546
        %4581 = vmatprep.subr.mxu0 0.0
        %4582 = vmatpush2.msra.mxu0 %v4544
        %4583 = vmatprep.subr.mxu0 0.0
        %4584 = vmatpush2.msra.mxu0 %v4542
        %4585 = vmatprep.subr.mxu0 0.0
        %4586 = vmatpush2.msra.mxu0 %v4540
        %4587 = vmatprep.subr.mxu0 0.0
        %4588 = vmatpush2.msra.mxu0 %v4538
        %4589 = vmatprep.subr.mxu0 0.0
        %4590 = vmatpush2.msra.mxu0 %v4536
        %4591 = vmatprep.subr.mxu0 0.0
        %4592 = vmatpush2.msra.mxu0 %v4534
        %4593 = vmatprep.subr.mxu0 0.0
        %4594 = vmatpush2.msra.mxu0 %v4532
        %4595 = vmatprep.subr.mxu0 0.0
        %4596 = vmatpush2.msra.mxu0 %v4530
        %4597 = vmatprep.subr.mxu0 0.0
        %4598 = vmatpush2.msra.mxu0 %v4528
        %4599 = vmatprep.subr.mxu0 0.0
        %4600 = vmatpush2.msra.mxu0 %v4526
        %4601 = vmatprep.subr.mxu0 0.0
        %4602 = vmatpush2.msra.mxu0 %v4524
        %4603 = vmatprep.subr.mxu0 0.0
        %4604 = vmatpush2.msra.mxu0 %v4522
        %4605 = vmatprep.subr.mxu0 0.0
        %4606 = vmatpush2.msra.mxu0 %v4520
        %4607 = vmatprep.subr.mxu0 0.0
        %4608 = vmatpush2.msra.mxu0 %v4518
        %4609 = vmatprep.subr.mxu0 0.0
        %4610 = vmatpush2.msra.mxu0 %v4516
        %4611 = vmatprep.mubr.f32.mxu0 %v3452
        %4612 = vmatmul.mubr.f32.gmra.mxu0 %v3451
        %v4613 = vpop.f32.mrf.mxu0
        %v4614 = vadd.f32 0.0, %v4613
        %v4615 = vpop.f32.mrf.mxu0
        %4616 = vmatprep.mubr.f32.mxu0 %v3454
        %4617 = vmatmul.mubr.f32.gmra.mxu0 %v3453
        %v4618 = vpop.f32.mrf.mxu0
        %v4619 = vadd.f32 0.0, %v4618
        %v4620 = vpop.f32.mrf.mxu0
        %4621 = vmatprep.mubr.f32.mxu0 %v3456
        %4622 = vmatmul.mubr.f32.gmra.mxu0 %v3455
        %v4623 = vpop.f32.mrf.mxu0
        %v4624 = vadd.f32 0.0, %v4623
        %v4625 = vpop.f32.mrf.mxu0
        %4626 = vmatprep.mubr.f32.mxu0 %v3458
        %4627 = vmatmul.mubr.f32.gmra.mxu0 %v3457
        %v4628 = vpop.f32.mrf.mxu0
        %v4629 = vadd.f32 0.0, %v4628
        %v4630 = vpop.f32.mrf.mxu0
        %4631 = vdwg.mxu0
        %v4632 = vmul.f32 %v4614, 0.025641026
        %v4633 = vmul.f32 %v4619, 0.025641026
        %v4634 = vmul.f32 %v4624, 0.025641026
        %v4635 = vmul.f32 %v4629, 0.025641026
        %v4636 = vld [vmem:[%s10] sm:$0xff]
        %v4637 = vld [vmem:[%s10 + $0x8] sm:$0xff]
        %v4638 = vld [vmem:[%s11] sm:$0xff]
        %v4639 = vld [vmem:[%s11 + $0x8] sm:$0xff]
        %v4641 = vsel %vm3546, %v4636, 0
        %v4644 = vsel %vm3546, %v4637, 0
        %4646 = vmatprep.subr.mxu0 0.0
        %4647 = vmatpush1.msra.mxu0 0.0
        %4648 = vmatprep.subr.mxu0 0.0
        %4649 = vmatpush1.msra.mxu0 0.0
        %4650 = vmatprep.subr.mxu0 0.0
        %4651 = vmatpush1.msra.mxu0 0.0
        %4652 = vmatprep.subr.mxu0 0.0
        %4653 = vmatpush1.msra.mxu0 0.0
        %4654 = vmatprep.subr.mxu0 0.0
        %4655 = vmatpush1.msra.mxu0 0.0
        %4656 = vmatprep.subr.mxu0 0.0
        %4657 = vmatpush1.msra.mxu0 0.0
        %4658 = vmatprep.subr.mxu0 0.0
        %4659 = vmatpush1.msra.mxu0 0.0
        %4660 = vmatprep.subr.mxu0 0.0
        %4661 = vmatpush1.msra.mxu0 0.0
        %4662 = vmatprep.subr.mxu0 0.0
        %4663 = vmatpush1.msra.mxu0 0.0
        %4664 = vmatprep.subr.mxu0 0.0
        %4665 = vmatpush1.msra.mxu0 0.0
        %4666 = vmatprep.subr.mxu0 0.0
        %4667 = vmatpush1.msra.mxu0 0.0
        %4668 = vmatprep.subr.mxu0 0.0
        %4669 = vmatpush1.msra.mxu0 0.0
        %4670 = vmatprep.subr.mxu0 0.0
        %4671 = vmatpush1.msra.mxu0 %v4635
        %4672 = vmatprep.subr.mxu0 0.0
        %4673 = vmatpush1.msra.mxu0 %v4634
        %4674 = vmatprep.subr.mxu0 0.0
        %4675 = vmatpush1.msra.mxu0 %v4633
        %4676 = vmatprep.subr.mxu0 0.0
        %4677 = vmatpush1.msra.mxu0 %v4632
        %4678 = vmatprep.subr.mxu0 0.0
        %4679 = vmatpush2.msra.mxu0 0.0
        %4680 = vmatprep.subr.mxu0 0.0
        %4681 = vmatpush2.msra.mxu0 0.0
        %4682 = vmatprep.subr.mxu0 0.0
        %4683 = vmatpush2.msra.mxu0 0.0
        %4684 = vmatprep.subr.mxu0 0.0
        %4685 = vmatpush2.msra.mxu0 0.0
        %4686 = vmatprep.subr.mxu0 0.0
        %4687 = vmatpush2.msra.mxu0 0.0
        %4688 = vmatprep.subr.mxu0 0.0
        %4689 = vmatpush2.msra.mxu0 0.0
        %4690 = vmatprep.subr.mxu0 0.0
        %4691 = vmatpush2.msra.mxu0 0.0
        %4692 = vmatprep.subr.mxu0 0.0
        %4693 = vmatpush2.msra.mxu0 0.0
        %4694 = vmatprep.subr.mxu0 0.0
        %4695 = vmatpush2.msra.mxu0 0.0
        %4696 = vmatprep.subr.mxu0 0.0
        %4697 = vmatpush2.msra.mxu0 0.0
        %4698 = vmatprep.subr.mxu0 0.0
        %4699 = vmatpush2.msra.mxu0 0.0
        %4700 = vmatprep.subr.mxu0 0.0
        %4701 = vmatpush2.msra.mxu0 0.0
        %4702 = vmatprep.subr.mxu0 0.0
        %4703 = vmatpush2.msra.mxu0 0.0
        %4704 = vmatprep.subr.mxu0 0.0
        %4705 = vmatpush2.msra.mxu0 0.0
        %4706 = vmatprep.subr.mxu0 0.0
        %4707 = vmatpush2.msra.mxu0 0.0
        %4708 = vmatprep.subr.mxu0 0.0
        %4709 = vmatpush2.msra.mxu0 0.0
        %4710 = vmatprep.mubr.f32.mxu0 0.0
        %4711 = vmatmul.mubr.f32.gmra.mxu0 %v4641
        %v4712 = vpop.f32.mrf.mxu0
        %v4713 = vadd.f32 %v4638, %v4712
        %v4714 = vpop.f32.mrf.mxu0
        %4715 = vmatprep.mubr.f32.mxu0 0.0
        %4716 = vmatmul.mubr.f32.gmra.mxu0 %v4644
        %v4717 = vpop.f32.mrf.mxu0
        %v4718 = vadd.f32 %v4639, %v4717
        %v4719 = vpop.f32.mrf.mxu0
        %4720 = vdwg.mxu0
        %v4721 = vmax.f32 %v4713, 0.0
        %v4722 = vmax.f32 %v4718, 0.0
        %v4723 = vld [vmem:[%s12] sm:$0xff]
        %v4724 = vld [vmem:[%s12 + $0x8] sm:$0xff]
        %v4725 = vld [vmem:[%s12 + $0x10] sm:$0xff]
        %v4726 = vld [vmem:[%s12 + $0x18] sm:$0xff]
        %v4727 = vld [vmem:[%s12 + $0x20] sm:$0xff]
        %v4728 = vld [vmem:[%s12 + $0x28] sm:$0xff]
        %v4729 = vld [vmem:[%s12 + $0x30] sm:$0xff]
        %v4730 = vld [vmem:[%s12 + $0x38] sm:$0xff]
        %v4731 = vld [vmem:[%s12 + $0x40] sm:$0xff]
        %v4732 = vld [vmem:[%s12 + $0x48] sm:$0xff]
        %v4733 = vld [vmem:[%s12 + $0x50] sm:$0xff]
        %v4734 = vld [vmem:[%s12 + $0x58] sm:$0xff]
        %v4735 = vld [vmem:[%s12 + $0x60] sm:$0xff]
        %v4736 = vld [vmem:[%s12 + $0x68] sm:$0xff]
        %v4737 = vld [vmem:[%s12 + $0x70] sm:$0xff]
        %v4738 = vld [vmem:[%s12 + $0x78] sm:$0xff]
        %v4739 = vld [vmem:[%s12 + $0x80] sm:$0xff]
        %v4740 = vld [vmem:[%s12 + $0x88] sm:$0xff]
        %v4741 = vld [vmem:[%s12 + $0x90] sm:$0xff]
        %v4742 = vld [vmem:[%s12 + $0x98] sm:$0xff]
        %v4743 = vld [vmem:[%s12 + $0xa0] sm:$0xff]
        %v4744 = vld [vmem:[%s12 + $0xa8] sm:$0xff]
        %v4745 = vld [vmem:[%s12 + $0xb0] sm:$0xff]
        %v4746 = vld [vmem:[%s12 + $0xb8] sm:$0xff]
        %v4747 = vld [vmem:[%s12 + $0xc0] sm:$0xff]
        %v4748 = vld [vmem:[%s12 + $0xc8] sm:$0xff]
        %v4749 = vld [vmem:[%s12 + $0xd0] sm:$0xff]
        %v4750 = vld [vmem:[%s12 + $0xd8] sm:$0xff]
        %v4751 = vld [vmem:[%s12 + $0xe0] sm:$0xff]
        %v4752 = vld [vmem:[%s12 + $0xe8] sm:$0xff]
        %v4753 = vld [vmem:[%s12 + $0xf0] sm:$0xff]
        %v4754 = vld [vmem:[%s12 + $0xf8] sm:$0xff]
        %v4755 = vld [vmem:[%s13] sm:$0xff]
        %v4756 = vld [vmem:[%s13 + $0x8] sm:$0xff]
        %v4757 = vld [vmem:[%s13 + $0x10] sm:$0xff]
        %v4758 = vld [vmem:[%s13 + $0x18] sm:$0xff]
        %v4759 = vld [vmem:[%s13 + $0x20] sm:$0xff]
        %v4760 = vld [vmem:[%s13 + $0x28] sm:$0xff]
        %v4761 = vld [vmem:[%s13 + $0x30] sm:$0xff]
        %v4762 = vld [vmem:[%s13 + $0x38] sm:$0xff]
        %v4763 = vld [vmem:[%s13 + $0x40] sm:$0xff]
        %v4764 = vld [vmem:[%s13 + $0x48] sm:$0xff]
        %v4765 = vld [vmem:[%s13 + $0x50] sm:$0xff]
        %v4766 = vld [vmem:[%s13 + $0x58] sm:$0xff]
        %v4767 = vld [vmem:[%s13 + $0x60] sm:$0xff]
        %v4768 = vld [vmem:[%s13 + $0x68] sm:$0xff]
        %v4769 = vld [vmem:[%s13 + $0x70] sm:$0xff]
        %v4770 = vld [vmem:[%s13 + $0x78] sm:$0xff]
        %v4771 = vld [vmem:[%s13 + $0x80] sm:$0xff]
        %v4772 = vld [vmem:[%s13 + $0x88] sm:$0xff]
        %v4773 = vld [vmem:[%s13 + $0x90] sm:$0xff]
        %v4774 = vld [vmem:[%s13 + $0x98] sm:$0xff]
        %v4775 = vld [vmem:[%s13 + $0xa0] sm:$0xff]
        %v4776 = vld [vmem:[%s13 + $0xa8] sm:$0xff]
        %v4777 = vld [vmem:[%s13 + $0xb0] sm:$0xff]
        %v4778 = vld [vmem:[%s13 + $0xb8] sm:$0xff]
        %v4779 = vld [vmem:[%s13 + $0xc0] sm:$0xff]
        %v4780 = vld [vmem:[%s13 + $0xc8] sm:$0xff]
        %v4781 = vld [vmem:[%s13 + $0xd0] sm:$0xff]
        %v4782 = vld [vmem:[%s13 + $0xd8] sm:$0xff]
        %v4783 = vld [vmem:[%s13 + $0xe0] sm:$0xff]
        %v4784 = vld [vmem:[%s13 + $0xe8] sm:$0xff]
        %v4785 = vld [vmem:[%s13 + $0xf0] sm:$0xff]
        %v4786 = vld [vmem:[%s13 + $0xf8] sm:$0xff]
        %vm4787 = vcmask 130048
        %v4789 = vsel %vm4787, %v4723, 0
        %v4792 = vsel %vm4787, %v4724, 0
        %v4795 = vsel %vm4787, %v4725, 0
        %v4798 = vsel %vm4787, %v4726, 0
        %v4801 = vsel %vm4787, %v4727, 0
        %v4804 = vsel %vm4787, %v4728, 0
        %v4807 = vsel %vm4787, %v4729, 0
        %v4810 = vsel %vm4787, %v4730, 0
        %v4813 = vsel %vm4787, %v4731, 0
        %v4816 = vsel %vm4787, %v4732, 0
        %v4819 = vsel %vm4787, %v4733, 0
        %v4822 = vsel %vm4787, %v4734, 0
        %v4825 = vsel %vm4787, %v4735, 0
        %v4828 = vsel %vm4787, %v4736, 0
        %v4831 = vsel %vm4787, %v4737, 0
        %v4834 = vsel %vm4787, %v4738, 0
        %v4837 = vsel %vm4787, %v4739, 0
        %v4840 = vsel %vm4787, %v4740, 0
        %v4843 = vsel %vm4787, %v4741, 0
        %v4846 = vsel %vm4787, %v4742, 0
        %v4849 = vsel %vm4787, %v4743, 0
        %v4852 = vsel %vm4787, %v4744, 0
        %v4855 = vsel %vm4787, %v4745, 0
        %v4858 = vsel %vm4787, %v4746, 0
        %v4861 = vsel %vm4787, %v4747, 0
        %v4864 = vsel %vm4787, %v4748, 0
        %v4867 = vsel %vm4787, %v4749, 0
        %v4870 = vsel %vm4787, %v4750, 0
        %v4873 = vsel %vm4787, %v4751, 0
        %v4876 = vsel %vm4787, %v4752, 0
        %v4879 = vsel %vm4787, %v4753, 0
        %v4882 = vsel %vm4787, %v4754, 0
        %4884 = vmatprep.subr.mxu0 0.0
        %4885 = vmatpush1.msra.mxu0 0.0
        %4886 = vmatprep.subr.mxu0 0.0
        %4887 = vmatpush1.msra.mxu0 0.0
        %4888 = vmatprep.subr.mxu0 0.0
        %4889 = vmatpush1.msra.mxu0 0.0
        %4890 = vmatprep.subr.mxu0 0.0
        %4891 = vmatpush1.msra.mxu0 0.0
        %4892 = vmatprep.subr.mxu0 0.0
        %4893 = vmatpush1.msra.mxu0 0.0
        %4894 = vmatprep.subr.mxu0 0.0
        %4895 = vmatpush1.msra.mxu0 0.0
        %4896 = vmatprep.subr.mxu0 0.0
        %4897 = vmatpush1.msra.mxu0 0.0
        %4898 = vmatprep.subr.mxu0 0.0
        %4899 = vmatpush1.msra.mxu0 0.0
        %4900 = vmatprep.subr.mxu0 0.0
        %4901 = vmatpush1.msra.mxu0 0.0
        %4902 = vmatprep.subr.mxu0 0.0
        %4903 = vmatpush1.msra.mxu0 0.0
        %4904 = vmatprep.subr.mxu0 0.0
        %4905 = vmatpush1.msra.mxu0 0.0
        %4906 = vmatprep.subr.mxu0 0.0
        %4907 = vmatpush1.msra.mxu0 0.0
        %4908 = vmatprep.subr.mxu0 0.0
        %4909 = vmatpush1.msra.mxu0 0.0
        %4910 = vmatprep.subr.mxu0 0.0
        %4911 = vmatpush1.msra.mxu0 0.0
        %4912 = vmatprep.subr.mxu0 0.0
        %4913 = vmatpush1.msra.mxu0 %v4722
        %4914 = vmatprep.subr.mxu0 0.0
        %4915 = vmatpush1.msra.mxu0 %v4721
        %4916 = vmatprep.subr.mxu0 0.0
        %4917 = vmatpush2.msra.mxu0 0.0
        %4918 = vmatprep.subr.mxu0 0.0
        %4919 = vmatpush2.msra.mxu0 0.0
        %4920 = vmatprep.subr.mxu0 0.0
        %4921 = vmatpush2.msra.mxu0 0.0
        %4922 = vmatprep.subr.mxu0 0.0
        %4923 = vmatpush2.msra.mxu0 0.0
        %4924 = vmatprep.subr.mxu0 0.0
        %4925 = vmatpush2.msra.mxu0 0.0
        %4926 = vmatprep.subr.mxu0 0.0
        %4927 = vmatpush2.msra.mxu0 0.0
        %4928 = vmatprep.subr.mxu0 0.0
        %4929 = vmatpush2.msra.mxu0 0.0
        %4930 = vmatprep.subr.mxu0 0.0
        %4931 = vmatpush2.msra.mxu0 0.0
        %4932 = vmatprep.subr.mxu0 0.0
        %4933 = vmatpush2.msra.mxu0 0.0
        %4934 = vmatprep.subr.mxu0 0.0
        %4935 = vmatpush2.msra.mxu0 0.0
        %4936 = vmatprep.subr.mxu0 0.0
        %4937 = vmatpush2.msra.mxu0 0.0
        %4938 = vmatprep.subr.mxu0 0.0
        %4939 = vmatpush2.msra.mxu0 0.0
        %4940 = vmatprep.subr.mxu0 0.0
        %4941 = vmatpush2.msra.mxu0 0.0
        %4942 = vmatprep.subr.mxu0 0.0
        %4943 = vmatpush2.msra.mxu0 0.0
        %4944 = vmatprep.subr.mxu0 0.0
        %4945 = vmatpush2.msra.mxu0 0.0
        %4946 = vmatprep.subr.mxu0 0.0
        %4947 = vmatpush2.msra.mxu0 0.0
        %4948 = vmatprep.mubr.f32.mxu0 0.0
        %4949 = vmatmul.mubr.f32.gmra.mxu0 %v4789
        %v4950 = vpop.f32.mrf.mxu0
        %v4951 = vadd.f32 %v4755, %v4950
        %v4952 = vpop.f32.mrf.mxu0
        %4953 = vmatprep.mubr.f32.mxu0 0.0
        %4954 = vmatmul.mubr.f32.gmra.mxu0 %v4792
        %v4955 = vpop.f32.mrf.mxu0
        %v4956 = vadd.f32 %v4756, %v4955
        %v4957 = vpop.f32.mrf.mxu0
        %4958 = vmatprep.mubr.f32.mxu0 0.0
        %4959 = vmatmul.mubr.f32.gmra.mxu0 %v4795
        %v4960 = vpop.f32.mrf.mxu0
        %v4961 = vadd.f32 %v4757, %v4960
        %v4962 = vpop.f32.mrf.mxu0
        %4963 = vmatprep.mubr.f32.mxu0 0.0
        %4964 = vmatmul.mubr.f32.gmra.mxu0 %v4798
        %v4965 = vpop.f32.mrf.mxu0
        %v4966 = vadd.f32 %v4758, %v4965
        %v4967 = vpop.f32.mrf.mxu0
        %4968 = vmatprep.mubr.f32.mxu0 0.0
        %4969 = vmatmul.mubr.f32.gmra.mxu0 %v4801
        %v4970 = vpop.f32.mrf.mxu0
        %v4971 = vadd.f32 %v4759, %v4970
        %v4972 = vpop.f32.mrf.mxu0
        %4973 = vmatprep.mubr.f32.mxu0 0.0
        %4974 = vmatmul.mubr.f32.gmra.mxu0 %v4804
        %v4975 = vpop.f32.mrf.mxu0
        %v4976 = vadd.f32 %v4760, %v4975
        %v4977 = vpop.f32.mrf.mxu0
        %4978 = vmatprep.mubr.f32.mxu0 0.0
        %4979 = vmatmul.mubr.f32.gmra.mxu0 %v4807
        %v4980 = vpop.f32.mrf.mxu0
        %v4981 = vadd.f32 %v4761, %v4980
        %v4982 = vpop.f32.mrf.mxu0
        %4983 = vmatprep.mubr.f32.mxu0 0.0
        %4984 = vmatmul.mubr.f32.gmra.mxu0 %v4810
        %v4985 = vpop.f32.mrf.mxu0
        %v4986 = vadd.f32 %v4762, %v4985
        %v4987 = vpop.f32.mrf.mxu0
        %4988 = vmatprep.mubr.f32.mxu0 0.0
        %4989 = vmatmul.mubr.f32.gmra.mxu0 %v4813
        %v4990 = vpop.f32.mrf.mxu0
        %v4991 = vadd.f32 %v4763, %v4990
        %v4992 = vpop.f32.mrf.mxu0
        %4993 = vmatprep.mubr.f32.mxu0 0.0
        %4994 = vmatmul.mubr.f32.gmra.mxu0 %v4816
        %v4995 = vpop.f32.mrf.mxu0
        %v4996 = vadd.f32 %v4764, %v4995
        %v4997 = vpop.f32.mrf.mxu0
        %4998 = vmatprep.mubr.f32.mxu0 0.0
        %4999 = vmatmul.mubr.f32.gmra.mxu0 %v4819
        %v5000 = vpop.f32.mrf.mxu0
        %v5001 = vadd.f32 %v4765, %v5000
        %v5002 = vpop.f32.mrf.mxu0
        %5003 = vmatprep.mubr.f32.mxu0 0.0
        %5004 = vmatmul.mubr.f32.gmra.mxu0 %v4822
        %v5005 = vpop.f32.mrf.mxu0
        %v5006 = vadd.f32 %v4766, %v5005
        %v5007 = vpop.f32.mrf.mxu0
        %5008 = vmatprep.mubr.f32.mxu0 0.0
        %5009 = vmatmul.mubr.f32.gmra.mxu0 %v4825
        %v5010 = vpop.f32.mrf.mxu0
        %v5011 = vadd.f32 %v4767, %v5010
        %v5012 = vpop.f32.mrf.mxu0
        %5013 = vmatprep.mubr.f32.mxu0 0.0
        %5014 = vmatmul.mubr.f32.gmra.mxu0 %v4828
        %v5015 = vpop.f32.mrf.mxu0
        %v5016 = vadd.f32 %v4768, %v5015
        %v5017 = vpop.f32.mrf.mxu0
        %5018 = vmatprep.mubr.f32.mxu0 0.0
        %5019 = vmatmul.mubr.f32.gmra.mxu0 %v4831
        %v5020 = vpop.f32.mrf.mxu0
        %v5021 = vadd.f32 %v4769, %v5020
        %v5022 = vpop.f32.mrf.mxu0
        %5023 = vmatprep.mubr.f32.mxu0 0.0
        %5024 = vmatmul.mubr.f32.gmra.mxu0 %v4834
        %v5025 = vpop.f32.mrf.mxu0
        %v5026 = vadd.f32 %v4770, %v5025
        %v5027 = vpop.f32.mrf.mxu0
        %5028 = vmatprep.mubr.f32.mxu0 0.0
        %5029 = vmatmul.mubr.f32.gmra.mxu0 %v4837
        %v5030 = vpop.f32.mrf.mxu0
        %v5031 = vadd.f32 %v4771, %v5030
        %v5032 = vpop.f32.mrf.mxu0
        %5033 = vmatprep.mubr.f32.mxu0 0.0
        %5034 = vmatmul.mubr.f32.gmra.mxu0 %v4840
        %v5035 = vpop.f32.mrf.mxu0
        %v5036 = vadd.f32 %v4772, %v5035
        %v5037 = vpop.f32.mrf.mxu0
        %5038 = vmatprep.mubr.f32.mxu0 0.0
        %5039 = vmatmul.mubr.f32.gmra.mxu0 %v4843
        %v5040 = vpop.f32.mrf.mxu0
        %v5041 = vadd.f32 %v4773, %v5040
        %v5042 = vpop.f32.mrf.mxu0
        %5043 = vmatprep.mubr.f32.mxu0 0.0
        %5044 = vmatmul.mubr.f32.gmra.mxu0 %v4846
        %v5045 = vpop.f32.mrf.mxu0
        %v5046 = vadd.f32 %v4774, %v5045
        %v5047 = vpop.f32.mrf.mxu0
        %5048 = vmatprep.mubr.f32.mxu0 0.0
        %5049 = vmatmul.mubr.f32.gmra.mxu0 %v4849
        %v5050 = vpop.f32.mrf.mxu0
        %v5051 = vadd.f32 %v4775, %v5050
        %v5052 = vpop.f32.mrf.mxu0
        %5053 = vmatprep.mubr.f32.mxu0 0.0
        %5054 = vmatmul.mubr.f32.gmra.mxu0 %v4852
        %v5055 = vpop.f32.mrf.mxu0
        %v5056 = vadd.f32 %v4776, %v5055
        %v5057 = vpop.f32.mrf.mxu0
        %5058 = vmatprep.mubr.f32.mxu0 0.0
        %5059 = vmatmul.mubr.f32.gmra.mxu0 %v4855
        %v5060 = vpop.f32.mrf.mxu0
        %v5061 = vadd.f32 %v4777, %v5060
        %v5062 = vpop.f32.mrf.mxu0
        %5063 = vmatprep.mubr.f32.mxu0 0.0
        %5064 = vmatmul.mubr.f32.gmra.mxu0 %v4858
        %v5065 = vpop.f32.mrf.mxu0
        %v5066 = vadd.f32 %v4778, %v5065
        %v5067 = vpop.f32.mrf.mxu0
        %5068 = vmatprep.mubr.f32.mxu0 0.0
        %5069 = vmatmul.mubr.f32.gmra.mxu0 %v4861
        %v5070 = vpop.f32.mrf.mxu0
        %v5071 = vadd.f32 %v4779, %v5070
        %v5072 = vpop.f32.mrf.mxu0
        %5073 = vmatprep.mubr.f32.mxu0 0.0
        %5074 = vmatmul.mubr.f32.gmra.mxu0 %v4864
        %v5075 = vpop.f32.mrf.mxu0
        %v5076 = vadd.f32 %v4780, %v5075
        %v5077 = vpop.f32.mrf.mxu0
        %5078 = vmatprep.mubr.f32.mxu0 0.0
        %5079 = vmatmul.mubr.f32.gmra.mxu0 %v4867
        %v5080 = vpop.f32.mrf.mxu0
        %v5081 = vadd.f32 %v4781, %v5080
        %v5082 = vpop.f32.mrf.mxu0
        %5083 = vmatprep.mubr.f32.mxu0 0.0
        %5084 = vmatmul.mubr.f32.gmra.mxu0 %v4870
        %v5085 = vpop.f32.mrf.mxu0
        %v5086 = vadd.f32 %v4782, %v5085
        %v5087 = vpop.f32.mrf.mxu0
        %5088 = vmatprep.mubr.f32.mxu0 0.0
        %5089 = vmatmul.mubr.f32.gmra.mxu0 %v4873
        %v5090 = vpop.f32.mrf.mxu0
        %v5091 = vadd.f32 %v4783, %v5090
        %v5092 = vpop.f32.mrf.mxu0
        %5093 = vmatprep.mubr.f32.mxu0 0.0
        %5094 = vmatmul.mubr.f32.gmra.mxu0 %v4876
        %v5095 = vpop.f32.mrf.mxu0
        %v5096 = vadd.f32 %v4784, %v5095
        %v5097 = vpop.f32.mrf.mxu0
        %5098 = vmatprep.mubr.f32.mxu0 0.0
        %5099 = vmatmul.mubr.f32.gmra.mxu0 %v4879
        %v5100 = vpop.f32.mrf.mxu0
        %v5101 = vadd.f32 %v4785, %v5100
        %v5102 = vpop.f32.mrf.mxu0
        %5103 = vmatprep.mubr.f32.mxu0 0.0
        %5104 = vmatmul.mubr.f32.gmra.mxu0 %v4882
        %v5105 = vpop.f32.mrf.mxu0
        %v5106 = vadd.f32 %v4786, %v5105
        %v5107 = vpop.f32.mrf.mxu0
        %5108 = vdwg.mxu0
        %v5109 = vxor.u32 %v4951, 2147483648
        %v5110 = vxor.u32 %v4956, 2147483648
        %v5111 = vxor.u32 %v4961, 2147483648
        %v5112 = vxor.u32 %v4966, 2147483648
        %v5113 = vxor.u32 %v4971, 2147483648
        %v5114 = vxor.u32 %v4976, 2147483648
        %v5115 = vxor.u32 %v4981, 2147483648
        %v5116 = vxor.u32 %v4986, 2147483648
        %v5117 = vxor.u32 %v4991, 2147483648
        %v5118 = vxor.u32 %v4996, 2147483648
        %v5119 = vxor.u32 %v5001, 2147483648
        %v5120 = vxor.u32 %v5006, 2147483648
        %v5121 = vxor.u32 %v5011, 2147483648
        %v5122 = vxor.u32 %v5016, 2147483648
        %v5123 = vxor.u32 %v5021, 2147483648
        %v5124 = vxor.u32 %v5026, 2147483648
        %v5125 = vxor.u32 %v5031, 2147483648
        %v5126 = vxor.u32 %v5036, 2147483648
        %v5127 = vxor.u32 %v5041, 2147483648
        %v5128 = vxor.u32 %v5046, 2147483648
        %v5129 = vxor.u32 %v5051, 2147483648
        %v5130 = vxor.u32 %v5056, 2147483648
        %v5131 = vxor.u32 %v5061, 2147483648
        %v5132 = vxor.u32 %v5066, 2147483648
        %v5133 = vxor.u32 %v5071, 2147483648
        %v5134 = vxor.u32 %v5076, 2147483648
        %v5135 = vxor.u32 %v5081, 2147483648
        %v5136 = vxor.u32 %v5086, 2147483648
        %v5137 = vxor.u32 %v5091, 2147483648
        %v5138 = vxor.u32 %v5096, 2147483648
        %v5139 = vxor.u32 %v5101, 2147483648
        %v5140 = vxor.u32 %v5106, 2147483648
        %v5141 = vmul.f32 %v5109, 1.442695
        %v5142 = vpow.pop %v5141
        %v5143 = vmul.f32 %v5110, 1.442695
        %v5144 = vpow.pop %v5143
        %v5145 = vmul.f32 %v5111, 1.442695
        %v5146 = vpow.pop %v5145
        %v5147 = vmul.f32 %v5112, 1.442695
        %v5148 = vpow.pop %v5147
        %v5149 = vmul.f32 %v5113, 1.442695
        %v5150 = vpow.pop %v5149
        %v5151 = vmul.f32 %v5114, 1.442695
        %v5152 = vpow.pop %v5151
        %v5153 = vmul.f32 %v5115, 1.442695
        %v5154 = vpow.pop %v5153
        %v5155 = vmul.f32 %v5116, 1.442695
        %v5156 = vpow.pop %v5155
        %v5157 = vmul.f32 %v5117, 1.442695
        %v5158 = vpow.pop %v5157
        %v5159 = vmul.f32 %v5118, 1.442695
        %v5160 = vpow.pop %v5159
        %v5161 = vmul.f32 %v5119, 1.442695
        %v5162 = vpow.pop %v5161
        %v5163 = vmul.f32 %v5120, 1.442695
        %v5164 = vpow.pop %v5163
        %v5165 = vmul.f32 %v5121, 1.442695
        %v5166 = vpow.pop %v5165
        %v5167 = vmul.f32 %v5122, 1.442695
        %v5168 = vpow.pop %v5167
        %v5169 = vmul.f32 %v5123, 1.442695
        %v5170 = vpow.pop %v5169
        %v5171 = vmul.f32 %v5124, 1.442695
        %v5172 = vpow.pop %v5171
        %v5173 = vmul.f32 %v5125, 1.442695
        %v5174 = vpow.pop %v5173
        %v5175 = vmul.f32 %v5126, 1.442695
        %v5176 = vpow.pop %v5175
        %v5177 = vmul.f32 %v5127, 1.442695
        %v5178 = vpow.pop %v5177
        %v5179 = vmul.f32 %v5128, 1.442695
        %v5180 = vpow.pop %v5179
        %v5181 = vmul.f32 %v5129, 1.442695
        %v5182 = vpow.pop %v5181
        %v5183 = vmul.f32 %v5130, 1.442695
        %v5184 = vpow.pop %v5183
        %v5185 = vmul.f32 %v5131, 1.442695
        %v5186 = vpow.pop %v5185
        %v5187 = vmul.f32 %v5132, 1.442695
        %v5188 = vpow.pop %v5187
        %v5189 = vmul.f32 %v5133, 1.442695
        %v5190 = vpow.pop %v5189
        %v5191 = vmul.f32 %v5134, 1.442695
        %v5192 = vpow.pop %v5191
        %v5193 = vmul.f32 %v5135, 1.442695
        %v5194 = vpow.pop %v5193
        %v5195 = vmul.f32 %v5136, 1.442695
        %v5196 = vpow.pop %v5195
        %v5197 = vmul.f32 %v5137, 1.442695
        %v5198 = vpow.pop %v5197
        %v5199 = vmul.f32 %v5138, 1.442695
        %v5200 = vpow.pop %v5199
        %v5201 = vmul.f32 %v5139, 1.442695
        %v5202 = vpow.pop %v5201
        %v5203 = vmul.f32 %v5140, 1.442695
        %v5204 = vpow.pop %v5203
        %v5205 = vadd.f32 %v5142, 1.0
        %v5206 = vadd.f32 %v5144, 1.0
        %v5207 = vadd.f32 %v5146, 1.0
        %v5208 = vadd.f32 %v5148, 1.0
        %v5209 = vadd.f32 %v5150, 1.0
        %v5210 = vadd.f32 %v5152, 1.0
        %v5211 = vadd.f32 %v5154, 1.0
        %v5212 = vadd.f32 %v5156, 1.0
        %v5213 = vadd.f32 %v5158, 1.0
        %v5214 = vadd.f32 %v5160, 1.0
        %v5215 = vadd.f32 %v5162, 1.0
        %v5216 = vadd.f32 %v5164, 1.0
        %v5217 = vadd.f32 %v5166, 1.0
        %v5218 = vadd.f32 %v5168, 1.0
        %v5219 = vadd.f32 %v5170, 1.0
        %v5220 = vadd.f32 %v5172, 1.0
        %v5221 = vadd.f32 %v5174, 1.0
        %v5222 = vadd.f32 %v5176, 1.0
        %v5223 = vadd.f32 %v5178, 1.0
        %v5224 = vadd.f32 %v5180, 1.0
        %v5225 = vadd.f32 %v5182, 1.0
        %v5226 = vadd.f32 %v5184, 1.0
        %v5227 = vadd.f32 %v5186, 1.0
        %v5228 = vadd.f32 %v5188, 1.0
        %v5229 = vadd.f32 %v5190, 1.0
        %v5230 = vadd.f32 %v5192, 1.0
        %v5231 = vadd.f32 %v5194, 1.0
        %v5232 = vadd.f32 %v5196, 1.0
        %v5233 = vadd.f32 %v5198, 1.0
        %v5234 = vadd.f32 %v5200, 1.0
        %v5235 = vadd.f32 %v5202, 1.0
        %v5236 = vadd.f32 %v5204, 1.0
        %v5237 = vrcp.pop %v5205
        %v5238 = vmul.f32 1.0, %v5237
        %v5239 = vrcp.pop %v5206
        %v5240 = vmul.f32 1.0, %v5239
        %v5241 = vrcp.pop %v5207
        %v5242 = vmul.f32 1.0, %v5241
        %v5243 = vrcp.pop %v5208
        %v5244 = vmul.f32 1.0, %v5243
        %v5245 = vrcp.pop %v5209
        %v5246 = vmul.f32 1.0, %v5245
        %v5247 = vrcp.pop %v5210
        %v5248 = vmul.f32 1.0, %v5247
        %v5249 = vrcp.pop %v5211
        %v5250 = vmul.f32 1.0, %v5249
        %v5251 = vrcp.pop %v5212
        %v5252 = vmul.f32 1.0, %v5251
        %v5253 = vrcp.pop %v5213
        %v5254 = vmul.f32 1.0, %v5253
        %v5255 = vrcp.pop %v5214
        %v5256 = vmul.f32 1.0, %v5255
        %v5257 = vrcp.pop %v5215
        %v5258 = vmul.f32 1.0, %v5257
        %v5259 = vrcp.pop %v5216
        %v5260 = vmul.f32 1.0, %v5259
        %v5261 = vrcp.pop %v5217
        %v5262 = vmul.f32 1.0, %v5261
        %v5263 = vrcp.pop %v5218
        %v5264 = vmul.f32 1.0, %v5263
        %v5265 = vrcp.pop %v5219
        %v5266 = vmul.f32 1.0, %v5265
        %v5267 = vrcp.pop %v5220
        %v5268 = vmul.f32 1.0, %v5267
        %v5269 = vrcp.pop %v5221
        %v5270 = vmul.f32 1.0, %v5269
        %v5271 = vrcp.pop %v5222
        %v5272 = vmul.f32 1.0, %v5271
        %v5273 = vrcp.pop %v5223
        %v5274 = vmul.f32 1.0, %v5273
        %v5275 = vrcp.pop %v5224
        %v5276 = vmul.f32 1.0, %v5275
        %v5277 = vrcp.pop %v5225
        %v5278 = vmul.f32 1.0, %v5277
        %v5279 = vrcp.pop %v5226
        %v5280 = vmul.f32 1.0, %v5279
        %v5281 = vrcp.pop %v5227
        %v5282 = vmul.f32 1.0, %v5281
        %v5283 = vrcp.pop %v5228
        %v5284 = vmul.f32 1.0, %v5283
        %v5285 = vrcp.pop %v5229
        %v5286 = vmul.f32 1.0, %v5285
        %v5287 = vrcp.pop %v5230
        %v5288 = vmul.f32 1.0, %v5287
        %v5289 = vrcp.pop %v5231
        %v5290 = vmul.f32 1.0, %v5289
        %v5291 = vrcp.pop %v5232
        %v5292 = vmul.f32 1.0, %v5291
        %v5293 = vrcp.pop %v5233
        %v5294 = vmul.f32 1.0, %v5293
        %v5295 = vrcp.pop %v5234
        %v5296 = vmul.f32 1.0, %v5295
        %v5297 = vrcp.pop %v5235
        %v5298 = vmul.f32 1.0, %v5297
        %v5299 = vrcp.pop %v5236
        %v5300 = vmul.f32 1.0, %v5299
        %v5301 = vadd.f32 %v5238, 1.0
        %v5302 = vadd.f32 %v5240, 1.0
        %v5303 = vadd.f32 %v5242, 1.0
        %v5304 = vadd.f32 %v5244, 1.0
        %v5305 = vadd.f32 %v5246, 1.0
        %v5306 = vadd.f32 %v5248, 1.0
        %v5307 = vadd.f32 %v5250, 1.0
        %v5308 = vadd.f32 %v5252, 1.0
        %v5309 = vadd.f32 %v5254, 1.0
        %v5310 = vadd.f32 %v5256, 1.0
        %v5311 = vadd.f32 %v5258, 1.0
        %v5312 = vadd.f32 %v5260, 1.0
        %v5313 = vadd.f32 %v5262, 1.0
        %v5314 = vadd.f32 %v5264, 1.0
        %v5315 = vadd.f32 %v5266, 1.0
        %v5316 = vadd.f32 %v5268, 1.0
        %v5317 = vadd.f32 %v5270, 1.0
        %v5318 = vadd.f32 %v5272, 1.0
        %v5319 = vadd.f32 %v5274, 1.0
        %v5320 = vadd.f32 %v5276, 1.0
        %v5321 = vadd.f32 %v5278, 1.0
        %v5322 = vadd.f32 %v5280, 1.0
        %v5323 = vadd.f32 %v5282, 1.0
        %v5324 = vadd.f32 %v5284, 1.0
        %v5325 = vadd.f32 %v5286, 1.0
        %v5326 = vadd.f32 %v5288, 1.0
        %v5327 = vadd.f32 %v5290, 1.0
        %v5328 = vadd.f32 %v5292, 1.0
        %v5329 = vadd.f32 %v5294, 1.0
        %v5330 = vadd.f32 %v5296, 1.0
        %v5331 = vadd.f32 %v5298, 1.0
        %v5332 = vadd.f32 %v5300, 1.0
        %5334 = vset.pattern.permute.xlu0 0
        %5335 = vperm.xlu0 %5334, %v5301
        %v5336 = vpop.permute.xlu0 %5335
        %5339 = vset.pattern.permute.xlu0 0
        %5340 = vperm.xlu0 %5339, %v5302
        %v5341 = vpop.permute.xlu0 %5340
        %5344 = vset.pattern.permute.xlu0 0
        %5345 = vperm.xlu0 %5344, %v5303
        %v5346 = vpop.permute.xlu0 %5345
        %5349 = vset.pattern.permute.xlu0 0
        %5350 = vperm.xlu0 %5349, %v5304
        %v5351 = vpop.permute.xlu0 %5350
        %5354 = vset.pattern.permute.xlu0 0
        %5355 = vperm.xlu0 %5354, %v5305
        %v5356 = vpop.permute.xlu0 %5355
        %5359 = vset.pattern.permute.xlu0 0
        %5360 = vperm.xlu0 %5359, %v5306
        %v5361 = vpop.permute.xlu0 %5360
        %5364 = vset.pattern.permute.xlu0 0
        %5365 = vperm.xlu0 %5364, %v5307
        %v5366 = vpop.permute.xlu0 %5365
        %5369 = vset.pattern.permute.xlu0 0
        %5370 = vperm.xlu0 %5369, %v5308
        %v5371 = vpop.permute.xlu0 %5370
        %5374 = vset.pattern.permute.xlu0 0
        %5375 = vperm.xlu0 %5374, %v5309
        %v5376 = vpop.permute.xlu0 %5375
        %5379 = vset.pattern.permute.xlu0 0
        %5380 = vperm.xlu0 %5379, %v5310
        %v5381 = vpop.permute.xlu0 %5380
        %5384 = vset.pattern.permute.xlu0 0
        %5385 = vperm.xlu0 %5384, %v5311
        %v5386 = vpop.permute.xlu0 %5385
        %5389 = vset.pattern.permute.xlu0 0
        %5390 = vperm.xlu0 %5389, %v5312
        %v5391 = vpop.permute.xlu0 %5390
        %5394 = vset.pattern.permute.xlu0 0
        %5395 = vperm.xlu0 %5394, %v5313
        %v5396 = vpop.permute.xlu0 %5395
        %5399 = vset.pattern.permute.xlu0 0
        %5400 = vperm.xlu0 %5399, %v5314
        %v5401 = vpop.permute.xlu0 %5400
        %5404 = vset.pattern.permute.xlu0 0
        %5405 = vperm.xlu0 %5404, %v5315
        %v5406 = vpop.permute.xlu0 %5405
        %5409 = vset.pattern.permute.xlu0 0
        %5410 = vperm.xlu0 %5409, %v5316
        %v5411 = vpop.permute.xlu0 %5410
        %5414 = vset.pattern.permute.xlu0 0
        %5415 = vperm.xlu0 %5414, %v5317
        %v5416 = vpop.permute.xlu0 %5415
        %5419 = vset.pattern.permute.xlu0 0
        %5420 = vperm.xlu0 %5419, %v5318
        %v5421 = vpop.permute.xlu0 %5420
        %5424 = vset.pattern.permute.xlu0 0
        %5425 = vperm.xlu0 %5424, %v5319
        %v5426 = vpop.permute.xlu0 %5425
        %5429 = vset.pattern.permute.xlu0 0
        %5430 = vperm.xlu0 %5429, %v5320
        %v5431 = vpop.permute.xlu0 %5430
        %5434 = vset.pattern.permute.xlu0 0
        %5435 = vperm.xlu0 %5434, %v5321
        %v5436 = vpop.permute.xlu0 %5435
        %5439 = vset.pattern.permute.xlu0 0
        %5440 = vperm.xlu0 %5439, %v5322
        %v5441 = vpop.permute.xlu0 %5440
        %5444 = vset.pattern.permute.xlu0 0
        %5445 = vperm.xlu0 %5444, %v5323
        %v5446 = vpop.permute.xlu0 %5445
        %5449 = vset.pattern.permute.xlu0 0
        %5450 = vperm.xlu0 %5449, %v5324
        %v5451 = vpop.permute.xlu0 %5450
        %5454 = vset.pattern.permute.xlu0 0
        %5455 = vperm.xlu0 %5454, %v5325
        %v5456 = vpop.permute.xlu0 %5455
        %5459 = vset.pattern.permute.xlu0 0
        %5460 = vperm.xlu0 %5459, %v5326
        %v5461 = vpop.permute.xlu0 %5460
        %5464 = vset.pattern.permute.xlu0 0
        %5465 = vperm.xlu0 %5464, %v5327
        %v5466 = vpop.permute.xlu0 %5465
        %5469 = vset.pattern.permute.xlu0 0
        %5470 = vperm.xlu0 %5469, %v5328
        %v5471 = vpop.permute.xlu0 %5470
        %5474 = vset.pattern.permute.xlu0 0
        %5475 = vperm.xlu0 %5474, %v5329
        %v5476 = vpop.permute.xlu0 %5475
        %5479 = vset.pattern.permute.xlu0 0
        %5480 = vperm.xlu0 %5479, %v5330
        %v5481 = vpop.permute.xlu0 %5480
        %5484 = vset.pattern.permute.xlu0 0
        %5485 = vperm.xlu0 %5484, %v5331
        %v5486 = vpop.permute.xlu0 %5485
        %5489 = vset.pattern.permute.xlu0 0
        %5490 = vperm.xlu0 %5489, %v5332
        %v5491 = vpop.permute.xlu0 %5490
        %v5493 = vmul.f32 %v4451, %v5336
        %v5494 = vmul.f32 %v4452, %v5341
        %v5495 = vmul.f32 %v4453, %v5346
        %v5496 = vmul.f32 %v4454, %v5351
        %v5497 = vmul.f32 %v4455, %v5356
        %v5498 = vmul.f32 %v4456, %v5361
        %v5499 = vmul.f32 %v4457, %v5366
        %v5500 = vmul.f32 %v4458, %v5371
        %v5501 = vmul.f32 %v4459, %v5376
        %v5502 = vmul.f32 %v4460, %v5381
        %v5503 = vmul.f32 %v4461, %v5386
        %v5504 = vmul.f32 %v4462, %v5391
        %v5505 = vmul.f32 %v4463, %v5396
        %v5506 = vmul.f32 %v4464, %v5401
        %v5507 = vmul.f32 %v4465, %v5406
        %v5508 = vmul.f32 %v4466, %v5411
        %v5509 = vmul.f32 %v4467, %v5416
        %v5510 = vmul.f32 %v4468, %v5421
        %v5511 = vmul.f32 %v4469, %v5426
        %v5512 = vmul.f32 %v4470, %v5431
        %v5513 = vmul.f32 %v4471, %v5436
        %v5514 = vmul.f32 %v4472, %v5441
        %v5515 = vmul.f32 %v4473, %v5446
        %v5516 = vmul.f32 %v4474, %v5451
        %v5517 = vmul.f32 %v4475, %v5456
        %v5518 = vmul.f32 %v4476, %v5461
        %v5519 = vmul.f32 %v4477, %v5466
        %v5520 = vmul.f32 %v4478, %v5471
        %v5521 = vmul.f32 %v4479, %v5476
        %v5522 = vmul.f32 %v4480, %v5481
        %v5523 = vmul.f32 %v4481, %v5486
        %v5524 = vmul.f32 %v4482, %v5491
        %v5525 = vpack.c.bf16 %v5494, %v5493
        %v5526 = vpack.c.bf16 %v5496, %v5495
        %v5527 = vpack.c.bf16 %v5498, %v5497
        %v5528 = vpack.c.bf16 %v5500, %v5499
        %v5529 = vpack.c.bf16 %v5502, %v5501
        %v5530 = vpack.c.bf16 %v5504, %v5503
        %v5531 = vpack.c.bf16 %v5506, %v5505
        %v5532 = vpack.c.bf16 %v5508, %v5507
        %v5533 = vpack.c.bf16 %v5510, %v5509
        %v5534 = vpack.c.bf16 %v5512, %v5511
        %v5535 = vpack.c.bf16 %v5514, %v5513
        %v5536 = vpack.c.bf16 %v5516, %v5515
        %v5537 = vpack.c.bf16 %v5518, %v5517
        %v5538 = vpack.c.bf16 %v5520, %v5519
        %v5539 = vpack.c.bf16 %v5522, %v5521
        %v5540 = vpack.c.bf16 %v5524, %v5523
        %v5541 = vld [vmem:[%s14] sm:$0xff]
        %v5542 = vld [vmem:[%s14 + $0x8] sm:$0xf]
        %v5543 = vld [vmem:[%s14 + $0xc] sm:$0xff]
        %v5544 = vld [vmem:[%s14 + $0x14] sm:$0xf]
        %v5545 = vld [vmem:[%s14 + $0x18] sm:$0xff]
        %v5546 = vld [vmem:[%s14 + $0x20] sm:$0xf]
        %v5547 = vld [vmem:[%s14 + $0x24] sm:$0xff]
        %v5548 = vld [vmem:[%s14 + $0x2c] sm:$0xf]
        %v5549 = vld [vmem:[%s14 + $0x30] sm:$0xff]
        %v5550 = vld [vmem:[%s14 + $0x38] sm:$0xf]
        %v5551 = vld [vmem:[%s14 + $0x3c] sm:$0xff]
        %v5552 = vld [vmem:[%s14 + $0x44] sm:$0xf]
        %v5553 = vld [vmem:[%s14 + $0x48] sm:$0xff]
        %v5554 = vld [vmem:[%s14 + $0x50] sm:$0xf]
        %v5555 = vld [vmem:[%s14 + $0x54] sm:$0xff]
        %v5556 = vld [vmem:[%s14 + $0x5c] sm:$0xf]
        %v5557 = vld [vmem:[%s14 + $0x60] sm:$0xff]
        %v5558 = vld [vmem:[%s14 + $0x68] sm:$0xf]
        %v5559 = vld [vmem:[%s14 + $0x6c] sm:$0xff]
        %v5560 = vld [vmem:[%s14 + $0x74] sm:$0xf]
        %v5561 = vld [vmem:[%s14 + $0x78] sm:$0xff]
        %v5562 = vld [vmem:[%s14 + $0x80] sm:$0xf]
        %v5563 = vld [vmem:[%s14 + $0x84] sm:$0xff]
        %v5564 = vld [vmem:[%s14 + $0x8c] sm:$0xf]
        %v5565 = vld [vmem:[%s14 + $0x90] sm:$0xff]
        %v5566 = vld [vmem:[%s14 + $0x98] sm:$0xf]
        %v5567 = vld [vmem:[%s14 + $0x9c] sm:$0xff]
        %v5568 = vld [vmem:[%s14 + $0xa4] sm:$0xf]
        %v5569 = vld [vmem:[%s14 + $0xa8] sm:$0xff]
        %v5570 = vld [vmem:[%s14 + $0xb0] sm:$0xf]
        %v5571 = vld [vmem:[%s14 + $0xb4] sm:$0xff]
        %v5572 = vld [vmem:[%s14 + $0xbc] sm:$0xf]
        %v5573 = vld [vmem:[%s14 + $0xc0] sm:$0xff]
        %v5574 = vld [vmem:[%s14 + $0xc8] sm:$0xf]
        %v5575 = vld [vmem:[%s14 + $0xcc] sm:$0xff]
        %v5576 = vld [vmem:[%s14 + $0xd4] sm:$0xf]
        %v5577 = vld [vmem:[%s14 + $0xd8] sm:$0xff]
        %v5578 = vld [vmem:[%s14 + $0xe0] sm:$0xf]
        %v5579 = vld [vmem:[%s14 + $0xe4] sm:$0xff]
        %v5580 = vld [vmem:[%s14 + $0xec] sm:$0xf]
        %v5581 = vld [vmem:[%s14 + $0xf0] sm:$0xff]
        %v5582 = vld [vmem:[%s14 + $0xf8] sm:$0xf]
        %v5583 = vld [vmem:[%s14 + $0xfc] sm:$0xff]
        %v5584 = vld [vmem:[%s14 + $0x104] sm:$0xf]
        %v5585 = vld [vmem:[%s14 + $0x108] sm:$0xff]
        %v5586 = vld [vmem:[%s14 + $0x110] sm:$0xf]
        %v5587 = vld [vmem:[%s14 + $0x114] sm:$0xff]
        %v5588 = vld [vmem:[%s14 + $0x11c] sm:$0xf]
        %v5589 = vld [vmem:[%s14 + $0x120] sm:$0xff]
        %v5590 = vld [vmem:[%s14 + $0x128] sm:$0xf]
        %v5591 = vld [vmem:[%s14 + $0x12c] sm:$0xff]
        %v5592 = vld [vmem:[%s14 + $0x134] sm:$0xf]
        %v5593 = vld [vmem:[%s14 + $0x138] sm:$0xff]
        %v5594 = vld [vmem:[%s14 + $0x140] sm:$0xf]
        %v5595 = vld [vmem:[%s14 + $0x144] sm:$0xff]
        %v5596 = vld [vmem:[%s14 + $0x14c] sm:$0xf]
        %v5597 = vld [vmem:[%s14 + $0x150] sm:$0xff]
        %v5598 = vld [vmem:[%s14 + $0x158] sm:$0xf]
        %v5599 = vld [vmem:[%s14 + $0x15c] sm:$0xff]
        %v5600 = vld [vmem:[%s14 + $0x164] sm:$0xf]
        %v5601 = vld [vmem:[%s14 + $0x168] sm:$0xff]
        %v5602 = vld [vmem:[%s14 + $0x170] sm:$0xf]
        %v5603 = vld [vmem:[%s14 + $0x174] sm:$0xff]
        %v5604 = vld [vmem:[%s14 + $0x17c] sm:$0xf]
        %v5605 = vld [vmem:[%s15] sm:$0xff]
        %v5606 = vld [vmem:[%s15 + $0x8] sm:$0xff]
        %v5607 = vld [vmem:[%s15 + $0x10] sm:$0xff]
        %v5608 = vld [vmem:[%s15 + $0x18] sm:$0xff]
        %v5609 = vld [vmem:[%s15 + $0x20] sm:$0xff]
        %v5610 = vld [vmem:[%s15 + $0x28] sm:$0xff]
        %v5611 = vld [vmem:[%s15 + $0x30] sm:$0xff]
        %v5612 = vld [vmem:[%s15 + $0x38] sm:$0xff]
        %v5613 = vld [vmem:[%s15 + $0x40] sm:$0xff]
        %v5614 = vld [vmem:[%s15 + $0x48] sm:$0xff]
        %v5615 = vld [vmem:[%s15 + $0x50] sm:$0xff]
        %v5616 = vld [vmem:[%s15 + $0x58] sm:$0xff]
        %v5617 = vld [vmem:[%s15 + $0x60] sm:$0xff]
        %v5618 = vld [vmem:[%s15 + $0x68] sm:$0xff]
        %v5619 = vld [vmem:[%s15 + $0x70] sm:$0xff]
        %v5620 = vld [vmem:[%s15 + $0x78] sm:$0xff]
        %v5621 = vld [vmem:[%s15 + $0x80] sm:$0xff]
        %v5622 = vld [vmem:[%s15 + $0x88] sm:$0xff]
        %v5623 = vld [vmem:[%s15 + $0x90] sm:$0xff]
        %v5624 = vld [vmem:[%s15 + $0x98] sm:$0xff]
        %v5625 = vld [vmem:[%s15 + $0xa0] sm:$0xff]
        %v5626 = vld [vmem:[%s15 + $0xa8] sm:$0xff]
        %v5627 = vld [vmem:[%s15 + $0xb0] sm:$0xff]
        %v5628 = vld [vmem:[%s15 + $0xb8] sm:$0xff]
        %v5629 = vld [vmem:[%s15 + $0xc0] sm:$0xff]
        %v5630 = vld [vmem:[%s15 + $0xc8] sm:$0xff]
        %v5631 = vld [vmem:[%s15 + $0xd0] sm:$0xff]
        %v5632 = vld [vmem:[%s15 + $0xd8] sm:$0xff]
        %v5633 = vld [vmem:[%s15 + $0xe0] sm:$0xff]
        %v5634 = vld [vmem:[%s15 + $0xe8] sm:$0xff]
        %v5635 = vld [vmem:[%s15 + $0xf0] sm:$0xff]
        %v5636 = vld [vmem:[%s15 + $0xf8] sm:$0xff]
        %5638 = vset.pattern.permute.xlu0 0
        %5639 = vperm.xlu0 %5638, %v5605
        %v5640 = vpop.permute.xlu0 %5639
        %5643 = vset.pattern.permute.xlu0 0
        %5644 = vperm.xlu0 %5643, %v5606
        %v5645 = vpop.permute.xlu0 %5644
        %5648 = vset.pattern.permute.xlu0 0
        %5649 = vperm.xlu0 %5648, %v5607
        %v5650 = vpop.permute.xlu0 %5649
        %5653 = vset.pattern.permute.xlu0 0
        %5654 = vperm.xlu0 %5653, %v5608
        %v5655 = vpop.permute.xlu0 %5654
        %5658 = vset.pattern.permute.xlu0 0
        %5659 = vperm.xlu0 %5658, %v5609
        %v5660 = vpop.permute.xlu0 %5659
        %5663 = vset.pattern.permute.xlu0 0
        %5664 = vperm.xlu0 %5663, %v5610
        %v5665 = vpop.permute.xlu0 %5664
        %5668 = vset.pattern.permute.xlu0 0
        %5669 = vperm.xlu0 %5668, %v5611
        %v5670 = vpop.permute.xlu0 %5669
        %5673 = vset.pattern.permute.xlu0 0
        %5674 = vperm.xlu0 %5673, %v5612
        %v5675 = vpop.permute.xlu0 %5674
        %5678 = vset.pattern.permute.xlu0 0
        %5679 = vperm.xlu0 %5678, %v5613
        %v5680 = vpop.permute.xlu0 %5679
        %5683 = vset.pattern.permute.xlu0 0
        %5684 = vperm.xlu0 %5683, %v5614
        %v5685 = vpop.permute.xlu0 %5684
        %5688 = vset.pattern.permute.xlu0 0
        %5689 = vperm.xlu0 %5688, %v5615
        %v5690 = vpop.permute.xlu0 %5689
        %5693 = vset.pattern.permute.xlu0 0
        %5694 = vperm.xlu0 %5693, %v5616
        %v5695 = vpop.permute.xlu0 %5694
        %5698 = vset.pattern.permute.xlu0 0
        %5699 = vperm.xlu0 %5698, %v5617
        %v5700 = vpop.permute.xlu0 %5699
        %5703 = vset.pattern.permute.xlu0 0
        %5704 = vperm.xlu0 %5703, %v5618
        %v5705 = vpop.permute.xlu0 %5704
        %5708 = vset.pattern.permute.xlu0 0
        %5709 = vperm.xlu0 %5708, %v5619
        %v5710 = vpop.permute.xlu0 %5709
        %5713 = vset.pattern.permute.xlu0 0
        %5714 = vperm.xlu0 %5713, %v5620
        %v5715 = vpop.permute.xlu0 %5714
        %5718 = vset.pattern.permute.xlu0 0
        %5719 = vperm.xlu0 %5718, %v5621
        %v5720 = vpop.permute.xlu0 %5719
        %5723 = vset.pattern.permute.xlu0 0
        %5724 = vperm.xlu0 %5723, %v5622
        %v5725 = vpop.permute.xlu0 %5724
        %5728 = vset.pattern.permute.xlu0 0
        %5729 = vperm.xlu0 %5728, %v5623
        %v5730 = vpop.permute.xlu0 %5729
        %5733 = vset.pattern.permute.xlu0 0
        %5734 = vperm.xlu0 %5733, %v5624
        %v5735 = vpop.permute.xlu0 %5734
        %5738 = vset.pattern.permute.xlu0 0
        %5739 = vperm.xlu0 %5738, %v5625
        %v5740 = vpop.permute.xlu0 %5739
        %5743 = vset.pattern.permute.xlu0 0
        %5744 = vperm.xlu0 %5743, %v5626
        %v5745 = vpop.permute.xlu0 %5744
        %5748 = vset.pattern.permute.xlu0 0
        %5749 = vperm.xlu0 %5748, %v5627
        %v5750 = vpop.permute.xlu0 %5749
        %5753 = vset.pattern.permute.xlu0 0
        %5754 = vperm.xlu0 %5753, %v5628
        %v5755 = vpop.permute.xlu0 %5754
        %5758 = vset.pattern.permute.xlu0 0
        %5759 = vperm.xlu0 %5758, %v5629
        %v5760 = vpop.permute.xlu0 %5759
        %5763 = vset.pattern.permute.xlu0 0
        %5764 = vperm.xlu0 %5763, %v5630
        %v5765 = vpop.permute.xlu0 %5764
        %5768 = vset.pattern.permute.xlu0 0
        %5769 = vperm.xlu0 %5768, %v5631
        %v5770 = vpop.permute.xlu0 %5769
        %5773 = vset.pattern.permute.xlu0 0
        %5774 = vperm.xlu0 %5773, %v5632
        %v5775 = vpop.permute.xlu0 %5774
        %5778 = vset.pattern.permute.xlu0 0
        %5779 = vperm.xlu0 %5778, %v5633
        %v5780 = vpop.permute.xlu0 %5779
        %5783 = vset.pattern.permute.xlu0 0
        %5784 = vperm.xlu0 %5783, %v5634
        %v5785 = vpop.permute.xlu0 %5784
        %5788 = vset.pattern.permute.xlu0 0
        %5789 = vperm.xlu0 %5788, %v5635
        %v5790 = vpop.permute.xlu0 %5789
        %5793 = vset.pattern.permute.xlu0 0
        %5794 = vperm.xlu0 %5793, %v5636
        %v5795 = vpop.permute.xlu0 %5794
        %v5861 = vunpack.c.l.b16 %v5541
        %v5862 = vunpack.c.h.b16 %v5541
        %v5863 = vunpack.c.l.b16 %v5542
        %v5864 = vunpack.c.l.b16 %v5543
        %v5865 = vunpack.c.h.b16 %v5543
        %v5866 = vunpack.c.l.b16 %v5544
        %v5867 = vunpack.c.l.b16 %v5545
        %v5868 = vunpack.c.h.b16 %v5545
        %v5869 = vunpack.c.l.b16 %v5546
        %v5870 = vunpack.c.l.b16 %v5547
        %v5871 = vunpack.c.h.b16 %v5547
        %v5872 = vunpack.c.l.b16 %v5548
        %v5873 = vunpack.c.l.b16 %v5549
        %v5874 = vunpack.c.h.b16 %v5549
        %v5875 = vunpack.c.l.b16 %v5550
        %v5876 = vunpack.c.l.b16 %v5551
        %v5877 = vunpack.c.h.b16 %v5551
        %v5878 = vunpack.c.l.b16 %v5552
        %v5879 = vunpack.c.l.b16 %v5553
        %v5880 = vunpack.c.h.b16 %v5553
        %v5881 = vunpack.c.l.b16 %v5554
        %v5882 = vunpack.c.l.b16 %v5555
        %v5883 = vunpack.c.h.b16 %v5555
        %v5884 = vunpack.c.l.b16 %v5556
        %v5885 = vunpack.c.l.b16 %v5557
        %v5886 = vunpack.c.h.b16 %v5557
        %v5887 = vunpack.c.l.b16 %v5558
        %v5888 = vunpack.c.l.b16 %v5559
        %v5889 = vunpack.c.h.b16 %v5559
        %v5890 = vunpack.c.l.b16 %v5560
        %v5891 = vunpack.c.l.b16 %v5561
        %v5892 = vunpack.c.h.b16 %v5561
        %v5893 = vunpack.c.l.b16 %v5562
        %v5894 = vunpack.c.l.b16 %v5563
        %v5895 = vunpack.c.h.b16 %v5563
        %v5896 = vunpack.c.l.b16 %v5564
        %v5897 = vunpack.c.l.b16 %v5565
        %v5898 = vunpack.c.h.b16 %v5565
        %v5899 = vunpack.c.l.b16 %v5566
        %v5900 = vunpack.c.l.b16 %v5567
        %v5901 = vunpack.c.h.b16 %v5567
        %v5902 = vunpack.c.l.b16 %v5568
        %v5903 = vunpack.c.l.b16 %v5569
        %v5904 = vunpack.c.h.b16 %v5569
        %v5905 = vunpack.c.l.b16 %v5570
        %v5906 = vunpack.c.l.b16 %v5571
        %v5907 = vunpack.c.h.b16 %v5571
        %v5908 = vunpack.c.l.b16 %v5572
        %v5909 = vunpack.c.l.b16 %v5573
        %v5910 = vunpack.c.h.b16 %v5573
        %v5911 = vunpack.c.l.b16 %v5574
        %v5912 = vunpack.c.l.b16 %v5575
        %v5913 = vunpack.c.h.b16 %v5575
        %v5914 = vunpack.c.l.b16 %v5576
        %v5915 = vunpack.c.l.b16 %v5577
        %v5916 = vunpack.c.h.b16 %v5577
        %v5917 = vunpack.c.l.b16 %v5578
        %v5918 = vunpack.c.l.b16 %v5579
        %v5919 = vunpack.c.h.b16 %v5579
        %v5920 = vunpack.c.l.b16 %v5580
        %v5921 = vunpack.c.l.b16 %v5581
        %v5922 = vunpack.c.h.b16 %v5581
        %v5923 = vunpack.c.l.b16 %v5582
        %v5924 = vunpack.c.l.b16 %v5583
        %v5925 = vunpack.c.h.b16 %v5583
        %v5926 = vunpack.c.l.b16 %v5584
        %v5927 = vunpack.c.l.b16 %v5585
        %v5928 = vunpack.c.h.b16 %v5585
        %v5929 = vunpack.c.l.b16 %v5586
        %v5930 = vunpack.c.l.b16 %v5587
        %v5931 = vunpack.c.h.b16 %v5587
        %v5932 = vunpack.c.l.b16 %v5588
        %v5933 = vunpack.c.l.b16 %v5589
        %v5934 = vunpack.c.h.b16 %v5589
        %v5935 = vunpack.c.l.b16 %v5590
        %v5936 = vunpack.c.l.b16 %v5591
        %v5937 = vunpack.c.h.b16 %v5591
        %v5938 = vunpack.c.l.b16 %v5592
        %v5939 = vunpack.c.l.b16 %v5593
        %v5940 = vunpack.c.h.b16 %v5593
        %v5941 = vunpack.c.l.b16 %v5594
        %v5942 = vunpack.c.l.b16 %v5595
        %v5943 = vunpack.c.h.b16 %v5595
        %v5944 = vunpack.c.l.b16 %v5596
        %v5945 = vunpack.c.l.b16 %v5597
        %v5946 = vunpack.c.h.b16 %v5597
        %v5947 = vunpack.c.l.b16 %v5598
        %v5948 = vunpack.c.l.b16 %v5599
        %v5949 = vunpack.c.h.b16 %v5599
        %v5950 = vunpack.c.l.b16 %v5600
        %v5951 = vunpack.c.l.b16 %v5601
        %v5952 = vunpack.c.h.b16 %v5601
        %v5953 = vunpack.c.l.b16 %v5602
        %v5954 = vunpack.c.l.b16 %v5603
        %v5955 = vunpack.c.h.b16 %v5603
        %v5956 = vunpack.c.l.b16 %v5604
        %v5957 = vpack.c.b16 %v5864, %v5861
        %v5958 = vpack.c.b16 %v5865, %v5862
        %v5959 = vpack.c.b16 %v5866, %v5863
        %v5960 = vpack.c.b16 %v5870, %v5867
        %v5961 = vpack.c.b16 %v5871, %v5868
        %v5962 = vpack.c.b16 %v5872, %v5869
        %v5963 = vpack.c.b16 %v5876, %v5873
        %v5964 = vpack.c.b16 %v5877, %v5874
        %v5965 = vpack.c.b16 %v5878, %v5875
        %v5966 = vpack.c.b16 %v5882, %v5879
        %v5967 = vpack.c.b16 %v5883, %v5880
        %v5968 = vpack.c.b16 %v5884, %v5881
        %v5969 = vpack.c.b16 %v5888, %v5885
        %v5970 = vpack.c.b16 %v5889, %v5886
        %v5971 = vpack.c.b16 %v5890, %v5887
        %v5972 = vpack.c.b16 %v5894, %v5891
        %v5973 = vpack.c.b16 %v5895, %v5892
        %v5974 = vpack.c.b16 %v5896, %v5893
        %v5975 = vpack.c.b16 %v5900, %v5897
        %v5976 = vpack.c.b16 %v5901, %v5898
        %v5977 = vpack.c.b16 %v5902, %v5899
        %v5978 = vpack.c.b16 %v5906, %v5903
        %v5979 = vpack.c.b16 %v5907, %v5904
        %v5980 = vpack.c.b16 %v5908, %v5905
        %v5981 = vpack.c.b16 %v5912, %v5909
        %v5982 = vpack.c.b16 %v5913, %v5910
        %v5983 = vpack.c.b16 %v5914, %v5911
        %v5984 = vpack.c.b16 %v5918, %v5915
        %v5985 = vpack.c.b16 %v5919, %v5916
        %v5986 = vpack.c.b16 %v5920, %v5917
        %v5987 = vpack.c.b16 %v5924, %v5921
        %v5988 = vpack.c.b16 %v5925, %v5922
        %v5989 = vpack.c.b16 %v5926, %v5923
        %v5990 = vpack.c.b16 %v5930, %v5927
        %v5991 = vpack.c.b16 %v5931, %v5928
        %v5992 = vpack.c.b16 %v5932, %v5929
        %v5993 = vpack.c.b16 %v5936, %v5933
        %v5994 = vpack.c.b16 %v5937, %v5934
        %v5995 = vpack.c.b16 %v5938, %v5935
        %v5996 = vpack.c.b16 %v5942, %v5939
        %v5997 = vpack.c.b16 %v5943, %v5940
        %v5998 = vpack.c.b16 %v5944, %v5941
        %v5999 = vpack.c.b16 %v5948, %v5945
        %v6000 = vpack.c.b16 %v5949, %v5946
        %v6001 = vpack.c.b16 %v5950, %v5947
        %v6002 = vpack.c.b16 %v5954, %v5951
        %v6003 = vpack.c.b16 %v5955, %v5952
        %v6004 = vpack.c.b16 %v5956, %v5953
        %6053 = vmatprep.subr.bf16.mxu0 0
        %6054 = vmatpush1.bf16.msra.mxu0 %v5532
        %6055 = vmatprep.subr.bf16.mxu0 0
        %6056 = vmatpush1.bf16.msra.mxu0 %v5531
        %6057 = vmatprep.subr.bf16.mxu0 0
        %6058 = vmatpush1.bf16.msra.mxu0 %v5530
        %6059 = vmatprep.subr.bf16.mxu0 0
        %6060 = vmatpush1.bf16.msra.mxu0 %v5529
        %6061 = vmatprep.subr.bf16.mxu0 0
        %6062 = vmatpush1.bf16.msra.mxu0 %v5528
        %6063 = vmatprep.subr.bf16.mxu0 0
        %6064 = vmatpush1.bf16.msra.mxu0 %v5527
        %6065 = vmatprep.subr.bf16.mxu0 0
        %6066 = vmatpush1.bf16.msra.mxu0 %v5526
        %6067 = vmatprep.subr.bf16.mxu0 0
        %6068 = vmatpush1.bf16.msra.mxu0 %v5525
        %6069 = vmatprep.subr.bf16.mxu0 0
        %6070 = vmatpush2.bf16.msra.mxu0 %v5540
        %6071 = vmatprep.subr.bf16.mxu0 0
        %6072 = vmatpush2.bf16.msra.mxu0 %v5539
        %6073 = vmatprep.subr.bf16.mxu0 0
        %6074 = vmatpush2.bf16.msra.mxu0 %v5538
        %6075 = vmatprep.subr.bf16.mxu0 0
        %6076 = vmatpush2.bf16.msra.mxu0 %v5537
        %6077 = vmatprep.subr.bf16.mxu0 0
        %6078 = vmatpush2.bf16.msra.mxu0 %v5536
        %6079 = vmatprep.subr.bf16.mxu0 0
        %6080 = vmatpush2.bf16.msra.mxu0 %v5535
        %6081 = vmatprep.subr.bf16.mxu0 0
        %6082 = vmatpush2.bf16.msra.mxu0 %v5534
        %6083 = vmatprep.subr.bf16.mxu0 0
        %6084 = vmatpush2.bf16.msra.mxu0 %v5533
        %6085 = vmatprep.mubr.bf16.mxu0 %v5958
        %6086 = vmatmul.mubr.bf16.gmra.mxu0 %v5957
        %v6087 = vpop.f32.mrf.mxu0
        %v6088 = vadd.f32 %v5640, %v6087
        %v6089 = vpop.f32.mrf.mxu0
        %v6090 = vpop.f32.mrf.mxu0
        %v6091 = vadd.f32 %v5645, %v6090
        %v6092 = vpop.f32.mrf.mxu0
        %6093 = vmatprep.mubr.bf16.mxu0 %v5961
        %6094 = vmatmul.mubr.bf16.gmra.mxu0 %v5960
        %v6095 = vpop.f32.mrf.mxu0
        %v6096 = vadd.f32 %v5650, %v6095
        %v6097 = vpop.f32.mrf.mxu0
        %v6098 = vpop.f32.mrf.mxu0
        %v6099 = vadd.f32 %v5655, %v6098
        %v6100 = vpop.f32.mrf.mxu0
        %6101 = vmatprep.mubr.bf16.mxu0 %v5964
        %6102 = vmatmul.mubr.bf16.gmra.mxu0 %v5963
        %v6103 = vpop.f32.mrf.mxu0
        %v6104 = vadd.f32 %v5660, %v6103
        %v6105 = vpop.f32.mrf.mxu0
        %v6106 = vpop.f32.mrf.mxu0
        %v6107 = vadd.f32 %v5665, %v6106
        %v6108 = vpop.f32.mrf.mxu0
        %6109 = vmatprep.mubr.bf16.mxu0 %v5967
        %6110 = vmatmul.mubr.bf16.gmra.mxu0 %v5966
        %v6111 = vpop.f32.mrf.mxu0
        %v6112 = vadd.f32 %v5670, %v6111
        %v6113 = vpop.f32.mrf.mxu0
        %v6114 = vpop.f32.mrf.mxu0
        %v6115 = vadd.f32 %v5675, %v6114
        %v6116 = vpop.f32.mrf.mxu0
        %6117 = vmatprep.mubr.bf16.mxu0 %v5970
        %6118 = vmatmul.mubr.bf16.gmra.mxu0 %v5969
        %v6119 = vpop.f32.mrf.mxu0
        %v6120 = vadd.f32 %v5680, %v6119
        %v6121 = vpop.f32.mrf.mxu0
        %v6122 = vpop.f32.mrf.mxu0
        %v6123 = vadd.f32 %v5685, %v6122
        %v6124 = vpop.f32.mrf.mxu0
        %6125 = vmatprep.mubr.bf16.mxu0 %v5973
        %6126 = vmatmul.mubr.bf16.gmra.mxu0 %v5972
        %v6127 = vpop.f32.mrf.mxu0
        %v6128 = vadd.f32 %v5690, %v6127
        %v6129 = vpop.f32.mrf.mxu0
        %v6130 = vpop.f32.mrf.mxu0
        %v6131 = vadd.f32 %v5695, %v6130
        %v6132 = vpop.f32.mrf.mxu0
        %6133 = vmatprep.mubr.bf16.mxu0 %v5976
        %6134 = vmatmul.mubr.bf16.gmra.mxu0 %v5975
        %v6135 = vpop.f32.mrf.mxu0
        %v6136 = vadd.f32 %v5700, %v6135
        %v6137 = vpop.f32.mrf.mxu0
        %v6138 = vpop.f32.mrf.mxu0
        %v6139 = vadd.f32 %v5705, %v6138
        %v6140 = vpop.f32.mrf.mxu0
        %6141 = vmatprep.mubr.bf16.mxu0 %v5979
        %6142 = vmatmul.mubr.bf16.gmra.mxu0 %v5978
        %v6143 = vpop.f32.mrf.mxu0
        %v6144 = vadd.f32 %v5710, %v6143
        %v6145 = vpop.f32.mrf.mxu0
        %v6146 = vpop.f32.mrf.mxu0
        %v6147 = vadd.f32 %v5715, %v6146
        %v6148 = vpop.f32.mrf.mxu0
        %6149 = vmatprep.mubr.bf16.mxu0 %v5982
        %6150 = vmatmul.mubr.bf16.gmra.mxu0 %v5981
        %v6151 = vpop.f32.mrf.mxu0
        %v6152 = vadd.f32 %v5720, %v6151
        %v6153 = vpop.f32.mrf.mxu0
        %v6154 = vpop.f32.mrf.mxu0
        %v6155 = vadd.f32 %v5725, %v6154
        %v6156 = vpop.f32.mrf.mxu0
        %6157 = vmatprep.mubr.bf16.mxu0 %v5985
        %6158 = vmatmul.mubr.bf16.gmra.mxu0 %v5984
        %v6159 = vpop.f32.mrf.mxu0
        %v6160 = vadd.f32 %v5730, %v6159
        %v6161 = vpop.f32.mrf.mxu0
        %v6162 = vpop.f32.mrf.mxu0
        %v6163 = vadd.f32 %v5735, %v6162
        %v6164 = vpop.f32.mrf.mxu0
        %6165 = vmatprep.mubr.bf16.mxu0 %v5988
        %6166 = vmatmul.mubr.bf16.gmra.mxu0 %v5987
        %v6167 = vpop.f32.mrf.mxu0
        %v6168 = vadd.f32 %v5740, %v6167
        %v6169 = vpop.f32.mrf.mxu0
        %v6170 = vpop.f32.mrf.mxu0
        %v6171 = vadd.f32 %v5745, %v6170
        %v6172 = vpop.f32.mrf.mxu0
        %6173 = vmatprep.mubr.bf16.mxu0 %v5991
        %6174 = vmatmul.mubr.bf16.gmra.mxu0 %v5990
        %v6175 = vpop.f32.mrf.mxu0
        %v6176 = vadd.f32 %v5750, %v6175
        %v6177 = vpop.f32.mrf.mxu0
        %v6178 = vpop.f32.mrf.mxu0
        %v6179 = vadd.f32 %v5755, %v6178
        %v6180 = vpop.f32.mrf.mxu0
        %6181 = vmatprep.mubr.bf16.mxu0 %v5994
        %6182 = vmatmul.mubr.bf16.gmra.mxu0 %v5993
        %v6183 = vpop.f32.mrf.mxu0
        %v6184 = vadd.f32 %v5760, %v6183
        %v6185 = vpop.f32.mrf.mxu0
        %v6186 = vpop.f32.mrf.mxu0
        %v6187 = vadd.f32 %v5765, %v6186
        %v6188 = vpop.f32.mrf.mxu0
        %6189 = vmatprep.mubr.bf16.mxu0 %v5997
        %6190 = vmatmul.mubr.bf16.gmra.mxu0 %v5996
        %v6191 = vpop.f32.mrf.mxu0
        %v6192 = vadd.f32 %v5770, %v6191
        %v6193 = vpop.f32.mrf.mxu0
        %v6194 = vpop.f32.mrf.mxu0
        %v6195 = vadd.f32 %v5775, %v6194
        %v6196 = vpop.f32.mrf.mxu0
        %6197 = vmatprep.mubr.bf16.mxu0 %v6000
        %6198 = vmatmul.mubr.bf16.gmra.mxu0 %v5999
        %v6199 = vpop.f32.mrf.mxu0
        %v6200 = vadd.f32 %v5780, %v6199
        %v6201 = vpop.f32.mrf.mxu0
        %v6202 = vpop.f32.mrf.mxu0
        %v6203 = vadd.f32 %v5785, %v6202
        %v6204 = vpop.f32.mrf.mxu0
        %6205 = vmatprep.mubr.bf16.mxu0 %v6003
        %6206 = vmatmul.mubr.bf16.gmra.mxu0 %v6002
        %v6207 = vpop.f32.mrf.mxu0
        %v6208 = vadd.f32 %v5790, %v6207
        %v6209 = vpop.f32.mrf.mxu0
        %v6210 = vpop.f32.mrf.mxu0
        %v6211 = vadd.f32 %v5795, %v6210
        %v6212 = vpop.f32.mrf.mxu0
        %6213 = vdwg.mxu0
        %6214 = vmatprep.subr.bf16.mxu0 0
        %6215 = vmatpush1.bf16.msra.mxu0 %v1075
        %6216 = vmatprep.subr.bf16.mxu0 0
        %6217 = vmatpush1.bf16.msra.mxu0 %v1074
        %6218 = vmatprep.subr.bf16.mxu0 0
        %6219 = vmatpush1.bf16.msra.mxu0 %v1073
        %6220 = vmatprep.subr.bf16.mxu0 0
        %6221 = vmatpush1.bf16.msra.mxu0 %v1072
        %6222 = vmatprep.subr.bf16.mxu0 0
        %6223 = vmatpush1.bf16.msra.mxu0 %v1071
        %6224 = vmatprep.subr.bf16.mxu0 0
        %6225 = vmatpush1.bf16.msra.mxu0 %v1070
        %6226 = vmatprep.subr.bf16.mxu0 0
        %6227 = vmatpush1.bf16.msra.mxu0 %v1069
        %6228 = vmatprep.subr.bf16.mxu0 0
        %6229 = vmatpush1.bf16.msra.mxu0 %v1068
        %6230 = vmatprep.subr.bf16.mxu0 0
        %6231 = vmatpush2.bf16.msra.mxu0 0
        %6232 = vmatprep.subr.bf16.mxu0 0
        %6233 = vmatpush2.bf16.msra.mxu0 0
        %6234 = vmatprep.subr.bf16.mxu0 0
        %6235 = vmatpush2.bf16.msra.mxu0 0
        %6236 = vmatprep.subr.bf16.mxu0 0
        %6237 = vmatpush2.bf16.msra.mxu0 0
        %6238 = vmatprep.subr.bf16.mxu0 0
        %6239 = vmatpush2.bf16.msra.mxu0 0
        %6240 = vmatprep.subr.bf16.mxu0 0
        %6241 = vmatpush2.bf16.msra.mxu0 0
        %6242 = vmatprep.subr.bf16.mxu0 0
        %6243 = vmatpush2.bf16.msra.mxu0 0
        %6244 = vmatprep.subr.bf16.mxu0 0
        %6245 = vmatpush2.bf16.msra.mxu0 0
        %6246 = vmatprep.mubr.bf16.mxu0 0
        %6247 = vmatmul.mubr.bf16.gmra.mxu0 %v5959
        %v6248 = vpop.f32.mrf.mxu0
        %v6249 = vadd.f32 %v6088, %v6248
        %v6250 = vpop.f32.mrf.mxu0
        %v6251 = vpop.f32.mrf.mxu0
        %v6252 = vadd.f32 %v6091, %v6251
        %v6253 = vpop.f32.mrf.mxu0
        %6254 = vmatprep.mubr.bf16.mxu0 0
        %6255 = vmatmul.mubr.bf16.gmra.mxu0 %v5962
        %v6256 = vpop.f32.mrf.mxu0
        %v6257 = vadd.f32 %v6096, %v6256
        %v6258 = vpop.f32.mrf.mxu0
        %v6259 = vpop.f32.mrf.mxu0
        %v6260 = vadd.f32 %v6099, %v6259
        %v6261 = vpop.f32.mrf.mxu0
        %6262 = vmatprep.mubr.bf16.mxu0 0
        %6263 = vmatmul.mubr.bf16.gmra.mxu0 %v5965
        %v6264 = vpop.f32.mrf.mxu0
        %v6265 = vadd.f32 %v6104, %v6264
        %v6266 = vpop.f32.mrf.mxu0
        %v6267 = vpop.f32.mrf.mxu0
        %v6268 = vadd.f32 %v6107, %v6267
        %v6269 = vpop.f32.mrf.mxu0
        %6270 = vmatprep.mubr.bf16.mxu0 0
        %6271 = vmatmul.mubr.bf16.gmra.mxu0 %v5968
        %v6272 = vpop.f32.mrf.mxu0
        %v6273 = vadd.f32 %v6112, %v6272
        %v6274 = vpop.f32.mrf.mxu0
        %v6275 = vpop.f32.mrf.mxu0
        %v6276 = vadd.f32 %v6115, %v6275
        %v6277 = vpop.f32.mrf.mxu0
        %6278 = vmatprep.mubr.bf16.mxu0 0
        %6279 = vmatmul.mubr.bf16.gmra.mxu0 %v5971
        %v6280 = vpop.f32.mrf.mxu0
        %v6281 = vadd.f32 %v6120, %v6280
        %v6282 = vpop.f32.mrf.mxu0
        %v6283 = vpop.f32.mrf.mxu0
        %v6284 = vadd.f32 %v6123, %v6283
        %v6285 = vpop.f32.mrf.mxu0
        %6286 = vmatprep.mubr.bf16.mxu0 0
        %6287 = vmatmul.mubr.bf16.gmra.mxu0 %v5974
        %v6288 = vpop.f32.mrf.mxu0
        %v6289 = vadd.f32 %v6128, %v6288
        %v6290 = vpop.f32.mrf.mxu0
        %v6291 = vpop.f32.mrf.mxu0
        %v6292 = vadd.f32 %v6131, %v6291
        %v6293 = vpop.f32.mrf.mxu0
        %6294 = vmatprep.mubr.bf16.mxu0 0
        %6295 = vmatmul.mubr.bf16.gmra.mxu0 %v5977
        %v6296 = vpop.f32.mrf.mxu0
        %v6297 = vadd.f32 %v6136, %v6296
        %v6298 = vpop.f32.mrf.mxu0
        %v6299 = vpop.f32.mrf.mxu0
        %v6300 = vadd.f32 %v6139, %v6299
        %v6301 = vpop.f32.mrf.mxu0
        %6302 = vmatprep.mubr.bf16.mxu0 0
        %6303 = vmatmul.mubr.bf16.gmra.mxu0 %v5980
        %v6304 = vpop.f32.mrf.mxu0
        %v6305 = vadd.f32 %v6144, %v6304
        %v6306 = vpop.f32.mrf.mxu0
        %v6307 = vpop.f32.mrf.mxu0
        %v6308 = vadd.f32 %v6147, %v6307
        %v6309 = vpop.f32.mrf.mxu0
        %6310 = vmatprep.mubr.bf16.mxu0 0
        %6311 = vmatmul.mubr.bf16.gmra.mxu0 %v5983
        %v6312 = vpop.f32.mrf.mxu0
        %v6313 = vadd.f32 %v6152, %v6312
        %v6314 = vpop.f32.mrf.mxu0
        %v6315 = vpop.f32.mrf.mxu0
        %v6316 = vadd.f32 %v6155, %v6315
        %v6317 = vpop.f32.mrf.mxu0
        %6318 = vmatprep.mubr.bf16.mxu0 0
        %6319 = vmatmul.mubr.bf16.gmra.mxu0 %v5986
        %v6320 = vpop.f32.mrf.mxu0
        %v6321 = vadd.f32 %v6160, %v6320
        %v6322 = vpop.f32.mrf.mxu0
        %v6323 = vpop.f32.mrf.mxu0
        %v6324 = vadd.f32 %v6163, %v6323
        %v6325 = vpop.f32.mrf.mxu0
        %6326 = vmatprep.mubr.bf16.mxu0 0
        %6327 = vmatmul.mubr.bf16.gmra.mxu0 %v5989
        %v6328 = vpop.f32.mrf.mxu0
        %v6329 = vadd.f32 %v6168, %v6328
        %v6330 = vpop.f32.mrf.mxu0
        %v6331 = vpop.f32.mrf.mxu0
        %v6332 = vadd.f32 %v6171, %v6331
        %v6333 = vpop.f32.mrf.mxu0
        %6334 = vmatprep.mubr.bf16.mxu0 0
        %6335 = vmatmul.mubr.bf16.gmra.mxu0 %v5992
        %v6336 = vpop.f32.mrf.mxu0
        %v6337 = vadd.f32 %v6176, %v6336
        %v6338 = vpop.f32.mrf.mxu0
        %v6339 = vpop.f32.mrf.mxu0
        %v6340 = vadd.f32 %v6179, %v6339
        %v6341 = vpop.f32.mrf.mxu0
        %6342 = vmatprep.mubr.bf16.mxu0 0
        %6343 = vmatmul.mubr.bf16.gmra.mxu0 %v5995
        %v6344 = vpop.f32.mrf.mxu0
        %v6345 = vadd.f32 %v6184, %v6344
        %v6346 = vpop.f32.mrf.mxu0
        %v6347 = vpop.f32.mrf.mxu0
        %v6348 = vadd.f32 %v6187, %v6347
        %v6349 = vpop.f32.mrf.mxu0
        %6350 = vmatprep.mubr.bf16.mxu0 0
        %6351 = vmatmul.mubr.bf16.gmra.mxu0 %v5998
        %v6352 = vpop.f32.mrf.mxu0
        %v6353 = vadd.f32 %v6192, %v6352
        %v6354 = vpop.f32.mrf.mxu0
        %v6355 = vpop.f32.mrf.mxu0
        %v6356 = vadd.f32 %v6195, %v6355
        %v6357 = vpop.f32.mrf.mxu0
        %6358 = vmatprep.mubr.bf16.mxu0 0
        %6359 = vmatmul.mubr.bf16.gmra.mxu0 %v6001
        %v6360 = vpop.f32.mrf.mxu0
        %v6361 = vadd.f32 %v6200, %v6360
        %v6362 = vpop.f32.mrf.mxu0
        %v6363 = vpop.f32.mrf.mxu0
        %v6364 = vadd.f32 %v6203, %v6363
        %v6365 = vpop.f32.mrf.mxu0
        %6366 = vmatprep.mubr.bf16.mxu0 0
        %6367 = vmatmul.mubr.bf16.gmra.mxu0 %v6004
        %v6368 = vpop.f32.mrf.mxu0
        %v6369 = vadd.f32 %v6208, %v6368
        %v6370 = vpop.f32.mrf.mxu0
        %v6371 = vpop.f32.mrf.mxu0
        %v6372 = vadd.f32 %v6211, %v6371
        %v6373 = vpop.f32.mrf.mxu0
        %6374 = vdwg.mxu0
        %v6375 = vmax.f32 %v6249, 0.0
        %v6376 = vmax.f32 %v6252, 0.0
        %v6377 = vmax.f32 %v6257, 0.0
        %v6378 = vmax.f32 %v6260, 0.0
        %v6379 = vmax.f32 %v6265, 0.0
        %v6380 = vmax.f32 %v6268, 0.0
        %v6381 = vmax.f32 %v6273, 0.0
        %v6382 = vmax.f32 %v6276, 0.0
        %v6383 = vmax.f32 %v6281, 0.0
        %v6384 = vmax.f32 %v6284, 0.0
        %v6385 = vmax.f32 %v6289, 0.0
        %v6386 = vmax.f32 %v6292, 0.0
        %v6387 = vmax.f32 %v6297, 0.0
        %v6388 = vmax.f32 %v6300, 0.0
        %v6389 = vmax.f32 %v6305, 0.0
        %v6390 = vmax.f32 %v6308, 0.0
        %v6391 = vmax.f32 %v6313, 0.0
        %v6392 = vmax.f32 %v6316, 0.0
        %v6393 = vmax.f32 %v6321, 0.0
        %v6394 = vmax.f32 %v6324, 0.0
        %v6395 = vmax.f32 %v6329, 0.0
        %v6396 = vmax.f32 %v6332, 0.0
        %v6397 = vmax.f32 %v6337, 0.0
        %v6398 = vmax.f32 %v6340, 0.0
        %v6399 = vmax.f32 %v6345, 0.0
        %v6400 = vmax.f32 %v6348, 0.0
        %v6401 = vmax.f32 %v6353, 0.0
        %v6402 = vmax.f32 %v6356, 0.0
        %v6403 = vmax.f32 %v6361, 0.0
        %v6404 = vmax.f32 %v6364, 0.0
        %v6405 = vmax.f32 %v6369, 0.0
        %v6406 = vmax.f32 %v6372, 0.0
        %v6407 = vmul.f32 %v6375, %v3418
        %v6408 = vmul.f32 %v6376, %v3418
        %v6409 = vmul.f32 %v6377, %v3418
        %v6410 = vmul.f32 %v6378, %v3418
        %v6411 = vmul.f32 %v6379, %v3418
        %v6412 = vmul.f32 %v6380, %v3418
        %v6413 = vmul.f32 %v6381, %v3418
        %v6414 = vmul.f32 %v6382, %v3418
        %v6415 = vmul.f32 %v6383, %v3418
        %v6416 = vmul.f32 %v6384, %v3418
        %v6417 = vmul.f32 %v6385, %v3418
        %v6418 = vmul.f32 %v6386, %v3418
        %v6419 = vmul.f32 %v6387, %v3418
        %v6420 = vmul.f32 %v6388, %v3418
        %v6421 = vmul.f32 %v6389, %v3418
        %v6422 = vmul.f32 %v6390, %v3418
        %v6423 = vmul.f32 %v6391, %v3418
        %v6424 = vmul.f32 %v6392, %v3418
        %v6425 = vmul.f32 %v6393, %v3418
        %v6426 = vmul.f32 %v6394, %v3418
        %v6427 = vmul.f32 %v6395, %v3418
        %v6428 = vmul.f32 %v6396, %v3418
        %v6429 = vmul.f32 %v6397, %v3418
        %v6430 = vmul.f32 %v6398, %v3418
        %v6431 = vmul.f32 %v6399, %v3418
        %v6432 = vmul.f32 %v6400, %v3418
        %v6433 = vmul.f32 %v6401, %v3418
        %v6434 = vmul.f32 %v6402, %v3418
        %v6435 = vmul.f32 %v6403, %v3418
        %v6436 = vmul.f32 %v6404, %v3418
        %v6437 = vmul.f32 %v6405, %v3418
        %v6438 = vmul.f32 %v6406, %v3418
        %6439 = vst [vmem:[%s535] sm:$0xff] %v6407
        %6440 = vst [vmem:[%s535 + $0x8] sm:$0xff] %v6408
        %6441 = vst [vmem:[%s535 + $0x10] sm:$0xff] %v6409
        %6442 = vst [vmem:[%s535 + $0x18] sm:$0xff] %v6410
        %6443 = vst [vmem:[%s535 + $0x20] sm:$0xff] %v6411
        %6444 = vst [vmem:[%s535 + $0x28] sm:$0xff] %v6412
        %6445 = vst [vmem:[%s535 + $0x30] sm:$0xff] %v6413
        %6446 = vst [vmem:[%s535 + $0x38] sm:$0xff] %v6414
        %6447 = vst [vmem:[%s535 + $0x40] sm:$0xff] %v6415
        %6448 = vst [vmem:[%s535 + $0x48] sm:$0xff] %v6416
        %6449 = vst [vmem:[%s535 + $0x50] sm:$0xff] %v6417
        %6450 = vst [vmem:[%s535 + $0x58] sm:$0xff] %v6418
        %6451 = vst [vmem:[%s535 + $0x60] sm:$0xff] %v6419
        %6452 = vst [vmem:[%s535 + $0x68] sm:$0xff] %v6420
        %6453 = vst [vmem:[%s535 + $0x70] sm:$0xff] %v6421
        %6454 = vst [vmem:[%s535 + $0x78] sm:$0xff] %v6422
        %6455 = vst [vmem:[%s535 + $0x80] sm:$0xff] %v6423
        %6456 = vst [vmem:[%s535 + $0x88] sm:$0xff] %v6424
        %6457 = vst [vmem:[%s535 + $0x90] sm:$0xff] %v6425
        %6458 = vst [vmem:[%s535 + $0x98] sm:$0xff] %v6426
        %6459 = vst [vmem:[%s535 + $0xa0] sm:$0xff] %v6427
        %6460 = vst [vmem:[%s535 + $0xa8] sm:$0xff] %v6428
        %6461 = vst [vmem:[%s535 + $0xb0] sm:$0xff] %v6429
        %6462 = vst [vmem:[%s535 + $0xb8] sm:$0xff] %v6430
        %6463 = vst [vmem:[%s535 + $0xc0] sm:$0xff] %v6431
        %6464 = vst [vmem:[%s535 + $0xc8] sm:$0xff] %v6432
        %6465 = vst [vmem:[%s535 + $0xd0] sm:$0xff] %v6433
        %6466 = vst [vmem:[%s535 + $0xd8] sm:$0xff] %v6434
        %6467 = vst [vmem:[%s535 + $0xe0] sm:$0xff] %v6435
        %6468 = vst [vmem:[%s535 + $0xe8] sm:$0xff] %v6436
        %6469 = vst [vmem:[%s535 + $0xf0] sm:$0xff] %v6437
        %6470 = vst [vmem:[%s535 + $0xf8] sm:$0xff] %v6438
        %p6471 = scmp.lt.s32.totalorder %s28, 1
        %s6472 = scalar_select %p6471, %s28, 1
        %s6473 = smul.addr %s6472, 32
        %s6474 = smul.addr %s6473, 8
        %s6475 = scalar_lea.vmem %s16, %s6474
        // Predicated region
        $region89: #{_lambda_.3} parent=83 // pred_check
          %p6476 = pneg %p387
        $region90: #{_lambda_.3} parent=83 // pred_check_branch
          %6478 = sbr.rel (%p6476) target = $region92
        $region91: #{_lambda_.3} parent=83 // pred_region
          _
        $region92: #{_lambda_.3} parent=83 // pred_fallthru
          _
      $region84: #{_lambda_.3} parent=5 // pred_fallthru
        _
      %p6479 = scmp.le.s32.totalorder 2, %s23
      // Predicated region
      $region93: #{_lambda_.3} parent=5 // pred_check
        %p6480 = pneg %p6479
      $region94: #{_lambda_.3} parent=5 // pred_check_branch
        %6482 = sbr.rel (%p6480) target = $region96
      $region95: #{_lambda_.3} parent=5 // pred_region
        %s6483 = ssub.s32 %s23, 2
        // Predicated region
        $region97: #{_lambda_.3} parent=95 // pred_check
          %p6484 = pneg %p393
        $region98: #{_lambda_.3} parent=95 // pred_check_branch
          %6486 = sbr.rel (%p6484) target = $region100
        $region99: #{_lambda_.3} parent=95 // pred_region
          %p6487 = scmp.lt.s32.totalorder %s29, 1
          %s6488 = scalar_select %p6487, %s29, 1
          %s6489 = smul.addr %s6488, 32
          %s6490 = smul.addr %s6489, 8
          %s6491 = scalar_lea.vmem %s16, %s6490
        $region100: #{_lambda_.3} parent=95 // pred_fallthru
          _
      $region96: #{_lambda_.3} parent=5 // pred_fallthru
        _
    $region6: #{_lambda_.3} parent=1 // loop_footer
      %s27 = sadd.s32 1, %s23
    $region7: #{_lambda_.3} parent=1 // loop_footer_branch
      %22 = sbr.rel target = $region3
    $region8: #{_lambda_.3} parent=1 // loop_exit
      _
    %6492 = vsyncpa [#allocation3], 1
    %s6493 = scalar_lea.sflag [#allocation3], 1
    %6494 = vsyncpa %s6493, 1

</llo_original>
